<compile_context>
chip_gen: v5e
topology: v5e:2x2
jax: 0.10.0
libtpu: 0.0.40
codegen_flags: <defaults>
</compile_context>

<pallas_src>
import math

import jax
import jax.numpy as jnp
from jax.experimental import pallas as pl
from jax.experimental.pallas import tpu as pltpu

# ----- hyperparameters (args / data), small shapes -----
B      = 2                # batch
P      = 16               # args.window
M      = 8                # data.m (number of series)
HID_R  = 32               # args.hidRNN
HID_C  = 16               # args.hidCNN
HID_S  = 8                # args.hidSkip
CK     = 4                # args.CNN_kernel
SKIP   = 3                # args.skip
PT     = (P - CK) // SKIP
HW     = 4                # args.highway_window
LSTM_H = 128              # SSA encoder hidden size (fixed in the module)
N_HEAD = 2                # attention heads (h=2)
T_CONV = P - CK + 1
F32 = jnp.float32

VMEM_SPEC = pl.BlockSpec(memory_space=pltpu.MemorySpace.VMEM)
SMEM_SPEC = pl.BlockSpec(memory_space=pltpu.MemorySpace.SMEM)


# ----------------- the single fused kernel -----------------

def lstnet_kernel(x_ref, xt2_ref,
                  lstm_wih_ref, lstm_whh_ref, lstm_b_ref,
                  att_wqkv_ref, att_bqkv_ref, att_wo_ref, att_bo_ref,
                  conv_w_ref, conv_b_ref,
                  g1_wi_ref, g1_wh_ref, g1_bi_ref, g1_bh_ref,
                  gs_wi_ref, gs_wh_ref, gs_bi_ref, gs_bh_ref,
                  lin_wr_ref, lin_ws_ref, lin_b_ref,
                  hwy_wz_ref,
                  alpha_ref, hwy_wx_ref, hwy_b_ref,
                  out_ref, xf_ref):
    # ---------------- SSA encoder: LSTM over the series axis ----------------
    # Hoisted input-to-hidden gates for all "timesteps" (= series index m): one matmul.
    gi_all = (jnp.dot(xt2_ref[...], lstm_wih_ref[...], preferred_element_type=F32)
              + lstm_b_ref[...])                              # (B*M, 4*128)
    gi_all = gi_all.reshape(B, M, 4 * LSTM_H)

    h = jnp.zeros((B, LSTM_H), F32)
    c = jnp.zeros((B, LSTM_H), F32)
    for t in range(M):  # sequential recurrence: only h @ W_hh on the dependent chain
        g = gi_all[:, t, :] + jnp.dot(h, lstm_whh_ref[...], preferred_element_type=F32)
        i_g = jax.nn.sigmoid(g[:, 0:LSTM_H])                  # PyTorch gate order i,f,g,o
        f_g = jax.nn.sigmoid(g[:, LSTM_H:2 * LSTM_H])
        g_g = jnp.tanh(g[:, 2 * LSTM_H:3 * LSTM_H])
        o_g = jax.nn.sigmoid(g[:, 3 * LSTM_H:4 * LSTM_H])
        c = f_g * c + i_g * g_g
        h = o_g * jnp.tanh(c)
        xf_ref[:, t:t + 1, :] = h.reshape(B, 1, LSTM_H)       # VMEM scratch, off critical path

    xf3 = xf_ref[...]                                         # (B, M, 128)
    xf_flat = xf3.reshape(B * M, LSTM_H)                      # (16, 128)

    # ---------------- multi-head scaled-dot-product self-attention ----------------
    # Fused QKV projection: one (16,128) @ (128,768) matmul; 128-lane-aligned head slices.
    qkv = (jnp.dot(xf_flat, att_wqkv_ref[...], preferred_element_type=F32)
           + att_bqkv_ref[...])                               # (16, 768)
    scale = 1.0 / math.sqrt(float(LSTM_H))
    heads = []
    for hh in range(N_HEAD):
        q_off = hh * LSTM_H
        k_off = N_HEAD * LSTM_H + hh * LSTM_H
        v_off = 2 * N_HEAD * LSTM_H + hh * LSTM_H
        qh = qkv[:, q_off:q_off + LSTM_H].reshape(B, M, LSTM_H)
        kh = qkv[:, k_off:k_off + LSTM_H].reshape(B, M, LSTM_H)
        vh = qkv[:, v_off:v_off + LSTM_H].reshape(B, M, LSTM_H)
        sc = jnp.einsum('bmd,bnd->bmn', qh, kh, preferred_element_type=F32) * scale
        sc = sc - jnp.max(sc, axis=-1, keepdims=True)
        e = jnp.exp(sc)
        att = e / jnp.sum(e, axis=-1, keepdims=True)
        heads.append(jnp.einsum('bmn,bnd->bmd', att, vh, preferred_element_type=F32))
    att_cat = jnp.concatenate(heads, axis=-1).reshape(B * M, N_HEAD * LSTM_H)  # (16, 256)
    att_o = (jnp.dot(att_cat, att_wo_ref[...], preferred_element_type=F32)
             + att_bo_ref[...])                               # (16, 128)
    alpha = alpha_ref[0]
    z3 = xf3 + alpha * att_o.reshape(B, M, LSTM_H)            # z = x_f + alpha * att

    # ---------------- CNN (Conv2d(1,hidC,(Ck,m)) as im2col) + ReLU ----------------
    xv = x_ref[...]                                           # (B, P, M)
    xcol = jnp.concatenate([xv[:, k:k + T_CONV, :] for k in range(CK)], axis=-1)  # (B,T,CK*M)
    xcol = xcol.reshape(B * T_CONV, CK * M)                   # (26, 32)
    conv_flat = jnp.maximum(
        jnp.dot(xcol, conv_w_ref[...], preferred_element_type=F32) + conv_b_ref[...],
        0.0)                                                  # (26, 16) == (B*T, hidC)

    # ---------------- GRU1 over time (final hidden), per-gate lane-aligned ----------------
    g1_wi = g1_wi_ref[...]; g1_bi = g1_bi_ref[...]
    g1_wh = g1_wh_ref[...]; g1_bh = g1_bh_ref[...]
    # hoisted input gates for all timesteps (PyTorch gate order r, z, n)
    gi_r = (jnp.dot(conv_flat, g1_wi[0], preferred_element_type=F32) + g1_bi[0]).reshape(B, T_CONV, HID_R)
    gi_z = (jnp.dot(conv_flat, g1_wi[1], preferred_element_type=F32) + g1_bi[1]).reshape(B, T_CONV, HID_R)
    gi_n = (jnp.dot(conv_flat, g1_wi[2], preferred_element_type=F32) + g1_bi[2]).reshape(B, T_CONV, HID_R)
    wh_r, wh_z, wh_n = g1_wh[0], g1_wh[1], g1_wh[2]
    bh_r, bh_z, bh_n = g1_bh[0], g1_bh[1], g1_bh[2]
    hr = jnp.zeros((B, HID_R), F32)
    for t in range(T_CONV):
        gh_r = jnp.dot(hr, wh_r, preferred_element_type=F32) + bh_r
        gh_z = jnp.dot(hr, wh_z, preferred_element_type=F32) + bh_z
        gh_n = jnp.dot(hr, wh_n, preferred_element_type=F32) + bh_n
        r_g = jax.nn.sigmoid(gi_r[:, t, :] + gh_r)
        z_g = jax.nn.sigmoid(gi_z[:, t, :] + gh_z)
        n_g = jnp.tanh(gi_n[:, t, :] + r_g * gh_n)
        hr = (1.0 - z_g) * n_g + z_g * hr                     # (B, hidR)

    # ---------------- skip GRU: SKIP independent weight-sharing recurrences ----------------
    gs_wi = gs_wi_ref[...]; gs_bi = gs_bi_ref[...]
    gs_wh = gs_wh_ref[...]; gs_bh = gs_bh_ref[...]
    si_r = (jnp.dot(conv_flat, gs_wi[0], preferred_element_type=F32) + gs_bi[0]).reshape(B, T_CONV, HID_S)
    si_z = (jnp.dot(conv_flat, gs_wi[1], preferred_element_type=F32) + gs_bi[1]).reshape(B, T_CONV, HID_S)
    si_n = (jnp.dot(conv_flat, gs_wi[2], preferred_element_type=F32) + gs_bi[2]).reshape(B, T_CONV, HID_S)
    swh_r, swh_z, swh_n = gs_wh[0], gs_wh[1], gs_wh[2]
    sbh_r, sbh_z, sbh_n = gs_bh[0], gs_bh[1], gs_bh[2]
    lin_ws = lin_ws_ref[...]                                  # (SKIP, hidS, M)
    t0 = T_CONV - PT * SKIP
    skip_contrib = jnp.zeros((B, M), F32)
    for k in range(SKIP):                                     # slot k == batch rows b*skip+k in torch
        hk = jnp.zeros((B, HID_S), F32)
        for pstep in range(PT):
            t = t0 + pstep * SKIP + k
            gh_r = jnp.dot(hk, swh_r, preferred_element_type=F32) + sbh_r
            gh_z = jnp.dot(hk, swh_z, preferred_element_type=F32) + sbh_z
            gh_n = jnp.dot(hk, swh_n, preferred_element_type=F32) + sbh_n
            r_g = jax.nn.sigmoid(si_r[:, t, :] + gh_r)
            z_g = jax.nn.sigmoid(si_z[:, t, :] + gh_z)
            n_g = jnp.tanh(si_n[:, t, :] + r_g * gh_n)
            hk = (1.0 - z_g) * n_g + z_g * hk
        # linear1 skip part, concat folded into per-slot split weights
        skip_contrib = skip_contrib + jnp.dot(hk, lin_ws[k], preferred_element_type=F32)

    # ---------------- linear1 (split weights -> no concat) ----------------
    res = (jnp.dot(hr, lin_wr_ref[...], preferred_element_type=F32)
           + skip_contrib + lin_b_ref[...])                   # (B, M)

    # ---------------- SSA highway: Linear(hw + 128 -> 1) with split weights ----------------
    z_part = jnp.sum(z3 * hwy_wz_ref[...], axis=-1)           # (B, M): z @ W_z
    x_part = jnp.zeros((B, M), F32)
    for i in range(HW):                                       # x_tail @ W_x with scalar weights
        x_part = x_part + hwy_wx_ref[i] * xv[:, P - HW + i, :]
    z_out = z_part + x_part + hwy_b_ref[0]

    # ---------------- residual add + output_fun == sigmoid ----------------
    out_ref[...] = jax.nn.sigmoid(res + z_out)


# ----------------- parameters (pre-laid-out for the fused kernel) -----------------

def init_params(key):
    ks = jax.random.split(key, 24)

    def nrm(k, shape, scale=0.1):
        return (scale * jax.random.normal(k, shape)).astype(F32)

    p = {}
    # SSA encoder LSTM(P -> 128), gate order i,f,g,o; b_ih + b_hh folded
    p['lstm_wih'] = nrm(ks[0], (P, 4 * LSTM_H))
    p['lstm_whh'] = nrm(ks[1], (LSTM_H, 4 * LSTM_H))
    p['lstm_b']   = nrm(ks[2], (1, 4 * LSTM_H))
    # attention (d_model = d_k = d_v = 128, h = 2); Q/K/V projections fused
    wq = nrm(ks[3], (LSTM_H, N_HEAD * LSTM_H)); bq = nrm(ks[4], (1, N_HEAD * LSTM_H))
    wk = nrm(ks[5], (LSTM_H, N_HEAD * LSTM_H)); bk = nrm(ks[6], (1, N_HEAD * LSTM_H))
    wv = nrm(ks[7], (LSTM_H, N_HEAD * LSTM_H)); bv = nrm(ks[8], (1, N_HEAD * LSTM_H))
    p['att_wqkv'] = jnp.concatenate([wq, wk, wv], axis=1)     # (128, 768)
    p['att_bqkv'] = jnp.concatenate([bq, bk, bv], axis=1)     # (1, 768)
    p['att_wo'] = nrm(ks[9], (N_HEAD * LSTM_H, LSTM_H))
    p['att_bo'] = nrm(ks[10], (1, LSTM_H))
    p['alpha']  = jnp.array([0.5], F32)
    # conv1: Conv2d(1, hidC, (Ck, m)); weight pre-reshaped for im2col (row = k*m + j)
    p['conv_w'] = nrm(ks[11], (CK, M, HID_C)).reshape(CK * M, HID_C)
    p['conv_b'] = nrm(ks[12], (1, HID_C))
    # GRU1(hidC -> hidR), per-gate (r, z, n) weight stacks for lane-aligned gates
    p['g1_wi'] = nrm(ks[13], (3, HID_C, HID_R))
    p['g1_wh'] = nrm(ks[14], (3, HID_R, HID_R))
    p['g1_bi'] = nrm(ks[15], (3, 1, HID_R))
    p['g1_bh'] = nrm(ks[16], (3, 1, HID_R))
    # GRUskip(hidC -> hidS), per-gate stacks
    p['gs_wi'] = nrm(ks[17], (3, HID_C, HID_S))
    p['gs_wh'] = nrm(ks[18], (3, HID_S, HID_S))
    p['gs_bi'] = nrm(ks[19], (3, 1, HID_S))
    p['gs_bh'] = nrm(ks[20], (3, 1, HID_S))
    # linear1(hidR + skip*hidS -> m), split into [hidR part | per-slot skip parts]
    lin_w = nrm(ks[21], (HID_R + SKIP * HID_S, M))
    p['lin_b'] = nrm(ks[22], (1, M))
    p['lin_wr'] = lin_w[:HID_R, :]                            # (hidR, m)
    p['lin_ws'] = lin_w[HID_R:, :].reshape(SKIP, HID_S, M)    # (skip, hidS, m)
    # highway(hw + 128 -> 1) (is_SSA branch): cat order is [x_tail(hw), z(128)]
    hwy_w = nrm(ks[23], (HW + LSTM_H, 1))
    p['hwy_wx'] = hwy_w[:HW, 0]                               # (hw,)   -> SMEM scalars
    p['hwy_wz'] = hwy_w[HW:, 0].reshape(1, LSTM_H)            # (1,128) -> lane reduce
    p['hwy_b'] = jnp.zeros((1,), F32)
    return p


# ----------------- forward -----------------

def _lstnet_pallas(x, xt2, p):
    return pl.pallas_call(
        lstnet_kernel,
        out_shape=jax.ShapeDtypeStruct((B, M), F32),
        in_specs=[VMEM_SPEC] * 23 + [SMEM_SPEC] * 3,
        out_specs=VMEM_SPEC,
        scratch_shapes=[pltpu.VMEM((B, M, LSTM_H), F32)],     # x_f (all LSTM hidden states)
    )(
        x, xt2,
        p['lstm_wih'], p['lstm_whh'], p['lstm_b'],
        p['att_wqkv'], p['att_bqkv'], p['att_wo'], p['att_bo'],
        p['conv_w'], p['conv_b'],
        p['g1_wi'], p['g1_wh'], p['g1_bi'], p['g1_bh'],
        p['gs_wi'], p['gs_wh'], p['gs_bi'], p['gs_bh'],
        p['lin_wr'], p['lin_ws'], p['lin_b'],
        p['hwy_wz'],
        p['alpha'], p['hwy_wx'], p['hwy_b'],
    )


@jax.jit
def lstnet_forward(x, p):
    # Only wrapper-side layout op left: the 1 KB input permute feeding the encoder LSTM
    # (everything downstream stays inside the single fused kernel / VMEM).
    xt2 = jnp.transpose(x, (0, 2, 1)).reshape(B * M, P)       # rows ordered (b, m)
    return _lstnet_pallas(x, xt2, p)


if __name__ == "__main__":
    key = jax.random.PRNGKey(0)
    kx, kp = jax.random.split(key)
    x = jax.random.normal(kx, (B, P, M), dtype=F32)
    params = init_params(kp)
    out = lstnet_forward(x, params)
    out = jax.block_until_ready(out)
    assert out.shape == (B, M)
    assert bool(jnp.all(jnp.isfinite(out)))
    print("KERNEL_OK")
</pallas_src>

<mosaic_0001>
module attributes {stable_mosaic.version = 11 : i64} {
  func.func @lstnet_kernel(%arg0: memref<2x16x8xf32, #tpu.memory_space<vmem>>, %arg1: memref<16x16xf32, #tpu.memory_space<vmem>>, %arg2: memref<16x512xf32, #tpu.memory_space<vmem>>, %arg3: memref<128x512xf32, #tpu.memory_space<vmem>>, %arg4: memref<1x512xf32, #tpu.memory_space<vmem>>, %arg5: memref<128x768xf32, #tpu.memory_space<vmem>>, %arg6: memref<1x768xf32, #tpu.memory_space<vmem>>, %arg7: memref<256x128xf32, #tpu.memory_space<vmem>>, %arg8: memref<1x128xf32, #tpu.memory_space<vmem>>, %arg9: memref<32x16xf32, #tpu.memory_space<vmem>>, %arg10: memref<1x16xf32, #tpu.memory_space<vmem>>, %arg11: memref<3x16x32xf32, #tpu.memory_space<vmem>>, %arg12: memref<3x32x32xf32, #tpu.memory_space<vmem>>, %arg13: memref<3x1x32xf32, #tpu.memory_space<vmem>>, %arg14: memref<3x1x32xf32, #tpu.memory_space<vmem>>, %arg15: memref<3x16x8xf32, #tpu.memory_space<vmem>>, %arg16: memref<3x8x8xf32, #tpu.memory_space<vmem>>, %arg17: memref<3x1x8xf32, #tpu.memory_space<vmem>>, %arg18: memref<3x1x8xf32, #tpu.memory_space<vmem>>, %arg19: memref<32x8xf32, #tpu.memory_space<vmem>>, %arg20: memref<3x8x8xf32, #tpu.memory_space<vmem>>, %arg21: memref<1x8xf32, #tpu.memory_space<vmem>>, %arg22: memref<1x128xf32, #tpu.memory_space<vmem>>, %arg23: memref<1xf32, #tpu.memory_space<smem>>, %arg24: memref<4xf32, #tpu.memory_space<smem>>, %arg25: memref<1xf32, #tpu.memory_space<smem>>, %arg26: memref<2x8xf32, #tpu.memory_space<vmem>>, %arg27: memref<2x8x128xf32, #tpu.memory_space<vmem>>) attributes {dimension_semantics = [], scalar_prefetch = 0 : i64, scratch_operands = 1 : i64, tpu.core_type = #tpu.core_type<tc>} {
    %c0 = arith.constant 0 : index
    %c0_0 = arith.constant 0 : index
    %0 = vector.load %arg1[%c0, %c0_0] : memref<16x16xf32, #tpu.memory_space<vmem>>, vector<16x16xf32>
    %c0_1 = arith.constant 0 : index
    %c0_2 = arith.constant 0 : index
    %1 = vector.load %arg2[%c0_1, %c0_2] : memref<16x512xf32, #tpu.memory_space<vmem>>, vector<16x512xf32>
    %cst = arith.constant dense<0.000000e+00> : vector<16x512xf32>
    %2 = tpu.matmul %0, %1, %cst {dimension_numbers = #tpu.dot_dimension_numbers<[1], [0], [0], [1], [0, 0, 1, 1], [], []>} : vector<16x16xf32>, vector<16x512xf32>, vector<16x512xf32> -> vector<16x512xf32>
    %c0_3 = arith.constant 0 : index
    %c0_4 = arith.constant 0 : index
    %3 = vector.load %arg4[%c0_3, %c0_4] : memref<1x512xf32, #tpu.memory_space<vmem>>, vector<1x512xf32>
    %4 = vector.broadcast %3 : vector<1x512xf32> to vector<16x512xf32>
    %5 = arith.addf %2, %4 : vector<16x512xf32>
    %6 = vector.shape_cast %5 : vector<16x512xf32> to vector<2x8x512xf32>
    %cst_5 = arith.constant 0.000000e+00 : f32
    %7 = vector.broadcast %cst_5 : f32 to vector<2x128xf32>
    %cst_6 = arith.constant 0.000000e+00 : f32
    %8 = vector.broadcast %cst_6 : f32 to vector<2x128xf32>
    %9 = vector.extract_strided_slice %6 {offsets = [0, 0, 0], sizes = [2, 1, 512], strides = [1, 1, 1]} : vector<2x8x512xf32> to vector<2x1x512xf32>
    %10 = vector.shape_cast %9 : vector<2x1x512xf32> to vector<2x512xf32>
    %c0_7 = arith.constant 0 : index
    %c0_8 = arith.constant 0 : index
    %11 = vector.load %arg3[%c0_7, %c0_8] : memref<128x512xf32, #tpu.memory_space<vmem>>, vector<128x512xf32>
    %cst_9 = arith.constant dense<0.000000e+00> : vector<2x512xf32>
    %12 = tpu.matmul %7, %11, %cst_9 {dimension_numbers = #tpu.dot_dimension_numbers<[1], [0], [0], [1], [0, 0, 1, 1], [], []>} : vector<2x128xf32>, vector<128x512xf32>, vector<2x512xf32> -> vector<2x512xf32>
    %13 = arith.addf %10, %12 : vector<2x512xf32>
    %14 = vector.extract_strided_slice %13 {offsets = [0, 0], sizes = [2, 128], strides = [1, 1]} : vector<2x512xf32> to vector<2x128xf32>
    %15 = arith.negf %14 : vector<2x128xf32>
    %16 = math.exp %15 : vector<2x128xf32>
    %cst_10 = arith.constant 1.000000e+00 : f32
    %17 = vector.broadcast %cst_10 : f32 to vector<2x128xf32>
    %18 = arith.addf %17, %16 : vector<2x128xf32>
    %19 = arith.divf %17, %18 : vector<2x128xf32>
    %20 = vector.extract_strided_slice %13 {offsets = [0, 128], sizes = [2, 128], strides = [1, 1]} : vector<2x512xf32> to vector<2x128xf32>
    %21 = arith.negf %20 : vector<2x128xf32>
    %22 = math.exp %21 : vector<2x128xf32>
    %cst_11 = arith.constant 1.000000e+00 : f32
    %23 = vector.broadcast %cst_11 : f32 to vector<2x128xf32>
    %24 = arith.addf %23, %22 : vector<2x128xf32>
    %25 = arith.divf %23, %24 : vector<2x128xf32>
    %26 = vector.extract_strided_slice %13 {offsets = [0, 256], sizes = [2, 128], strides = [1, 1]} : vector<2x512xf32> to vector<2x128xf32>
    %27 = math.tanh %26 : vector<2x128xf32>
    %28 = vector.extract_strided_slice %13 {offsets = [0, 384], sizes = [2, 128], strides = [1, 1]} : vector<2x512xf32> to vector<2x128xf32>
    %29 = arith.negf %28 : vector<2x128xf32>
    %30 = math.exp %29 : vector<2x128xf32>
    %cst_12 = arith.constant 1.000000e+00 : f32
    %31 = vector.broadcast %cst_12 : f32 to vector<2x128xf32>
    %32 = arith.addf %31, %30 : vector<2x128xf32>
    %33 = arith.divf %31, %32 : vector<2x128xf32>
    %34 = arith.mulf %25, %8 : vector<2x128xf32>
    %35 = arith.mulf %19, %27 : vector<2x128xf32>
    %36 = arith.addf %34, %35 : vector<2x128xf32>
    %37 = math.tanh %36 : vector<2x128xf32>
    %38 = arith.mulf %33, %37 : vector<2x128xf32>
    %39 = vector.shape_cast %38 : vector<2x128xf32> to vector<2x1x128xf32>
    %c0_13 = arith.constant 0 : index
    %c0_14 = arith.constant 0 : index
    %c0_15 = arith.constant 0 : index
    %40 = vector.load %arg27[%c0_13, %c0_14, %c0_15] : memref<2x8x128xf32, #tpu.memory_space<vmem>>, vector<2x1x128xf32>
    tpu.vector_store %arg27[%c0_13, %c0_14, %c0_15], %39 {strides = array<i32>} : memref<2x8x128xf32, #tpu.memory_space<vmem>>, vector<2x1x128xf32>,
    %41 = vector.extract_strided_slice %6 {offsets = [0, 1, 0], sizes = [2, 1, 512], strides = [1, 1, 1]} : vector<2x8x512xf32> to vector<2x1x512xf32>
    %42 = vector.shape_cast %41 : vector<2x1x512xf32> to vector<2x512xf32>
    %c0_16 = arith.constant 0 : index
    %c0_17 = arith.constant 0 : index
    %43 = vector.load %arg3[%c0_16, %c0_17] : memref<128x512xf32, #tpu.memory_space<vmem>>, vector<128x512xf32>
    %cst_18 = arith.constant dense<0.000000e+00> : vector<2x512xf32>
    %44 = tpu.matmul %38, %43, %cst_18 {dimension_numbers = #tpu.dot_dimension_numbers<[1], [0], [0], [1], [0, 0, 1, 1], [], []>} : vector<2x128xf32>, vector<128x512xf32>, vector<2x512xf32> -> vector<2x512xf32>
    %45 = arith.addf %42, %44 : vector<2x512xf32>
    %46 = vector.extract_strided_slice %45 {offsets = [0, 0], sizes = [2, 128], strides = [1, 1]} : vector<2x512xf32> to vector<2x128xf32>
    %47 = arith.negf %46 : vector<2x128xf32>
    %48 = math.exp %47 : vector<2x128xf32>
    %cst_19 = arith.constant 1.000000e+00 : f32
    %49 = vector.broadcast %cst_19 : f32 to vector<2x128xf32>
    %50 = arith.addf %49, %48 : vector<2x128xf32>
    %51 = arith.divf %49, %50 : vector<2x128xf32>
    %52 = vector.extract_strided_slice %45 {offsets = [0, 128], sizes = [2, 128], strides = [1, 1]} : vector<2x512xf32> to vector<2x128xf32>
    %53 = arith.negf %52 : vector<2x128xf32>
    %54 = math.exp %53 : vector<2x128xf32>
    %cst_20 = arith.constant 1.000000e+00 : f32
    %55 = vector.broadcast %cst_20 : f32 to vector<2x128xf32>
    %56 = arith.addf %55, %54 : vector<2x128xf32>
    %57 = arith.divf %55, %56 : vector<2x128xf32>
    %58 = vector.extract_strided_slice %45 {offsets = [0, 256], sizes = [2, 128], strides = [1, 1]} : vector<2x512xf32> to vector<2x128xf32>
    %59 = math.tanh %58 : vector<2x128xf32>
    %60 = vector.extract_strided_slice %45 {offsets = [0, 384], sizes = [2, 128], strides = [1, 1]} : vector<2x512xf32> to vector<2x128xf32>
    %61 = arith.negf %60 : vector<2x128xf32>
    %62 = math.exp %61 : vector<2x128xf32>
    %cst_21 = arith.constant 1.000000e+00 : f32
    %63 = vector.broadcast %cst_21 : f32 to vector<2x128xf32>
    %64 = arith.addf %63, %62 : vector<2x128xf32>
    %65 = arith.divf %63, %64 : vector<2x128xf32>
    %66 = arith.mulf %57, %36 : vector<2x128xf32>
    %67 = arith.mulf %51, %59 : vector<2x128xf32>
    %68 = arith.addf %66, %67 : vector<2x128xf32>
    %69 = math.tanh %68 : vector<2x128xf32>
    %70 = arith.mulf %65, %69 : vector<2x128xf32>
    %71 = vector.shape_cast %70 : vector<2x128xf32> to vector<2x1x128xf32>
    %c0_22 = arith.constant 0 : index
    %c1 = arith.constant 1 : index
    %c0_23 = arith.constant 0 : index
    %72 = vector.load %arg27[%c0_22, %c1, %c0_23] : memref<2x8x128xf32, #tpu.memory_space<vmem>>, vector<2x1x128xf32>
    tpu.vector_store %arg27[%c0_22, %c1, %c0_23], %71 {strides = array<i32>} : memref<2x8x128xf32, #tpu.memory_space<vmem>>, vector<2x1x128xf32>,
    %73 = vector.extract_strided_slice %6 {offsets = [0, 2, 0], sizes = [2, 1, 512], strides = [1, 1, 1]} : vector<2x8x512xf32> to vector<2x1x512xf32>
    %74 = vector.shape_cast %73 : vector<2x1x512xf32> to vector<2x512xf32>
    %c0_24 = arith.constant 0 : index
    %c0_25 = arith.constant 0 : index
    %75 = vector.load %arg3[%c0_24, %c0_25] : memref<128x512xf32, #tpu.memory_space<vmem>>, vector<128x512xf32>
    %cst_26 = arith.constant dense<0.000000e+00> : vector<2x512xf32>
    %76 = tpu.matmul %70, %75, %cst_26 {dimension_numbers = #tpu.dot_dimension_numbers<[1], [0], [0], [1], [0, 0, 1, 1], [], []>} : vector<2x128xf32>, vector<128x512xf32>, vector<2x512xf32> -> vector<2x512xf32>
    %77 = arith.addf %74, %76 : vector<2x512xf32>
    %78 = vector.extract_strided_slice %77 {offsets = [0, 0], sizes = [2, 128], strides = [1, 1]} : vector<2x512xf32> to vector<2x128xf32>
    %79 = arith.negf %78 : vector<2x128xf32>
    %80 = math.exp %79 : vector<2x128xf32>
    %cst_27 = arith.constant 1.000000e+00 : f32
    %81 = vector.broadcast %cst_27 : f32 to vector<2x128xf32>
    %82 = arith.addf %81, %80 : vector<2x128xf32>
    %83 = arith.divf %81, %82 : vector<2x128xf32>
    %84 = vector.extract_strided_slice %77 {offsets = [0, 128], sizes = [2, 128], strides = [1, 1]} : vector<2x512xf32> to vector<2x128xf32>
    %85 = arith.negf %84 : vector<2x128xf32>
    %86 = math.exp %85 : vector<2x128xf32>
    %cst_28 = arith.constant 1.000000e+00 : f32
    %87 = vector.broadcast %cst_28 : f32 to vector<2x128xf32>
    %88 = arith.addf %87, %86 : vector<2x128xf32>
    %89 = arith.divf %87, %88 : vector<2x128xf32>
    %90 = vector.extract_strided_slice %77 {offsets = [0, 256], sizes = [2, 128], strides = [1, 1]} : vector<2x512xf32> to vector<2x128xf32>
    %91 = math.tanh %90 : vector<2x128xf32>
    %92 = vector.extract_strided_slice %77 {offsets = [0, 384], sizes = [2, 128], strides = [1, 1]} : vector<2x512xf32> to vector<2x128xf32>
    %93 = arith.negf %92 : vector<2x128xf32>
    %94 = math.exp %93 : vector<2x128xf32>
    %cst_29 = arith.constant 1.000000e+00 : f32
    %95 = vector.broadcast %cst_29 : f32 to vector<2x128xf32>
    %96 = arith.addf %95, %94 : vector<2x128xf32>
    %97 = arith.divf %95, %96 : vector<2x128xf32>
    %98 = arith.mulf %89, %68 : vector<2x128xf32>
    %99 = arith.mulf %83, %91 : vector<2x128xf32>
    %100 = arith.addf %98, %99 : vector<2x128xf32>
    %101 = math.tanh %100 : vector<2x128xf32>
    %102 = arith.mulf %97, %101 : vector<2x128xf32>
    %103 = vector.shape_cast %102 : vector<2x128xf32> to vector<2x1x128xf32>
    %c0_30 = arith.constant 0 : index
    %c2 = arith.constant 2 : index
    %c0_31 = arith.constant 0 : index
    %104 = vector.load %arg27[%c0_30, %c2, %c0_31] : memref<2x8x128xf32, #tpu.memory_space<vmem>>, vector<2x1x128xf32>
    tpu.vector_store %arg27[%c0_30, %c2, %c0_31], %103 {strides = array<i32>} : memref<2x8x128xf32, #tpu.memory_space<vmem>>, vector<2x1x128xf32>,
    %105 = vector.extract_strided_slice %6 {offsets = [0, 3, 0], sizes = [2, 1, 512], strides = [1, 1, 1]} : vector<2x8x512xf32> to vector<2x1x512xf32>
    %106 = vector.shape_cast %105 : vector<2x1x512xf32> to vector<2x512xf32>
    %c0_32 = arith.constant 0 : index
    %c0_33 = arith.constant 0 : index
    %107 = vector.load %arg3[%c0_32, %c0_33] : memref<128x512xf32, #tpu.memory_space<vmem>>, vector<128x512xf32>
    %cst_34 = arith.constant dense<0.000000e+00> : vector<2x512xf32>
    %108 = tpu.matmul %102, %107, %cst_34 {dimension_numbers = #tpu.dot_dimension_numbers<[1], [0], [0], [1], [0, 0, 1, 1], [], []>} : vector<2x128xf32>, vector<128x512xf32>, vector<2x512xf32> -> vector<2x512xf32>
    %109 = arith.addf %106, %108 : vector<2x512xf32>
    %110 = vector.extract_strided_slice %109 {offsets = [0, 0], sizes = [2, 128], strides = [1, 1]} : vector<2x512xf32> to vector<2x128xf32>
    %111 = arith.negf %110 : vector<2x128xf32>
    %112 = math.exp %111 : vector<2x128xf32>
    %cst_35 = arith.constant 1.000000e+00 : f32
    %113 = vector.broadcast %cst_35 : f32 to vector<2x128xf32>
    %114 = arith.addf %113, %112 : vector<2x128xf32>
    %115 = arith.divf %113, %114 : vector<2x128xf32>
    %116 = vector.extract_strided_slice %109 {offsets = [0, 128], sizes = [2, 128], strides = [1, 1]} : vector<2x512xf32> to vector<2x128xf32>
    %117 = arith.negf %116 : vector<2x128xf32>
    %118 = math.exp %117 : vector<2x128xf32>
    %cst_36 = arith.constant 1.000000e+00 : f32
    %119 = vector.broadcast %cst_36 : f32 to vector<2x128xf32>
    %120 = arith.addf %119, %118 : vector<2x128xf32>
    %121 = arith.divf %119, %120 : vector<2x128xf32>
    %122 = vector.extract_strided_slice %109 {offsets = [0, 256], sizes = [2, 128], strides = [1, 1]} : vector<2x512xf32> to vector<2x128xf32>
    %123 = math.tanh %122 : vector<2x128xf32>
    %124 = vector.extract_strided_slice %109 {offsets = [0, 384], sizes = [2, 128], strides = [1, 1]} : vector<2x512xf32> to vector<2x128xf32>
    %125 = arith.negf %124 : vector<2x128xf32>
    %126 = math.exp %125 : vector<2x128xf32>
    %cst_37 = arith.constant 1.000000e+00 : f32
    %127 = vector.broadcast %cst_37 : f32 to vector<2x128xf32>
    %128 = arith.addf %127, %126 : vector<2x128xf32>
    %129 = arith.divf %127, %128 : vector<2x128xf32>
    %130 = arith.mulf %121, %100 : vector<2x128xf32>
    %131 = arith.mulf %115, %123 : vector<2x128xf32>
    %132 = arith.addf %130, %131 : vector<2x128xf32>
    %133 = math.tanh %132 : vector<2x128xf32>
    %134 = arith.mulf %129, %133 : vector<2x128xf32>
    %135 = vector.shape_cast %134 : vector<2x128xf32> to vector<2x1x128xf32>
    %c0_38 = arith.constant 0 : index
    %c3 = arith.constant 3 : index
    %c0_39 = arith.constant 0 : index
    %136 = vector.load %arg27[%c0_38, %c3, %c0_39] : memref<2x8x128xf32, #tpu.memory_space<vmem>>, vector<2x1x128xf32>
    tpu.vector_store %arg27[%c0_38, %c3, %c0_39], %135 {strides = array<i32>} : memref<2x8x128xf32, #tpu.memory_space<vmem>>, vector<2x1x128xf32>,
    %137 = vector.extract_strided_slice %6 {offsets = [0, 4, 0], sizes = [2, 1, 512], strides = [1, 1, 1]} : vector<2x8x512xf32> to vector<2x1x512xf32>
    %138 = vector.shape_cast %137 : vector<2x1x512xf32> to vector<2x512xf32>
    %c0_40 = arith.constant 0 : index
    %c0_41 = arith.constant 0 : index
    %139 = vector.load %arg3[%c0_40, %c0_41] : memref<128x512xf32, #tpu.memory_space<vmem>>, vector<128x512xf32>
    %cst_42 = arith.constant dense<0.000000e+00> : vector<2x512xf32>
    %140 = tpu.matmul %134, %139, %cst_42 {dimension_numbers = #tpu.dot_dimension_numbers<[1], [0], [0], [1], [0, 0, 1, 1], [], []>} : vector<2x128xf32>, vector<128x512xf32>, vector<2x512xf32> -> vector<2x512xf32>
    %141 = arith.addf %138, %140 : vector<2x512xf32>
    %142 = vector.extract_strided_slice %141 {offsets = [0, 0], sizes = [2, 128], strides = [1, 1]} : vector<2x512xf32> to vector<2x128xf32>
    %143 = arith.negf %142 : vector<2x128xf32>
    %144 = math.exp %143 : vector<2x128xf32>
    %cst_43 = arith.constant 1.000000e+00 : f32
    %145 = vector.broadcast %cst_43 : f32 to vector<2x128xf32>
    %146 = arith.addf %145, %144 : vector<2x128xf32>
    %147 = arith.divf %145, %146 : vector<2x128xf32>
    %148 = vector.extract_strided_slice %141 {offsets = [0, 128], sizes = [2, 128], strides = [1, 1]} : vector<2x512xf32> to vector<2x128xf32>
    %149 = arith.negf %148 : vector<2x128xf32>
    %150 = math.exp %149 : vector<2x128xf32>
    %cst_44 = arith.constant 1.000000e+00 : f32
    %151 = vector.broadcast %cst_44 : f32 to vector<2x128xf32>
    %152 = arith.addf %151, %150 : vector<2x128xf32>
    %153 = arith.divf %151, %152 : vector<2x128xf32>
    %154 = vector.extract_strided_slice %141 {offsets = [0, 256], sizes = [2, 128], strides = [1, 1]} : vector<2x512xf32> to vector<2x128xf32>
    %155 = math.tanh %154 : vector<2x128xf32>
    %156 = vector.extract_strided_slice %141 {offsets = [0, 384], sizes = [2, 128], strides = [1, 1]} : vector<2x512xf32> to vector<2x128xf32>
    %157 = arith.negf %156 : vector<2x128xf32>
    %158 = math.exp %157 : vector<2x128xf32>
    %cst_45 = arith.constant 1.000000e+00 : f32
    %159 = vector.broadcast %cst_45 : f32 to vector<2x128xf32>
    %160 = arith.addf %159, %158 : vector<2x128xf32>
    %161 = arith.divf %159, %160 : vector<2x128xf32>
    %162 = arith.mulf %153, %132 : vector<2x128xf32>
    %163 = arith.mulf %147, %155 : vector<2x128xf32>
    %164 = arith.addf %162, %163 : vector<2x128xf32>
    %165 = math.tanh %164 : vector<2x128xf32>
    %166 = arith.mulf %161, %165 : vector<2x128xf32>
    %167 = vector.shape_cast %166 : vector<2x128xf32> to vector<2x1x128xf32>
    %c0_46 = arith.constant 0 : index
    %c4 = arith.constant 4 : index
    %c0_47 = arith.constant 0 : index
    %168 = vector.load %arg27[%c0_46, %c4, %c0_47] : memref<2x8x128xf32, #tpu.memory_space<vmem>>, vector<2x1x128xf32>
    tpu.vector_store %arg27[%c0_46, %c4, %c0_47], %167 {strides = array<i32>} : memref<2x8x128xf32, #tpu.memory_space<vmem>>, vector<2x1x128xf32>,
    %169 = vector.extract_strided_slice %6 {offsets = [0, 5, 0], sizes = [2, 1, 512], strides = [1, 1, 1]} : vector<2x8x512xf32> to vector<2x1x512xf32>
    %170 = vector.shape_cast %169 : vector<2x1x512xf32> to vector<2x512xf32>
    %c0_48 = arith.constant 0 : index
    %c0_49 = arith.constant 0 : index
    %171 = vector.load %arg3[%c0_48, %c0_49] : memref<128x512xf32, #tpu.memory_space<vmem>>, vector<128x512xf32>
    %cst_50 = arith.constant dense<0.000000e+00> : vector<2x512xf32>
    %172 = tpu.matmul %166, %171, %cst_50 {dimension_numbers = #tpu.dot_dimension_numbers<[1], [0], [0], [1], [0, 0, 1, 1], [], []>} : vector<2x128xf32>, vector<128x512xf32>, vector<2x512xf32> -> vector<2x512xf32>
    %173 = arith.addf %170, %172 : vector<2x512xf32>
    %174 = vector.extract_strided_slice %173 {offsets = [0, 0], sizes = [2, 128], strides = [1, 1]} : vector<2x512xf32> to vector<2x128xf32>
    %175 = arith.negf %174 : vector<2x128xf32>
    %176 = math.exp %175 : vector<2x128xf32>
    %cst_51 = arith.constant 1.000000e+00 : f32
    %177 = vector.broadcast %cst_51 : f32 to vector<2x128xf32>
    %178 = arith.addf %177, %176 : vector<2x128xf32>
    %179 = arith.divf %177, %178 : vector<2x128xf32>
    %180 = vector.extract_strided_slice %173 {offsets = [0, 128], sizes = [2, 128], strides = [1, 1]} : vector<2x512xf32> to vector<2x128xf32>
    %181 = arith.negf %180 : vector<2x128xf32>
    %182 = math.exp %181 : vector<2x128xf32>
    %cst_52 = arith.constant 1.000000e+00 : f32
    %183 = vector.broadcast %cst_52 : f32 to vector<2x128xf32>
    %184 = arith.addf %183, %182 : vector<2x128xf32>
    %185 = arith.divf %183, %184 : vector<2x128xf32>
    %186 = vector.extract_strided_slice %173 {offsets = [0, 256], sizes = [2, 128], strides = [1, 1]} : vector<2x512xf32> to vector<2x128xf32>
    %187 = math.tanh %186 : vector<2x128xf32>
    %188 = vector.extract_strided_slice %173 {offsets = [0, 384], sizes = [2, 128], strides = [1, 1]} : vector<2x512xf32> to vector<2x128xf32>
    %189 = arith.negf %188 : vector<2x128xf32>
    %190 = math.exp %189 : vector<2x128xf32>
    %cst_53 = arith.constant 1.000000e+00 : f32
    %191 = vector.broadcast %cst_53 : f32 to vector<2x128xf32>
    %192 = arith.addf %191, %190 : vector<2x128xf32>
    %193 = arith.divf %191, %192 : vector<2x128xf32>
    %194 = arith.mulf %185, %164 : vector<2x128xf32>
    %195 = arith.mulf %179, %187 : vector<2x128xf32>
    %196 = arith.addf %194, %195 : vector<2x128xf32>
    %197 = math.tanh %196 : vector<2x128xf32>
    %198 = arith.mulf %193, %197 : vector<2x128xf32>
    %199 = vector.shape_cast %198 : vector<2x128xf32> to vector<2x1x128xf32>
    %c0_54 = arith.constant 0 : index
    %c5 = arith.constant 5 : index
    %c0_55 = arith.constant 0 : index
    %200 = vector.load %arg27[%c0_54, %c5, %c0_55] : memref<2x8x128xf32, #tpu.memory_space<vmem>>, vector<2x1x128xf32>
    tpu.vector_store %arg27[%c0_54, %c5, %c0_55], %199 {strides = array<i32>} : memref<2x8x128xf32, #tpu.memory_space<vmem>>, vector<2x1x128xf32>,
    %201 = vector.extract_strided_slice %6 {offsets = [0, 6, 0], sizes = [2, 1, 512], strides = [1, 1, 1]} : vector<2x8x512xf32> to vector<2x1x512xf32>
    %202 = vector.shape_cast %201 : vector<2x1x512xf32> to vector<2x512xf32>
    %c0_56 = arith.constant 0 : index
    %c0_57 = arith.constant 0 : index
    %203 = vector.load %arg3[%c0_56, %c0_57] : memref<128x512xf32, #tpu.memory_space<vmem>>, vector<128x512xf32>
    %cst_58 = arith.constant dense<0.000000e+00> : vector<2x512xf32>
    %204 = tpu.matmul %198, %203, %cst_58 {dimension_numbers = #tpu.dot_dimension_numbers<[1], [0], [0], [1], [0, 0, 1, 1], [], []>} : vector<2x128xf32>, vector<128x512xf32>, vector<2x512xf32> -> vector<2x512xf32>
    %205 = arith.addf %202, %204 : vector<2x512xf32>
    %206 = vector.extract_strided_slice %205 {offsets = [0, 0], sizes = [2, 128], strides = [1, 1]} : vector<2x512xf32> to vector<2x128xf32>
    %207 = arith.negf %206 : vector<2x128xf32>
    %208 = math.exp %207 : vector<2x128xf32>
    %cst_59 = arith.constant 1.000000e+00 : f32
    %209 = vector.broadcast %cst_59 : f32 to vector<2x128xf32>
    %210 = arith.addf %209, %208 : vector<2x128xf32>
    %211 = arith.divf %209, %210 : vector<2x128xf32>
    %212 = vector.extract_strided_slice %205 {offsets = [0, 128], sizes = [2, 128], strides = [1, 1]} : vector<2x512xf32> to vector<2x128xf32>
    %213 = arith.negf %212 : vector<2x128xf32>
    %214 = math.exp %213 : vector<2x128xf32>
    %cst_60 = arith.constant 1.000000e+00 : f32
    %215 = vector.broadcast %cst_60 : f32 to vector<2x128xf32>
    %216 = arith.addf %215, %214 : vector<2x128xf32>
    %217 = arith.divf %215, %216 : vector<2x128xf32>
    %218 = vector.extract_strided_slice %205 {offsets = [0, 256], sizes = [2, 128], strides = [1, 1]} : vector<2x512xf32> to vector<2x128xf32>
    %219 = math.tanh %218 : vector<2x128xf32>
    %220 = vector.extract_strided_slice %205 {offsets = [0, 384], sizes = [2, 128], strides = [1, 1]} : vector<2x512xf32> to vector<2x128xf32>
    %221 = arith.negf %220 : vector<2x128xf32>
    %222 = math.exp %221 : vector<2x128xf32>
    %cst_61 = arith.constant 1.000000e+00 : f32
    %223 = vector.broadcast %cst_61 : f32 to vector<2x128xf32>
    %224 = arith.addf %223, %222 : vector<2x128xf32>
    %225 = arith.divf %223, %224 : vector<2x128xf32>
    %226 = arith.mulf %217, %196 : vector<2x128xf32>
    %227 = arith.mulf %211, %219 : vector<2x128xf32>
    %228 = arith.addf %226, %227 : vector<2x128xf32>
    %229 = math.tanh %228 : vector<2x128xf32>
    %230 = arith.mulf %225, %229 : vector<2x128xf32>
    %231 = vector.shape_cast %230 : vector<2x128xf32> to vector<2x1x128xf32>
    %c0_62 = arith.constant 0 : index
    %c6 = arith.constant 6 : index
    %c0_63 = arith.constant 0 : index
    %232 = vector.load %arg27[%c0_62, %c6, %c0_63] : memref<2x8x128xf32, #tpu.memory_space<vmem>>, vector<2x1x128xf32>
    tpu.vector_store %arg27[%c0_62, %c6, %c0_63], %231 {strides = array<i32>} : memref<2x8x128xf32, #tpu.memory_space<vmem>>, vector<2x1x128xf32>,
    %233 = vector.extract_strided_slice %6 {offsets = [0, 7, 0], sizes = [2, 1, 512], strides = [1, 1, 1]} : vector<2x8x512xf32> to vector<2x1x512xf32>
    %234 = vector.shape_cast %233 : vector<2x1x512xf32> to vector<2x512xf32>
    %c0_64 = arith.constant 0 : index
    %c0_65 = arith.constant 0 : index
    %235 = vector.load %arg3[%c0_64, %c0_65] : memref<128x512xf32, #tpu.memory_space<vmem>>, vector<128x512xf32>
    %cst_66 = arith.constant dense<0.000000e+00> : vector<2x512xf32>
    %236 = tpu.matmul %230, %235, %cst_66 {dimension_numbers = #tpu.dot_dimension_numbers<[1], [0], [0], [1], [0, 0, 1, 1], [], []>} : vector<2x128xf32>, vector<128x512xf32>, vector<2x512xf32> -> vector<2x512xf32>
    %237 = arith.addf %234, %236 : vector<2x512xf32>
    %238 = vector.extract_strided_slice %237 {offsets = [0, 0], sizes = [2, 128], strides = [1, 1]} : vector<2x512xf32> to vector<2x128xf32>
    %239 = arith.negf %238 : vector<2x128xf32>
    %240 = math.exp %239 : vector<2x128xf32>
    %cst_67 = arith.constant 1.000000e+00 : f32
    %241 = vector.broadcast %cst_67 : f32 to vector<2x128xf32>
    %242 = arith.addf %241, %240 : vector<2x128xf32>
    %243 = arith.divf %241, %242 : vector<2x128xf32>
    %244 = vector.extract_strided_slice %237 {offsets = [0, 128], sizes = [2, 128], strides = [1, 1]} : vector<2x512xf32> to vector<2x128xf32>
    %245 = arith.negf %244 : vector<2x128xf32>
    %246 = math.exp %245 : vector<2x128xf32>
    %cst_68 = arith.constant 1.000000e+00 : f32
    %247 = vector.broadcast %cst_68 : f32 to vector<2x128xf32>
    %248 = arith.addf %247, %246 : vector<2x128xf32>
    %249 = arith.divf %247, %248 : vector<2x128xf32>
    %250 = vector.extract_strided_slice %237 {offsets = [0, 256], sizes = [2, 128], strides = [1, 1]} : vector<2x512xf32> to vector<2x128xf32>
    %251 = math.tanh %250 : vector<2x128xf32>
    %252 = vector.extract_strided_slice %237 {offsets = [0, 384], sizes = [2, 128], strides = [1, 1]} : vector<2x512xf32> to vector<2x128xf32>
    %253 = arith.negf %252 : vector<2x128xf32>
    %254 = math.exp %253 : vector<2x128xf32>
    %cst_69 = arith.constant 1.000000e+00 : f32
    %255 = vector.broadcast %cst_69 : f32 to vector<2x128xf32>
    %256 = arith.addf %255, %254 : vector<2x128xf32>
    %257 = arith.divf %255, %256 : vector<2x128xf32>
    %258 = arith.mulf %249, %228 : vector<2x128xf32>
    %259 = arith.mulf %243, %251 : vector<2x128xf32>
    %260 = arith.addf %258, %259 : vector<2x128xf32>
    %261 = math.tanh %260 : vector<2x128xf32>
    %262 = arith.mulf %257, %261 : vector<2x128xf32>
    %263 = vector.shape_cast %262 : vector<2x128xf32> to vector<2x1x128xf32>
    %c0_70 = arith.constant 0 : index
    %c7 = arith.constant 7 : index
    %c0_71 = arith.constant 0 : index
    %264 = vector.load %arg27[%c0_70, %c7, %c0_71] : memref<2x8x128xf32, #tpu.memory_space<vmem>>, vector<2x1x128xf32>
    tpu.vector_store %arg27[%c0_70, %c7, %c0_71], %263 {strides = array<i32>} : memref<2x8x128xf32, #tpu.memory_space<vmem>>, vector<2x1x128xf32>,
    %c0_72 = arith.constant 0 : index
    %c0_73 = arith.constant 0 : index
    %c0_74 = arith.constant 0 : index
    %265 = vector.load %arg27[%c0_72, %c0_73, %c0_74] : memref<2x8x128xf32, #tpu.memory_space<vmem>>, vector<2x8x128xf32>
    %266 = vector.shape_cast %265 : vector<2x8x128xf32> to vector<16x128xf32>
    %c0_75 = arith.constant 0 : index
    %c0_76 = arith.constant 0 : index
    %267 = vector.load %arg5[%c0_75, %c0_76] : memref<128x768xf32, #tpu.memory_space<vmem>>, vector<128x768xf32>
    %cst_77 = arith.constant dense<0.000000e+00> : vector<16x768xf32>
    %268 = tpu.matmul %266, %267, %cst_77 {dimension_numbers = #tpu.dot_dimension_numbers<[1], [0], [0], [1], [0, 0, 1, 1], [], []>} : vector<16x128xf32>, vector<128x768xf32>, vector<16x768xf32> -> vector<16x768xf32>
    %c0_78 = arith.constant 0 : index
    %c0_79 = arith.constant 0 : index
    %269 = vector.load %arg6[%c0_78, %c0_79] : memref<1x768xf32, #tpu.memory_space<vmem>>, vector<1x768xf32>
    %270 = vector.broadcast %269 : vector<1x768xf32> to vector<16x768xf32>
    %271 = arith.addf %268, %270 : vector<16x768xf32>
    %272 = vector.extract_strided_slice %271 {offsets = [0, 0], sizes = [16, 128], strides = [1, 1]} : vector<16x768xf32> to vector<16x128xf32>
    %273 = vector.shape_cast %272 : vector<16x128xf32> to vector<2x8x128xf32>
    %274 = vector.extract_strided_slice %271 {offsets = [0, 256], sizes = [16, 128], strides = [1, 1]} : vector<16x768xf32> to vector<16x128xf32>
    %275 = vector.shape_cast %274 : vector<16x128xf32> to vector<2x8x128xf32>
    %276 = vector.extract_strided_slice %271 {offsets = [0, 512], sizes = [16, 128], strides = [1, 1]} : vector<16x768xf32> to vector<16x128xf32>
    %277 = vector.shape_cast %276 : vector<16x128xf32> to vector<2x8x128xf32>
    "tpu.trace_start"() <{level = 10 : i32, message = "bmd,bnd->bmn"}> : () -> ()
    %cst_80 = arith.constant dense<0.000000e+00> : vector<2x8x8xf32>
    %278 = tpu.matmul %273, %275, %cst_80 {dimension_numbers = #tpu.dot_dimension_numbers<[2], [2], [1], [1], [0, 0, 0, 1, 1, 1], [0], [0]>} : vector<2x8x128xf32>, vector<2x8x128xf32>, vector<2x8x8xf32> -> vector<2x8x8xf32>
    "tpu.trace_stop"() : () -> ()
    %cst_81 = arith.constant 0.0883883461 : f32
    %279 = vector.broadcast %cst_81 : f32 to vector<2x8x8xf32>
    %280 = arith.mulf %278, %279 : vector<2x8x8xf32>
    %cst_82 = arith.constant dense<0xFF800000> : vector<2x8xf32>
    %281 = vector.multi_reduction <maximumf>, %280, %cst_82 [2] : vector<2x8x8xf32> to vector<2x8xf32>
    %282 = vector.shape_cast %281 : vector<2x8xf32> to vector<2x8x1xf32>
    %283 = vector.broadcast %282 : vector<2x8x1xf32> to vector<2x8x8xf32>
    %284 = arith.subf %280, %283 : vector<2x8x8xf32>
    %285 = math.exp %284 : vector<2x8x8xf32>
    %cst_83 = arith.constant dense<0.000000e+00> : vector<2x8xf32>
    %286 = vector.multi_reduction <add>, %285, %cst_83 [2] : vector<2x8x8xf32> to vector<2x8xf32>
    %287 = vector.shape_cast %286 : vector<2x8xf32> to vector<2x8x1xf32>
    %288 = vector.broadcast %287 : vector<2x8x1xf32> to vector<2x8x8xf32>
    %289 = arith.divf %285, %288 : vector<2x8x8xf32>
    "tpu.trace_start"() <{level = 10 : i32, message = "bmn,bnd->bmd"}> : () -> ()
    %cst_84 = arith.constant dense<0.000000e+00> : vector<2x8x128xf32>
    %290 = tpu.matmul %289, %277, %cst_84 {dimension_numbers = #tpu.dot_dimension_numbers<[2], [1], [1], [2], [0, 0, 0, 1, 1, 2], [0], [0]>} : vector<2x8x8xf32>, vector<2x8x128xf32>, vector<2x8x128xf32> -> vector<2x8x128xf32>
    "tpu.trace_stop"() : () -> ()
    %291 = vector.extract_strided_slice %271 {offsets = [0, 128], sizes = [16, 128], strides = [1, 1]} : vector<16x768xf32> to vector<16x128xf32>
    %292 = vector.shape_cast %291 : vector<16x128xf32> to vector<2x8x128xf32>
    %293 = vector.extract_strided_slice %271 {offsets = [0, 384], sizes = [16, 128], strides = [1, 1]} : vector<16x768xf32> to vector<16x128xf32>
    %294 = vector.shape_cast %293 : vector<16x128xf32> to vector<2x8x128xf32>
    %295 = vector.extract_strided_slice %271 {offsets = [0, 640], sizes = [16, 128], strides = [1, 1]} : vector<16x768xf32> to vector<16x128xf32>
    %296 = vector.shape_cast %295 : vector<16x128xf32> to vector<2x8x128xf32>
    "tpu.trace_start"() <{level = 10 : i32, message = "bmd,bnd->bmn"}> : () -> ()
    %cst_85 = arith.constant dense<0.000000e+00> : vector<2x8x8xf32>
    %297 = tpu.matmul %292, %294, %cst_85 {dimension_numbers = #tpu.dot_dimension_numbers<[2], [2], [1], [1], [0, 0, 0, 1, 1, 1], [0], [0]>} : vector<2x8x128xf32>, vector<2x8x128xf32>, vector<2x8x8xf32> -> vector<2x8x8xf32>
    "tpu.trace_stop"() : () -> ()
    %cst_86 = arith.constant 0.0883883461 : f32
    %298 = vector.broadcast %cst_86 : f32 to vector<2x8x8xf32>
    %299 = arith.mulf %297, %298 : vector<2x8x8xf32>
    %cst_87 = arith.constant dense<0xFF800000> : vector<2x8xf32>
    %300 = vector.multi_reduction <maximumf>, %299, %cst_87 [2] : vector<2x8x8xf32> to vector<2x8xf32>
    %301 = vector.shape_cast %300 : vector<2x8xf32> to vector<2x8x1xf32>
    %302 = vector.broadcast %301 : vector<2x8x1xf32> to vector<2x8x8xf32>
    %303 = arith.subf %299, %302 : vector<2x8x8xf32>
    %304 = math.exp %303 : vector<2x8x8xf32>
    %cst_88 = arith.constant dense<0.000000e+00> : vector<2x8xf32>
    %305 = vector.multi_reduction <add>, %304, %cst_88 [2] : vector<2x8x8xf32> to vector<2x8xf32>
    %306 = vector.shape_cast %305 : vector<2x8xf32> to vector<2x8x1xf32>
    %307 = vector.broadcast %306 : vector<2x8x1xf32> to vector<2x8x8xf32>
    %308 = arith.divf %304, %307 : vector<2x8x8xf32>
    "tpu.trace_start"() <{level = 10 : i32, message = "bmn,bnd->bmd"}> : () -> ()
    %cst_89 = arith.constant dense<0.000000e+00> : vector<2x8x128xf32>
    %309 = tpu.matmul %308, %296, %cst_89 {dimension_numbers = #tpu.dot_dimension_numbers<[2], [1], [1], [2], [0, 0, 0, 1, 1, 2], [0], [0]>} : vector<2x8x8xf32>, vector<2x8x128xf32>, vector<2x8x128xf32> -> vector<2x8x128xf32>
    "tpu.trace_stop"() : () -> ()
    %310 = tpu.concatenate %290, %309 in 2 : vector<2x8x128xf32>, vector<2x8x128xf32> -> vector<2x8x256xf32>
    %311 = vector.shape_cast %310 : vector<2x8x256xf32> to vector<16x256xf32>
    %c0_90 = arith.constant 0 : index
    %c0_91 = arith.constant 0 : index
    %312 = vector.load %arg7[%c0_90, %c0_91] : memref<256x128xf32, #tpu.memory_space<vmem>>, vector<256x128xf32>
    %cst_92 = arith.constant dense<0.000000e+00> : vector<16x128xf32>
    %313 = tpu.matmul %311, %312, %cst_92 {dimension_numbers = #tpu.dot_dimension_numbers<[1], [0], [0], [1], [0, 0, 1, 1], [], []>} : vector<16x256xf32>, vector<256x128xf32>, vector<16x128xf32> -> vector<16x128xf32>
    %c0_93 = arith.constant 0 : index
    %c0_94 = arith.constant 0 : index
    %314 = vector.load %arg8[%c0_93, %c0_94] : memref<1x128xf32, #tpu.memory_space<vmem>>, vector<1x128xf32>
    %315 = vector.broadcast %314 : vector<1x128xf32> to vector<16x128xf32>
    %316 = arith.addf %313, %315 : vector<16x128xf32>
    %c0_95 = arith.constant 0 : index
    %317 = memref.load %arg23[%c0_95] : memref<1xf32, #tpu.memory_space<smem>>
    %318 = vector.shape_cast %316 : vector<16x128xf32> to vector<2x8x128xf32>
    %319 = vector.broadcast %317 : f32 to vector<2x8x128xf32>
    %320 = arith.mulf %319, %318 : vector<2x8x128xf32>
    %321 = arith.addf %265, %320 : vector<2x8x128xf32>
    %c0_96 = arith.constant 0 : index
    %c0_97 = arith.constant 0 : index
    %c0_98 = arith.constant 0 : index
    %322 = vector.load %arg0[%c0_96, %c0_97, %c0_98] : memref<2x16x8xf32, #tpu.memory_space<vmem>>, vector<2x16x8xf32>
    %323 = vector.extract_strided_slice %322 {offsets = [0, 0, 0], sizes = [2, 13, 8], strides = [1, 1, 1]} : vector<2x16x8xf32> to vector<2x13x8xf32>
    %324 = vector.extract_strided_slice %322 {offsets = [0, 1, 0], sizes = [2, 13, 8], strides = [1, 1, 1]} : vector<2x16x8xf32> to vector<2x13x8xf32>
    %325 = vector.extract_strided_slice %322 {offsets = [0, 2, 0], sizes = [2, 13, 8], strides = [1, 1, 1]} : vector<2x16x8xf32> to vector<2x13x8xf32>
    %326 = vector.extract_strided_slice %322 {offsets = [0, 3, 0], sizes = [2, 13, 8], strides = [1, 1, 1]} : vector<2x16x8xf32> to vector<2x13x8xf32>
    %327 = tpu.concatenate %323, %324, %325, %326 in 2 : vector<2x13x8xf32>, vector<2x13x8xf32>, vector<2x13x8xf32>, vector<2x13x8xf32> -> vector<2x13x32xf32>
    %328 = vector.shape_cast %327 : vector<2x13x32xf32> to vector<26x32xf32>
    %c0_99 = arith.constant 0 : index
    %c0_100 = arith.constant 0 : index
    %329 = vector.load %arg9[%c0_99, %c0_100] : memref<32x16xf32, #tpu.memory_space<vmem>>, vector<32x16xf32>
    %cst_101 = arith.constant dense<0.000000e+00> : vector<26x16xf32>
    %330 = tpu.matmul %328, %329, %cst_101 {dimension_numbers = #tpu.dot_dimension_numbers<[1], [0], [0], [1], [0, 0, 1, 1], [], []>} : vector<26x32xf32>, vector<32x16xf32>, vector<26x16xf32> -> vector<26x16xf32>
    %c0_102 = arith.constant 0 : index
    %c0_103 = arith.constant 0 : index
    %331 = vector.load %arg10[%c0_102, %c0_103] : memref<1x16xf32, #tpu.memory_space<vmem>>, vector<1x16xf32>
    %332 = vector.broadcast %331 : vector<1x16xf32> to vector<26x16xf32>
    %333 = arith.addf %330, %332 : vector<26x16xf32>
    %cst_104 = arith.constant 0.000000e+00 : f32
    %334 = vector.broadcast %cst_104 : f32 to vector<26x16xf32>
    %335 = arith.maximumf %333, %334 : vector<26x16xf32>
    %c0_105 = arith.constant 0 : index
    %c0_106 = arith.constant 0 : index
    %c0_107 = arith.constant 0 : index
    %336 = vector.load %arg11[%c0_105, %c0_106, %c0_107] : memref<3x16x32xf32, #tpu.memory_space<vmem>>, vector<3x16x32xf32>
    %c0_108 = arith.constant 0 : index
    %c0_109 = arith.constant 0 : index
    %c0_110 = arith.constant 0 : index
    %337 = vector.load %arg13[%c0_108, %c0_109, %c0_110] : memref<3x1x32xf32, #tpu.memory_space<vmem>>, vector<3x1x32xf32>
    %c0_111 = arith.constant 0 : index
    %c0_112 = arith.constant 0 : index
    %c0_113 = arith.constant 0 : index
    %338 = vector.load %arg12[%c0_111, %c0_112, %c0_113] : memref<3x32x32xf32, #tpu.memory_space<vmem>>, vector<3x32x32xf32>
    %c0_114 = arith.constant 0 : index
    %c0_115 = arith.constant 0 : index
    %c0_116 = arith.constant 0 : index
    %339 = vector.load %arg14[%c0_114, %c0_115, %c0_116] : memref<3x1x32xf32, #tpu.memory_space<vmem>>, vector<3x1x32xf32>
    %340 = vector.extract_strided_slice %336 {offsets = [0, 0, 0], sizes = [1, 16, 32], strides = [1, 1, 1]} : vector<3x16x32xf32> to vector<1x16x32xf32>
    %341 = vector.shape_cast %340 : vector<1x16x32xf32> to vector<16x32xf32>
    %cst_117 = arith.constant dense<0.000000e+00> : vector<26x32xf32>
    %342 = tpu.matmul %335, %341, %cst_117 {dimension_numbers = #tpu.dot_dimension_numbers<[1], [0], [0], [1], [0, 0, 1, 1], [], []>} : vector<26x16xf32>, vector<16x32xf32>, vector<26x32xf32> -> vector<26x32xf32>
    %343 = vector.extract_strided_slice %337 {offsets = [0, 0, 0], sizes = [1, 1, 32], strides = [1, 1, 1]} : vector<3x1x32xf32> to vector<1x1x32xf32>
    %344 = vector.shape_cast %343 : vector<1x1x32xf32> to vector<1x32xf32>
    %345 = vector.broadcast %344 : vector<1x32xf32> to vector<26x32xf32>
    %346 = arith.addf %342, %345 : vector<26x32xf32>
    %347 = vector.shape_cast %346 : vector<26x32xf32> to vector<2x13x32xf32>
    %348 = vector.extract_strided_slice %336 {offsets = [1, 0, 0], sizes = [1, 16, 32], strides = [1, 1, 1]} : vector<3x16x32xf32> to vector<1x16x32xf32>
    %349 = vector.shape_cast %348 : vector<1x16x32xf32> to vector<16x32xf32>
    %cst_118 = arith.constant dense<0.000000e+00> : vector<26x32xf32>
    %350 = tpu.matmul %335, %349, %cst_118 {dimension_numbers = #tpu.dot_dimension_numbers<[1], [0], [0], [1], [0, 0, 1, 1], [], []>} : vector<26x16xf32>, vector<16x32xf32>, vector<26x32xf32> -> vector<26x32xf32>
    %351 = vector.extract_strided_slice %337 {offsets = [1, 0, 0], sizes = [1, 1, 32], strides = [1, 1, 1]} : vector<3x1x32xf32> to vector<1x1x32xf32>
    %352 = vector.shape_cast %351 : vector<1x1x32xf32> to vector<1x32xf32>
    %353 = vector.broadcast %352 : vector<1x32xf32> to vector<26x32xf32>
    %354 = arith.addf %350, %353 : vector<26x32xf32>
    %355 = vector.shape_cast %354 : vector<26x32xf32> to vector<2x13x32xf32>
    %356 = vector.extract_strided_slice %336 {offsets = [2, 0, 0], sizes = [1, 16, 32], strides = [1, 1, 1]} : vector<3x16x32xf32> to vector<1x16x32xf32>
    %357 = vector.shape_cast %356 : vector<1x16x32xf32> to vector<16x32xf32>
    %cst_119 = arith.constant dense<0.000000e+00> : vector<26x32xf32>
    %358 = tpu.matmul %335, %357, %cst_119 {dimension_numbers = #tpu.dot_dimension_numbers<[1], [0], [0], [1], [0, 0, 1, 1], [], []>} : vector<26x16xf32>, vector<16x32xf32>, vector<26x32xf32> -> vector<26x32xf32>
    %359 = vector.extract_strided_slice %337 {offsets = [2, 0, 0], sizes = [1, 1, 32], strides = [1, 1, 1]} : vector<3x1x32xf32> to vector<1x1x32xf32>
    %360 = vector.shape_cast %359 : vector<1x1x32xf32> to vector<1x32xf32>
    %361 = vector.broadcast %360 : vector<1x32xf32> to vector<26x32xf32>
    %362 = arith.addf %358, %361 : vector<26x32xf32>
    %363 = vector.shape_cast %362 : vector<26x32xf32> to vector<2x13x32xf32>
    %364 = vector.extract_strided_slice %338 {offsets = [0, 0, 0], sizes = [1, 32, 32], strides = [1, 1, 1]} : vector<3x32x32xf32> to vector<1x32x32xf32>
    %365 = vector.shape_cast %364 : vector<1x32x32xf32> to vector<32x32xf32>
    %366 = vector.extract_strided_slice %338 {offsets = [1, 0, 0], sizes = [1, 32, 32], strides = [1, 1, 1]} : vector<3x32x32xf32> to vector<1x32x32xf32>
    %367 = vector.shape_cast %366 : vector<1x32x32xf32> to vector<32x32xf32>
    %368 = vector.extract_strided_slice %338 {offsets = [2, 0, 0], sizes = [1, 32, 32], strides = [1, 1, 1]} : vector<3x32x32xf32> to vector<1x32x32xf32>
    %369 = vector.shape_cast %368 : vector<1x32x32xf32> to vector<32x32xf32>
    %370 = vector.extract_strided_slice %339 {offsets = [0, 0, 0], sizes = [1, 1, 32], strides = [1, 1, 1]} : vector<3x1x32xf32> to vector<1x1x32xf32>
    %371 = vector.shape_cast %370 : vector<1x1x32xf32> to vector<1x32xf32>
    %372 = vector.extract_strided_slice %339 {offsets = [1, 0, 0], sizes = [1, 1, 32], strides = [1, 1, 1]} : vector<3x1x32xf32> to vector<1x1x32xf32>
    %373 = vector.shape_cast %372 : vector<1x1x32xf32> to vector<1x32xf32>
    %374 = vector.extract_strided_slice %339 {offsets = [2, 0, 0], sizes = [1, 1, 32], strides = [1, 1, 1]} : vector<3x1x32xf32> to vector<1x1x32xf32>
    %375 = vector.shape_cast %374 : vector<1x1x32xf32> to vector<1x32xf32>
    %cst_120 = arith.constant 0.000000e+00 : f32
    %376 = vector.broadcast %cst_120 : f32 to vector<2x32xf32>
    %cst_121 = arith.constant dense<0.000000e+00> : vector<2x32xf32>
    %377 = tpu.matmul %376, %365, %cst_121 {dimension_numbers = #tpu.dot_dimension_numbers<[1], [0], [0], [1], [0, 0, 1, 1], [], []>} : vector<2x32xf32>, vector<32x32xf32>, vector<2x32xf32> -> vector<2x32xf32>
    %378 = vector.broadcast %371 : vector<1x32xf32> to vector<2x32xf32>
    %379 = arith.addf %377, %378 : vector<2x32xf32>
    %cst_122 = arith.constant dense<0.000000e+00> : vector<2x32xf32>
    %380 = tpu.matmul %376, %367, %cst_122 {dimension_numbers = #tpu.dot_dimension_numbers<[1], [0], [0], [1], [0, 0, 1, 1], [], []>} : vector<2x32xf32>, vector<32x32xf32>, vector<2x32xf32> -> vector<2x32xf32>
    %381 = vector.broadcast %373 : vector<1x32xf32> to vector<2x32xf32>
    %382 = arith.addf %380, %381 : vector<2x32xf32>
    %cst_123 = arith.constant dense<0.000000e+00> : vector<2x32xf32>
    %383 = tpu.matmul %376, %369, %cst_123 {dimension_numbers = #tpu.dot_dimension_numbers<[1], [0], [0], [1], [0, 0, 1, 1], [], []>} : vector<2x32xf32>, vector<32x32xf32>, vector<2x32xf32> -> vector<2x32xf32>
    %384 = vector.broadcast %375 : vector<1x32xf32> to vector<2x32xf32>
    %385 = arith.addf %383, %384 : vector<2x32xf32>
    %386 = vector.extract_strided_slice %347 {offsets = [0, 0, 0], sizes = [2, 1, 32], strides = [1, 1, 1]} : vector<2x13x32xf32> to vector<2x1x32xf32>
    %387 = vector.shape_cast %386 : vector<2x1x32xf32> to vector<2x32xf32>
    %388 = arith.addf %387, %379 : vector<2x32xf32>
    %389 = arith.negf %388 : vector<2x32xf32>
    %390 = math.exp %389 : vector<2x32xf32>
    %cst_124 = arith.constant 1.000000e+00 : f32
    %391 = vector.broadcast %cst_124 : f32 to vector<2x32xf32>
    %392 = arith.addf %391, %390 : vector<2x32xf32>
    %393 = arith.divf %391, %392 : vector<2x32xf32>
    %394 = vector.extract_strided_slice %355 {offsets = [0, 0, 0], sizes = [2, 1, 32], strides = [1, 1, 1]} : vector<2x13x32xf32> to vector<2x1x32xf32>
    %395 = vector.shape_cast %394 : vector<2x1x32xf32> to vector<2x32xf32>
    %396 = arith.addf %395, %382 : vector<2x32xf32>
    %397 = arith.negf %396 : vector<2x32xf32>
    %398 = math.exp %397 : vector<2x32xf32>
    %cst_125 = arith.constant 1.000000e+00 : f32
    %399 = vector.broadcast %cst_125 : f32 to vector<2x32xf32>
    %400 = arith.addf %399, %398 : vector<2x32xf32>
    %401 = arith.divf %399, %400 : vector<2x32xf32>
    %402 = vector.extract_strided_slice %363 {offsets = [0, 0, 0], sizes = [2, 1, 32], strides = [1, 1, 1]} : vector<2x13x32xf32> to vector<2x1x32xf32>
    %403 = vector.shape_cast %402 : vector<2x1x32xf32> to vector<2x32xf32>
    %404 = arith.mulf %393, %385 : vector<2x32xf32>
    %405 = arith.addf %403, %404 : vector<2x32xf32>
    %406 = math.tanh %405 : vector<2x32xf32>
    %cst_126 = arith.constant 1.000000e+00 : f32
    %407 = vector.broadcast %cst_126 : f32 to vector<2x32xf32>
    %408 = arith.subf %407, %401 : vector<2x32xf32>
    %409 = arith.mulf %408, %406 : vector<2x32xf32>
    %410 = arith.mulf %401, %376 : vector<2x32xf32>
    %411 = arith.addf %409, %410 : vector<2x32xf32>
    %cst_127 = arith.constant dense<0.000000e+00> : vector<2x32xf32>
    %412 = tpu.matmul %411, %365, %cst_127 {dimension_numbers = #tpu.dot_dimension_numbers<[1], [0], [0], [1], [0, 0, 1, 1], [], []>} : vector<2x32xf32>, vector<32x32xf32>, vector<2x32xf32> -> vector<2x32xf32>
    %413 = vector.broadcast %371 : vector<1x32xf32> to vector<2x32xf32>
    %414 = arith.addf %412, %413 : vector<2x32xf32>
    %cst_128 = arith.constant dense<0.000000e+00> : vector<2x32xf32>
    %415 = tpu.matmul %411, %367, %cst_128 {dimension_numbers = #tpu.dot_dimension_numbers<[1], [0], [0], [1], [0, 0, 1, 1], [], []>} : vector<2x32xf32>, vector<32x32xf32>, vector<2x32xf32> -> vector<2x32xf32>
    %416 = vector.broadcast %373 : vector<1x32xf32> to vector<2x32xf32>
    %417 = arith.addf %415, %416 : vector<2x32xf32>
    %cst_129 = arith.constant dense<0.000000e+00> : vector<2x32xf32>
    %418 = tpu.matmul %411, %369, %cst_129 {dimension_numbers = #tpu.dot_dimension_numbers<[1], [0], [0], [1], [0, 0, 1, 1], [], []>} : vector<2x32xf32>, vector<32x32xf32>, vector<2x32xf32> -> vector<2x32xf32>
    %419 = vector.broadcast %375 : vector<1x32xf32> to vector<2x32xf32>
    %420 = arith.addf %418, %419 : vector<2x32xf32>
    %421 = vector.extract_strided_slice %347 {offsets = [0, 1, 0], sizes = [2, 1, 32], strides = [1, 1, 1]} : vector<2x13x32xf32> to vector<2x1x32xf32>
    %422 = vector.shape_cast %421 : vector<2x1x32xf32> to vector<2x32xf32>
    %423 = arith.addf %422, %414 : vector<2x32xf32>
    %424 = arith.negf %423 : vector<2x32xf32>
    %425 = math.exp %424 : vector<2x32xf32>
    %cst_130 = arith.constant 1.000000e+00 : f32
    %426 = vector.broadcast %cst_130 : f32 to vector<2x32xf32>
    %427 = arith.addf %426, %425 : vector<2x32xf32>
    %428 = arith.divf %426, %427 : vector<2x32xf32>
    %429 = vector.extract_strided_slice %355 {offsets = [0, 1, 0], sizes = [2, 1, 32], strides = [1, 1, 1]} : vector<2x13x32xf32> to vector<2x1x32xf32>
    %430 = vector.shape_cast %429 : vector<2x1x32xf32> to vector<2x32xf32>
    %431 = arith.addf %430, %417 : vector<2x32xf32>
    %432 = arith.negf %431 : vector<2x32xf32>
    %433 = math.exp %432 : vector<2x32xf32>
    %cst_131 = arith.constant 1.000000e+00 : f32
    %434 = vector.broadcast %cst_131 : f32 to vector<2x32xf32>
    %435 = arith.addf %434, %433 : vector<2x32xf32>
    %436 = arith.divf %434, %435 : vector<2x32xf32>
    %437 = vector.extract_strided_slice %363 {offsets = [0, 1, 0], sizes = [2, 1, 32], strides = [1, 1, 1]} : vector<2x13x32xf32> to vector<2x1x32xf32>
    %438 = vector.shape_cast %437 : vector<2x1x32xf32> to vector<2x32xf32>
    %439 = arith.mulf %428, %420 : vector<2x32xf32>
    %440 = arith.addf %438, %439 : vector<2x32xf32>
    %441 = math.tanh %440 : vector<2x32xf32>
    %cst_132 = arith.constant 1.000000e+00 : f32
    %442 = vector.broadcast %cst_132 : f32 to vector<2x32xf32>
    %443 = arith.subf %442, %436 : vector<2x32xf32>
    %444 = arith.mulf %443, %441 : vector<2x32xf32>
    %445 = arith.mulf %436, %411 : vector<2x32xf32>
    %446 = arith.addf %444, %445 : vector<2x32xf32>
    %cst_133 = arith.constant dense<0.000000e+00> : vector<2x32xf32>
    %447 = tpu.matmul %446, %365, %cst_133 {dimension_numbers = #tpu.dot_dimension_numbers<[1], [0], [0], [1], [0, 0, 1, 1], [], []>} : vector<2x32xf32>, vector<32x32xf32>, vector<2x32xf32> -> vector<2x32xf32>
    %448 = vector.broadcast %371 : vector<1x32xf32> to vector<2x32xf32>
    %449 = arith.addf %447, %448 : vector<2x32xf32>
    %cst_134 = arith.constant dense<0.000000e+00> : vector<2x32xf32>
    %450 = tpu.matmul %446, %367, %cst_134 {dimension_numbers = #tpu.dot_dimension_numbers<[1], [0], [0], [1], [0, 0, 1, 1], [], []>} : vector<2x32xf32>, vector<32x32xf32>, vector<2x32xf32> -> vector<2x32xf32>
    %451 = vector.broadcast %373 : vector<1x32xf32> to vector<2x32xf32>
    %452 = arith.addf %450, %451 : vector<2x32xf32>
    %cst_135 = arith.constant dense<0.000000e+00> : vector<2x32xf32>
    %453 = tpu.matmul %446, %369, %cst_135 {dimension_numbers = #tpu.dot_dimension_numbers<[1], [0], [0], [1], [0, 0, 1, 1], [], []>} : vector<2x32xf32>, vector<32x32xf32>, vector<2x32xf32> -> vector<2x32xf32>
    %454 = vector.broadcast %375 : vector<1x32xf32> to vector<2x32xf32>
    %455 = arith.addf %453, %454 : vector<2x32xf32>
    %456 = vector.extract_strided_slice %347 {offsets = [0, 2, 0], sizes = [2, 1, 32], strides = [1, 1, 1]} : vector<2x13x32xf32> to vector<2x1x32xf32>
    %457 = vector.shape_cast %456 : vector<2x1x32xf32> to vector<2x32xf32>
    %458 = arith.addf %457, %449 : vector<2x32xf32>
    %459 = arith.negf %458 : vector<2x32xf32>
    %460 = math.exp %459 : vector<2x32xf32>
    %cst_136 = arith.constant 1.000000e+00 : f32
    %461 = vector.broadcast %cst_136 : f32 to vector<2x32xf32>
    %462 = arith.addf %461, %460 : vector<2x32xf32>
    %463 = arith.divf %461, %462 : vector<2x32xf32>
    %464 = vector.extract_strided_slice %355 {offsets = [0, 2, 0], sizes = [2, 1, 32], strides = [1, 1, 1]} : vector<2x13x32xf32> to vector<2x1x32xf32>
    %465 = vector.shape_cast %464 : vector<2x1x32xf32> to vector<2x32xf32>
    %466 = arith.addf %465, %452 : vector<2x32xf32>
    %467 = arith.negf %466 : vector<2x32xf32>
    %468 = math.exp %467 : vector<2x32xf32>
    %cst_137 = arith.constant 1.000000e+00 : f32
    %469 = vector.broadcast %cst_137 : f32 to vector<2x32xf32>
    %470 = arith.addf %469, %468 : vector<2x32xf32>
    %471 = arith.divf %469, %470 : vector<2x32xf32>
    %472 = vector.extract_strided_slice %363 {offsets = [0, 2, 0], sizes = [2, 1, 32], strides = [1, 1, 1]} : vector<2x13x32xf32> to vector<2x1x32xf32>
    %473 = vector.shape_cast %472 : vector<2x1x32xf32> to vector<2x32xf32>
    %474 = arith.mulf %463, %455 : vector<2x32xf32>
    %475 = arith.addf %473, %474 : vector<2x32xf32>
    %476 = math.tanh %475 : vector<2x32xf32>
    %cst_138 = arith.constant 1.000000e+00 : f32
    %477 = vector.broadcast %cst_138 : f32 to vector<2x32xf32>
    %478 = arith.subf %477, %471 : vector<2x32xf32>
    %479 = arith.mulf %478, %476 : vector<2x32xf32>
    %480 = arith.mulf %471, %446 : vector<2x32xf32>
    %481 = arith.addf %479, %480 : vector<2x32xf32>
    %cst_139 = arith.constant dense<0.000000e+00> : vector<2x32xf32>
    %482 = tpu.matmul %481, %365, %cst_139 {dimension_numbers = #tpu.dot_dimension_numbers<[1], [0], [0], [1], [0, 0, 1, 1], [], []>} : vector<2x32xf32>, vector<32x32xf32>, vector<2x32xf32> -> vector<2x32xf32>
    %483 = vector.broadcast %371 : vector<1x32xf32> to vector<2x32xf32>
    %484 = arith.addf %482, %483 : vector<2x32xf32>
    %cst_140 = arith.constant dense<0.000000e+00> : vector<2x32xf32>
    %485 = tpu.matmul %481, %367, %cst_140 {dimension_numbers = #tpu.dot_dimension_numbers<[1], [0], [0], [1], [0, 0, 1, 1], [], []>} : vector<2x32xf32>, vector<32x32xf32>, vector<2x32xf32> -> vector<2x32xf32>
    %486 = vector.broadcast %373 : vector<1x32xf32> to vector<2x32xf32>
    %487 = arith.addf %485, %486 : vector<2x32xf32>
    %cst_141 = arith.constant dense<0.000000e+00> : vector<2x32xf32>
    %488 = tpu.matmul %481, %369, %cst_141 {dimension_numbers = #tpu.dot_dimension_numbers<[1], [0], [0], [1], [0, 0, 1, 1], [], []>} : vector<2x32xf32>, vector<32x32xf32>, vector<2x32xf32> -> vector<2x32xf32>
    %489 = vector.broadcast %375 : vector<1x32xf32> to vector<2x32xf32>
    %490 = arith.addf %488, %489 : vector<2x32xf32>
    %491 = vector.extract_strided_slice %347 {offsets = [0, 3, 0], sizes = [2, 1, 32], strides = [1, 1, 1]} : vector<2x13x32xf32> to vector<2x1x32xf32>
    %492 = vector.shape_cast %491 : vector<2x1x32xf32> to vector<2x32xf32>
    %493 = arith.addf %492, %484 : vector<2x32xf32>
    %494 = arith.negf %493 : vector<2x32xf32>
    %495 = math.exp %494 : vector<2x32xf32>
    %cst_142 = arith.constant 1.000000e+00 : f32
    %496 = vector.broadcast %cst_142 : f32 to vector<2x32xf32>
    %497 = arith.addf %496, %495 : vector<2x32xf32>
    %498 = arith.divf %496, %497 : vector<2x32xf32>
    %499 = vector.extract_strided_slice %355 {offsets = [0, 3, 0], sizes = [2, 1, 32], strides = [1, 1, 1]} : vector<2x13x32xf32> to vector<2x1x32xf32>
    %500 = vector.shape_cast %499 : vector<2x1x32xf32> to vector<2x32xf32>
    %501 = arith.addf %500, %487 : vector<2x32xf32>
    %502 = arith.negf %501 : vector<2x32xf32>
    %503 = math.exp %502 : vector<2x32xf32>
    %cst_143 = arith.constant 1.000000e+00 : f32
    %504 = vector.broadcast %cst_143 : f32 to vector<2x32xf32>
    %505 = arith.addf %504, %503 : vector<2x32xf32>
    %506 = arith.divf %504, %505 : vector<2x32xf32>
    %507 = vector.extract_strided_slice %363 {offsets = [0, 3, 0], sizes = [2, 1, 32], strides = [1, 1, 1]} : vector<2x13x32xf32> to vector<2x1x32xf32>
    %508 = vector.shape_cast %507 : vector<2x1x32xf32> to vector<2x32xf32>
    %509 = arith.mulf %498, %490 : vector<2x32xf32>
    %510 = arith.addf %508, %509 : vector<2x32xf32>
    %511 = math.tanh %510 : vector<2x32xf32>
    %cst_144 = arith.constant 1.000000e+00 : f32
    %512 = vector.broadcast %cst_144 : f32 to vector<2x32xf32>
    %513 = arith.subf %512, %506 : vector<2x32xf32>
    %514 = arith.mulf %513, %511 : vector<2x32xf32>
    %515 = arith.mulf %506, %481 : vector<2x32xf32>
    %516 = arith.addf %514, %515 : vector<2x32xf32>
    %cst_145 = arith.constant dense<0.000000e+00> : vector<2x32xf32>
    %517 = tpu.matmul %516, %365, %cst_145 {dimension_numbers = #tpu.dot_dimension_numbers<[1], [0], [0], [1], [0, 0, 1, 1], [], []>} : vector<2x32xf32>, vector<32x32xf32>, vector<2x32xf32> -> vector<2x32xf32>
    %518 = vector.broadcast %371 : vector<1x32xf32> to vector<2x32xf32>
    %519 = arith.addf %517, %518 : vector<2x32xf32>
    %cst_146 = arith.constant dense<0.000000e+00> : vector<2x32xf32>
    %520 = tpu.matmul %516, %367, %cst_146 {dimension_numbers = #tpu.dot_dimension_numbers<[1], [0], [0], [1], [0, 0, 1, 1], [], []>} : vector<2x32xf32>, vector<32x32xf32>, vector<2x32xf32> -> vector<2x32xf32>
    %521 = vector.broadcast %373 : vector<1x32xf32> to vector<2x32xf32>
    %522 = arith.addf %520, %521 : vector<2x32xf32>
    %cst_147 = arith.constant dense<0.000000e+00> : vector<2x32xf32>
    %523 = tpu.matmul %516, %369, %cst_147 {dimension_numbers = #tpu.dot_dimension_numbers<[1], [0], [0], [1], [0, 0, 1, 1], [], []>} : vector<2x32xf32>, vector<32x32xf32>, vector<2x32xf32> -> vector<2x32xf32>
    %524 = vector.broadcast %375 : vector<1x32xf32> to vector<2x32xf32>
    %525 = arith.addf %523, %524 : vector<2x32xf32>
    %526 = vector.extract_strided_slice %347 {offsets = [0, 4, 0], sizes = [2, 1, 32], strides = [1, 1, 1]} : vector<2x13x32xf32> to vector<2x1x32xf32>
    %527 = vector.shape_cast %526 : vector<2x1x32xf32> to vector<2x32xf32>
    %528 = arith.addf %527, %519 : vector<2x32xf32>
    %529 = arith.negf %528 : vector<2x32xf32>
    %530 = math.exp %529 : vector<2x32xf32>
    %cst_148 = arith.constant 1.000000e+00 : f32
    %531 = vector.broadcast %cst_148 : f32 to vector<2x32xf32>
    %532 = arith.addf %531, %530 : vector<2x32xf32>
    %533 = arith.divf %531, %532 : vector<2x32xf32>
    %534 = vector.extract_strided_slice %355 {offsets = [0, 4, 0], sizes = [2, 1, 32], strides = [1, 1, 1]} : vector<2x13x32xf32> to vector<2x1x32xf32>
    %535 = vector.shape_cast %534 : vector<2x1x32xf32> to vector<2x32xf32>
    %536 = arith.addf %535, %522 : vector<2x32xf32>
    %537 = arith.negf %536 : vector<2x32xf32>
    %538 = math.exp %537 : vector<2x32xf32>
    %cst_149 = arith.constant 1.000000e+00 : f32
    %539 = vector.broadcast %cst_149 : f32 to vector<2x32xf32>
    %540 = arith.addf %539, %538 : vector<2x32xf32>
    %541 = arith.divf %539, %540 : vector<2x32xf32>
    %542 = vector.extract_strided_slice %363 {offsets = [0, 4, 0], sizes = [2, 1, 32], strides = [1, 1, 1]} : vector<2x13x32xf32> to vector<2x1x32xf32>
    %543 = vector.shape_cast %542 : vector<2x1x32xf32> to vector<2x32xf32>
    %544 = arith.mulf %533, %525 : vector<2x32xf32>
    %545 = arith.addf %543, %544 : vector<2x32xf32>
    %546 = math.tanh %545 : vector<2x32xf32>
    %cst_150 = arith.constant 1.000000e+00 : f32
    %547 = vector.broadcast %cst_150 : f32 to vector<2x32xf32>
    %548 = arith.subf %547, %541 : vector<2x32xf32>
    %549 = arith.mulf %548, %546 : vector<2x32xf32>
    %550 = arith.mulf %541, %516 : vector<2x32xf32>
    %551 = arith.addf %549, %550 : vector<2x32xf32>
    %cst_151 = arith.constant dense<0.000000e+00> : vector<2x32xf32>
    %552 = tpu.matmul %551, %365, %cst_151 {dimension_numbers = #tpu.dot_dimension_numbers<[1], [0], [0], [1], [0, 0, 1, 1], [], []>} : vector<2x32xf32>, vector<32x32xf32>, vector<2x32xf32> -> vector<2x32xf32>
    %553 = vector.broadcast %371 : vector<1x32xf32> to vector<2x32xf32>
    %554 = arith.addf %552, %553 : vector<2x32xf32>
    %cst_152 = arith.constant dense<0.000000e+00> : vector<2x32xf32>
    %555 = tpu.matmul %551, %367, %cst_152 {dimension_numbers = #tpu.dot_dimension_numbers<[1], [0], [0], [1], [0, 0, 1, 1], [], []>} : vector<2x32xf32>, vector<32x32xf32>, vector<2x32xf32> -> vector<2x32xf32>
    %556 = vector.broadcast %373 : vector<1x32xf32> to vector<2x32xf32>
    %557 = arith.addf %555, %556 : vector<2x32xf32>
    %cst_153 = arith.constant dense<0.000000e+00> : vector<2x32xf32>
    %558 = tpu.matmul %551, %369, %cst_153 {dimension_numbers = #tpu.dot_dimension_numbers<[1], [0], [0], [1], [0, 0, 1, 1], [], []>} : vector<2x32xf32>, vector<32x32xf32>, vector<2x32xf32> -> vector<2x32xf32>
    %559 = vector.broadcast %375 : vector<1x32xf32> to vector<2x32xf32>
    %560 = arith.addf %558, %559 : vector<2x32xf32>
    %561 = vector.extract_strided_slice %347 {offsets = [0, 5, 0], sizes = [2, 1, 32], strides = [1, 1, 1]} : vector<2x13x32xf32> to vector<2x1x32xf32>
    %562 = vector.shape_cast %561 : vector<2x1x32xf32> to vector<2x32xf32>
    %563 = arith.addf %562, %554 : vector<2x32xf32>
    %564 = arith.negf %563 : vector<2x32xf32>
    %565 = math.exp %564 : vector<2x32xf32>
    %cst_154 = arith.constant 1.000000e+00 : f32
    %566 = vector.broadcast %cst_154 : f32 to vector<2x32xf32>
    %567 = arith.addf %566, %565 : vector<2x32xf32>
    %568 = arith.divf %566, %567 : vector<2x32xf32>
    %569 = vector.extract_strided_slice %355 {offsets = [0, 5, 0], sizes = [2, 1, 32], strides = [1, 1, 1]} : vector<2x13x32xf32> to vector<2x1x32xf32>
    %570 = vector.shape_cast %569 : vector<2x1x32xf32> to vector<2x32xf32>
    %571 = arith.addf %570, %557 : vector<2x32xf32>
    %572 = arith.negf %571 : vector<2x32xf32>
    %573 = math.exp %572 : vector<2x32xf32>
    %cst_155 = arith.constant 1.000000e+00 : f32
    %574 = vector.broadcast %cst_155 : f32 to vector<2x32xf32>
    %575 = arith.addf %574, %573 : vector<2x32xf32>
    %576 = arith.divf %574, %575 : vector<2x32xf32>
    %577 = vector.extract_strided_slice %363 {offsets = [0, 5, 0], sizes = [2, 1, 32], strides = [1, 1, 1]} : vector<2x13x32xf32> to vector<2x1x32xf32>
    %578 = vector.shape_cast %577 : vector<2x1x32xf32> to vector<2x32xf32>
    %579 = arith.mulf %568, %560 : vector<2x32xf32>
    %580 = arith.addf %578, %579 : vector<2x32xf32>
    %581 = math.tanh %580 : vector<2x32xf32>
    %cst_156 = arith.constant 1.000000e+00 : f32
    %582 = vector.broadcast %cst_156 : f32 to vector<2x32xf32>
    %583 = arith.subf %582, %576 : vector<2x32xf32>
    %584 = arith.mulf %583, %581 : vector<2x32xf32>
    %585 = arith.mulf %576, %551 : vector<2x32xf32>
    %586 = arith.addf %584, %585 : vector<2x32xf32>
    %cst_157 = arith.constant dense<0.000000e+00> : vector<2x32xf32>
    %587 = tpu.matmul %586, %365, %cst_157 {dimension_numbers = #tpu.dot_dimension_numbers<[1], [0], [0], [1], [0, 0, 1, 1], [], []>} : vector<2x32xf32>, vector<32x32xf32>, vector<2x32xf32> -> vector<2x32xf32>
    %588 = vector.broadcast %371 : vector<1x32xf32> to vector<2x32xf32>
    %589 = arith.addf %587, %588 : vector<2x32xf32>
    %cst_158 = arith.constant dense<0.000000e+00> : vector<2x32xf32>
    %590 = tpu.matmul %586, %367, %cst_158 {dimension_numbers = #tpu.dot_dimension_numbers<[1], [0], [0], [1], [0, 0, 1, 1], [], []>} : vector<2x32xf32>, vector<32x32xf32>, vector<2x32xf32> -> vector<2x32xf32>
    %591 = vector.broadcast %373 : vector<1x32xf32> to vector<2x32xf32>
    %592 = arith.addf %590, %591 : vector<2x32xf32>
    %cst_159 = arith.constant dense<0.000000e+00> : vector<2x32xf32>
    %593 = tpu.matmul %586, %369, %cst_159 {dimension_numbers = #tpu.dot_dimension_numbers<[1], [0], [0], [1], [0, 0, 1, 1], [], []>} : vector<2x32xf32>, vector<32x32xf32>, vector<2x32xf32> -> vector<2x32xf32>
    %594 = vector.broadcast %375 : vector<1x32xf32> to vector<2x32xf32>
    %595 = arith.addf %593, %594 : vector<2x32xf32>
    %596 = vector.extract_strided_slice %347 {offsets = [0, 6, 0], sizes = [2, 1, 32], strides = [1, 1, 1]} : vector<2x13x32xf32> to vector<2x1x32xf32>
    %597 = vector.shape_cast %596 : vector<2x1x32xf32> to vector<2x32xf32>
    %598 = arith.addf %597, %589 : vector<2x32xf32>
    %599 = arith.negf %598 : vector<2x32xf32>
    %600 = math.exp %599 : vector<2x32xf32>
    %cst_160 = arith.constant 1.000000e+00 : f32
    %601 = vector.broadcast %cst_160 : f32 to vector<2x32xf32>
    %602 = arith.addf %601, %600 : vector<2x32xf32>
    %603 = arith.divf %601, %602 : vector<2x32xf32>
    %604 = vector.extract_strided_slice %355 {offsets = [0, 6, 0], sizes = [2, 1, 32], strides = [1, 1, 1]} : vector<2x13x32xf32> to vector<2x1x32xf32>
    %605 = vector.shape_cast %604 : vector<2x1x32xf32> to vector<2x32xf32>
    %606 = arith.addf %605, %592 : vector<2x32xf32>
    %607 = arith.negf %606 : vector<2x32xf32>
    %608 = math.exp %607 : vector<2x32xf32>
    %cst_161 = arith.constant 1.000000e+00 : f32
    %609 = vector.broadcast %cst_161 : f32 to vector<2x32xf32>
    %610 = arith.addf %609, %608 : vector<2x32xf32>
    %611 = arith.divf %609, %610 : vector<2x32xf32>
    %612 = vector.extract_strided_slice %363 {offsets = [0, 6, 0], sizes = [2, 1, 32], strides = [1, 1, 1]} : vector<2x13x32xf32> to vector<2x1x32xf32>
    %613 = vector.shape_cast %612 : vector<2x1x32xf32> to vector<2x32xf32>
    %614 = arith.mulf %603, %595 : vector<2x32xf32>
    %615 = arith.addf %613, %614 : vector<2x32xf32>
    %616 = math.tanh %615 : vector<2x32xf32>
    %cst_162 = arith.constant 1.000000e+00 : f32
    %617 = vector.broadcast %cst_162 : f32 to vector<2x32xf32>
    %618 = arith.subf %617, %611 : vector<2x32xf32>
    %619 = arith.mulf %618, %616 : vector<2x32xf32>
    %620 = arith.mulf %611, %586 : vector<2x32xf32>
    %621 = arith.addf %619, %620 : vector<2x32xf32>
    %cst_163 = arith.constant dense<0.000000e+00> : vector<2x32xf32>
    %622 = tpu.matmul %621, %365, %cst_163 {dimension_numbers = #tpu.dot_dimension_numbers<[1], [0], [0], [1], [0, 0, 1, 1], [], []>} : vector<2x32xf32>, vector<32x32xf32>, vector<2x32xf32> -> vector<2x32xf32>
    %623 = vector.broadcast %371 : vector<1x32xf32> to vector<2x32xf32>
    %624 = arith.addf %622, %623 : vector<2x32xf32>
    %cst_164 = arith.constant dense<0.000000e+00> : vector<2x32xf32>
    %625 = tpu.matmul %621, %367, %cst_164 {dimension_numbers = #tpu.dot_dimension_numbers<[1], [0], [0], [1], [0, 0, 1, 1], [], []>} : vector<2x32xf32>, vector<32x32xf32>, vector<2x32xf32> -> vector<2x32xf32>
    %626 = vector.broadcast %373 : vector<1x32xf32> to vector<2x32xf32>
    %627 = arith.addf %625, %626 : vector<2x32xf32>
    %cst_165 = arith.constant dense<0.000000e+00> : vector<2x32xf32>
    %628 = tpu.matmul %621, %369, %cst_165 {dimension_numbers = #tpu.dot_dimension_numbers<[1], [0], [0], [1], [0, 0, 1, 1], [], []>} : vector<2x32xf32>, vector<32x32xf32>, vector<2x32xf32> -> vector<2x32xf32>
    %629 = vector.broadcast %375 : vector<1x32xf32> to vector<2x32xf32>
    %630 = arith.addf %628, %629 : vector<2x32xf32>
    %631 = vector.extract_strided_slice %347 {offsets = [0, 7, 0], sizes = [2, 1, 32], strides = [1, 1, 1]} : vector<2x13x32xf32> to vector<2x1x32xf32>
    %632 = vector.shape_cast %631 : vector<2x1x32xf32> to vector<2x32xf32>
    %633 = arith.addf %632, %624 : vector<2x32xf32>
    %634 = arith.negf %633 : vector<2x32xf32>
    %635 = math.exp %634 : vector<2x32xf32>
    %cst_166 = arith.constant 1.000000e+00 : f32
    %636 = vector.broadcast %cst_166 : f32 to vector<2x32xf32>
    %637 = arith.addf %636, %635 : vector<2x32xf32>
    %638 = arith.divf %636, %637 : vector<2x32xf32>
    %639 = vector.extract_strided_slice %355 {offsets = [0, 7, 0], sizes = [2, 1, 32], strides = [1, 1, 1]} : vector<2x13x32xf32> to vector<2x1x32xf32>
    %640 = vector.shape_cast %639 : vector<2x1x32xf32> to vector<2x32xf32>
    %641 = arith.addf %640, %627 : vector<2x32xf32>
    %642 = arith.negf %641 : vector<2x32xf32>
    %643 = math.exp %642 : vector<2x32xf32>
    %cst_167 = arith.constant 1.000000e+00 : f32
    %644 = vector.broadcast %cst_167 : f32 to vector<2x32xf32>
    %645 = arith.addf %644, %643 : vector<2x32xf32>
    %646 = arith.divf %644, %645 : vector<2x32xf32>
    %647 = vector.extract_strided_slice %363 {offsets = [0, 7, 0], sizes = [2, 1, 32], strides = [1, 1, 1]} : vector<2x13x32xf32> to vector<2x1x32xf32>
    %648 = vector.shape_cast %647 : vector<2x1x32xf32> to vector<2x32xf32>
    %649 = arith.mulf %638, %630 : vector<2x32xf32>
    %650 = arith.addf %648, %649 : vector<2x32xf32>
    %651 = math.tanh %650 : vector<2x32xf32>
    %cst_168 = arith.constant 1.000000e+00 : f32
    %652 = vector.broadcast %cst_168 : f32 to vector<2x32xf32>
    %653 = arith.subf %652, %646 : vector<2x32xf32>
    %654 = arith.mulf %653, %651 : vector<2x32xf32>
    %655 = arith.mulf %646, %621 : vector<2x32xf32>
    %656 = arith.addf %654, %655 : vector<2x32xf32>
    %cst_169 = arith.constant dense<0.000000e+00> : vector<2x32xf32>
    %657 = tpu.matmul %656, %365, %cst_169 {dimension_numbers = #tpu.dot_dimension_numbers<[1], [0], [0], [1], [0, 0, 1, 1], [], []>} : vector<2x32xf32>, vector<32x32xf32>, vector<2x32xf32> -> vector<2x32xf32>
    %658 = vector.broadcast %371 : vector<1x32xf32> to vector<2x32xf32>
    %659 = arith.addf %657, %658 : vector<2x32xf32>
    %cst_170 = arith.constant dense<0.000000e+00> : vector<2x32xf32>
    %660 = tpu.matmul %656, %367, %cst_170 {dimension_numbers = #tpu.dot_dimension_numbers<[1], [0], [0], [1], [0, 0, 1, 1], [], []>} : vector<2x32xf32>, vector<32x32xf32>, vector<2x32xf32> -> vector<2x32xf32>
    %661 = vector.broadcast %373 : vector<1x32xf32> to vector<2x32xf32>
    %662 = arith.addf %660, %661 : vector<2x32xf32>
    %cst_171 = arith.constant dense<0.000000e+00> : vector<2x32xf32>
    %663 = tpu.matmul %656, %369, %cst_171 {dimension_numbers = #tpu.dot_dimension_numbers<[1], [0], [0], [1], [0, 0, 1, 1], [], []>} : vector<2x32xf32>, vector<32x32xf32>, vector<2x32xf32> -> vector<2x32xf32>
    %664 = vector.broadcast %375 : vector<1x32xf32> to vector<2x32xf32>
    %665 = arith.addf %663, %664 : vector<2x32xf32>
    %666 = vector.extract_strided_slice %347 {offsets = [0, 8, 0], sizes = [2, 1, 32], strides = [1, 1, 1]} : vector<2x13x32xf32> to vector<2x1x32xf32>
    %667 = vector.shape_cast %666 : vector<2x1x32xf32> to vector<2x32xf32>
    %668 = arith.addf %667, %659 : vector<2x32xf32>
    %669 = arith.negf %668 : vector<2x32xf32>
    %670 = math.exp %669 : vector<2x32xf32>
    %cst_172 = arith.constant 1.000000e+00 : f32
    %671 = vector.broadcast %cst_172 : f32 to vector<2x32xf32>
    %672 = arith.addf %671, %670 : vector<2x32xf32>
    %673 = arith.divf %671, %672 : vector<2x32xf32>
    %674 = vector.extract_strided_slice %355 {offsets = [0, 8, 0], sizes = [2, 1, 32], strides = [1, 1, 1]} : vector<2x13x32xf32> to vector<2x1x32xf32>
    %675 = vector.shape_cast %674 : vector<2x1x32xf32> to vector<2x32xf32>
    %676 = arith.addf %675, %662 : vector<2x32xf32>
    %677 = arith.negf %676 : vector<2x32xf32>
    %678 = math.exp %677 : vector<2x32xf32>
    %cst_173 = arith.constant 1.000000e+00 : f32
    %679 = vector.broadcast %cst_173 : f32 to vector<2x32xf32>
    %680 = arith.addf %679, %678 : vector<2x32xf32>
    %681 = arith.divf %679, %680 : vector<2x32xf32>
    %682 = vector.extract_strided_slice %363 {offsets = [0, 8, 0], sizes = [2, 1, 32], strides = [1, 1, 1]} : vector<2x13x32xf32> to vector<2x1x32xf32>
    %683 = vector.shape_cast %682 : vector<2x1x32xf32> to vector<2x32xf32>
    %684 = arith.mulf %673, %665 : vector<2x32xf32>
    %685 = arith.addf %683, %684 : vector<2x32xf32>
    %686 = math.tanh %685 : vector<2x32xf32>
    %cst_174 = arith.constant 1.000000e+00 : f32
    %687 = vector.broadcast %cst_174 : f32 to vector<2x32xf32>
    %688 = arith.subf %687, %681 : vector<2x32xf32>
    %689 = arith.mulf %688, %686 : vector<2x32xf32>
    %690 = arith.mulf %681, %656 : vector<2x32xf32>
    %691 = arith.addf %689, %690 : vector<2x32xf32>
    %cst_175 = arith.constant dense<0.000000e+00> : vector<2x32xf32>
    %692 = tpu.matmul %691, %365, %cst_175 {dimension_numbers = #tpu.dot_dimension_numbers<[1], [0], [0], [1], [0, 0, 1, 1], [], []>} : vector<2x32xf32>, vector<32x32xf32>, vector<2x32xf32> -> vector<2x32xf32>
    %693 = vector.broadcast %371 : vector<1x32xf32> to vector<2x32xf32>
    %694 = arith.addf %692, %693 : vector<2x32xf32>
    %cst_176 = arith.constant dense<0.000000e+00> : vector<2x32xf32>
    %695 = tpu.matmul %691, %367, %cst_176 {dimension_numbers = #tpu.dot_dimension_numbers<[1], [0], [0], [1], [0, 0, 1, 1], [], []>} : vector<2x32xf32>, vector<32x32xf32>, vector<2x32xf32> -> vector<2x32xf32>
    %696 = vector.broadcast %373 : vector<1x32xf32> to vector<2x32xf32>
    %697 = arith.addf %695, %696 : vector<2x32xf32>
    %cst_177 = arith.constant dense<0.000000e+00> : vector<2x32xf32>
    %698 = tpu.matmul %691, %369, %cst_177 {dimension_numbers = #tpu.dot_dimension_numbers<[1], [0], [0], [1], [0, 0, 1, 1], [], []>} : vector<2x32xf32>, vector<32x32xf32>, vector<2x32xf32> -> vector<2x32xf32>
    %699 = vector.broadcast %375 : vector<1x32xf32> to vector<2x32xf32>
    %700 = arith.addf %698, %699 : vector<2x32xf32>
    %701 = vector.extract_strided_slice %347 {offsets = [0, 9, 0], sizes = [2, 1, 32], strides = [1, 1, 1]} : vector<2x13x32xf32> to vector<2x1x32xf32>
    %702 = vector.shape_cast %701 : vector<2x1x32xf32> to vector<2x32xf32>
    %703 = arith.addf %702, %694 : vector<2x32xf32>
    %704 = arith.negf %703 : vector<2x32xf32>
    %705 = math.exp %704 : vector<2x32xf32>
    %cst_178 = arith.constant 1.000000e+00 : f32
    %706 = vector.broadcast %cst_178 : f32 to vector<2x32xf32>
    %707 = arith.addf %706, %705 : vector<2x32xf32>
    %708 = arith.divf %706, %707 : vector<2x32xf32>
    %709 = vector.extract_strided_slice %355 {offsets = [0, 9, 0], sizes = [2, 1, 32], strides = [1, 1, 1]} : vector<2x13x32xf32> to vector<2x1x32xf32>
    %710 = vector.shape_cast %709 : vector<2x1x32xf32> to vector<2x32xf32>
    %711 = arith.addf %710, %697 : vector<2x32xf32>
    %712 = arith.negf %711 : vector<2x32xf32>
    %713 = math.exp %712 : vector<2x32xf32>
    %cst_179 = arith.constant 1.000000e+00 : f32
    %714 = vector.broadcast %cst_179 : f32 to vector<2x32xf32>
    %715 = arith.addf %714, %713 : vector<2x32xf32>
    %716 = arith.divf %714, %715 : vector<2x32xf32>
    %717 = vector.extract_strided_slice %363 {offsets = [0, 9, 0], sizes = [2, 1, 32], strides = [1, 1, 1]} : vector<2x13x32xf32> to vector<2x1x32xf32>
    %718 = vector.shape_cast %717 : vector<2x1x32xf32> to vector<2x32xf32>
    %719 = arith.mulf %708, %700 : vector<2x32xf32>
    %720 = arith.addf %718, %719 : vector<2x32xf32>
    %721 = math.tanh %720 : vector<2x32xf32>
    %cst_180 = arith.constant 1.000000e+00 : f32
    %722 = vector.broadcast %cst_180 : f32 to vector<2x32xf32>
    %723 = arith.subf %722, %716 : vector<2x32xf32>
    %724 = arith.mulf %723, %721 : vector<2x32xf32>
    %725 = arith.mulf %716, %691 : vector<2x32xf32>
    %726 = arith.addf %724, %725 : vector<2x32xf32>
    %cst_181 = arith.constant dense<0.000000e+00> : vector<2x32xf32>
    %727 = tpu.matmul %726, %365, %cst_181 {dimension_numbers = #tpu.dot_dimension_numbers<[1], [0], [0], [1], [0, 0, 1, 1], [], []>} : vector<2x32xf32>, vector<32x32xf32>, vector<2x32xf32> -> vector<2x32xf32>
    %728 = vector.broadcast %371 : vector<1x32xf32> to vector<2x32xf32>
    %729 = arith.addf %727, %728 : vector<2x32xf32>
    %cst_182 = arith.constant dense<0.000000e+00> : vector<2x32xf32>
    %730 = tpu.matmul %726, %367, %cst_182 {dimension_numbers = #tpu.dot_dimension_numbers<[1], [0], [0], [1], [0, 0, 1, 1], [], []>} : vector<2x32xf32>, vector<32x32xf32>, vector<2x32xf32> -> vector<2x32xf32>
    %731 = vector.broadcast %373 : vector<1x32xf32> to vector<2x32xf32>
    %732 = arith.addf %730, %731 : vector<2x32xf32>
    %cst_183 = arith.constant dense<0.000000e+00> : vector<2x32xf32>
    %733 = tpu.matmul %726, %369, %cst_183 {dimension_numbers = #tpu.dot_dimension_numbers<[1], [0], [0], [1], [0, 0, 1, 1], [], []>} : vector<2x32xf32>, vector<32x32xf32>, vector<2x32xf32> -> vector<2x32xf32>
    %734 = vector.broadcast %375 : vector<1x32xf32> to vector<2x32xf32>
    %735 = arith.addf %733, %734 : vector<2x32xf32>
    %736 = vector.extract_strided_slice %347 {offsets = [0, 10, 0], sizes = [2, 1, 32], strides = [1, 1, 1]} : vector<2x13x32xf32> to vector<2x1x32xf32>
    %737 = vector.shape_cast %736 : vector<2x1x32xf32> to vector<2x32xf32>
    %738 = arith.addf %737, %729 : vector<2x32xf32>
    %739 = arith.negf %738 : vector<2x32xf32>
    %740 = math.exp %739 : vector<2x32xf32>
    %cst_184 = arith.constant 1.000000e+00 : f32
    %741 = vector.broadcast %cst_184 : f32 to vector<2x32xf32>
    %742 = arith.addf %741, %740 : vector<2x32xf32>
    %743 = arith.divf %741, %742 : vector<2x32xf32>
    %744 = vector.extract_strided_slice %355 {offsets = [0, 10, 0], sizes = [2, 1, 32], strides = [1, 1, 1]} : vector<2x13x32xf32> to vector<2x1x32xf32>
    %745 = vector.shape_cast %744 : vector<2x1x32xf32> to vector<2x32xf32>
    %746 = arith.addf %745, %732 : vector<2x32xf32>
    %747 = arith.negf %746 : vector<2x32xf32>
    %748 = math.exp %747 : vector<2x32xf32>
    %cst_185 = arith.constant 1.000000e+00 : f32
    %749 = vector.broadcast %cst_185 : f32 to vector<2x32xf32>
    %750 = arith.addf %749, %748 : vector<2x32xf32>
    %751 = arith.divf %749, %750 : vector<2x32xf32>
    %752 = vector.extract_strided_slice %363 {offsets = [0, 10, 0], sizes = [2, 1, 32], strides = [1, 1, 1]} : vector<2x13x32xf32> to vector<2x1x32xf32>
    %753 = vector.shape_cast %752 : vector<2x1x32xf32> to vector<2x32xf32>
    %754 = arith.mulf %743, %735 : vector<2x32xf32>
    %755 = arith.addf %753, %754 : vector<2x32xf32>
    %756 = math.tanh %755 : vector<2x32xf32>
    %cst_186 = arith.constant 1.000000e+00 : f32
    %757 = vector.broadcast %cst_186 : f32 to vector<2x32xf32>
    %758 = arith.subf %757, %751 : vector<2x32xf32>
    %759 = arith.mulf %758, %756 : vector<2x32xf32>
    %760 = arith.mulf %751, %726 : vector<2x32xf32>
    %761 = arith.addf %759, %760 : vector<2x32xf32>
    %cst_187 = arith.constant dense<0.000000e+00> : vector<2x32xf32>
    %762 = tpu.matmul %761, %365, %cst_187 {dimension_numbers = #tpu.dot_dimension_numbers<[1], [0], [0], [1], [0, 0, 1, 1], [], []>} : vector<2x32xf32>, vector<32x32xf32>, vector<2x32xf32> -> vector<2x32xf32>
    %763 = vector.broadcast %371 : vector<1x32xf32> to vector<2x32xf32>
    %764 = arith.addf %762, %763 : vector<2x32xf32>
    %cst_188 = arith.constant dense<0.000000e+00> : vector<2x32xf32>
    %765 = tpu.matmul %761, %367, %cst_188 {dimension_numbers = #tpu.dot_dimension_numbers<[1], [0], [0], [1], [0, 0, 1, 1], [], []>} : vector<2x32xf32>, vector<32x32xf32>, vector<2x32xf32> -> vector<2x32xf32>
    %766 = vector.broadcast %373 : vector<1x32xf32> to vector<2x32xf32>
    %767 = arith.addf %765, %766 : vector<2x32xf32>
    %cst_189 = arith.constant dense<0.000000e+00> : vector<2x32xf32>
    %768 = tpu.matmul %761, %369, %cst_189 {dimension_numbers = #tpu.dot_dimension_numbers<[1], [0], [0], [1], [0, 0, 1, 1], [], []>} : vector<2x32xf32>, vector<32x32xf32>, vector<2x32xf32> -> vector<2x32xf32>
    %769 = vector.broadcast %375 : vector<1x32xf32> to vector<2x32xf32>
    %770 = arith.addf %768, %769 : vector<2x32xf32>
    %771 = vector.extract_strided_slice %347 {offsets = [0, 11, 0], sizes = [2, 1, 32], strides = [1, 1, 1]} : vector<2x13x32xf32> to vector<2x1x32xf32>
    %772 = vector.shape_cast %771 : vector<2x1x32xf32> to vector<2x32xf32>
    %773 = arith.addf %772, %764 : vector<2x32xf32>
    %774 = arith.negf %773 : vector<2x32xf32>
    %775 = math.exp %774 : vector<2x32xf32>
    %cst_190 = arith.constant 1.000000e+00 : f32
    %776 = vector.broadcast %cst_190 : f32 to vector<2x32xf32>
    %777 = arith.addf %776, %775 : vector<2x32xf32>
    %778 = arith.divf %776, %777 : vector<2x32xf32>
    %779 = vector.extract_strided_slice %355 {offsets = [0, 11, 0], sizes = [2, 1, 32], strides = [1, 1, 1]} : vector<2x13x32xf32> to vector<2x1x32xf32>
    %780 = vector.shape_cast %779 : vector<2x1x32xf32> to vector<2x32xf32>
    %781 = arith.addf %780, %767 : vector<2x32xf32>
    %782 = arith.negf %781 : vector<2x32xf32>
    %783 = math.exp %782 : vector<2x32xf32>
    %cst_191 = arith.constant 1.000000e+00 : f32
    %784 = vector.broadcast %cst_191 : f32 to vector<2x32xf32>
    %785 = arith.addf %784, %783 : vector<2x32xf32>
    %786 = arith.divf %784, %785 : vector<2x32xf32>
    %787 = vector.extract_strided_slice %363 {offsets = [0, 11, 0], sizes = [2, 1, 32], strides = [1, 1, 1]} : vector<2x13x32xf32> to vector<2x1x32xf32>
    %788 = vector.shape_cast %787 : vector<2x1x32xf32> to vector<2x32xf32>
    %789 = arith.mulf %778, %770 : vector<2x32xf32>
    %790 = arith.addf %788, %789 : vector<2x32xf32>
    %791 = math.tanh %790 : vector<2x32xf32>
    %cst_192 = arith.constant 1.000000e+00 : f32
    %792 = vector.broadcast %cst_192 : f32 to vector<2x32xf32>
    %793 = arith.subf %792, %786 : vector<2x32xf32>
    %794 = arith.mulf %793, %791 : vector<2x32xf32>
    %795 = arith.mulf %786, %761 : vector<2x32xf32>
    %796 = arith.addf %794, %795 : vector<2x32xf32>
    %cst_193 = arith.constant dense<0.000000e+00> : vector<2x32xf32>
    %797 = tpu.matmul %796, %365, %cst_193 {dimension_numbers = #tpu.dot_dimension_numbers<[1], [0], [0], [1], [0, 0, 1, 1], [], []>} : vector<2x32xf32>, vector<32x32xf32>, vector<2x32xf32> -> vector<2x32xf32>
    %798 = vector.broadcast %371 : vector<1x32xf32> to vector<2x32xf32>
    %799 = arith.addf %797, %798 : vector<2x32xf32>
    %cst_194 = arith.constant dense<0.000000e+00> : vector<2x32xf32>
    %800 = tpu.matmul %796, %367, %cst_194 {dimension_numbers = #tpu.dot_dimension_numbers<[1], [0], [0], [1], [0, 0, 1, 1], [], []>} : vector<2x32xf32>, vector<32x32xf32>, vector<2x32xf32> -> vector<2x32xf32>
    %801 = vector.broadcast %373 : vector<1x32xf32> to vector<2x32xf32>
    %802 = arith.addf %800, %801 : vector<2x32xf32>
    %cst_195 = arith.constant dense<0.000000e+00> : vector<2x32xf32>
    %803 = tpu.matmul %796, %369, %cst_195 {dimension_numbers = #tpu.dot_dimension_numbers<[1], [0], [0], [1], [0, 0, 1, 1], [], []>} : vector<2x32xf32>, vector<32x32xf32>, vector<2x32xf32> -> vector<2x32xf32>
    %804 = vector.broadcast %375 : vector<1x32xf32> to vector<2x32xf32>
    %805 = arith.addf %803, %804 : vector<2x32xf32>
    %806 = vector.extract_strided_slice %347 {offsets = [0, 12, 0], sizes = [2, 1, 32], strides = [1, 1, 1]} : vector<2x13x32xf32> to vector<2x1x32xf32>
    %807 = vector.shape_cast %806 : vector<2x1x32xf32> to vector<2x32xf32>
    %808 = arith.addf %807, %799 : vector<2x32xf32>
    %809 = arith.negf %808 : vector<2x32xf32>
    %810 = math.exp %809 : vector<2x32xf32>
    %cst_196 = arith.constant 1.000000e+00 : f32
    %811 = vector.broadcast %cst_196 : f32 to vector<2x32xf32>
    %812 = arith.addf %811, %810 : vector<2x32xf32>
    %813 = arith.divf %811, %812 : vector<2x32xf32>
    %814 = vector.extract_strided_slice %355 {offsets = [0, 12, 0], sizes = [2, 1, 32], strides = [1, 1, 1]} : vector<2x13x32xf32> to vector<2x1x32xf32>
    %815 = vector.shape_cast %814 : vector<2x1x32xf32> to vector<2x32xf32>
    %816 = arith.addf %815, %802 : vector<2x32xf32>
    %817 = arith.negf %816 : vector<2x32xf32>
    %818 = math.exp %817 : vector<2x32xf32>
    %cst_197 = arith.constant 1.000000e+00 : f32
    %819 = vector.broadcast %cst_197 : f32 to vector<2x32xf32>
    %820 = arith.addf %819, %818 : vector<2x32xf32>
    %821 = arith.divf %819, %820 : vector<2x32xf32>
    %822 = vector.extract_strided_slice %363 {offsets = [0, 12, 0], sizes = [2, 1, 32], strides = [1, 1, 1]} : vector<2x13x32xf32> to vector<2x1x32xf32>
    %823 = vector.shape_cast %822 : vector<2x1x32xf32> to vector<2x32xf32>
    %824 = arith.mulf %813, %805 : vector<2x32xf32>
    %825 = arith.addf %823, %824 : vector<2x32xf32>
    %826 = math.tanh %825 : vector<2x32xf32>
    %cst_198 = arith.constant 1.000000e+00 : f32
    %827 = vector.broadcast %cst_198 : f32 to vector<2x32xf32>
    %828 = arith.subf %827, %821 : vector<2x32xf32>
    %829 = arith.mulf %828, %826 : vector<2x32xf32>
    %830 = arith.mulf %821, %796 : vector<2x32xf32>
    %831 = arith.addf %829, %830 : vector<2x32xf32>
    %c0_199 = arith.constant 0 : index
    %c0_200 = arith.constant 0 : index
    %c0_201 = arith.constant 0 : index
    %832 = vector.load %arg15[%c0_199, %c0_200, %c0_201] : memref<3x16x8xf32, #tpu.memory_space<vmem>>, vector<3x16x8xf32>
    %c0_202 = arith.constant 0 : index
    %c0_203 = arith.constant 0 : index
    %c0_204 = arith.constant 0 : index
    %833 = vector.load %arg17[%c0_202, %c0_203, %c0_204] : memref<3x1x8xf32, #tpu.memory_space<vmem>>, vector<3x1x8xf32>
    %c0_205 = arith.constant 0 : index
    %c0_206 = arith.constant 0 : index
    %c0_207 = arith.constant 0 : index
    %834 = vector.load %arg16[%c0_205, %c0_206, %c0_207] : memref<3x8x8xf32, #tpu.memory_space<vmem>>, vector<3x8x8xf32>
    %c0_208 = arith.constant 0 : index
    %c0_209 = arith.constant 0 : index
    %c0_210 = arith.constant 0 : index
    %835 = vector.load %arg18[%c0_208, %c0_209, %c0_210] : memref<3x1x8xf32, #tpu.memory_space<vmem>>, vector<3x1x8xf32>
    %836 = vector.extract_strided_slice %832 {offsets = [0, 0, 0], sizes = [1, 16, 8], strides = [1, 1, 1]} : vector<3x16x8xf32> to vector<1x16x8xf32>
    %837 = vector.shape_cast %836 : vector<1x16x8xf32> to vector<16x8xf32>
    %cst_211 = arith.constant dense<0.000000e+00> : vector<26x8xf32>
    %838 = tpu.matmul %335, %837, %cst_211 {dimension_numbers = #tpu.dot_dimension_numbers<[1], [0], [0], [1], [0, 0, 1, 1], [], []>} : vector<26x16xf32>, vector<16x8xf32>, vector<26x8xf32> -> vector<26x8xf32>
    %839 = vector.extract_strided_slice %833 {offsets = [0, 0, 0], sizes = [1, 1, 8], strides = [1, 1, 1]} : vector<3x1x8xf32> to vector<1x1x8xf32>
    %840 = vector.shape_cast %839 : vector<1x1x8xf32> to vector<1x8xf32>
    %841 = vector.broadcast %840 : vector<1x8xf32> to vector<26x8xf32>
    %842 = arith.addf %838, %841 : vector<26x8xf32>
    %843 = vector.shape_cast %842 : vector<26x8xf32> to vector<2x13x8xf32>
    %844 = vector.extract_strided_slice %832 {offsets = [1, 0, 0], sizes = [1, 16, 8], strides = [1, 1, 1]} : vector<3x16x8xf32> to vector<1x16x8xf32>
    %845 = vector.shape_cast %844 : vector<1x16x8xf32> to vector<16x8xf32>
    %cst_212 = arith.constant dense<0.000000e+00> : vector<26x8xf32>
    %846 = tpu.matmul %335, %845, %cst_212 {dimension_numbers = #tpu.dot_dimension_numbers<[1], [0], [0], [1], [0, 0, 1, 1], [], []>} : vector<26x16xf32>, vector<16x8xf32>, vector<26x8xf32> -> vector<26x8xf32>
    %847 = vector.extract_strided_slice %833 {offsets = [1, 0, 0], sizes = [1, 1, 8], strides = [1, 1, 1]} : vector<3x1x8xf32> to vector<1x1x8xf32>
    %848 = vector.shape_cast %847 : vector<1x1x8xf32> to vector<1x8xf32>
    %849 = vector.broadcast %848 : vector<1x8xf32> to vector<26x8xf32>
    %850 = arith.addf %846, %849 : vector<26x8xf32>
    %851 = vector.shape_cast %850 : vector<26x8xf32> to vector<2x13x8xf32>
    %852 = vector.extract_strided_slice %832 {offsets = [2, 0, 0], sizes = [1, 16, 8], strides = [1, 1, 1]} : vector<3x16x8xf32> to vector<1x16x8xf32>
    %853 = vector.shape_cast %852 : vector<1x16x8xf32> to vector<16x8xf32>
    %cst_213 = arith.constant dense<0.000000e+00> : vector<26x8xf32>
    %854 = tpu.matmul %335, %853, %cst_213 {dimension_numbers = #tpu.dot_dimension_numbers<[1], [0], [0], [1], [0, 0, 1, 1], [], []>} : vector<26x16xf32>, vector<16x8xf32>, vector<26x8xf32> -> vector<26x8xf32>
    %855 = vector.extract_strided_slice %833 {offsets = [2, 0, 0], sizes = [1, 1, 8], strides = [1, 1, 1]} : vector<3x1x8xf32> to vector<1x1x8xf32>
    %856 = vector.shape_cast %855 : vector<1x1x8xf32> to vector<1x8xf32>
    %857 = vector.broadcast %856 : vector<1x8xf32> to vector<26x8xf32>
    %858 = arith.addf %854, %857 : vector<26x8xf32>
    %859 = vector.shape_cast %858 : vector<26x8xf32> to vector<2x13x8xf32>
    %860 = vector.extract_strided_slice %834 {offsets = [0, 0, 0], sizes = [1, 8, 8], strides = [1, 1, 1]} : vector<3x8x8xf32> to vector<1x8x8xf32>
    %861 = vector.shape_cast %860 : vector<1x8x8xf32> to vector<8x8xf32>
    %862 = vector.extract_strided_slice %834 {offsets = [1, 0, 0], sizes = [1, 8, 8], strides = [1, 1, 1]} : vector<3x8x8xf32> to vector<1x8x8xf32>
    %863 = vector.shape_cast %862 : vector<1x8x8xf32> to vector<8x8xf32>
    %864 = vector.extract_strided_slice %834 {offsets = [2, 0, 0], sizes = [1, 8, 8], strides = [1, 1, 1]} : vector<3x8x8xf32> to vector<1x8x8xf32>
    %865 = vector.shape_cast %864 : vector<1x8x8xf32> to vector<8x8xf32>
    %866 = vector.extract_strided_slice %835 {offsets = [0, 0, 0], sizes = [1, 1, 8], strides = [1, 1, 1]} : vector<3x1x8xf32> to vector<1x1x8xf32>
    %867 = vector.shape_cast %866 : vector<1x1x8xf32> to vector<1x8xf32>
    %868 = vector.extract_strided_slice %835 {offsets = [1, 0, 0], sizes = [1, 1, 8], strides = [1, 1, 1]} : vector<3x1x8xf32> to vector<1x1x8xf32>
    %869 = vector.shape_cast %868 : vector<1x1x8xf32> to vector<1x8xf32>
    %870 = vector.extract_strided_slice %835 {offsets = [2, 0, 0], sizes = [1, 1, 8], strides = [1, 1, 1]} : vector<3x1x8xf32> to vector<1x1x8xf32>
    %871 = vector.shape_cast %870 : vector<1x1x8xf32> to vector<1x8xf32>
    %c0_214 = arith.constant 0 : index
    %c0_215 = arith.constant 0 : index
    %c0_216 = arith.constant 0 : index
    %872 = vector.load %arg20[%c0_214, %c0_215, %c0_216] : memref<3x8x8xf32, #tpu.memory_space<vmem>>, vector<3x8x8xf32>
    %cst_217 = arith.constant 0.000000e+00 : f32
    %873 = vector.broadcast %cst_217 : f32 to vector<2x8xf32>
    %cst_218 = arith.constant 0.000000e+00 : f32
    %874 = vector.broadcast %cst_218 : f32 to vector<2x8xf32>
    %cst_219 = arith.constant dense<0.000000e+00> : vector<2x8xf32>
    %875 = tpu.matmul %874, %861, %cst_219 {dimension_numbers = #tpu.dot_dimension_numbers<[1], [0], [0], [1], [0, 0, 1, 1], [], []>} : vector<2x8xf32>, vector<8x8xf32>, vector<2x8xf32> -> vector<2x8xf32>
    %876 = vector.broadcast %867 : vector<1x8xf32> to vector<2x8xf32>
    %877 = arith.addf %875, %876 : vector<2x8xf32>
    %cst_220 = arith.constant dense<0.000000e+00> : vector<2x8xf32>
    %878 = tpu.matmul %874, %863, %cst_220 {dimension_numbers = #tpu.dot_dimension_numbers<[1], [0], [0], [1], [0, 0, 1, 1], [], []>} : vector<2x8xf32>, vector<8x8xf32>, vector<2x8xf32> -> vector<2x8xf32>
    %879 = vector.broadcast %869 : vector<1x8xf32> to vector<2x8xf32>
    %880 = arith.addf %878, %879 : vector<2x8xf32>
    %cst_221 = arith.constant dense<0.000000e+00> : vector<2x8xf32>
    %881 = tpu.matmul %874, %865, %cst_221 {dimension_numbers = #tpu.dot_dimension_numbers<[1], [0], [0], [1], [0, 0, 1, 1], [], []>} : vector<2x8xf32>, vector<8x8xf32>, vector<2x8xf32> -> vector<2x8xf32>
    %882 = vector.broadcast %871 : vector<1x8xf32> to vector<2x8xf32>
    %883 = arith.addf %881, %882 : vector<2x8xf32>
    %884 = vector.extract_strided_slice %843 {offsets = [0, 1, 0], sizes = [2, 1, 8], strides = [1, 1, 1]} : vector<2x13x8xf32> to vector<2x1x8xf32>
    %885 = vector.shape_cast %884 : vector<2x1x8xf32> to vector<2x8xf32>
    %886 = arith.addf %885, %877 : vector<2x8xf32>
    %887 = arith.negf %886 : vector<2x8xf32>
    %888 = math.exp %887 : vector<2x8xf32>
    %cst_222 = arith.constant 1.000000e+00 : f32
    %889 = vector.broadcast %cst_222 : f32 to vector<2x8xf32>
    %890 = arith.addf %889, %888 : vector<2x8xf32>
    %891 = arith.divf %889, %890 : vector<2x8xf32>
    %892 = vector.extract_strided_slice %851 {offsets = [0, 1, 0], sizes = [2, 1, 8], strides = [1, 1, 1]} : vector<2x13x8xf32> to vector<2x1x8xf32>
    %893 = vector.shape_cast %892 : vector<2x1x8xf32> to vector<2x8xf32>
    %894 = arith.addf %893, %880 : vector<2x8xf32>
    %895 = arith.negf %894 : vector<2x8xf32>
    %896 = math.exp %895 : vector<2x8xf32>
    %cst_223 = arith.constant 1.000000e+00 : f32
    %897 = vector.broadcast %cst_223 : f32 to vector<2x8xf32>
    %898 = arith.addf %897, %896 : vector<2x8xf32>
    %899 = arith.divf %897, %898 : vector<2x8xf32>
    %900 = vector.extract_strided_slice %859 {offsets = [0, 1, 0], sizes = [2, 1, 8], strides = [1, 1, 1]} : vector<2x13x8xf32> to vector<2x1x8xf32>
    %901 = vector.shape_cast %900 : vector<2x1x8xf32> to vector<2x8xf32>
    %902 = arith.mulf %891, %883 : vector<2x8xf32>
    %903 = arith.addf %901, %902 : vector<2x8xf32>
    %904 = math.tanh %903 : vector<2x8xf32>
    %cst_224 = arith.constant 1.000000e+00 : f32
    %905 = vector.broadcast %cst_224 : f32 to vector<2x8xf32>
    %906 = arith.subf %905, %899 : vector<2x8xf32>
    %907 = arith.mulf %906, %904 : vector<2x8xf32>
    %908 = arith.mulf %899, %874 : vector<2x8xf32>
    %909 = arith.addf %907, %908 : vector<2x8xf32>
    %cst_225 = arith.constant dense<0.000000e+00> : vector<2x8xf32>
    %910 = tpu.matmul %909, %861, %cst_225 {dimension_numbers = #tpu.dot_dimension_numbers<[1], [0], [0], [1], [0, 0, 1, 1], [], []>} : vector<2x8xf32>, vector<8x8xf32>, vector<2x8xf32> -> vector<2x8xf32>
    %911 = vector.broadcast %867 : vector<1x8xf32> to vector<2x8xf32>
    %912 = arith.addf %910, %911 : vector<2x8xf32>
    %cst_226 = arith.constant dense<0.000000e+00> : vector<2x8xf32>
    %913 = tpu.matmul %909, %863, %cst_226 {dimension_numbers = #tpu.dot_dimension_numbers<[1], [0], [0], [1], [0, 0, 1, 1], [], []>} : vector<2x8xf32>, vector<8x8xf32>, vector<2x8xf32> -> vector<2x8xf32>
    %914 = vector.broadcast %869 : vector<1x8xf32> to vector<2x8xf32>
    %915 = arith.addf %913, %914 : vector<2x8xf32>
    %cst_227 = arith.constant dense<0.000000e+00> : vector<2x8xf32>
    %916 = tpu.matmul %909, %865, %cst_227 {dimension_numbers = #tpu.dot_dimension_numbers<[1], [0], [0], [1], [0, 0, 1, 1], [], []>} : vector<2x8xf32>, vector<8x8xf32>, vector<2x8xf32> -> vector<2x8xf32>
    %917 = vector.broadcast %871 : vector<1x8xf32> to vector<2x8xf32>
    %918 = arith.addf %916, %917 : vector<2x8xf32>
    %919 = vector.extract_strided_slice %843 {offsets = [0, 4, 0], sizes = [2, 1, 8], strides = [1, 1, 1]} : vector<2x13x8xf32> to vector<2x1x8xf32>
    %920 = vector.shape_cast %919 : vector<2x1x8xf32> to vector<2x8xf32>
    %921 = arith.addf %920, %912 : vector<2x8xf32>
    %922 = arith.negf %921 : vector<2x8xf32>
    %923 = math.exp %922 : vector<2x8xf32>
    %cst_228 = arith.constant 1.000000e+00 : f32
    %924 = vector.broadcast %cst_228 : f32 to vector<2x8xf32>
    %925 = arith.addf %924, %923 : vector<2x8xf32>
    %926 = arith.divf %924, %925 : vector<2x8xf32>
    %927 = vector.extract_strided_slice %851 {offsets = [0, 4, 0], sizes = [2, 1, 8], strides = [1, 1, 1]} : vector<2x13x8xf32> to vector<2x1x8xf32>
    %928 = vector.shape_cast %927 : vector<2x1x8xf32> to vector<2x8xf32>
    %929 = arith.addf %928, %915 : vector<2x8xf32>
    %930 = arith.negf %929 : vector<2x8xf32>
    %931 = math.exp %930 : vector<2x8xf32>
    %cst_229 = arith.constant 1.000000e+00 : f32
    %932 = vector.broadcast %cst_229 : f32 to vector<2x8xf32>
    %933 = arith.addf %932, %931 : vector<2x8xf32>
    %934 = arith.divf %932, %933 : vector<2x8xf32>
    %935 = vector.extract_strided_slice %859 {offsets = [0, 4, 0], sizes = [2, 1, 8], strides = [1, 1, 1]} : vector<2x13x8xf32> to vector<2x1x8xf32>
    %936 = vector.shape_cast %935 : vector<2x1x8xf32> to vector<2x8xf32>
    %937 = arith.mulf %926, %918 : vector<2x8xf32>
    %938 = arith.addf %936, %937 : vector<2x8xf32>
    %939 = math.tanh %938 : vector<2x8xf32>
    %cst_230 = arith.constant 1.000000e+00 : f32
    %940 = vector.broadcast %cst_230 : f32 to vector<2x8xf32>
    %941 = arith.subf %940, %934 : vector<2x8xf32>
    %942 = arith.mulf %941, %939 : vector<2x8xf32>
    %943 = arith.mulf %934, %909 : vector<2x8xf32>
    %944 = arith.addf %942, %943 : vector<2x8xf32>
    %cst_231 = arith.constant dense<0.000000e+00> : vector<2x8xf32>
    %945 = tpu.matmul %944, %861, %cst_231 {dimension_numbers = #tpu.dot_dimension_numbers<[1], [0], [0], [1], [0, 0, 1, 1], [], []>} : vector<2x8xf32>, vector<8x8xf32>, vector<2x8xf32> -> vector<2x8xf32>
    %946 = vector.broadcast %867 : vector<1x8xf32> to vector<2x8xf32>
    %947 = arith.addf %945, %946 : vector<2x8xf32>
    %cst_232 = arith.constant dense<0.000000e+00> : vector<2x8xf32>
    %948 = tpu.matmul %944, %863, %cst_232 {dimension_numbers = #tpu.dot_dimension_numbers<[1], [0], [0], [1], [0, 0, 1, 1], [], []>} : vector<2x8xf32>, vector<8x8xf32>, vector<2x8xf32> -> vector<2x8xf32>
    %949 = vector.broadcast %869 : vector<1x8xf32> to vector<2x8xf32>
    %950 = arith.addf %948, %949 : vector<2x8xf32>
    %cst_233 = arith.constant dense<0.000000e+00> : vector<2x8xf32>
    %951 = tpu.matmul %944, %865, %cst_233 {dimension_numbers = #tpu.dot_dimension_numbers<[1], [0], [0], [1], [0, 0, 1, 1], [], []>} : vector<2x8xf32>, vector<8x8xf32>, vector<2x8xf32> -> vector<2x8xf32>
    %952 = vector.broadcast %871 : vector<1x8xf32> to vector<2x8xf32>
    %953 = arith.addf %951, %952 : vector<2x8xf32>
    %954 = vector.extract_strided_slice %843 {offsets = [0, 7, 0], sizes = [2, 1, 8], strides = [1, 1, 1]} : vector<2x13x8xf32> to vector<2x1x8xf32>
    %955 = vector.shape_cast %954 : vector<2x1x8xf32> to vector<2x8xf32>
    %956 = arith.addf %955, %947 : vector<2x8xf32>
    %957 = arith.negf %956 : vector<2x8xf32>
    %958 = math.exp %957 : vector<2x8xf32>
    %cst_234 = arith.constant 1.000000e+00 : f32
    %959 = vector.broadcast %cst_234 : f32 to vector<2x8xf32>
    %960 = arith.addf %959, %958 : vector<2x8xf32>
    %961 = arith.divf %959, %960 : vector<2x8xf32>
    %962 = vector.extract_strided_slice %851 {offsets = [0, 7, 0], sizes = [2, 1, 8], strides = [1, 1, 1]} : vector<2x13x8xf32> to vector<2x1x8xf32>
    %963 = vector.shape_cast %962 : vector<2x1x8xf32> to vector<2x8xf32>
    %964 = arith.addf %963, %950 : vector<2x8xf32>
    %965 = arith.negf %964 : vector<2x8xf32>
    %966 = math.exp %965 : vector<2x8xf32>
    %cst_235 = arith.constant 1.000000e+00 : f32
    %967 = vector.broadcast %cst_235 : f32 to vector<2x8xf32>
    %968 = arith.addf %967, %966 : vector<2x8xf32>
    %969 = arith.divf %967, %968 : vector<2x8xf32>
    %970 = vector.extract_strided_slice %859 {offsets = [0, 7, 0], sizes = [2, 1, 8], strides = [1, 1, 1]} : vector<2x13x8xf32> to vector<2x1x8xf32>
    %971 = vector.shape_cast %970 : vector<2x1x8xf32> to vector<2x8xf32>
    %972 = arith.mulf %961, %953 : vector<2x8xf32>
    %973 = arith.addf %971, %972 : vector<2x8xf32>
    %974 = math.tanh %973 : vector<2x8xf32>
    %cst_236 = arith.constant 1.000000e+00 : f32
    %975 = vector.broadcast %cst_236 : f32 to vector<2x8xf32>
    %976 = arith.subf %975, %969 : vector<2x8xf32>
    %977 = arith.mulf %976, %974 : vector<2x8xf32>
    %978 = arith.mulf %969, %944 : vector<2x8xf32>
    %979 = arith.addf %977, %978 : vector<2x8xf32>
    %cst_237 = arith.constant dense<0.000000e+00> : vector<2x8xf32>
    %980 = tpu.matmul %979, %861, %cst_237 {dimension_numbers = #tpu.dot_dimension_numbers<[1], [0], [0], [1], [0, 0, 1, 1], [], []>} : vector<2x8xf32>, vector<8x8xf32>, vector<2x8xf32> -> vector<2x8xf32>
    %981 = vector.broadcast %867 : vector<1x8xf32> to vector<2x8xf32>
    %982 = arith.addf %980, %981 : vector<2x8xf32>
    %cst_238 = arith.constant dense<0.000000e+00> : vector<2x8xf32>
    %983 = tpu.matmul %979, %863, %cst_238 {dimension_numbers = #tpu.dot_dimension_numbers<[1], [0], [0], [1], [0, 0, 1, 1], [], []>} : vector<2x8xf32>, vector<8x8xf32>, vector<2x8xf32> -> vector<2x8xf32>
    %984 = vector.broadcast %869 : vector<1x8xf32> to vector<2x8xf32>
    %985 = arith.addf %983, %984 : vector<2x8xf32>
    %cst_239 = arith.constant dense<0.000000e+00> : vector<2x8xf32>
    %986 = tpu.matmul %979, %865, %cst_239 {dimension_numbers = #tpu.dot_dimension_numbers<[1], [0], [0], [1], [0, 0, 1, 1], [], []>} : vector<2x8xf32>, vector<8x8xf32>, vector<2x8xf32> -> vector<2x8xf32>
    %987 = vector.broadcast %871 : vector<1x8xf32> to vector<2x8xf32>
    %988 = arith.addf %986, %987 : vector<2x8xf32>
    %989 = vector.extract_strided_slice %843 {offsets = [0, 10, 0], sizes = [2, 1, 8], strides = [1, 1, 1]} : vector<2x13x8xf32> to vector<2x1x8xf32>
    %990 = vector.shape_cast %989 : vector<2x1x8xf32> to vector<2x8xf32>
    %991 = arith.addf %990, %982 : vector<2x8xf32>
    %992 = arith.negf %991 : vector<2x8xf32>
    %993 = math.exp %992 : vector<2x8xf32>
    %cst_240 = arith.constant 1.000000e+00 : f32
    %994 = vector.broadcast %cst_240 : f32 to vector<2x8xf32>
    %995 = arith.addf %994, %993 : vector<2x8xf32>
    %996 = arith.divf %994, %995 : vector<2x8xf32>
    %997 = vector.extract_strided_slice %851 {offsets = [0, 10, 0], sizes = [2, 1, 8], strides = [1, 1, 1]} : vector<2x13x8xf32> to vector<2x1x8xf32>
    %998 = vector.shape_cast %997 : vector<2x1x8xf32> to vector<2x8xf32>
    %999 = arith.addf %998, %985 : vector<2x8xf32>
    %1000 = arith.negf %999 : vector<2x8xf32>
    %1001 = math.exp %1000 : vector<2x8xf32>
    %cst_241 = arith.constant 1.000000e+00 : f32
    %1002 = vector.broadcast %cst_241 : f32 to vector<2x8xf32>
    %1003 = arith.addf %1002, %1001 : vector<2x8xf32>
    %1004 = arith.divf %1002, %1003 : vector<2x8xf32>
    %1005 = vector.extract_strided_slice %859 {offsets = [0, 10, 0], sizes = [2, 1, 8], strides = [1, 1, 1]} : vector<2x13x8xf32> to vector<2x1x8xf32>
    %1006 = vector.shape_cast %1005 : vector<2x1x8xf32> to vector<2x8xf32>
    %1007 = arith.mulf %996, %988 : vector<2x8xf32>
    %1008 = arith.addf %1006, %1007 : vector<2x8xf32>
    %1009 = math.tanh %1008 : vector<2x8xf32>
    %cst_242 = arith.constant 1.000000e+00 : f32
    %1010 = vector.broadcast %cst_242 : f32 to vector<2x8xf32>
    %1011 = arith.subf %1010, %1004 : vector<2x8xf32>
    %1012 = arith.mulf %1011, %1009 : vector<2x8xf32>
    %1013 = arith.mulf %1004, %979 : vector<2x8xf32>
    %1014 = arith.addf %1012, %1013 : vector<2x8xf32>
    %1015 = vector.extract_strided_slice %872 {offsets = [0, 0, 0], sizes = [1, 8, 8], strides = [1, 1, 1]} : vector<3x8x8xf32> to vector<1x8x8xf32>
    %1016 = vector.shape_cast %1015 : vector<1x8x8xf32> to vector<8x8xf32>
    %cst_243 = arith.constant dense<0.000000e+00> : vector<2x8xf32>
    %1017 = tpu.matmul %1014, %1016, %cst_243 {dimension_numbers = #tpu.dot_dimension_numbers<[1], [0], [0], [1], [0, 0, 1, 1], [], []>} : vector<2x8xf32>, vector<8x8xf32>, vector<2x8xf32> -> vector<2x8xf32>
    %1018 = arith.addf %873, %1017 : vector<2x8xf32>
    %cst_244 = arith.constant 0.000000e+00 : f32
    %1019 = vector.broadcast %cst_244 : f32 to vector<2x8xf32>
    %cst_245 = arith.constant dense<0.000000e+00> : vector<2x8xf32>
    %1020 = tpu.matmul %1019, %861, %cst_245 {dimension_numbers = #tpu.dot_dimension_numbers<[1], [0], [0], [1], [0, 0, 1, 1], [], []>} : vector<2x8xf32>, vector<8x8xf32>, vector<2x8xf32> -> vector<2x8xf32>
    %1021 = vector.broadcast %867 : vector<1x8xf32> to vector<2x8xf32>
    %1022 = arith.addf %1020, %1021 : vector<2x8xf32>
    %cst_246 = arith.constant dense<0.000000e+00> : vector<2x8xf32>
    %1023 = tpu.matmul %1019, %863, %cst_246 {dimension_numbers = #tpu.dot_dimension_numbers<[1], [0], [0], [1], [0, 0, 1, 1], [], []>} : vector<2x8xf32>, vector<8x8xf32>, vector<2x8xf32> -> vector<2x8xf32>
    %1024 = vector.broadcast %869 : vector<1x8xf32> to vector<2x8xf32>
    %1025 = arith.addf %1023, %1024 : vector<2x8xf32>
    %cst_247 = arith.constant dense<0.000000e+00> : vector<2x8xf32>
    %1026 = tpu.matmul %1019, %865, %cst_247 {dimension_numbers = #tpu.dot_dimension_numbers<[1], [0], [0], [1], [0, 0, 1, 1], [], []>} : vector<2x8xf32>, vector<8x8xf32>, vector<2x8xf32> -> vector<2x8xf32>
    %1027 = vector.broadcast %871 : vector<1x8xf32> to vector<2x8xf32>
    %1028 = arith.addf %1026, %1027 : vector<2x8xf32>
    %1029 = vector.extract_strided_slice %843 {offsets = [0, 2, 0], sizes = [2, 1, 8], strides = [1, 1, 1]} : vector<2x13x8xf32> to vector<2x1x8xf32>
    %1030 = vector.shape_cast %1029 : vector<2x1x8xf32> to vector<2x8xf32>
    %1031 = arith.addf %1030, %1022 : vector<2x8xf32>
    %1032 = arith.negf %1031 : vector<2x8xf32>
    %1033 = math.exp %1032 : vector<2x8xf32>
    %cst_248 = arith.constant 1.000000e+00 : f32
    %1034 = vector.broadcast %cst_248 : f32 to vector<2x8xf32>
    %1035 = arith.addf %1034, %1033 : vector<2x8xf32>
    %1036 = arith.divf %1034, %1035 : vector<2x8xf32>
    %1037 = vector.extract_strided_slice %851 {offsets = [0, 2, 0], sizes = [2, 1, 8], strides = [1, 1, 1]} : vector<2x13x8xf32> to vector<2x1x8xf32>
    %1038 = vector.shape_cast %1037 : vector<2x1x8xf32> to vector<2x8xf32>
    %1039 = arith.addf %1038, %1025 : vector<2x8xf32>
    %1040 = arith.negf %1039 : vector<2x8xf32>
    %1041 = math.exp %1040 : vector<2x8xf32>
    %cst_249 = arith.constant 1.000000e+00 : f32
    %1042 = vector.broadcast %cst_249 : f32 to vector<2x8xf32>
    %1043 = arith.addf %1042, %1041 : vector<2x8xf32>
    %1044 = arith.divf %1042, %1043 : vector<2x8xf32>
    %1045 = vector.extract_strided_slice %859 {offsets = [0, 2, 0], sizes = [2, 1, 8], strides = [1, 1, 1]} : vector<2x13x8xf32> to vector<2x1x8xf32>
    %1046 = vector.shape_cast %1045 : vector<2x1x8xf32> to vector<2x8xf32>
    %1047 = arith.mulf %1036, %1028 : vector<2x8xf32>
    %1048 = arith.addf %1046, %1047 : vector<2x8xf32>
    %1049 = math.tanh %1048 : vector<2x8xf32>
    %cst_250 = arith.constant 1.000000e+00 : f32
    %1050 = vector.broadcast %cst_250 : f32 to vector<2x8xf32>
    %1051 = arith.subf %1050, %1044 : vector<2x8xf32>
    %1052 = arith.mulf %1051, %1049 : vector<2x8xf32>
    %1053 = arith.mulf %1044, %1019 : vector<2x8xf32>
    %1054 = arith.addf %1052, %1053 : vector<2x8xf32>
    %cst_251 = arith.constant dense<0.000000e+00> : vector<2x8xf32>
    %1055 = tpu.matmul %1054, %861, %cst_251 {dimension_numbers = #tpu.dot_dimension_numbers<[1], [0], [0], [1], [0, 0, 1, 1], [], []>} : vector<2x8xf32>, vector<8x8xf32>, vector<2x8xf32> -> vector<2x8xf32>
    %1056 = vector.broadcast %867 : vector<1x8xf32> to vector<2x8xf32>
    %1057 = arith.addf %1055, %1056 : vector<2x8xf32>
    %cst_252 = arith.constant dense<0.000000e+00> : vector<2x8xf32>
    %1058 = tpu.matmul %1054, %863, %cst_252 {dimension_numbers = #tpu.dot_dimension_numbers<[1], [0], [0], [1], [0, 0, 1, 1], [], []>} : vector<2x8xf32>, vector<8x8xf32>, vector<2x8xf32> -> vector<2x8xf32>
    %1059 = vector.broadcast %869 : vector<1x8xf32> to vector<2x8xf32>
    %1060 = arith.addf %1058, %1059 : vector<2x8xf32>
    %cst_253 = arith.constant dense<0.000000e+00> : vector<2x8xf32>
    %1061 = tpu.matmul %1054, %865, %cst_253 {dimension_numbers = #tpu.dot_dimension_numbers<[1], [0], [0], [1], [0, 0, 1, 1], [], []>} : vector<2x8xf32>, vector<8x8xf32>, vector<2x8xf32> -> vector<2x8xf32>
    %1062 = vector.broadcast %871 : vector<1x8xf32> to vector<2x8xf32>
    %1063 = arith.addf %1061, %1062 : vector<2x8xf32>
    %1064 = vector.extract_strided_slice %843 {offsets = [0, 5, 0], sizes = [2, 1, 8], strides = [1, 1, 1]} : vector<2x13x8xf32> to vector<2x1x8xf32>
    %1065 = vector.shape_cast %1064 : vector<2x1x8xf32> to vector<2x8xf32>
    %1066 = arith.addf %1065, %1057 : vector<2x8xf32>
    %1067 = arith.negf %1066 : vector<2x8xf32>
    %1068 = math.exp %1067 : vector<2x8xf32>
    %cst_254 = arith.constant 1.000000e+00 : f32
    %1069 = vector.broadcast %cst_254 : f32 to vector<2x8xf32>
    %1070 = arith.addf %1069, %1068 : vector<2x8xf32>
    %1071 = arith.divf %1069, %1070 : vector<2x8xf32>
    %1072 = vector.extract_strided_slice %851 {offsets = [0, 5, 0], sizes = [2, 1, 8], strides = [1, 1, 1]} : vector<2x13x8xf32> to vector<2x1x8xf32>
    %1073 = vector.shape_cast %1072 : vector<2x1x8xf32> to vector<2x8xf32>
    %1074 = arith.addf %1073, %1060 : vector<2x8xf32>
    %1075 = arith.negf %1074 : vector<2x8xf32>
    %1076 = math.exp %1075 : vector<2x8xf32>
    %cst_255 = arith.constant 1.000000e+00 : f32
    %1077 = vector.broadcast %cst_255 : f32 to vector<2x8xf32>
    %1078 = arith.addf %1077, %1076 : vector<2x8xf32>
    %1079 = arith.divf %1077, %1078 : vector<2x8xf32>
    %1080 = vector.extract_strided_slice %859 {offsets = [0, 5, 0], sizes = [2, 1, 8], strides = [1, 1, 1]} : vector<2x13x8xf32> to vector<2x1x8xf32>
    %1081 = vector.shape_cast %1080 : vector<2x1x8xf32> to vector<2x8xf32>
    %1082 = arith.mulf %1071, %1063 : vector<2x8xf32>
    %1083 = arith.addf %1081, %1082 : vector<2x8xf32>
    %1084 = math.tanh %1083 : vector<2x8xf32>
    %cst_256 = arith.constant 1.000000e+00 : f32
    %1085 = vector.broadcast %cst_256 : f32 to vector<2x8xf32>
    %1086 = arith.subf %1085, %1079 : vector<2x8xf32>
    %1087 = arith.mulf %1086, %1084 : vector<2x8xf32>
    %1088 = arith.mulf %1079, %1054 : vector<2x8xf32>
    %1089 = arith.addf %1087, %1088 : vector<2x8xf32>
    %cst_257 = arith.constant dense<0.000000e+00> : vector<2x8xf32>
    %1090 = tpu.matmul %1089, %861, %cst_257 {dimension_numbers = #tpu.dot_dimension_numbers<[1], [0], [0], [1], [0, 0, 1, 1], [], []>} : vector<2x8xf32>, vector<8x8xf32>, vector<2x8xf32> -> vector<2x8xf32>
    %1091 = vector.broadcast %867 : vector<1x8xf32> to vector<2x8xf32>
    %1092 = arith.addf %1090, %1091 : vector<2x8xf32>
    %cst_258 = arith.constant dense<0.000000e+00> : vector<2x8xf32>
    %1093 = tpu.matmul %1089, %863, %cst_258 {dimension_numbers = #tpu.dot_dimension_numbers<[1], [0], [0], [1], [0, 0, 1, 1], [], []>} : vector<2x8xf32>, vector<8x8xf32>, vector<2x8xf32> -> vector<2x8xf32>
    %1094 = vector.broadcast %869 : vector<1x8xf32> to vector<2x8xf32>
    %1095 = arith.addf %1093, %1094 : vector<2x8xf32>
    %cst_259 = arith.constant dense<0.000000e+00> : vector<2x8xf32>
    %1096 = tpu.matmul %1089, %865, %cst_259 {dimension_numbers = #tpu.dot_dimension_numbers<[1], [0], [0], [1], [0, 0, 1, 1], [], []>} : vector<2x8xf32>, vector<8x8xf32>, vector<2x8xf32> -> vector<2x8xf32>
    %1097 = vector.broadcast %871 : vector<1x8xf32> to vector<2x8xf32>
    %1098 = arith.addf %1096, %1097 : vector<2x8xf32>
    %1099 = vector.extract_strided_slice %843 {offsets = [0, 8, 0], sizes = [2, 1, 8], strides = [1, 1, 1]} : vector<2x13x8xf32> to vector<2x1x8xf32>
    %1100 = vector.shape_cast %1099 : vector<2x1x8xf32> to vector<2x8xf32>
    %1101 = arith.addf %1100, %1092 : vector<2x8xf32>
    %1102 = arith.negf %1101 : vector<2x8xf32>
    %1103 = math.exp %1102 : vector<2x8xf32>
    %cst_260 = arith.constant 1.000000e+00 : f32
    %1104 = vector.broadcast %cst_260 : f32 to vector<2x8xf32>
    %1105 = arith.addf %1104, %1103 : vector<2x8xf32>
    %1106 = arith.divf %1104, %1105 : vector<2x8xf32>
    %1107 = vector.extract_strided_slice %851 {offsets = [0, 8, 0], sizes = [2, 1, 8], strides = [1, 1, 1]} : vector<2x13x8xf32> to vector<2x1x8xf32>
    %1108 = vector.shape_cast %1107 : vector<2x1x8xf32> to vector<2x8xf32>
    %1109 = arith.addf %1108, %1095 : vector<2x8xf32>
    %1110 = arith.negf %1109 : vector<2x8xf32>
    %1111 = math.exp %1110 : vector<2x8xf32>
    %cst_261 = arith.constant 1.000000e+00 : f32
    %1112 = vector.broadcast %cst_261 : f32 to vector<2x8xf32>
    %1113 = arith.addf %1112, %1111 : vector<2x8xf32>
    %1114 = arith.divf %1112, %1113 : vector<2x8xf32>
    %1115 = vector.extract_strided_slice %859 {offsets = [0, 8, 0], sizes = [2, 1, 8], strides = [1, 1, 1]} : vector<2x13x8xf32> to vector<2x1x8xf32>
    %1116 = vector.shape_cast %1115 : vector<2x1x8xf32> to vector<2x8xf32>
    %1117 = arith.mulf %1106, %1098 : vector<2x8xf32>
    %1118 = arith.addf %1116, %1117 : vector<2x8xf32>
    %1119 = math.tanh %1118 : vector<2x8xf32>
    %cst_262 = arith.constant 1.000000e+00 : f32
    %1120 = vector.broadcast %cst_262 : f32 to vector<2x8xf32>
    %1121 = arith.subf %1120, %1114 : vector<2x8xf32>
    %1122 = arith.mulf %1121, %1119 : vector<2x8xf32>
    %1123 = arith.mulf %1114, %1089 : vector<2x8xf32>
    %1124 = arith.addf %1122, %1123 : vector<2x8xf32>
    %cst_263 = arith.constant dense<0.000000e+00> : vector<2x8xf32>
    %1125 = tpu.matmul %1124, %861, %cst_263 {dimension_numbers = #tpu.dot_dimension_numbers<[1], [0], [0], [1], [0, 0, 1, 1], [], []>} : vector<2x8xf32>, vector<8x8xf32>, vector<2x8xf32> -> vector<2x8xf32>
    %1126 = vector.broadcast %867 : vector<1x8xf32> to vector<2x8xf32>
    %1127 = arith.addf %1125, %1126 : vector<2x8xf32>
    %cst_264 = arith.constant dense<0.000000e+00> : vector<2x8xf32>
    %1128 = tpu.matmul %1124, %863, %cst_264 {dimension_numbers = #tpu.dot_dimension_numbers<[1], [0], [0], [1], [0, 0, 1, 1], [], []>} : vector<2x8xf32>, vector<8x8xf32>, vector<2x8xf32> -> vector<2x8xf32>
    %1129 = vector.broadcast %869 : vector<1x8xf32> to vector<2x8xf32>
    %1130 = arith.addf %1128, %1129 : vector<2x8xf32>
    %cst_265 = arith.constant dense<0.000000e+00> : vector<2x8xf32>
    %1131 = tpu.matmul %1124, %865, %cst_265 {dimension_numbers = #tpu.dot_dimension_numbers<[1], [0], [0], [1], [0, 0, 1, 1], [], []>} : vector<2x8xf32>, vector<8x8xf32>, vector<2x8xf32> -> vector<2x8xf32>
    %1132 = vector.broadcast %871 : vector<1x8xf32> to vector<2x8xf32>
    %1133 = arith.addf %1131, %1132 : vector<2x8xf32>
    %1134 = vector.extract_strided_slice %843 {offsets = [0, 11, 0], sizes = [2, 1, 8], strides = [1, 1, 1]} : vector<2x13x8xf32> to vector<2x1x8xf32>
    %1135 = vector.shape_cast %1134 : vector<2x1x8xf32> to vector<2x8xf32>
    %1136 = arith.addf %1135, %1127 : vector<2x8xf32>
    %1137 = arith.negf %1136 : vector<2x8xf32>
    %1138 = math.exp %1137 : vector<2x8xf32>
    %cst_266 = arith.constant 1.000000e+00 : f32
    %1139 = vector.broadcast %cst_266 : f32 to vector<2x8xf32>
    %1140 = arith.addf %1139, %1138 : vector<2x8xf32>
    %1141 = arith.divf %1139, %1140 : vector<2x8xf32>
    %1142 = vector.extract_strided_slice %851 {offsets = [0, 11, 0], sizes = [2, 1, 8], strides = [1, 1, 1]} : vector<2x13x8xf32> to vector<2x1x8xf32>
    %1143 = vector.shape_cast %1142 : vector<2x1x8xf32> to vector<2x8xf32>
    %1144 = arith.addf %1143, %1130 : vector<2x8xf32>
    %1145 = arith.negf %1144 : vector<2x8xf32>
    %1146 = math.exp %1145 : vector<2x8xf32>
    %cst_267 = arith.constant 1.000000e+00 : f32
    %1147 = vector.broadcast %cst_267 : f32 to vector<2x8xf32>
    %1148 = arith.addf %1147, %1146 : vector<2x8xf32>
    %1149 = arith.divf %1147, %1148 : vector<2x8xf32>
    %1150 = vector.extract_strided_slice %859 {offsets = [0, 11, 0], sizes = [2, 1, 8], strides = [1, 1, 1]} : vector<2x13x8xf32> to vector<2x1x8xf32>
    %1151 = vector.shape_cast %1150 : vector<2x1x8xf32> to vector<2x8xf32>
    %1152 = arith.mulf %1141, %1133 : vector<2x8xf32>
    %1153 = arith.addf %1151, %1152 : vector<2x8xf32>
    %1154 = math.tanh %1153 : vector<2x8xf32>
    %cst_268 = arith.constant 1.000000e+00 : f32
    %1155 = vector.broadcast %cst_268 : f32 to vector<2x8xf32>
    %1156 = arith.subf %1155, %1149 : vector<2x8xf32>
    %1157 = arith.mulf %1156, %1154 : vector<2x8xf32>
    %1158 = arith.mulf %1149, %1124 : vector<2x8xf32>
    %1159 = arith.addf %1157, %1158 : vector<2x8xf32>
    %1160 = vector.extract_strided_slice %872 {offsets = [1, 0, 0], sizes = [1, 8, 8], strides = [1, 1, 1]} : vector<3x8x8xf32> to vector<1x8x8xf32>
    %1161 = vector.shape_cast %1160 : vector<1x8x8xf32> to vector<8x8xf32>
    %cst_269 = arith.constant dense<0.000000e+00> : vector<2x8xf32>
    %1162 = tpu.matmul %1159, %1161, %cst_269 {dimension_numbers = #tpu.dot_dimension_numbers<[1], [0], [0], [1], [0, 0, 1, 1], [], []>} : vector<2x8xf32>, vector<8x8xf32>, vector<2x8xf32> -> vector<2x8xf32>
    %1163 = arith.addf %1018, %1162 : vector<2x8xf32>
    %cst_270 = arith.constant 0.000000e+00 : f32
    %1164 = vector.broadcast %cst_270 : f32 to vector<2x8xf32>
    %cst_271 = arith.constant dense<0.000000e+00> : vector<2x8xf32>
    %1165 = tpu.matmul %1164, %861, %cst_271 {dimension_numbers = #tpu.dot_dimension_numbers<[1], [0], [0], [1], [0, 0, 1, 1], [], []>} : vector<2x8xf32>, vector<8x8xf32>, vector<2x8xf32> -> vector<2x8xf32>
    %1166 = vector.broadcast %867 : vector<1x8xf32> to vector<2x8xf32>
    %1167 = arith.addf %1165, %1166 : vector<2x8xf32>
    %cst_272 = arith.constant dense<0.000000e+00> : vector<2x8xf32>
    %1168 = tpu.matmul %1164, %863, %cst_272 {dimension_numbers = #tpu.dot_dimension_numbers<[1], [0], [0], [1], [0, 0, 1, 1], [], []>} : vector<2x8xf32>, vector<8x8xf32>, vector<2x8xf32> -> vector<2x8xf32>
    %1169 = vector.broadcast %869 : vector<1x8xf32> to vector<2x8xf32>
    %1170 = arith.addf %1168, %1169 : vector<2x8xf32>
    %cst_273 = arith.constant dense<0.000000e+00> : vector<2x8xf32>
    %1171 = tpu.matmul %1164, %865, %cst_273 {dimension_numbers = #tpu.dot_dimension_numbers<[1], [0], [0], [1], [0, 0, 1, 1], [], []>} : vector<2x8xf32>, vector<8x8xf32>, vector<2x8xf32> -> vector<2x8xf32>
    %1172 = vector.broadcast %871 : vector<1x8xf32> to vector<2x8xf32>
    %1173 = arith.addf %1171, %1172 : vector<2x8xf32>
    %1174 = vector.extract_strided_slice %843 {offsets = [0, 3, 0], sizes = [2, 1, 8], strides = [1, 1, 1]} : vector<2x13x8xf32> to vector<2x1x8xf32>
    %1175 = vector.shape_cast %1174 : vector<2x1x8xf32> to vector<2x8xf32>
    %1176 = arith.addf %1175, %1167 : vector<2x8xf32>
    %1177 = arith.negf %1176 : vector<2x8xf32>
    %1178 = math.exp %1177 : vector<2x8xf32>
    %cst_274 = arith.constant 1.000000e+00 : f32
    %1179 = vector.broadcast %cst_274 : f32 to vector<2x8xf32>
    %1180 = arith.addf %1179, %1178 : vector<2x8xf32>
    %1181 = arith.divf %1179, %1180 : vector<2x8xf32>
    %1182 = vector.extract_strided_slice %851 {offsets = [0, 3, 0], sizes = [2, 1, 8], strides = [1, 1, 1]} : vector<2x13x8xf32> to vector<2x1x8xf32>
    %1183 = vector.shape_cast %1182 : vector<2x1x8xf32> to vector<2x8xf32>
    %1184 = arith.addf %1183, %1170 : vector<2x8xf32>
    %1185 = arith.negf %1184 : vector<2x8xf32>
    %1186 = math.exp %1185 : vector<2x8xf32>
    %cst_275 = arith.constant 1.000000e+00 : f32
    %1187 = vector.broadcast %cst_275 : f32 to vector<2x8xf32>
    %1188 = arith.addf %1187, %1186 : vector<2x8xf32>
    %1189 = arith.divf %1187, %1188 : vector<2x8xf32>
    %1190 = vector.extract_strided_slice %859 {offsets = [0, 3, 0], sizes = [2, 1, 8], strides = [1, 1, 1]} : vector<2x13x8xf32> to vector<2x1x8xf32>
    %1191 = vector.shape_cast %1190 : vector<2x1x8xf32> to vector<2x8xf32>
    %1192 = arith.mulf %1181, %1173 : vector<2x8xf32>
    %1193 = arith.addf %1191, %1192 : vector<2x8xf32>
    %1194 = math.tanh %1193 : vector<2x8xf32>
    %cst_276 = arith.constant 1.000000e+00 : f32
    %1195 = vector.broadcast %cst_276 : f32 to vector<2x8xf32>
    %1196 = arith.subf %1195, %1189 : vector<2x8xf32>
    %1197 = arith.mulf %1196, %1194 : vector<2x8xf32>
    %1198 = arith.mulf %1189, %1164 : vector<2x8xf32>
    %1199 = arith.addf %1197, %1198 : vector<2x8xf32>
    %cst_277 = arith.constant dense<0.000000e+00> : vector<2x8xf32>
    %1200 = tpu.matmul %1199, %861, %cst_277 {dimension_numbers = #tpu.dot_dimension_numbers<[1], [0], [0], [1], [0, 0, 1, 1], [], []>} : vector<2x8xf32>, vector<8x8xf32>, vector<2x8xf32> -> vector<2x8xf32>
    %1201 = vector.broadcast %867 : vector<1x8xf32> to vector<2x8xf32>
    %1202 = arith.addf %1200, %1201 : vector<2x8xf32>
    %cst_278 = arith.constant dense<0.000000e+00> : vector<2x8xf32>
    %1203 = tpu.matmul %1199, %863, %cst_278 {dimension_numbers = #tpu.dot_dimension_numbers<[1], [0], [0], [1], [0, 0, 1, 1], [], []>} : vector<2x8xf32>, vector<8x8xf32>, vector<2x8xf32> -> vector<2x8xf32>
    %1204 = vector.broadcast %869 : vector<1x8xf32> to vector<2x8xf32>
    %1205 = arith.addf %1203, %1204 : vector<2x8xf32>
    %cst_279 = arith.constant dense<0.000000e+00> : vector<2x8xf32>
    %1206 = tpu.matmul %1199, %865, %cst_279 {dimension_numbers = #tpu.dot_dimension_numbers<[1], [0], [0], [1], [0, 0, 1, 1], [], []>} : vector<2x8xf32>, vector<8x8xf32>, vector<2x8xf32> -> vector<2x8xf32>
    %1207 = vector.broadcast %871 : vector<1x8xf32> to vector<2x8xf32>
    %1208 = arith.addf %1206, %1207 : vector<2x8xf32>
    %1209 = vector.extract_strided_slice %843 {offsets = [0, 6, 0], sizes = [2, 1, 8], strides = [1, 1, 1]} : vector<2x13x8xf32> to vector<2x1x8xf32>
    %1210 = vector.shape_cast %1209 : vector<2x1x8xf32> to vector<2x8xf32>
    %1211 = arith.addf %1210, %1202 : vector<2x8xf32>
    %1212 = arith.negf %1211 : vector<2x8xf32>
    %1213 = math.exp %1212 : vector<2x8xf32>
    %cst_280 = arith.constant 1.000000e+00 : f32
    %1214 = vector.broadcast %cst_280 : f32 to vector<2x8xf32>
    %1215 = arith.addf %1214, %1213 : vector<2x8xf32>
    %1216 = arith.divf %1214, %1215 : vector<2x8xf32>
    %1217 = vector.extract_strided_slice %851 {offsets = [0, 6, 0], sizes = [2, 1, 8], strides = [1, 1, 1]} : vector<2x13x8xf32> to vector<2x1x8xf32>
    %1218 = vector.shape_cast %1217 : vector<2x1x8xf32> to vector<2x8xf32>
    %1219 = arith.addf %1218, %1205 : vector<2x8xf32>
    %1220 = arith.negf %1219 : vector<2x8xf32>
    %1221 = math.exp %1220 : vector<2x8xf32>
    %cst_281 = arith.constant 1.000000e+00 : f32
    %1222 = vector.broadcast %cst_281 : f32 to vector<2x8xf32>
    %1223 = arith.addf %1222, %1221 : vector<2x8xf32>
    %1224 = arith.divf %1222, %1223 : vector<2x8xf32>
    %1225 = vector.extract_strided_slice %859 {offsets = [0, 6, 0], sizes = [2, 1, 8], strides = [1, 1, 1]} : vector<2x13x8xf32> to vector<2x1x8xf32>
    %1226 = vector.shape_cast %1225 : vector<2x1x8xf32> to vector<2x8xf32>
    %1227 = arith.mulf %1216, %1208 : vector<2x8xf32>
    %1228 = arith.addf %1226, %1227 : vector<2x8xf32>
    %1229 = math.tanh %1228 : vector<2x8xf32>
    %cst_282 = arith.constant 1.000000e+00 : f32
    %1230 = vector.broadcast %cst_282 : f32 to vector<2x8xf32>
    %1231 = arith.subf %1230, %1224 : vector<2x8xf32>
    %1232 = arith.mulf %1231, %1229 : vector<2x8xf32>
    %1233 = arith.mulf %1224, %1199 : vector<2x8xf32>
    %1234 = arith.addf %1232, %1233 : vector<2x8xf32>
    %cst_283 = arith.constant dense<0.000000e+00> : vector<2x8xf32>
    %1235 = tpu.matmul %1234, %861, %cst_283 {dimension_numbers = #tpu.dot_dimension_numbers<[1], [0], [0], [1], [0, 0, 1, 1], [], []>} : vector<2x8xf32>, vector<8x8xf32>, vector<2x8xf32> -> vector<2x8xf32>
    %1236 = vector.broadcast %867 : vector<1x8xf32> to vector<2x8xf32>
    %1237 = arith.addf %1235, %1236 : vector<2x8xf32>
    %cst_284 = arith.constant dense<0.000000e+00> : vector<2x8xf32>
    %1238 = tpu.matmul %1234, %863, %cst_284 {dimension_numbers = #tpu.dot_dimension_numbers<[1], [0], [0], [1], [0, 0, 1, 1], [], []>} : vector<2x8xf32>, vector<8x8xf32>, vector<2x8xf32> -> vector<2x8xf32>
    %1239 = vector.broadcast %869 : vector<1x8xf32> to vector<2x8xf32>
    %1240 = arith.addf %1238, %1239 : vector<2x8xf32>
    %cst_285 = arith.constant dense<0.000000e+00> : vector<2x8xf32>
    %1241 = tpu.matmul %1234, %865, %cst_285 {dimension_numbers = #tpu.dot_dimension_numbers<[1], [0], [0], [1], [0, 0, 1, 1], [], []>} : vector<2x8xf32>, vector<8x8xf32>, vector<2x8xf32> -> vector<2x8xf32>
    %1242 = vector.broadcast %871 : vector<1x8xf32> to vector<2x8xf32>
    %1243 = arith.addf %1241, %1242 : vector<2x8xf32>
    %1244 = vector.extract_strided_slice %843 {offsets = [0, 9, 0], sizes = [2, 1, 8], strides = [1, 1, 1]} : vector<2x13x8xf32> to vector<2x1x8xf32>
    %1245 = vector.shape_cast %1244 : vector<2x1x8xf32> to vector<2x8xf32>
    %1246 = arith.addf %1245, %1237 : vector<2x8xf32>
    %1247 = arith.negf %1246 : vector<2x8xf32>
    %1248 = math.exp %1247 : vector<2x8xf32>
    %cst_286 = arith.constant 1.000000e+00 : f32
    %1249 = vector.broadcast %cst_286 : f32 to vector<2x8xf32>
    %1250 = arith.addf %1249, %1248 : vector<2x8xf32>
    %1251 = arith.divf %1249, %1250 : vector<2x8xf32>
    %1252 = vector.extract_strided_slice %851 {offsets = [0, 9, 0], sizes = [2, 1, 8], strides = [1, 1, 1]} : vector<2x13x8xf32> to vector<2x1x8xf32>
    %1253 = vector.shape_cast %1252 : vector<2x1x8xf32> to vector<2x8xf32>
    %1254 = arith.addf %1253, %1240 : vector<2x8xf32>
    %1255 = arith.negf %1254 : vector<2x8xf32>
    %1256 = math.exp %1255 : vector<2x8xf32>
    %cst_287 = arith.constant 1.000000e+00 : f32
    %1257 = vector.broadcast %cst_287 : f32 to vector<2x8xf32>
    %1258 = arith.addf %1257, %1256 : vector<2x8xf32>
    %1259 = arith.divf %1257, %1258 : vector<2x8xf32>
    %1260 = vector.extract_strided_slice %859 {offsets = [0, 9, 0], sizes = [2, 1, 8], strides = [1, 1, 1]} : vector<2x13x8xf32> to vector<2x1x8xf32>
    %1261 = vector.shape_cast %1260 : vector<2x1x8xf32> to vector<2x8xf32>
    %1262 = arith.mulf %1251, %1243 : vector<2x8xf32>
    %1263 = arith.addf %1261, %1262 : vector<2x8xf32>
    %1264 = math.tanh %1263 : vector<2x8xf32>
    %cst_288 = arith.constant 1.000000e+00 : f32
    %1265 = vector.broadcast %cst_288 : f32 to vector<2x8xf32>
    %1266 = arith.subf %1265, %1259 : vector<2x8xf32>
    %1267 = arith.mulf %1266, %1264 : vector<2x8xf32>
    %1268 = arith.mulf %1259, %1234 : vector<2x8xf32>
    %1269 = arith.addf %1267, %1268 : vector<2x8xf32>
    %cst_289 = arith.constant dense<0.000000e+00> : vector<2x8xf32>
    %1270 = tpu.matmul %1269, %861, %cst_289 {dimension_numbers = #tpu.dot_dimension_numbers<[1], [0], [0], [1], [0, 0, 1, 1], [], []>} : vector<2x8xf32>, vector<8x8xf32>, vector<2x8xf32> -> vector<2x8xf32>
    %1271 = vector.broadcast %867 : vector<1x8xf32> to vector<2x8xf32>
    %1272 = arith.addf %1270, %1271 : vector<2x8xf32>
    %cst_290 = arith.constant dense<0.000000e+00> : vector<2x8xf32>
    %1273 = tpu.matmul %1269, %863, %cst_290 {dimension_numbers = #tpu.dot_dimension_numbers<[1], [0], [0], [1], [0, 0, 1, 1], [], []>} : vector<2x8xf32>, vector<8x8xf32>, vector<2x8xf32> -> vector<2x8xf32>
    %1274 = vector.broadcast %869 : vector<1x8xf32> to vector<2x8xf32>
    %1275 = arith.addf %1273, %1274 : vector<2x8xf32>
    %cst_291 = arith.constant dense<0.000000e+00> : vector<2x8xf32>
    %1276 = tpu.matmul %1269, %865, %cst_291 {dimension_numbers = #tpu.dot_dimension_numbers<[1], [0], [0], [1], [0, 0, 1, 1], [], []>} : vector<2x8xf32>, vector<8x8xf32>, vector<2x8xf32> -> vector<2x8xf32>
    %1277 = vector.broadcast %871 : vector<1x8xf32> to vector<2x8xf32>
    %1278 = arith.addf %1276, %1277 : vector<2x8xf32>
    %1279 = vector.extract_strided_slice %843 {offsets = [0, 12, 0], sizes = [2, 1, 8], strides = [1, 1, 1]} : vector<2x13x8xf32> to vector<2x1x8xf32>
    %1280 = vector.shape_cast %1279 : vector<2x1x8xf32> to vector<2x8xf32>
    %1281 = arith.addf %1280, %1272 : vector<2x8xf32>
    %1282 = arith.negf %1281 : vector<2x8xf32>
    %1283 = math.exp %1282 : vector<2x8xf32>
    %cst_292 = arith.constant 1.000000e+00 : f32
    %1284 = vector.broadcast %cst_292 : f32 to vector<2x8xf32>
    %1285 = arith.addf %1284, %1283 : vector<2x8xf32>
    %1286 = arith.divf %1284, %1285 : vector<2x8xf32>
    %1287 = vector.extract_strided_slice %851 {offsets = [0, 12, 0], sizes = [2, 1, 8], strides = [1, 1, 1]} : vector<2x13x8xf32> to vector<2x1x8xf32>
    %1288 = vector.shape_cast %1287 : vector<2x1x8xf32> to vector<2x8xf32>
    %1289 = arith.addf %1288, %1275 : vector<2x8xf32>
    %1290 = arith.negf %1289 : vector<2x8xf32>
    %1291 = math.exp %1290 : vector<2x8xf32>
    %cst_293 = arith.constant 1.000000e+00 : f32
    %1292 = vector.broadcast %cst_293 : f32 to vector<2x8xf32>
    %1293 = arith.addf %1292, %1291 : vector<2x8xf32>
    %1294 = arith.divf %1292, %1293 : vector<2x8xf32>
    %1295 = vector.extract_strided_slice %859 {offsets = [0, 12, 0], sizes = [2, 1, 8], strides = [1, 1, 1]} : vector<2x13x8xf32> to vector<2x1x8xf32>
    %1296 = vector.shape_cast %1295 : vector<2x1x8xf32> to vector<2x8xf32>
    %1297 = arith.mulf %1286, %1278 : vector<2x8xf32>
    %1298 = arith.addf %1296, %1297 : vector<2x8xf32>
    %1299 = math.tanh %1298 : vector<2x8xf32>
    %cst_294 = arith.constant 1.000000e+00 : f32
    %1300 = vector.broadcast %cst_294 : f32 to vector<2x8xf32>
    %1301 = arith.subf %1300, %1294 : vector<2x8xf32>
    %1302 = arith.mulf %1301, %1299 : vector<2x8xf32>
    %1303 = arith.mulf %1294, %1269 : vector<2x8xf32>
    %1304 = arith.addf %1302, %1303 : vector<2x8xf32>
    %1305 = vector.extract_strided_slice %872 {offsets = [2, 0, 0], sizes = [1, 8, 8], strides = [1, 1, 1]} : vector<3x8x8xf32> to vector<1x8x8xf32>
    %1306 = vector.shape_cast %1305 : vector<1x8x8xf32> to vector<8x8xf32>
    %cst_295 = arith.constant dense<0.000000e+00> : vector<2x8xf32>
    %1307 = tpu.matmul %1304, %1306, %cst_295 {dimension_numbers = #tpu.dot_dimension_numbers<[1], [0], [0], [1], [0, 0, 1, 1], [], []>} : vector<2x8xf32>, vector<8x8xf32>, vector<2x8xf32> -> vector<2x8xf32>
    %1308 = arith.addf %1163, %1307 : vector<2x8xf32>
    %c0_296 = arith.constant 0 : index
    %c0_297 = arith.constant 0 : index
    %1309 = vector.load %arg19[%c0_296, %c0_297] : memref<32x8xf32, #tpu.memory_space<vmem>>, vector<32x8xf32>
    %cst_298 = arith.constant dense<0.000000e+00> : vector<2x8xf32>
    %1310 = tpu.matmul %831, %1309, %cst_298 {dimension_numbers = #tpu.dot_dimension_numbers<[1], [0], [0], [1], [0, 0, 1, 1], [], []>} : vector<2x32xf32>, vector<32x8xf32>, vector<2x8xf32> -> vector<2x8xf32>
    %1311 = arith.addf %1310, %1308 : vector<2x8xf32>
    %c0_299 = arith.constant 0 : index
    %c0_300 = arith.constant 0 : index
    %1312 = vector.load %arg21[%c0_299, %c0_300] : memref<1x8xf32, #tpu.memory_space<vmem>>, vector<1x8xf32>
    %1313 = vector.broadcast %1312 : vector<1x8xf32> to vector<2x8xf32>
    %1314 = arith.addf %1311, %1313 : vector<2x8xf32>
    %c0_301 = arith.constant 0 : index
    %c0_302 = arith.constant 0 : index
    %1315 = vector.load %arg22[%c0_301, %c0_302] : memref<1x128xf32, #tpu.memory_space<vmem>>, vector<1x128xf32>
    %1316 = vector.shape_cast %1315 : vector<1x128xf32> to vector<1x1x128xf32>
    %1317 = vector.broadcast %1316 : vector<1x1x128xf32> to vector<2x8x128xf32>
    %1318 = arith.mulf %321, %1317 : vector<2x8x128xf32>
    %cst_303 = arith.constant dense<0.000000e+00> : vector<2x8xf32>
    %1319 = vector.multi_reduction <add>, %1318, %cst_303 [2] : vector<2x8x128xf32> to vector<2x8xf32>
    %cst_304 = arith.constant 0.000000e+00 : f32
    %1320 = vector.broadcast %cst_304 : f32 to vector<2x8xf32>
    %c0_305 = arith.constant 0 : index
    %1321 = memref.load %arg24[%c0_305] : memref<4xf32, #tpu.memory_space<smem>>
    %1322 = vector.extract_strided_slice %322 {offsets = [0, 12, 0], sizes = [2, 1, 8], strides = [1, 1, 1]} : vector<2x16x8xf32> to vector<2x1x8xf32>
    %1323 = vector.shape_cast %1322 : vector<2x1x8xf32> to vector<2x8xf32>
    %1324 = vector.broadcast %1321 : f32 to vector<2x8xf32>
    %1325 = arith.mulf %1324, %1323 : vector<2x8xf32>
    %1326 = arith.addf %1320, %1325 : vector<2x8xf32>
    %c1_306 = arith.constant 1 : index
    %1327 = memref.load %arg24[%c1_306] : memref<4xf32, #tpu.memory_space<smem>>
    %1328 = vector.extract_strided_slice %322 {offsets = [0, 13, 0], sizes = [2, 1, 8], strides = [1, 1, 1]} : vector<2x16x8xf32> to vector<2x1x8xf32>
    %1329 = vector.shape_cast %1328 : vector<2x1x8xf32> to vector<2x8xf32>
    %1330 = vector.broadcast %1327 : f32 to vector<2x8xf32>
    %1331 = arith.mulf %1330, %1329 : vector<2x8xf32>
    %1332 = arith.addf %1326, %1331 : vector<2x8xf32>
    %c2_307 = arith.constant 2 : index
    %1333 = memref.load %arg24[%c2_307] : memref<4xf32, #tpu.memory_space<smem>>
    %1334 = vector.extract_strided_slice %322 {offsets = [0, 14, 0], sizes = [2, 1, 8], strides = [1, 1, 1]} : vector<2x16x8xf32> to vector<2x1x8xf32>
    %1335 = vector.shape_cast %1334 : vector<2x1x8xf32> to vector<2x8xf32>
    %1336 = vector.broadcast %1333 : f32 to vector<2x8xf32>
    %1337 = arith.mulf %1336, %1335 : vector<2x8xf32>
    %1338 = arith.addf %1332, %1337 : vector<2x8xf32>
    %c3_308 = arith.constant 3 : index
    %1339 = memref.load %arg24[%c3_308] : memref<4xf32, #tpu.memory_space<smem>>
    %1340 = vector.extract_strided_slice %322 {offsets = [0, 15, 0], sizes = [2, 1, 8], strides = [1, 1, 1]} : vector<2x16x8xf32> to vector<2x1x8xf32>
    %1341 = vector.shape_cast %1340 : vector<2x1x8xf32> to vector<2x8xf32>
    %1342 = vector.broadcast %1339 : f32 to vector<2x8xf32>
    %1343 = arith.mulf %1342, %1341 : vector<2x8xf32>
    %1344 = arith.addf %1338, %1343 : vector<2x8xf32>
    %1345 = arith.addf %1319, %1344 : vector<2x8xf32>
    %c0_309 = arith.constant 0 : index
    %1346 = memref.load %arg25[%c0_309] : memref<1xf32, #tpu.memory_space<smem>>
    %1347 = vector.broadcast %1346 : f32 to vector<2x8xf32>
    %1348 = arith.addf %1345, %1347 : vector<2x8xf32>
    %1349 = arith.addf %1314, %1348 : vector<2x8xf32>
    %1350 = arith.negf %1349 : vector<2x8xf32>
    %1351 = math.exp %1350 : vector<2x8xf32>
    %cst_310 = arith.constant 1.000000e+00 : f32
    %1352 = vector.broadcast %cst_310 : f32 to vector<2x8xf32>
    %1353 = arith.addf %1352, %1351 : vector<2x8xf32>
    %1354 = arith.divf %1352, %1353 : vector<2x8xf32>
    %c0_311 = arith.constant 0 : index
    %c0_312 = arith.constant 0 : index
    %1355 = vector.load %arg26[%c0_311, %c0_312] : memref<2x8xf32, #tpu.memory_space<vmem>>, vector<2x8xf32>
    tpu.vector_store %arg26[%c0_311, %c0_312], %1354 {strides = array<i32>} : memref<2x8xf32, #tpu.memory_space<vmem>>, vector<2x8xf32>,
    return
  }
}

</mosaic_0001>

<llo_original>
// kernel: lstnet_forward.1
$region0: #{lstnet_forward.1}
  #allocation0 [shape = 'u32[]', space=smem, size = 0x4, offset = 0x4, fixed_abs, tag = 'smem constant byte address 0x4 - core index']
  #allocation1 [shape = 'u32[72,128]{1,0:T(1,128)}', space=vmem, size = 0x9000, scoped, tag = 'internal scratch']
  #allocation2 [shape = 'f32[2,8,128]{2,1,0:T(8,128)}', space=vmem, size = 0x2000, scoped, tag = 'scratch operand']
  #allocation3 [shape = 'f32[1]{0:T(128)S(6)}', space=smem, size = 0x200, scoped, tag = 'scoped memory for lstnet_forward.1']
  #allocation4 [shape = 'f32[1]{0:T(128)S(6)}', space=smem, size = 0x200, scoped, tag = 'scoped memory for lstnet_forward.1']
  %s0 = inlined_call_operand.vmem [shape: f32[2,16,8], index: 0, kind: input, shape index: {}]
  %s1 = inlined_call_operand.vmem [shape: f32[16,16], index: 1, kind: input, shape index: {}]
  %s2 = inlined_call_operand.vmem [shape: f32[16,512], index: 2, kind: input, shape index: {}]
  %s3 = inlined_call_operand.hbm [shape: f32[128,512], index: 3, kind: input, shape index: {}]
  %s4 = inlined_call_operand.vmem [shape: f32[1,512], index: 4, kind: input, shape index: {}]
  %s5 = inlined_call_operand.hbm [shape: f32[128,768], index: 5, kind: input, shape index: {}]
  %s6 = inlined_call_operand.hbm [shape: f32[1,768], index: 6, kind: input, shape index: {}]
  %s7 = inlined_call_operand.hbm [shape: f32[256,128], index: 7, kind: input, shape index: {}]
  %s8 = inlined_call_operand.vmem [shape: f32[1,128], index: 8, kind: input, shape index: {}]
  %s9 = inlined_call_operand.vmem [shape: f32[32,16], index: 9, kind: input, shape index: {}]
  %s10 = inlined_call_operand.hbm [shape: f32[1,16], index: 10, kind: input, shape index: {}]
  %s11 = inlined_call_operand.hbm [shape: f32[3,16,32], index: 11, kind: input, shape index: {}]
  %s12 = inlined_call_operand.vmem [shape: f32[3,32,32], index: 12, kind: input, shape index: {}]
  %s13 = inlined_call_operand.vmem [shape: f32[3,1,32], index: 13, kind: input, shape index: {}]
  %s14 = inlined_call_operand.hbm [shape: f32[3,1,32], index: 14, kind: input, shape index: {}]
  %s15 = inlined_call_operand.vmem [shape: f32[3,16,8], index: 15, kind: input, shape index: {}]
  %s16 = inlined_call_operand.hbm [shape: f32[3,8,8], index: 16, kind: input, shape index: {}]
  %s17 = inlined_call_operand.vmem [shape: f32[3,1,8], index: 17, kind: input, shape index: {}]
  %s18 = inlined_call_operand.vmem [shape: f32[3,1,8], index: 18, kind: input, shape index: {}]
  %s19 = inlined_call_operand.vmem [shape: f32[32,8], index: 19, kind: input, shape index: {}]
  %s20 = inlined_call_operand.hbm [shape: f32[3,8,8], index: 20, kind: input, shape index: {}]
  %s21 = inlined_call_operand.vmem [shape: f32[1,8], index: 21, kind: input, shape index: {}]
  %s22 = inlined_call_operand.vmem [shape: f32[1,128], index: 22, kind: input, shape index: {}]
  %s23 = inlined_call_operand.<no memory space> [shape: f32[1], index: 23, kind: input, shape index: {}]
  %s24 = inlined_call_operand.vmem [shape: f32[4], index: 24, kind: input, shape index: {}]
  %s25 = inlined_call_operand.<no memory space> [shape: f32[1], index: 25, kind: input, shape index: {}]
  %s26 = inlined_call_operand.hbm [shape: f32[2,8], index: 26, kind: output, shape index: {}]
  %s27 = sld [smem:[#allocation0]]
  $region154: #{lstnet_forward.1} parent=0
    _
  %s29 = ssub.s32 1, %s27
  %s30 = scalar_select 0, %s29, %s27
  %31 = sst [smem:[#allocation3]] %s23
  %32 = sst [smem:[#allocation4]] %s25
  $region1: #{lstnet_forward.1} parent=0
    #allocation5 [shape = 'u8[262144]{0}', space=vmem, size = 0x40000, scoped, tag = 'input window, operand 3, single buffered']
    #allocation6 [shape = 's32[1]{0}', space=sflag, size = 0x4, scoped, tag = 'scoped memory for lstnet_forward.1']
    #allocation7 [shape = 's32[1]{0}', space=sflag, size = 0x4, scoped, tag = 'scoped memory for lstnet_forward.1']
    #allocation8 [shape = 's32[1]{0}', space=sflag, size = 0x4, scoped, tag = 'scoped memory for lstnet_forward.1']
    #allocation9 [shape = 'u8[393216]{0}', space=vmem, size = 0x60000, scoped, tag = 'input window, operand 5, single buffered']
    #allocation10 [shape = 's32[1]{0}', space=sflag, size = 0x4, scoped, tag = 'scoped memory for lstnet_forward.1']
    #allocation11 [shape = 'u8[3072]{0}', space=vmem, size = 0xc00, scoped, tag = 'input window, operand 6, single buffered']
    #allocation12 [shape = 'u8[131072]{0}', space=vmem, size = 0x20000, scoped, tag = 'input window, operand 7, single buffered']
    #allocation13 [shape = 's32[1]{0}', space=sflag, size = 0x4, scoped, tag = 'scoped memory for lstnet_forward.1']
    #allocation14 [shape = 'u8[512]{0}', space=vmem, size = 0x400, scoped, tag = 'input window, operand 10, single buffered']
    #allocation15 [shape = 'u8[24576]{0}', space=vmem, size = 0x6000, scoped, tag = 'input window, operand 11, single buffered']
    #allocation16 [shape = 's32[1]{0}', space=sflag, size = 0x4, scoped, tag = 'scoped memory for lstnet_forward.1']
    #allocation17 [shape = 'u8[1536]{0}', space=vmem, size = 0x800, scoped, tag = 'input window, operand 14, single buffered']
    #allocation18 [shape = 'u8[12288]{0}', space=vmem, size = 0x3000, scoped, tag = 'input window, operand 16, single buffered']
    #allocation19 [shape = 's32[1]{0}', space=sflag, size = 0x4, scoped, tag = 'scoped memory for lstnet_forward.1']
    #allocation20 [shape = 'u8[12288]{0}', space=vmem, size = 0x3000, scoped, tag = 'input window, operand 20, single buffered']
    #allocation21 [shape = 'u8[512]{0}', space=smem, size = 0x200, scoped, tag = 'input window, operand 24, single buffered']
    #allocation22 [shape = 'u8[1024]{0}', space=vmem, size = 0x400, scoped, tag = 'output window, operand 0, single buffered']
    %33 = vsyncpa [#allocation6], 0
    %34 = vsyncpa [#allocation10], 0
    %35 = vsyncpa [#allocation13], 0
    %36 = vsyncpa [#allocation16], 0
    %37 = vsyncpa [#allocation19], 0
    %38 = vsyncpa [#allocation8], 0
    %39 = vsyncpa [#allocation7], 0
    // Predicated region
    $region2: #{lstnet_forward.1} parent=1 // pred_check
      _
    $region3: #{lstnet_forward.1} parent=1 // pred_check_branch
      %41 = sbr.rel (0) target = $region5
    $region4: #{lstnet_forward.1} parent=1 // pred_region
      _
    $region5: #{lstnet_forward.1} parent=1 // pred_fallthru
      _
    // Predicated region
    $region6: #{lstnet_forward.1} parent=1 // pred_check
      _
    $region7: #{lstnet_forward.1} parent=1 // pred_check_branch
      %43 = sbr.rel (0) target = $region9
    $region8: #{lstnet_forward.1} parent=1 // pred_region
      _
    $region9: #{lstnet_forward.1} parent=1 // pred_fallthru
      _
    // Predicated region
    $region10: #{lstnet_forward.1} parent=1 // pred_check
      _
    $region11: #{lstnet_forward.1} parent=1 // pred_check_branch
      %45 = sbr.rel (0) target = $region13
    $region12: #{lstnet_forward.1} parent=1 // pred_region
      _
    $region13: #{lstnet_forward.1} parent=1 // pred_fallthru
      _
    // Predicated region
    $region14: #{lstnet_forward.1} parent=1 // pred_check
      _
    $region15: #{lstnet_forward.1} parent=1 // pred_check_branch
      %47 = sbr.rel (0) target = $region17
    $region16: #{lstnet_forward.1} parent=1 // pred_region
      %49 = vsyncadd [#allocation6], 0
      %s50 = sshll.u32 %s3, 4
      %s51 = int_to_ptr.hbm [resolvable:$true] %s50
      %s52 = sshll.u32 [#allocation5], 4
      %s53 = int_to_ptr.vmem [resolvable:$true] %s52
      %58 = dma.hbm_to_vmem [thread:$0]  %s51, 8192, %s53, [#allocation6], 512, 512, 32
    $region17: #{lstnet_forward.1} parent=1 // pred_fallthru
      _
    // Predicated region
    $region18: #{lstnet_forward.1} parent=1 // pred_check
      _
    $region19: #{lstnet_forward.1} parent=1 // pred_check_branch
      %60 = sbr.rel (0) target = $region21
    $region20: #{lstnet_forward.1} parent=1 // pred_region
      _
    $region21: #{lstnet_forward.1} parent=1 // pred_fallthru
      _
    // Predicated region
    $region22: #{lstnet_forward.1} parent=1 // pred_check
      _
    $region23: #{lstnet_forward.1} parent=1 // pred_check_branch
      %62 = sbr.rel (0) target = $region25
    $region24: #{lstnet_forward.1} parent=1 // pred_region
      %64 = vsyncadd [#allocation10], 0
      %s65 = sshll.u32 %s5, 4
      %s66 = int_to_ptr.hbm [resolvable:$true] %s65
      %s67 = sshll.u32 [#allocation9], 4
      %s68 = int_to_ptr.vmem [resolvable:$true] %s67
      %73 = dma.hbm_to_vmem [thread:$0]  %s66, 12288, %s68, [#allocation10], 768, 768, 48
    $region25: #{lstnet_forward.1} parent=1 // pred_fallthru
      _
    // Predicated region
    $region26: #{lstnet_forward.1} parent=1 // pred_check
      _
    $region27: #{lstnet_forward.1} parent=1 // pred_check_branch
      %75 = sbr.rel (0) target = $region29
    $region28: #{lstnet_forward.1} parent=1 // pred_region
      %77 = vsyncadd [#allocation10], 0
      %s79 = sshll.u32 %s6, 4
      %s80 = int_to_ptr.hbm [resolvable:$true] %s79
      %s81 = sshll.u32 [#allocation11], 4
      %s82 = int_to_ptr.vmem [resolvable:$true] %s81
      %84 = dma.hbm_to_vmem [thread:$0]  %s80, 96, %s82, [#allocation10]
    $region29: #{lstnet_forward.1} parent=1 // pred_fallthru
      _
    // Predicated region
    $region30: #{lstnet_forward.1} parent=1 // pred_check
      _
    $region31: #{lstnet_forward.1} parent=1 // pred_check_branch
      %86 = sbr.rel (0) target = $region33
    $region32: #{lstnet_forward.1} parent=1 // pred_region
      %88 = vsyncadd [#allocation13], 0
      %s89 = sshll.u32 %s7, 4
      %s90 = int_to_ptr.hbm [resolvable:$true] %s89
      %s91 = sshll.u32 [#allocation12], 4
      %s92 = int_to_ptr.vmem [resolvable:$true] %s91
      %97 = dma.hbm_to_vmem [thread:$0]  %s90, 4096, %s92, [#allocation13], 128, 128, 8
    $region33: #{lstnet_forward.1} parent=1 // pred_fallthru
      _
    // Predicated region
    $region34: #{lstnet_forward.1} parent=1 // pred_check
      _
    $region35: #{lstnet_forward.1} parent=1 // pred_check_branch
      %99 = sbr.rel (0) target = $region37
    $region36: #{lstnet_forward.1} parent=1 // pred_region
      _
    $region37: #{lstnet_forward.1} parent=1 // pred_fallthru
      _
    // Predicated region
    $region38: #{lstnet_forward.1} parent=1 // pred_check
      _
    $region39: #{lstnet_forward.1} parent=1 // pred_check_branch
      %101 = sbr.rel (0) target = $region41
    $region40: #{lstnet_forward.1} parent=1 // pred_region
      _
    $region41: #{lstnet_forward.1} parent=1 // pred_fallthru
      _
    // Predicated region
    $region42: #{lstnet_forward.1} parent=1 // pred_check
      _
    $region43: #{lstnet_forward.1} parent=1 // pred_check_branch
      %103 = sbr.rel (0) target = $region45
    $region44: #{lstnet_forward.1} parent=1 // pred_region
      %105 = vsyncadd [#allocation13], 0
      %s107 = sshll.u32 %s10, 4
      %s108 = int_to_ptr.hbm [resolvable:$true] %s107
      %s109 = sshll.u32 [#allocation14], 4
      %s110 = int_to_ptr.vmem [resolvable:$true] %s109
      %112 = dma.hbm_to_vmem [thread:$0]  %s108, 16, %s110, [#allocation13]
    $region45: #{lstnet_forward.1} parent=1 // pred_fallthru
      _
    // Predicated region
    $region46: #{lstnet_forward.1} parent=1 // pred_check
      _
    $region47: #{lstnet_forward.1} parent=1 // pred_check_branch
      %114 = sbr.rel (0) target = $region49
    $region48: #{lstnet_forward.1} parent=1 // pred_region
      %116 = vsyncadd [#allocation16], 0
      %s117 = sshll.u32 %s11, 4
      %s118 = int_to_ptr.hbm [resolvable:$true] %s117
      %s119 = sshll.u32 [#allocation15], 4
      %s120 = int_to_ptr.vmem [resolvable:$true] %s119
      %125 = dma.hbm_to_vmem [thread:$0]  %s118, 768, %s120, [#allocation16], 128, 128, 8
    $region49: #{lstnet_forward.1} parent=1 // pred_fallthru
      _
    // Predicated region
    $region50: #{lstnet_forward.1} parent=1 // pred_check
      _
    $region51: #{lstnet_forward.1} parent=1 // pred_check_branch
      %127 = sbr.rel (0) target = $region53
    $region52: #{lstnet_forward.1} parent=1 // pred_region
      _
    $region53: #{lstnet_forward.1} parent=1 // pred_fallthru
      _
    // Predicated region
    $region54: #{lstnet_forward.1} parent=1 // pred_check
      _
    $region55: #{lstnet_forward.1} parent=1 // pred_check_branch
      %129 = sbr.rel (0) target = $region57
    $region56: #{lstnet_forward.1} parent=1 // pred_region
      _
    $region57: #{lstnet_forward.1} parent=1 // pred_fallthru
      _
    // Predicated region
    $region58: #{lstnet_forward.1} parent=1 // pred_check
      _
    $region59: #{lstnet_forward.1} parent=1 // pred_check_branch
      %131 = sbr.rel (0) target = $region61
    $region60: #{lstnet_forward.1} parent=1 // pred_region
      %133 = vsyncadd [#allocation16], 0
      %s134 = sshll.u32 %s14, 4
      %s135 = int_to_ptr.hbm [resolvable:$true] %s134
      %s136 = sshll.u32 [#allocation17], 4
      %s137 = int_to_ptr.vmem [resolvable:$true] %s136
      %142 = dma.hbm_to_vmem [thread:$0]  %s135, 48, %s137, [#allocation16], 16, 16, 1
    $region61: #{lstnet_forward.1} parent=1 // pred_fallthru
      _
    // Predicated region
    $region62: #{lstnet_forward.1} parent=1 // pred_check
      _
    $region63: #{lstnet_forward.1} parent=1 // pred_check_branch
      %144 = sbr.rel (0) target = $region65
    $region64: #{lstnet_forward.1} parent=1 // pred_region
      _
    $region65: #{lstnet_forward.1} parent=1 // pred_fallthru
      _
    // Predicated region
    $region66: #{lstnet_forward.1} parent=1 // pred_check
      _
    $region67: #{lstnet_forward.1} parent=1 // pred_check_branch
      %146 = sbr.rel (0) target = $region69
    $region68: #{lstnet_forward.1} parent=1 // pred_region
      %148 = vsyncadd [#allocation19], 0
      %s149 = sshll.u32 %s16, 4
      %s150 = int_to_ptr.hbm [resolvable:$true] %s149
      %s151 = sshll.u32 [#allocation18], 4
      %s152 = int_to_ptr.vmem [resolvable:$true] %s151
      %157 = dma.hbm_to_vmem [thread:$0]  %s150, 384, %s152, [#allocation19], 128, 128, 8
    $region69: #{lstnet_forward.1} parent=1 // pred_fallthru
      _
    // Predicated region
    $region70: #{lstnet_forward.1} parent=1 // pred_check
      _
    $region71: #{lstnet_forward.1} parent=1 // pred_check_branch
      %159 = sbr.rel (0) target = $region73
    $region72: #{lstnet_forward.1} parent=1 // pred_region
      _
    $region73: #{lstnet_forward.1} parent=1 // pred_fallthru
      _
    // Predicated region
    $region74: #{lstnet_forward.1} parent=1 // pred_check
      _
    $region75: #{lstnet_forward.1} parent=1 // pred_check_branch
      %161 = sbr.rel (0) target = $region77
    $region76: #{lstnet_forward.1} parent=1 // pred_region
      _
    $region77: #{lstnet_forward.1} parent=1 // pred_fallthru
      _
    // Predicated region
    $region78: #{lstnet_forward.1} parent=1 // pred_check
      _
    $region79: #{lstnet_forward.1} parent=1 // pred_check_branch
      %163 = sbr.rel (0) target = $region81
    $region80: #{lstnet_forward.1} parent=1 // pred_region
      _
    $region81: #{lstnet_forward.1} parent=1 // pred_fallthru
      _
    // Predicated region
    $region82: #{lstnet_forward.1} parent=1 // pred_check
      _
    $region83: #{lstnet_forward.1} parent=1 // pred_check_branch
      %165 = sbr.rel (0) target = $region85
    $region84: #{lstnet_forward.1} parent=1 // pred_region
      %167 = vsyncadd [#allocation19], 0
      %s168 = sshll.u32 %s20, 4
      %s169 = int_to_ptr.hbm [resolvable:$true] %s168
      %s170 = sshll.u32 [#allocation20], 4
      %s171 = int_to_ptr.vmem [resolvable:$true] %s170
      %176 = dma.hbm_to_vmem [thread:$0]  %s169, 384, %s171, [#allocation19], 128, 128, 8
    $region85: #{lstnet_forward.1} parent=1 // pred_fallthru
      _
    // Predicated region
    $region86: #{lstnet_forward.1} parent=1 // pred_check
      _
    $region87: #{lstnet_forward.1} parent=1 // pred_check_branch
      %178 = sbr.rel (0) target = $region89
    $region88: #{lstnet_forward.1} parent=1 // pred_region
      _
    $region89: #{lstnet_forward.1} parent=1 // pred_fallthru
      _
    // Predicated region
    $region90: #{lstnet_forward.1} parent=1 // pred_check
      _
    $region91: #{lstnet_forward.1} parent=1 // pred_check_branch
      %180 = sbr.rel (0) target = $region93
    $region92: #{lstnet_forward.1} parent=1 // pred_region
      _
    $region93: #{lstnet_forward.1} parent=1 // pred_fallthru
      _
    // Predicated region
    $region94: #{lstnet_forward.1} parent=1 // pred_check
      _
    $region95: #{lstnet_forward.1} parent=1 // pred_check_branch
      %182 = sbr.rel (0) target = $region97
    $region96: #{lstnet_forward.1} parent=1 // pred_region
      _
    $region97: #{lstnet_forward.1} parent=1 // pred_fallthru
      _
    // Predicated region
    $region98: #{lstnet_forward.1} parent=1 // pred_check
      _
    $region99: #{lstnet_forward.1} parent=1 // pred_check_branch
      %184 = sbr.rel (0) target = $region101
    $region100: #{lstnet_forward.1} parent=1 // pred_region
      %186 = vsyncadd [#allocation8], 0
      %s188 = sshll.u32 %s24, 4
      %s189 = int_to_ptr.vmem [resolvable:$true] %s188
      %191 = dma.vmem_to_smem %s189, 16, [#allocation21], [#allocation8]
    $region101: #{lstnet_forward.1} parent=1 // pred_fallthru
      _
    // Predicated region
    $region102: #{lstnet_forward.1} parent=1 // pred_check
      _
    $region103: #{lstnet_forward.1} parent=1 // pred_check_branch
      %193 = sbr.rel (0) target = $region105
    $region104: #{lstnet_forward.1} parent=1 // pred_region
      _
    $region105: #{lstnet_forward.1} parent=1 // pred_fallthru
      _
    // Predicated region
    $region106: #{lstnet_forward.1} parent=1 // pred_check
      _
    $region107: #{lstnet_forward.1} parent=1 // pred_check_branch
      %195 = sbr.rel (0) target = $region109
    $region108: #{lstnet_forward.1} parent=1 // pred_region
      %197 = dma.done [#allocation6], 8192
    $region109: #{lstnet_forward.1} parent=1 // pred_fallthru
      _
    // Predicated region
    $region110: #{lstnet_forward.1} parent=1 // pred_check
      _
    $region111: #{lstnet_forward.1} parent=1 // pred_check_branch
      %199 = sbr.rel (0) target = $region113
    $region112: #{lstnet_forward.1} parent=1 // pred_region
      %201 = dma.done [#allocation10], 12288
    $region113: #{lstnet_forward.1} parent=1 // pred_fallthru
      _
    // Predicated region
    $region114: #{lstnet_forward.1} parent=1 // pred_check
      _
    $region115: #{lstnet_forward.1} parent=1 // pred_check_branch
      %203 = sbr.rel (0) target = $region117
    $region116: #{lstnet_forward.1} parent=1 // pred_region
      %205 = dma.done [#allocation10], 96
    $region117: #{lstnet_forward.1} parent=1 // pred_fallthru
      _
    // Predicated region
    $region118: #{lstnet_forward.1} parent=1 // pred_check
      _
    $region119: #{lstnet_forward.1} parent=1 // pred_check_branch
      %207 = sbr.rel (0) target = $region121
    $region120: #{lstnet_forward.1} parent=1 // pred_region
      %209 = dma.done [#allocation13], 4096
    $region121: #{lstnet_forward.1} parent=1 // pred_fallthru
      _
    // Predicated region
    $region122: #{lstnet_forward.1} parent=1 // pred_check
      _
    $region123: #{lstnet_forward.1} parent=1 // pred_check_branch
      %211 = sbr.rel (0) target = $region125
    $region124: #{lstnet_forward.1} parent=1 // pred_region
      %213 = dma.done [#allocation13], 16
    $region125: #{lstnet_forward.1} parent=1 // pred_fallthru
      _
    // Predicated region
    $region126: #{lstnet_forward.1} parent=1 // pred_check
      _
    $region127: #{lstnet_forward.1} parent=1 // pred_check_branch
      %215 = sbr.rel (0) target = $region129
    $region128: #{lstnet_forward.1} parent=1 // pred_region
      %217 = dma.done [#allocation16], 768
    $region129: #{lstnet_forward.1} parent=1 // pred_fallthru
      _
    // Predicated region
    $region130: #{lstnet_forward.1} parent=1 // pred_check
      _
    $region131: #{lstnet_forward.1} parent=1 // pred_check_branch
      %219 = sbr.rel (0) target = $region133
    $region132: #{lstnet_forward.1} parent=1 // pred_region
      %221 = dma.done [#allocation16], 48
    $region133: #{lstnet_forward.1} parent=1 // pred_fallthru
      _
    // Predicated region
    $region134: #{lstnet_forward.1} parent=1 // pred_check
      _
    $region135: #{lstnet_forward.1} parent=1 // pred_check_branch
      %223 = sbr.rel (0) target = $region137
    $region136: #{lstnet_forward.1} parent=1 // pred_region
      %225 = dma.done [#allocation19], 384
    $region137: #{lstnet_forward.1} parent=1 // pred_fallthru
      _
    // Predicated region
    $region138: #{lstnet_forward.1} parent=1 // pred_check
      _
    $region139: #{lstnet_forward.1} parent=1 // pred_check_branch
      %227 = sbr.rel (0) target = $region141
    $region140: #{lstnet_forward.1} parent=1 // pred_region
      %229 = dma.done [#allocation19], 384
    $region141: #{lstnet_forward.1} parent=1 // pred_fallthru
      _
    // Predicated region
    $region142: #{lstnet_forward.1} parent=1 // pred_check
      _
    $region143: #{lstnet_forward.1} parent=1 // pred_check_branch
      %231 = sbr.rel (0) target = $region145
    $region144: #{lstnet_forward.1} parent=1 // pred_region
      %233 = dma.done [#allocation8], 16
    $region145: #{lstnet_forward.1} parent=1 // pred_fallthru
      _
    %234 = sfence
    %v235 = vld [vmem:[%s1] sm:$0xff]
    %v236 = vld [vmem:[%s1 + $0x8] sm:$0xff]
    %v237 = vld [vmem:[%s2] sm:$0xff]
    %v238 = vld [vmem:[%s2 + $0x8] sm:$0xff]
    %v239 = vld [vmem:[%s2 + $0x10] sm:$0xff]
    %v240 = vld [vmem:[%s2 + $0x18] sm:$0xff]
    %v241 = vld [vmem:[%s2 + $0x20] sm:$0xff]
    %v242 = vld [vmem:[%s2 + $0x28] sm:$0xff]
    %v243 = vld [vmem:[%s2 + $0x30] sm:$0xff]
    %v244 = vld [vmem:[%s2 + $0x38] sm:$0xff]
    %v245 = vld [vmem:[%s4] sm:$0xf]
    %v247 = vperm.slane %v245, 0
    %v248 = vperm.slane %v245, 1
    %v249 = vperm.slane %v245, 2
    %v250 = vperm.slane %v245, 3
    %vm255 = vcmask 130048
    %v257 = vsel %vm255, %v235, 0
    %v260 = vsel %vm255, %v236, 0
    %262 = vmatpush.msra.mxu0 0.0
    %263 = vmatpush.msra.mxu0 0.0
    %264 = vmatpush.msra.mxu0 0.0
    %265 = vmatpush.msra.mxu0 0.0
    %266 = vmatpush.msra.mxu0 0.0
    %267 = vmatpush.msra.mxu0 0.0
    %268 = vmatpush.msra.mxu0 0.0
    %269 = vmatpush.msra.mxu0 0.0
    %270 = vmatpush.msra.mxu0 0.0
    %271 = vmatpush.msra.mxu0 0.0
    %272 = vmatpush.msra.mxu0 0.0
    %273 = vmatpush.msra.mxu0 0.0
    %274 = vmatpush.msra.mxu0 0.0
    %275 = vmatpush.msra.mxu0 0.0
    %276 = vmatpush.msra.mxu0 %v241
    %277 = vmatpush.msra.mxu0 %v237
    %278 = vmatmul.f32.gmra.mxu0 %v257
    %v279 = vpop.f32.mrf.mxu0
    %v280 = vadd.f32 %v247, %v279
    %281 = vmatmul.f32.gmra.mxu0 %v260
    %v282 = vpop.f32.mrf.mxu0
    %v283 = vadd.f32 %v247, %v282
    %284 = vdwg.mxu0
    %285 = vmatpush.msra.mxu0 0.0
    %286 = vmatpush.msra.mxu0 0.0
    %287 = vmatpush.msra.mxu0 0.0
    %288 = vmatpush.msra.mxu0 0.0
    %289 = vmatpush.msra.mxu0 0.0
    %290 = vmatpush.msra.mxu0 0.0
    %291 = vmatpush.msra.mxu0 0.0
    %292 = vmatpush.msra.mxu0 0.0
    %293 = vmatpush.msra.mxu0 0.0
    %294 = vmatpush.msra.mxu0 0.0
    %295 = vmatpush.msra.mxu0 0.0
    %296 = vmatpush.msra.mxu0 0.0
    %297 = vmatpush.msra.mxu0 0.0
    %298 = vmatpush.msra.mxu0 0.0
    %299 = vmatpush.msra.mxu0 %v242
    %300 = vmatpush.msra.mxu0 %v238
    %301 = vmatmul.f32.gmra.mxu0 %v257
    %v302 = vpop.f32.mrf.mxu0
    %v303 = vadd.f32 %v248, %v302
    %304 = vmatmul.f32.gmra.mxu0 %v260
    %v305 = vpop.f32.mrf.mxu0
    %v306 = vadd.f32 %v248, %v305
    %307 = vdwg.mxu0
    %308 = vmatpush.msra.mxu0 0.0
    %309 = vmatpush.msra.mxu0 0.0
    %310 = vmatpush.msra.mxu0 0.0
    %311 = vmatpush.msra.mxu0 0.0
    %312 = vmatpush.msra.mxu0 0.0
    %313 = vmatpush.msra.mxu0 0.0
    %314 = vmatpush.msra.mxu0 0.0
    %315 = vmatpush.msra.mxu0 0.0
    %316 = vmatpush.msra.mxu0 0.0
    %317 = vmatpush.msra.mxu0 0.0
    %318 = vmatpush.msra.mxu0 0.0
    %319 = vmatpush.msra.mxu0 0.0
    %320 = vmatpush.msra.mxu0 0.0
    %321 = vmatpush.msra.mxu0 0.0
    %322 = vmatpush.msra.mxu0 %v243
    %323 = vmatpush.msra.mxu0 %v239
    %324 = vmatmul.f32.gmra.mxu0 %v257
    %v325 = vpop.f32.mrf.mxu0
    %v326 = vadd.f32 %v249, %v325
    %327 = vmatmul.f32.gmra.mxu0 %v260
    %v328 = vpop.f32.mrf.mxu0
    %v329 = vadd.f32 %v249, %v328
    %330 = vdwg.mxu0
    %331 = vmatpush.msra.mxu0 0.0
    %332 = vmatpush.msra.mxu0 0.0
    %333 = vmatpush.msra.mxu0 0.0
    %334 = vmatpush.msra.mxu0 0.0
    %335 = vmatpush.msra.mxu0 0.0
    %336 = vmatpush.msra.mxu0 0.0
    %337 = vmatpush.msra.mxu0 0.0
    %338 = vmatpush.msra.mxu0 0.0
    %339 = vmatpush.msra.mxu0 0.0
    %340 = vmatpush.msra.mxu0 0.0
    %341 = vmatpush.msra.mxu0 0.0
    %342 = vmatpush.msra.mxu0 0.0
    %343 = vmatpush.msra.mxu0 0.0
    %344 = vmatpush.msra.mxu0 0.0
    %345 = vmatpush.msra.mxu0 %v244
    %346 = vmatpush.msra.mxu0 %v240
    %347 = vmatmul.f32.gmra.mxu0 %v257
    %v348 = vpop.f32.mrf.mxu0
    %v349 = vadd.f32 %v250, %v348
    %350 = vmatmul.f32.gmra.mxu0 %v260
    %v351 = vpop.f32.mrf.mxu0
    %v352 = vadd.f32 %v250, %v351
    %353 = vdwg.mxu0
    %v354 = vld [vmem:[#allocation5] sm:$0xff]
    %v355 = vld [vmem:[#allocation5 + $0x8] sm:$0xff]
    %v356 = vld [vmem:[#allocation5 + $0x10] sm:$0xff]
    %v357 = vld [vmem:[#allocation5 + $0x18] sm:$0xff]
    %v358 = vld [vmem:[#allocation5 + $0x20] sm:$0xff]
    %v359 = vld [vmem:[#allocation5 + $0x28] sm:$0xff]
    %v360 = vld [vmem:[#allocation5 + $0x30] sm:$0xff]
    %v361 = vld [vmem:[#allocation5 + $0x38] sm:$0xff]
    %v362 = vld [vmem:[#allocation5 + $0x40] sm:$0xff]
    %v363 = vld [vmem:[#allocation5 + $0x48] sm:$0xff]
    %v364 = vld [vmem:[#allocation5 + $0x50] sm:$0xff]
    %v365 = vld [vmem:[#allocation5 + $0x58] sm:$0xff]
    %v366 = vld [vmem:[#allocation5 + $0x60] sm:$0xff]
    %v367 = vld [vmem:[#allocation5 + $0x68] sm:$0xff]
    %v368 = vld [vmem:[#allocation5 + $0x70] sm:$0xff]
    %v369 = vld [vmem:[#allocation5 + $0x78] sm:$0xff]
    %v370 = vld [vmem:[#allocation5 + $0x80] sm:$0xff]
    %v371 = vld [vmem:[#allocation5 + $0x88] sm:$0xff]
    %v372 = vld [vmem:[#allocation5 + $0x90] sm:$0xff]
    %v373 = vld [vmem:[#allocation5 + $0x98] sm:$0xff]
    %v374 = vld [vmem:[#allocation5 + $0xa0] sm:$0xff]
    %v375 = vld [vmem:[#allocation5 + $0xa8] sm:$0xff]
    %v376 = vld [vmem:[#allocation5 + $0xb0] sm:$0xff]
    %v377 = vld [vmem:[#allocation5 + $0xb8] sm:$0xff]
    %v378 = vld [vmem:[#allocation5 + $0xc0] sm:$0xff]
    %v379 = vld [vmem:[#allocation5 + $0xc8] sm:$0xff]
    %v380 = vld [vmem:[#allocation5 + $0xd0] sm:$0xff]
    %v381 = vld [vmem:[#allocation5 + $0xd8] sm:$0xff]
    %v382 = vld [vmem:[#allocation5 + $0xe0] sm:$0xff]
    %v383 = vld [vmem:[#allocation5 + $0xe8] sm:$0xff]
    %v384 = vld [vmem:[#allocation5 + $0xf0] sm:$0xff]
    %v385 = vld [vmem:[#allocation5 + $0xf8] sm:$0xff]
    %v386 = vld [vmem:[#allocation5 + $0x100] sm:$0xff]
    %v387 = vld [vmem:[#allocation5 + $0x108] sm:$0xff]
    %v388 = vld [vmem:[#allocation5 + $0x110] sm:$0xff]
    %v389 = vld [vmem:[#allocation5 + $0x118] sm:$0xff]
    %v390 = vld [vmem:[#allocation5 + $0x120] sm:$0xff]
    %v391 = vld [vmem:[#allocation5 + $0x128] sm:$0xff]
    %v392 = vld [vmem:[#allocation5 + $0x130] sm:$0xff]
    %v393 = vld [vmem:[#allocation5 + $0x138] sm:$0xff]
    %v394 = vld [vmem:[#allocation5 + $0x140] sm:$0xff]
    %v395 = vld [vmem:[#allocation5 + $0x148] sm:$0xff]
    %v396 = vld [vmem:[#allocation5 + $0x150] sm:$0xff]
    %v397 = vld [vmem:[#allocation5 + $0x158] sm:$0xff]
    %v398 = vld [vmem:[#allocation5 + $0x160] sm:$0xff]
    %v399 = vld [vmem:[#allocation5 + $0x168] sm:$0xff]
    %v400 = vld [vmem:[#allocation5 + $0x170] sm:$0xff]
    %v401 = vld [vmem:[#allocation5 + $0x178] sm:$0xff]
    %v402 = vld [vmem:[#allocation5 + $0x180] sm:$0xff]
    %v403 = vld [vmem:[#allocation5 + $0x188] sm:$0xff]
    %v404 = vld [vmem:[#allocation5 + $0x190] sm:$0xff]
    %v405 = vld [vmem:[#allocation5 + $0x198] sm:$0xff]
    %v406 = vld [vmem:[#allocation5 + $0x1a0] sm:$0xff]
    %v407 = vld [vmem:[#allocation5 + $0x1a8] sm:$0xff]
    %v408 = vld [vmem:[#allocation5 + $0x1b0] sm:$0xff]
    %v409 = vld [vmem:[#allocation5 + $0x1b8] sm:$0xff]
    %v410 = vld [vmem:[#allocation5 + $0x1c0] sm:$0xff]
    %v411 = vld [vmem:[#allocation5 + $0x1c8] sm:$0xff]
    %v412 = vld [vmem:[#allocation5 + $0x1d0] sm:$0xff]
    %v413 = vld [vmem:[#allocation5 + $0x1d8] sm:$0xff]
    %v414 = vld [vmem:[#allocation5 + $0x1e0] sm:$0xff]
    %v415 = vld [vmem:[#allocation5 + $0x1e8] sm:$0xff]
    %v416 = vld [vmem:[#allocation5 + $0x1f0] sm:$0xff]
    %v417 = vld [vmem:[#allocation5 + $0x1f8] sm:$0xff]
    %418 = vmatpush.msra.mxu0 %v414
    %419 = vmatpush.msra.mxu0 %v410
    %420 = vmatpush.msra.mxu0 %v406
    %421 = vmatpush.msra.mxu0 %v402
    %422 = vmatpush.msra.mxu0 %v398
    %423 = vmatpush.msra.mxu0 %v394
    %424 = vmatpush.msra.mxu0 %v390
    %425 = vmatpush.msra.mxu0 %v386
    %426 = vmatpush.msra.mxu0 %v382
    %427 = vmatpush.msra.mxu0 %v378
    %428 = vmatpush.msra.mxu0 %v374
    %429 = vmatpush.msra.mxu0 %v370
    %430 = vmatpush.msra.mxu0 %v366
    %431 = vmatpush.msra.mxu0 %v362
    %432 = vmatpush.msra.mxu0 %v358
    %433 = vmatpush.msra.mxu0 %v354
    %434 = vmatmul.f32.gmra.mxu0 0.0
    %v435 = vpop.f32.mrf.mxu0
    %v436 = vadd.f32 0.0, %v435
    %437 = vdwg.mxu0
    %438 = vmatpush.msra.mxu0 %v415
    %439 = vmatpush.msra.mxu0 %v411
    %440 = vmatpush.msra.mxu0 %v407
    %441 = vmatpush.msra.mxu0 %v403
    %442 = vmatpush.msra.mxu0 %v399
    %443 = vmatpush.msra.mxu0 %v395
    %444 = vmatpush.msra.mxu0 %v391
    %445 = vmatpush.msra.mxu0 %v387
    %446 = vmatpush.msra.mxu0 %v383
    %447 = vmatpush.msra.mxu0 %v379
    %448 = vmatpush.msra.mxu0 %v375
    %449 = vmatpush.msra.mxu0 %v371
    %450 = vmatpush.msra.mxu0 %v367
    %451 = vmatpush.msra.mxu0 %v363
    %452 = vmatpush.msra.mxu0 %v359
    %453 = vmatpush.msra.mxu0 %v355
    %454 = vmatmul.f32.gmra.mxu0 0.0
    %v455 = vpop.f32.mrf.mxu0
    %v456 = vadd.f32 0.0, %v455
    %457 = vdwg.mxu0
    %458 = vmatpush.msra.mxu0 %v416
    %459 = vmatpush.msra.mxu0 %v412
    %460 = vmatpush.msra.mxu0 %v408
    %461 = vmatpush.msra.mxu0 %v404
    %462 = vmatpush.msra.mxu0 %v400
    %463 = vmatpush.msra.mxu0 %v396
    %464 = vmatpush.msra.mxu0 %v392
    %465 = vmatpush.msra.mxu0 %v388
    %466 = vmatpush.msra.mxu0 %v384
    %467 = vmatpush.msra.mxu0 %v380
    %468 = vmatpush.msra.mxu0 %v376
    %469 = vmatpush.msra.mxu0 %v372
    %470 = vmatpush.msra.mxu0 %v368
    %471 = vmatpush.msra.mxu0 %v364
    %472 = vmatpush.msra.mxu0 %v360
    %473 = vmatpush.msra.mxu0 %v356
    %474 = vmatmul.f32.gmra.mxu0 0.0
    %v475 = vpop.f32.mrf.mxu0
    %v476 = vadd.f32 0.0, %v475
    %477 = vdwg.mxu0
    %478 = vmatpush.msra.mxu0 %v417
    %479 = vmatpush.msra.mxu0 %v413
    %480 = vmatpush.msra.mxu0 %v409
    %481 = vmatpush.msra.mxu0 %v405
    %482 = vmatpush.msra.mxu0 %v401
    %483 = vmatpush.msra.mxu0 %v397
    %484 = vmatpush.msra.mxu0 %v393
    %485 = vmatpush.msra.mxu0 %v389
    %486 = vmatpush.msra.mxu0 %v385
    %487 = vmatpush.msra.mxu0 %v381
    %488 = vmatpush.msra.mxu0 %v377
    %489 = vmatpush.msra.mxu0 %v373
    %490 = vmatpush.msra.mxu0 %v369
    %491 = vmatpush.msra.mxu0 %v365
    %492 = vmatpush.msra.mxu0 %v361
    %493 = vmatpush.msra.mxu0 %v357
    %494 = vmatmul.f32.gmra.mxu0 0.0
    %v495 = vpop.f32.mrf.mxu0
    %v496 = vadd.f32 0.0, %v495
    %497 = vdwg.mxu0
    %v502 = vrot.slane %v436, 1
    %v503 = vrot.slane %v456, 1
    %v504 = vrot.slane %v476, 1
    %v505 = vrot.slane %v496, 1
    %v514 = vadd.f32 %v280, %v436
    %v515 = vadd.f32 %v303, %v456
    %v516 = vadd.f32 %v326, %v476
    %v517 = vadd.f32 %v349, %v496
    %v518 = vadd.f32 %v283, %v502
    %v519 = vadd.f32 %v306, %v503
    %v520 = vadd.f32 %v329, %v504
    %v521 = vadd.f32 %v352, %v505
    %v522 = vxor.u32 %v514, 2147483648
    %v523 = vxor.u32 %v518, 2147483648
    %v524 = vmul.f32 %v522, 1.442695
    %v525 = vpow.pop %v524
    %v526 = vmul.f32 %v523, 1.442695
    %v527 = vpow.pop %v526
    %v528 = vadd.f32 %v525, 1.0
    %v529 = vadd.f32 %v527, 1.0
    %v530 = vrcp.pop %v528
    %v531 = vmul.f32 %v528, %v530
    %v532 = vsub.f32 1.0, %v531
    %v533 = vmul.f32 %v530, %v532
    %v534 = vadd.f32 %v530, %v533
    %vm535 = vweird.f32 %v528
    %vm536 = vweird.f32 %v530
    %vm537 = vmor %vm535, %vm536
    %v538 = vsel %vm537, %v530, %v534
    %v539 = vand.u32 2147483647, %v528
    %vm540 = vcmp.eq.f32.partialorder %v539, 8.507059e+37
    %v541 = vand.u32 %v528, 2147483648
    %v542 = vor.u32 1.1754944e-38, %v541
    %v543 = vsel %vm540, %v542, %v538
    %v544 = vmul.f32 1.0, %v543
    %v545 = vrcp.pop %v529
    %v546 = vmul.f32 %v529, %v545
    %v547 = vsub.f32 1.0, %v546
    %v548 = vmul.f32 %v545, %v547
    %v549 = vadd.f32 %v545, %v548
    %vm550 = vweird.f32 %v529
    %vm551 = vweird.f32 %v545
    %vm552 = vmor %vm550, %vm551
    %v553 = vsel %vm552, %v545, %v549
    %v554 = vand.u32 2147483647, %v529
    %vm555 = vcmp.eq.f32.partialorder %v554, 8.507059e+37
    %v556 = vand.u32 %v529, 2147483648
    %v557 = vor.u32 1.1754944e-38, %v556
    %v558 = vsel %vm555, %v557, %v553
    %v559 = vmul.f32 1.0, %v558
    %v560 = vxor.u32 %v515, 2147483648
    %v561 = vxor.u32 %v519, 2147483648
    %v562 = vmul.f32 %v560, 1.442695
    %v563 = vpow.pop %v562
    %v564 = vmul.f32 %v561, 1.442695
    %v565 = vpow.pop %v564
    %v566 = vadd.f32 %v563, 1.0
    %v567 = vadd.f32 %v565, 1.0
    %v568 = vrcp.pop %v566
    %v569 = vmul.f32 %v566, %v568
    %v570 = vsub.f32 1.0, %v569
    %v571 = vmul.f32 %v568, %v570
    %v572 = vadd.f32 %v568, %v571
    %vm573 = vweird.f32 %v566
    %vm574 = vweird.f32 %v568
    %vm575 = vmor %vm573, %vm574
    %v576 = vsel %vm575, %v568, %v572
    %v577 = vand.u32 2147483647, %v566
    %vm578 = vcmp.eq.f32.partialorder %v577, 8.507059e+37
    %v579 = vand.u32 %v566, 2147483648
    %v580 = vor.u32 1.1754944e-38, %v579
    %v581 = vsel %vm578, %v580, %v576
    %v582 = vmul.f32 1.0, %v581
    %v583 = vrcp.pop %v567
    %v584 = vmul.f32 %v567, %v583
    %v585 = vsub.f32 1.0, %v584
    %v586 = vmul.f32 %v583, %v585
    %v587 = vadd.f32 %v583, %v586
    %vm588 = vweird.f32 %v567
    %vm589 = vweird.f32 %v583
    %vm590 = vmor %vm588, %vm589
    %v591 = vsel %vm590, %v583, %v587
    %v592 = vand.u32 2147483647, %v567
    %vm593 = vcmp.eq.f32.partialorder %v592, 8.507059e+37
    %v594 = vand.u32 %v567, 2147483648
    %v595 = vor.u32 1.1754944e-38, %v594
    %v596 = vsel %vm593, %v595, %v591
    %v597 = vmul.f32 1.0, %v596
    %v598 = vtanh.pop %v516
    %v599 = vtanh.pop %v520
    %v600 = vxor.u32 %v517, 2147483648
    %v601 = vxor.u32 %v521, 2147483648
    %v602 = vmul.f32 %v600, 1.442695
    %v603 = vpow.pop %v602
    %v604 = vmul.f32 %v601, 1.442695
    %v605 = vpow.pop %v604
    %v606 = vadd.f32 %v603, 1.0
    %v607 = vadd.f32 %v605, 1.0
    %v608 = vrcp.pop %v606
    %v609 = vmul.f32 %v606, %v608
    %v610 = vsub.f32 1.0, %v609
    %v611 = vmul.f32 %v608, %v610
    %v612 = vadd.f32 %v608, %v611
    %vm613 = vweird.f32 %v606
    %vm614 = vweird.f32 %v608
    %vm615 = vmor %vm613, %vm614
    %v616 = vsel %vm615, %v608, %v612
    %v617 = vand.u32 2147483647, %v606
    %vm618 = vcmp.eq.f32.partialorder %v617, 8.507059e+37
    %v619 = vand.u32 %v606, 2147483648
    %v620 = vor.u32 1.1754944e-38, %v619
    %v621 = vsel %vm618, %v620, %v616
    %v622 = vmul.f32 1.0, %v621
    %v623 = vrcp.pop %v607
    %v624 = vmul.f32 %v607, %v623
    %v625 = vsub.f32 1.0, %v624
    %v626 = vmul.f32 %v623, %v625
    %v627 = vadd.f32 %v623, %v626
    %vm628 = vweird.f32 %v607
    %vm629 = vweird.f32 %v623
    %vm630 = vmor %vm628, %vm629
    %v631 = vsel %vm630, %v623, %v627
    %v632 = vand.u32 2147483647, %v607
    %vm633 = vcmp.eq.f32.partialorder %v632, 8.507059e+37
    %v634 = vand.u32 %v607, 2147483648
    %v635 = vor.u32 1.1754944e-38, %v634
    %v636 = vsel %vm633, %v635, %v631
    %v637 = vmul.f32 1.0, %v636
    %v638 = vmul.f32 %v582, 0.0
    %v639 = vmul.f32 %v597, 0.0
    %v640 = vmul.f32 %v544, %v598
    %v641 = vmul.f32 %v559, %v599
    %v642 = vadd.f32 %v638, %v640
    %v643 = vadd.f32 %v639, %v641
    %v644 = vtanh.pop %v642
    %v645 = vtanh.pop %v643
    %v646 = vmul.f32 %v622, %v644
    %v647 = vmul.f32 %v637, %v645
    %648 = vst [vmem:[#allocation2] sm:$0x1] %v646
    %649 = vst [vmem:[#allocation2 + $0x8] sm:$0x1] %v647
    %v650 = vld [vmem:[#allocation5] sm:$0xff]
    %v651 = vld [vmem:[#allocation5 + $0x8] sm:$0xff]
    %v652 = vld [vmem:[#allocation5 + $0x10] sm:$0xff]
    %v653 = vld [vmem:[#allocation5 + $0x18] sm:$0xff]
    %v654 = vld [vmem:[#allocation5 + $0x20] sm:$0xff]
    %v655 = vld [vmem:[#allocation5 + $0x28] sm:$0xff]
    %v656 = vld [vmem:[#allocation5 + $0x30] sm:$0xff]
    %v657 = vld [vmem:[#allocation5 + $0x38] sm:$0xff]
    %v658 = vld [vmem:[#allocation5 + $0x40] sm:$0xff]
    %v659 = vld [vmem:[#allocation5 + $0x48] sm:$0xff]
    %v660 = vld [vmem:[#allocation5 + $0x50] sm:$0xff]
    %v661 = vld [vmem:[#allocation5 + $0x58] sm:$0xff]
    %v662 = vld [vmem:[#allocation5 + $0x60] sm:$0xff]
    %v663 = vld [vmem:[#allocation5 + $0x68] sm:$0xff]
    %v664 = vld [vmem:[#allocation5 + $0x70] sm:$0xff]
    %v665 = vld [vmem:[#allocation5 + $0x78] sm:$0xff]
    %v666 = vld [vmem:[#allocation5 + $0x80] sm:$0xff]
    %v667 = vld [vmem:[#allocation5 + $0x88] sm:$0xff]
    %v668 = vld [vmem:[#allocation5 + $0x90] sm:$0xff]
    %v669 = vld [vmem:[#allocation5 + $0x98] sm:$0xff]
    %v670 = vld [vmem:[#allocation5 + $0xa0] sm:$0xff]
    %v671 = vld [vmem:[#allocation5 + $0xa8] sm:$0xff]
    %v672 = vld [vmem:[#allocation5 + $0xb0] sm:$0xff]
    %v673 = vld [vmem:[#allocation5 + $0xb8] sm:$0xff]
    %v674 = vld [vmem:[#allocation5 + $0xc0] sm:$0xff]
    %v675 = vld [vmem:[#allocation5 + $0xc8] sm:$0xff]
    %v676 = vld [vmem:[#allocation5 + $0xd0] sm:$0xff]
    %v677 = vld [vmem:[#allocation5 + $0xd8] sm:$0xff]
    %v678 = vld [vmem:[#allocation5 + $0xe0] sm:$0xff]
    %v679 = vld [vmem:[#allocation5 + $0xe8] sm:$0xff]
    %v680 = vld [vmem:[#allocation5 + $0xf0] sm:$0xff]
    %v681 = vld [vmem:[#allocation5 + $0xf8] sm:$0xff]
    %v682 = vld [vmem:[#allocation5 + $0x100] sm:$0xff]
    %v683 = vld [vmem:[#allocation5 + $0x108] sm:$0xff]
    %v684 = vld [vmem:[#allocation5 + $0x110] sm:$0xff]
    %v685 = vld [vmem:[#allocation5 + $0x118] sm:$0xff]
    %v686 = vld [vmem:[#allocation5 + $0x120] sm:$0xff]
    %v687 = vld [vmem:[#allocation5 + $0x128] sm:$0xff]
    %v688 = vld [vmem:[#allocation5 + $0x130] sm:$0xff]
    %v689 = vld [vmem:[#allocation5 + $0x138] sm:$0xff]
    %v690 = vld [vmem:[#allocation5 + $0x140] sm:$0xff]
    %v691 = vld [vmem:[#allocation5 + $0x148] sm:$0xff]
    %v692 = vld [vmem:[#allocation5 + $0x150] sm:$0xff]
    %v693 = vld [vmem:[#allocation5 + $0x158] sm:$0xff]
    %v694 = vld [vmem:[#allocation5 + $0x160] sm:$0xff]
    %v695 = vld [vmem:[#allocation5 + $0x168] sm:$0xff]
    %v696 = vld [vmem:[#allocation5 + $0x170] sm:$0xff]
    %v697 = vld [vmem:[#allocation5 + $0x178] sm:$0xff]
    %v698 = vld [vmem:[#allocation5 + $0x180] sm:$0xff]
    %v699 = vld [vmem:[#allocation5 + $0x188] sm:$0xff]
    %v700 = vld [vmem:[#allocation5 + $0x190] sm:$0xff]
    %v701 = vld [vmem:[#allocation5 + $0x198] sm:$0xff]
    %v702 = vld [vmem:[#allocation5 + $0x1a0] sm:$0xff]
    %v703 = vld [vmem:[#allocation5 + $0x1a8] sm:$0xff]
    %v704 = vld [vmem:[#allocation5 + $0x1b0] sm:$0xff]
    %v705 = vld [vmem:[#allocation5 + $0x1b8] sm:$0xff]
    %v706 = vld [vmem:[#allocation5 + $0x1c0] sm:$0xff]
    %v707 = vld [vmem:[#allocation5 + $0x1c8] sm:$0xff]
    %v708 = vld [vmem:[#allocation5 + $0x1d0] sm:$0xff]
    %v709 = vld [vmem:[#allocation5 + $0x1d8] sm:$0xff]
    %v710 = vld [vmem:[#allocation5 + $0x1e0] sm:$0xff]
    %v711 = vld [vmem:[#allocation5 + $0x1e8] sm:$0xff]
    %v712 = vld [vmem:[#allocation5 + $0x1f0] sm:$0xff]
    %v713 = vld [vmem:[#allocation5 + $0x1f8] sm:$0xff]
    %v716 = vrot.slane %v647, 7
    %vm717 = vcmask 1041409
    %v718 = vsel %vm717, %v716, %v646
    %720 = vmatpush.msra.mxu0 %v710
    %721 = vmatpush.msra.mxu0 %v706
    %722 = vmatpush.msra.mxu0 %v702
    %723 = vmatpush.msra.mxu0 %v698
    %724 = vmatpush.msra.mxu0 %v694
    %725 = vmatpush.msra.mxu0 %v690
    %726 = vmatpush.msra.mxu0 %v686
    %727 = vmatpush.msra.mxu0 %v682
    %728 = vmatpush.msra.mxu0 %v678
    %729 = vmatpush.msra.mxu0 %v674
    %730 = vmatpush.msra.mxu0 %v670
    %731 = vmatpush.msra.mxu0 %v666
    %732 = vmatpush.msra.mxu0 %v662
    %733 = vmatpush.msra.mxu0 %v658
    %734 = vmatpush.msra.mxu0 %v654
    %735 = vmatpush.msra.mxu0 %v650
    %736 = vmatmul.f32.gmra.mxu0 %v718
    %v737 = vpop.f32.mrf.mxu0
    %v738 = vadd.f32 0.0, %v737
    %739 = vdwg.mxu0
    %740 = vmatpush.msra.mxu0 %v711
    %741 = vmatpush.msra.mxu0 %v707
    %742 = vmatpush.msra.mxu0 %v703
    %743 = vmatpush.msra.mxu0 %v699
    %744 = vmatpush.msra.mxu0 %v695
    %745 = vmatpush.msra.mxu0 %v691
    %746 = vmatpush.msra.mxu0 %v687
    %747 = vmatpush.msra.mxu0 %v683
    %748 = vmatpush.msra.mxu0 %v679
    %749 = vmatpush.msra.mxu0 %v675
    %750 = vmatpush.msra.mxu0 %v671
    %751 = vmatpush.msra.mxu0 %v667
    %752 = vmatpush.msra.mxu0 %v663
    %753 = vmatpush.msra.mxu0 %v659
    %754 = vmatpush.msra.mxu0 %v655
    %755 = vmatpush.msra.mxu0 %v651
    %756 = vmatmul.f32.gmra.mxu0 %v718
    %v757 = vpop.f32.mrf.mxu0
    %v758 = vadd.f32 0.0, %v757
    %759 = vdwg.mxu0
    %760 = vmatpush.msra.mxu0 %v712
    %761 = vmatpush.msra.mxu0 %v708
    %762 = vmatpush.msra.mxu0 %v704
    %763 = vmatpush.msra.mxu0 %v700
    %764 = vmatpush.msra.mxu0 %v696
    %765 = vmatpush.msra.mxu0 %v692
    %766 = vmatpush.msra.mxu0 %v688
    %767 = vmatpush.msra.mxu0 %v684
    %768 = vmatpush.msra.mxu0 %v680
    %769 = vmatpush.msra.mxu0 %v676
    %770 = vmatpush.msra.mxu0 %v672
    %771 = vmatpush.msra.mxu0 %v668
    %772 = vmatpush.msra.mxu0 %v664
    %773 = vmatpush.msra.mxu0 %v660
    %774 = vmatpush.msra.mxu0 %v656
    %775 = vmatpush.msra.mxu0 %v652
    %776 = vmatmul.f32.gmra.mxu0 %v718
    %v777 = vpop.f32.mrf.mxu0
    %v778 = vadd.f32 0.0, %v777
    %779 = vdwg.mxu0
    %780 = vmatpush.msra.mxu0 %v713
    %781 = vmatpush.msra.mxu0 %v709
    %782 = vmatpush.msra.mxu0 %v705
    %783 = vmatpush.msra.mxu0 %v701
    %784 = vmatpush.msra.mxu0 %v697
    %785 = vmatpush.msra.mxu0 %v693
    %786 = vmatpush.msra.mxu0 %v689
    %787 = vmatpush.msra.mxu0 %v685
    %788 = vmatpush.msra.mxu0 %v681
    %789 = vmatpush.msra.mxu0 %v677
    %790 = vmatpush.msra.mxu0 %v673
    %791 = vmatpush.msra.mxu0 %v669
    %792 = vmatpush.msra.mxu0 %v665
    %793 = vmatpush.msra.mxu0 %v661
    %794 = vmatpush.msra.mxu0 %v657
    %795 = vmatpush.msra.mxu0 %v653
    %796 = vmatmul.f32.gmra.mxu0 %v718
    %v797 = vpop.f32.mrf.mxu0
    %v798 = vadd.f32 0.0, %v797
    %799 = vdwg.mxu0
    %v804 = vrot.slane %v738, 7
    %v805 = vrot.slane %v758, 7
    %v806 = vrot.slane %v778, 7
    %v807 = vrot.slane %v798, 7
    %v816 = vadd.f32 %v280, %v804
    %v817 = vadd.f32 %v303, %v805
    %v818 = vadd.f32 %v326, %v806
    %v819 = vadd.f32 %v349, %v807
    %v820 = vadd.f32 %v283, %v738
    %v821 = vadd.f32 %v306, %v758
    %v822 = vadd.f32 %v329, %v778
    %v823 = vadd.f32 %v352, %v798
    %v824 = vxor.u32 %v816, 2147483648
    %v825 = vxor.u32 %v820, 2147483648
    %v826 = vmul.f32 %v824, 1.442695
    %v827 = vpow.pop %v826
    %v828 = vmul.f32 %v825, 1.442695
    %v829 = vpow.pop %v828
    %v830 = vadd.f32 %v827, 1.0
    %v831 = vadd.f32 %v829, 1.0
    %v832 = vrcp.pop %v830
    %v833 = vmul.f32 %v830, %v832
    %v834 = vsub.f32 1.0, %v833
    %v835 = vmul.f32 %v832, %v834
    %v836 = vadd.f32 %v832, %v835
    %vm837 = vweird.f32 %v830
    %vm838 = vweird.f32 %v832
    %vm839 = vmor %vm837, %vm838
    %v840 = vsel %vm839, %v832, %v836
    %v841 = vand.u32 2147483647, %v830
    %vm842 = vcmp.eq.f32.partialorder %v841, 8.507059e+37
    %v843 = vand.u32 %v830, 2147483648
    %v844 = vor.u32 1.1754944e-38, %v843
    %v845 = vsel %vm842, %v844, %v840
    %v846 = vmul.f32 1.0, %v845
    %v847 = vrcp.pop %v831
    %v848 = vmul.f32 %v831, %v847
    %v849 = vsub.f32 1.0, %v848
    %v850 = vmul.f32 %v847, %v849
    %v851 = vadd.f32 %v847, %v850
    %vm852 = vweird.f32 %v831
    %vm853 = vweird.f32 %v847
    %vm854 = vmor %vm852, %vm853
    %v855 = vsel %vm854, %v847, %v851
    %v856 = vand.u32 2147483647, %v831
    %vm857 = vcmp.eq.f32.partialorder %v856, 8.507059e+37
    %v858 = vand.u32 %v831, 2147483648
    %v859 = vor.u32 1.1754944e-38, %v858
    %v860 = vsel %vm857, %v859, %v855
    %v861 = vmul.f32 1.0, %v860
    %v862 = vxor.u32 %v817, 2147483648
    %v863 = vxor.u32 %v821, 2147483648
    %v864 = vmul.f32 %v862, 1.442695
    %v865 = vpow.pop %v864
    %v866 = vmul.f32 %v863, 1.442695
    %v867 = vpow.pop %v866
    %v868 = vadd.f32 %v865, 1.0
    %v869 = vadd.f32 %v867, 1.0
    %v870 = vrcp.pop %v868
    %v871 = vmul.f32 %v868, %v870
    %v872 = vsub.f32 1.0, %v871
    %v873 = vmul.f32 %v870, %v872
    %v874 = vadd.f32 %v870, %v873
    %vm875 = vweird.f32 %v868
    %vm876 = vweird.f32 %v870
    %vm877 = vmor %vm875, %vm876
    %v878 = vsel %vm877, %v870, %v874
    %v879 = vand.u32 2147483647, %v868
    %vm880 = vcmp.eq.f32.partialorder %v879, 8.507059e+37
    %v881 = vand.u32 %v868, 2147483648
    %v882 = vor.u32 1.1754944e-38, %v881
    %v883 = vsel %vm880, %v882, %v878
    %v884 = vmul.f32 1.0, %v883
    %v885 = vrcp.pop %v869
    %v886 = vmul.f32 %v869, %v885
    %v887 = vsub.f32 1.0, %v886
    %v888 = vmul.f32 %v885, %v887
    %v889 = vadd.f32 %v885, %v888
    %vm890 = vweird.f32 %v869
    %vm891 = vweird.f32 %v885
    %vm892 = vmor %vm890, %vm891
    %v893 = vsel %vm892, %v885, %v889
    %v894 = vand.u32 2147483647, %v869
    %vm895 = vcmp.eq.f32.partialorder %v894, 8.507059e+37
    %v896 = vand.u32 %v869, 2147483648
    %v897 = vor.u32 1.1754944e-38, %v896
    %v898 = vsel %vm895, %v897, %v893
    %v899 = vmul.f32 1.0, %v898
    %v900 = vtanh.pop %v818
    %v901 = vtanh.pop %v822
    %v902 = vxor.u32 %v819, 2147483648
    %v903 = vxor.u32 %v823, 2147483648
    %v904 = vmul.f32 %v902, 1.442695
    %v905 = vpow.pop %v904
    %v906 = vmul.f32 %v903, 1.442695
    %v907 = vpow.pop %v906
    %v908 = vadd.f32 %v905, 1.0
    %v909 = vadd.f32 %v907, 1.0
    %v910 = vrcp.pop %v908
    %v911 = vmul.f32 %v908, %v910
    %v912 = vsub.f32 1.0, %v911
    %v913 = vmul.f32 %v910, %v912
    %v914 = vadd.f32 %v910, %v913
    %vm915 = vweird.f32 %v908
    %vm916 = vweird.f32 %v910
    %vm917 = vmor %vm915, %vm916
    %v918 = vsel %vm917, %v910, %v914
    %v919 = vand.u32 2147483647, %v908
    %vm920 = vcmp.eq.f32.partialorder %v919, 8.507059e+37
    %v921 = vand.u32 %v908, 2147483648
    %v922 = vor.u32 1.1754944e-38, %v921
    %v923 = vsel %vm920, %v922, %v918
    %v924 = vmul.f32 1.0, %v923
    %v925 = vrcp.pop %v909
    %v926 = vmul.f32 %v909, %v925
    %v927 = vsub.f32 1.0, %v926
    %v928 = vmul.f32 %v925, %v927
    %v929 = vadd.f32 %v925, %v928
    %vm930 = vweird.f32 %v909
    %vm931 = vweird.f32 %v925
    %vm932 = vmor %vm930, %vm931
    %v933 = vsel %vm932, %v925, %v929
    %v934 = vand.u32 2147483647, %v909
    %vm935 = vcmp.eq.f32.partialorder %v934, 8.507059e+37
    %v936 = vand.u32 %v909, 2147483648
    %v937 = vor.u32 1.1754944e-38, %v936
    %v938 = vsel %vm935, %v937, %v933
    %v939 = vmul.f32 1.0, %v938
    %v942 = vrot.slane %v642, 7
    %v943 = vrot.slane %v643, 7
    %v946 = vmul.f32 %v884, %v942
    %v947 = vmul.f32 %v899, %v943
    %v948 = vmul.f32 %v846, %v900
    %v949 = vmul.f32 %v861, %v901
    %v950 = vadd.f32 %v946, %v948
    %v951 = vadd.f32 %v947, %v949
    %v952 = vtanh.pop %v950
    %v953 = vtanh.pop %v951
    %v954 = vmul.f32 %v924, %v952
    %v955 = vmul.f32 %v939, %v953
    %956 = vst [vmem:[#allocation2] sm:$0x2] %v954
    %957 = vst [vmem:[#allocation2 + $0x8] sm:$0x2] %v955
    %v958 = vld [vmem:[#allocation5] sm:$0xff]
    %v959 = vld [vmem:[#allocation5 + $0x8] sm:$0xff]
    %v960 = vld [vmem:[#allocation5 + $0x10] sm:$0xff]
    %v961 = vld [vmem:[#allocation5 + $0x18] sm:$0xff]
    %v962 = vld [vmem:[#allocation5 + $0x20] sm:$0xff]
    %v963 = vld [vmem:[#allocation5 + $0x28] sm:$0xff]
    %v964 = vld [vmem:[#allocation5 + $0x30] sm:$0xff]
    %v965 = vld [vmem:[#allocation5 + $0x38] sm:$0xff]
    %v966 = vld [vmem:[#allocation5 + $0x40] sm:$0xff]
    %v967 = vld [vmem:[#allocation5 + $0x48] sm:$0xff]
    %v968 = vld [vmem:[#allocation5 + $0x50] sm:$0xff]
    %v969 = vld [vmem:[#allocation5 + $0x58] sm:$0xff]
    %v970 = vld [vmem:[#allocation5 + $0x60] sm:$0xff]
    %v971 = vld [vmem:[#allocation5 + $0x68] sm:$0xff]
    %v972 = vld [vmem:[#allocation5 + $0x70] sm:$0xff]
    %v973 = vld [vmem:[#allocation5 + $0x78] sm:$0xff]
    %v974 = vld [vmem:[#allocation5 + $0x80] sm:$0xff]
    %v975 = vld [vmem:[#allocation5 + $0x88] sm:$0xff]
    %v976 = vld [vmem:[#allocation5 + $0x90] sm:$0xff]
    %v977 = vld [vmem:[#allocation5 + $0x98] sm:$0xff]
    %v978 = vld [vmem:[#allocation5 + $0xa0] sm:$0xff]
    %v979 = vld [vmem:[#allocation5 + $0xa8] sm:$0xff]
    %v980 = vld [vmem:[#allocation5 + $0xb0] sm:$0xff]
    %v981 = vld [vmem:[#allocation5 + $0xb8] sm:$0xff]
    %v982 = vld [vmem:[#allocation5 + $0xc0] sm:$0xff]
    %v983 = vld [vmem:[#allocation5 + $0xc8] sm:$0xff]
    %v984 = vld [vmem:[#allocation5 + $0xd0] sm:$0xff]
    %v985 = vld [vmem:[#allocation5 + $0xd8] sm:$0xff]
    %v986 = vld [vmem:[#allocation5 + $0xe0] sm:$0xff]
    %v987 = vld [vmem:[#allocation5 + $0xe8] sm:$0xff]
    %v988 = vld [vmem:[#allocation5 + $0xf0] sm:$0xff]
    %v989 = vld [vmem:[#allocation5 + $0xf8] sm:$0xff]
    %v990 = vld [vmem:[#allocation5 + $0x100] sm:$0xff]
    %v991 = vld [vmem:[#allocation5 + $0x108] sm:$0xff]
    %v992 = vld [vmem:[#allocation5 + $0x110] sm:$0xff]
    %v993 = vld [vmem:[#allocation5 + $0x118] sm:$0xff]
    %v994 = vld [vmem:[#allocation5 + $0x120] sm:$0xff]
    %v995 = vld [vmem:[#allocation5 + $0x128] sm:$0xff]
    %v996 = vld [vmem:[#allocation5 + $0x130] sm:$0xff]
    %v997 = vld [vmem:[#allocation5 + $0x138] sm:$0xff]
    %v998 = vld [vmem:[#allocation5 + $0x140] sm:$0xff]
    %v999 = vld [vmem:[#allocation5 + $0x148] sm:$0xff]
    %v1000 = vld [vmem:[#allocation5 + $0x150] sm:$0xff]
    %v1001 = vld [vmem:[#allocation5 + $0x158] sm:$0xff]
    %v1002 = vld [vmem:[#allocation5 + $0x160] sm:$0xff]
    %v1003 = vld [vmem:[#allocation5 + $0x168] sm:$0xff]
    %v1004 = vld [vmem:[#allocation5 + $0x170] sm:$0xff]
    %v1005 = vld [vmem:[#allocation5 + $0x178] sm:$0xff]
    %v1006 = vld [vmem:[#allocation5 + $0x180] sm:$0xff]
    %v1007 = vld [vmem:[#allocation5 + $0x188] sm:$0xff]
    %v1008 = vld [vmem:[#allocation5 + $0x190] sm:$0xff]
    %v1009 = vld [vmem:[#allocation5 + $0x198] sm:$0xff]
    %v1010 = vld [vmem:[#allocation5 + $0x1a0] sm:$0xff]
    %v1011 = vld [vmem:[#allocation5 + $0x1a8] sm:$0xff]
    %v1012 = vld [vmem:[#allocation5 + $0x1b0] sm:$0xff]
    %v1013 = vld [vmem:[#allocation5 + $0x1b8] sm:$0xff]
    %v1014 = vld [vmem:[#allocation5 + $0x1c0] sm:$0xff]
    %v1015 = vld [vmem:[#allocation5 + $0x1c8] sm:$0xff]
    %v1016 = vld [vmem:[#allocation5 + $0x1d0] sm:$0xff]
    %v1017 = vld [vmem:[#allocation5 + $0x1d8] sm:$0xff]
    %v1018 = vld [vmem:[#allocation5 + $0x1e0] sm:$0xff]
    %v1019 = vld [vmem:[#allocation5 + $0x1e8] sm:$0xff]
    %v1020 = vld [vmem:[#allocation5 + $0x1f0] sm:$0xff]
    %v1021 = vld [vmem:[#allocation5 + $0x1f8] sm:$0xff]
    %v1024 = vrot.slane %v954, 1
    %v1025 = vsel %vm717, %v955, %v1024
    %1027 = vmatpush.msra.mxu0 %v1018
    %1028 = vmatpush.msra.mxu0 %v1014
    %1029 = vmatpush.msra.mxu0 %v1010
    %1030 = vmatpush.msra.mxu0 %v1006
    %1031 = vmatpush.msra.mxu0 %v1002
    %1032 = vmatpush.msra.mxu0 %v998
    %1033 = vmatpush.msra.mxu0 %v994
    %1034 = vmatpush.msra.mxu0 %v990
    %1035 = vmatpush.msra.mxu0 %v986
    %1036 = vmatpush.msra.mxu0 %v982
    %1037 = vmatpush.msra.mxu0 %v978
    %1038 = vmatpush.msra.mxu0 %v974
    %1039 = vmatpush.msra.mxu0 %v970
    %1040 = vmatpush.msra.mxu0 %v966
    %1041 = vmatpush.msra.mxu0 %v962
    %1042 = vmatpush.msra.mxu0 %v958
    %1043 = vmatmul.f32.gmra.mxu0 %v1025
    %v1044 = vpop.f32.mrf.mxu0
    %v1045 = vadd.f32 0.0, %v1044
    %1046 = vdwg.mxu0
    %1047 = vmatpush.msra.mxu0 %v1019
    %1048 = vmatpush.msra.mxu0 %v1015
    %1049 = vmatpush.msra.mxu0 %v1011
    %1050 = vmatpush.msra.mxu0 %v1007
    %1051 = vmatpush.msra.mxu0 %v1003
    %1052 = vmatpush.msra.mxu0 %v999
    %1053 = vmatpush.msra.mxu0 %v995
    %1054 = vmatpush.msra.mxu0 %v991
    %1055 = vmatpush.msra.mxu0 %v987
    %1056 = vmatpush.msra.mxu0 %v983
    %1057 = vmatpush.msra.mxu0 %v979
    %1058 = vmatpush.msra.mxu0 %v975
    %1059 = vmatpush.msra.mxu0 %v971
    %1060 = vmatpush.msra.mxu0 %v967
    %1061 = vmatpush.msra.mxu0 %v963
    %1062 = vmatpush.msra.mxu0 %v959
    %1063 = vmatmul.f32.gmra.mxu0 %v1025
    %v1064 = vpop.f32.mrf.mxu0
    %v1065 = vadd.f32 0.0, %v1064
    %1066 = vdwg.mxu0
    %1067 = vmatpush.msra.mxu0 %v1020
    %1068 = vmatpush.msra.mxu0 %v1016
    %1069 = vmatpush.msra.mxu0 %v1012
    %1070 = vmatpush.msra.mxu0 %v1008
    %1071 = vmatpush.msra.mxu0 %v1004
    %1072 = vmatpush.msra.mxu0 %v1000
    %1073 = vmatpush.msra.mxu0 %v996
    %1074 = vmatpush.msra.mxu0 %v992
    %1075 = vmatpush.msra.mxu0 %v988
    %1076 = vmatpush.msra.mxu0 %v984
    %1077 = vmatpush.msra.mxu0 %v980
    %1078 = vmatpush.msra.mxu0 %v976
    %1079 = vmatpush.msra.mxu0 %v972
    %1080 = vmatpush.msra.mxu0 %v968
    %1081 = vmatpush.msra.mxu0 %v964
    %1082 = vmatpush.msra.mxu0 %v960
    %1083 = vmatmul.f32.gmra.mxu0 %v1025
    %v1084 = vpop.f32.mrf.mxu0
    %v1085 = vadd.f32 0.0, %v1084
    %1086 = vdwg.mxu0
    %1087 = vmatpush.msra.mxu0 %v1021
    %1088 = vmatpush.msra.mxu0 %v1017
    %1089 = vmatpush.msra.mxu0 %v1013
    %1090 = vmatpush.msra.mxu0 %v1009
    %1091 = vmatpush.msra.mxu0 %v1005
    %1092 = vmatpush.msra.mxu0 %v1001
    %1093 = vmatpush.msra.mxu0 %v997
    %1094 = vmatpush.msra.mxu0 %v993
    %1095 = vmatpush.msra.mxu0 %v989
    %1096 = vmatpush.msra.mxu0 %v985
    %1097 = vmatpush.msra.mxu0 %v981
    %1098 = vmatpush.msra.mxu0 %v977
    %1099 = vmatpush.msra.mxu0 %v973
    %1100 = vmatpush.msra.mxu0 %v969
    %1101 = vmatpush.msra.mxu0 %v965
    %1102 = vmatpush.msra.mxu0 %v961
    %1103 = vmatmul.f32.gmra.mxu0 %v1025
    %v1104 = vpop.f32.mrf.mxu0
    %v1105 = vadd.f32 0.0, %v1104
    %1106 = vdwg.mxu0
    %v1111 = vrot.slane %v1045, 6
    %v1112 = vrot.slane %v1065, 6
    %v1113 = vrot.slane %v1085, 6
    %v1114 = vrot.slane %v1105, 6
    %v1115 = vrot.slane %v1045, 7
    %v1116 = vrot.slane %v1065, 7
    %v1117 = vrot.slane %v1085, 7
    %v1118 = vrot.slane %v1105, 7
    %v1127 = vadd.f32 %v280, %v1111
    %v1128 = vadd.f32 %v303, %v1112
    %v1129 = vadd.f32 %v326, %v1113
    %v1130 = vadd.f32 %v349, %v1114
    %v1131 = vadd.f32 %v283, %v1115
    %v1132 = vadd.f32 %v306, %v1116
    %v1133 = vadd.f32 %v329, %v1117
    %v1134 = vadd.f32 %v352, %v1118
    %v1135 = vxor.u32 %v1127, 2147483648
    %v1136 = vxor.u32 %v1131, 2147483648
    %v1137 = vmul.f32 %v1135, 1.442695
    %v1138 = vpow.pop %v1137
    %v1139 = vmul.f32 %v1136, 1.442695
    %v1140 = vpow.pop %v1139
    %v1141 = vadd.f32 %v1138, 1.0
    %v1142 = vadd.f32 %v1140, 1.0
    %v1143 = vrcp.pop %v1141
    %v1144 = vmul.f32 %v1141, %v1143
    %v1145 = vsub.f32 1.0, %v1144
    %v1146 = vmul.f32 %v1143, %v1145
    %v1147 = vadd.f32 %v1143, %v1146
    %vm1148 = vweird.f32 %v1141
    %vm1149 = vweird.f32 %v1143
    %vm1150 = vmor %vm1148, %vm1149
    %v1151 = vsel %vm1150, %v1143, %v1147
    %v1152 = vand.u32 2147483647, %v1141
    %vm1153 = vcmp.eq.f32.partialorder %v1152, 8.507059e+37
    %v1154 = vand.u32 %v1141, 2147483648
    %v1155 = vor.u32 1.1754944e-38, %v1154
    %v1156 = vsel %vm1153, %v1155, %v1151
    %v1157 = vmul.f32 1.0, %v1156
    %v1158 = vrcp.pop %v1142
    %v1159 = vmul.f32 %v1142, %v1158
    %v1160 = vsub.f32 1.0, %v1159
    %v1161 = vmul.f32 %v1158, %v1160
    %v1162 = vadd.f32 %v1158, %v1161
    %vm1163 = vweird.f32 %v1142
    %vm1164 = vweird.f32 %v1158
    %vm1165 = vmor %vm1163, %vm1164
    %v1166 = vsel %vm1165, %v1158, %v1162
    %v1167 = vand.u32 2147483647, %v1142
    %vm1168 = vcmp.eq.f32.partialorder %v1167, 8.507059e+37
    %v1169 = vand.u32 %v1142, 2147483648
    %v1170 = vor.u32 1.1754944e-38, %v1169
    %v1171 = vsel %vm1168, %v1170, %v1166
    %v1172 = vmul.f32 1.0, %v1171
    %v1173 = vxor.u32 %v1128, 2147483648
    %v1174 = vxor.u32 %v1132, 2147483648
    %v1175 = vmul.f32 %v1173, 1.442695
    %v1176 = vpow.pop %v1175
    %v1177 = vmul.f32 %v1174, 1.442695
    %v1178 = vpow.pop %v1177
    %v1179 = vadd.f32 %v1176, 1.0
    %v1180 = vadd.f32 %v1178, 1.0
    %v1181 = vrcp.pop %v1179
    %v1182 = vmul.f32 %v1179, %v1181
    %v1183 = vsub.f32 1.0, %v1182
    %v1184 = vmul.f32 %v1181, %v1183
    %v1185 = vadd.f32 %v1181, %v1184
    %vm1186 = vweird.f32 %v1179
    %vm1187 = vweird.f32 %v1181
    %vm1188 = vmor %vm1186, %vm1187
    %v1189 = vsel %vm1188, %v1181, %v1185
    %v1190 = vand.u32 2147483647, %v1179
    %vm1191 = vcmp.eq.f32.partialorder %v1190, 8.507059e+37
    %v1192 = vand.u32 %v1179, 2147483648
    %v1193 = vor.u32 1.1754944e-38, %v1192
    %v1194 = vsel %vm1191, %v1193, %v1189
    %v1195 = vmul.f32 1.0, %v1194
    %v1196 = vrcp.pop %v1180
    %v1197 = vmul.f32 %v1180, %v1196
    %v1198 = vsub.f32 1.0, %v1197
    %v1199 = vmul.f32 %v1196, %v1198
    %v1200 = vadd.f32 %v1196, %v1199
    %vm1201 = vweird.f32 %v1180
    %vm1202 = vweird.f32 %v1196
    %vm1203 = vmor %vm1201, %vm1202
    %v1204 = vsel %vm1203, %v1196, %v1200
    %v1205 = vand.u32 2147483647, %v1180
    %vm1206 = vcmp.eq.f32.partialorder %v1205, 8.507059e+37
    %v1207 = vand.u32 %v1180, 2147483648
    %v1208 = vor.u32 1.1754944e-38, %v1207
    %v1209 = vsel %vm1206, %v1208, %v1204
    %v1210 = vmul.f32 1.0, %v1209
    %v1211 = vtanh.pop %v1129
    %v1212 = vtanh.pop %v1133
    %v1213 = vxor.u32 %v1130, 2147483648
    %v1214 = vxor.u32 %v1134, 2147483648
    %v1215 = vmul.f32 %v1213, 1.442695
    %v1216 = vpow.pop %v1215
    %v1217 = vmul.f32 %v1214, 1.442695
    %v1218 = vpow.pop %v1217
    %v1219 = vadd.f32 %v1216, 1.0
    %v1220 = vadd.f32 %v1218, 1.0
    %v1221 = vrcp.pop %v1219
    %v1222 = vmul.f32 %v1219, %v1221
    %v1223 = vsub.f32 1.0, %v1222
    %v1224 = vmul.f32 %v1221, %v1223
    %v1225 = vadd.f32 %v1221, %v1224
    %vm1226 = vweird.f32 %v1219
    %vm1227 = vweird.f32 %v1221
    %vm1228 = vmor %vm1226, %vm1227
    %v1229 = vsel %vm1228, %v1221, %v1225
    %v1230 = vand.u32 2147483647, %v1219
    %vm1231 = vcmp.eq.f32.partialorder %v1230, 8.507059e+37
    %v1232 = vand.u32 %v1219, 2147483648
    %v1233 = vor.u32 1.1754944e-38, %v1232
    %v1234 = vsel %vm1231, %v1233, %v1229
    %v1235 = vmul.f32 1.0, %v1234
    %v1236 = vrcp.pop %v1220
    %v1237 = vmul.f32 %v1220, %v1236
    %v1238 = vsub.f32 1.0, %v1237
    %v1239 = vmul.f32 %v1236, %v1238
    %v1240 = vadd.f32 %v1236, %v1239
    %vm1241 = vweird.f32 %v1220
    %vm1242 = vweird.f32 %v1236
    %vm1243 = vmor %vm1241, %vm1242
    %v1244 = vsel %vm1243, %v1236, %v1240
    %v1245 = vand.u32 2147483647, %v1220
    %vm1246 = vcmp.eq.f32.partialorder %v1245, 8.507059e+37
    %v1247 = vand.u32 %v1220, 2147483648
    %v1248 = vor.u32 1.1754944e-38, %v1247
    %v1249 = vsel %vm1246, %v1248, %v1244
    %v1250 = vmul.f32 1.0, %v1249
    %v1253 = vrot.slane %v950, 7
    %v1254 = vrot.slane %v951, 7
    %v1257 = vmul.f32 %v1195, %v1253
    %v1258 = vmul.f32 %v1210, %v1254
    %v1259 = vmul.f32 %v1157, %v1211
    %v1260 = vmul.f32 %v1172, %v1212
    %v1261 = vadd.f32 %v1257, %v1259
    %v1262 = vadd.f32 %v1258, %v1260
    %v1263 = vtanh.pop %v1261
    %v1264 = vtanh.pop %v1262
    %v1265 = vmul.f32 %v1235, %v1263
    %v1266 = vmul.f32 %v1250, %v1264
    %1267 = vst [vmem:[#allocation2] sm:$0x4] %v1265
    %1268 = vst [vmem:[#allocation2 + $0x8] sm:$0x4] %v1266
    %v1269 = vld [vmem:[#allocation5] sm:$0xff]
    %v1270 = vld [vmem:[#allocation5 + $0x8] sm:$0xff]
    %v1271 = vld [vmem:[#allocation5 + $0x10] sm:$0xff]
    %v1272 = vld [vmem:[#allocation5 + $0x18] sm:$0xff]
    %v1273 = vld [vmem:[#allocation5 + $0x20] sm:$0xff]
    %v1274 = vld [vmem:[#allocation5 + $0x28] sm:$0xff]
    %v1275 = vld [vmem:[#allocation5 + $0x30] sm:$0xff]
    %v1276 = vld [vmem:[#allocation5 + $0x38] sm:$0xff]
    %v1277 = vld [vmem:[#allocation5 + $0x40] sm:$0xff]
    %v1278 = vld [vmem:[#allocation5 + $0x48] sm:$0xff]
    %v1279 = vld [vmem:[#allocation5 + $0x50] sm:$0xff]
    %v1280 = vld [vmem:[#allocation5 + $0x58] sm:$0xff]
    %v1281 = vld [vmem:[#allocation5 + $0x60] sm:$0xff]
    %v1282 = vld [vmem:[#allocation5 + $0x68] sm:$0xff]
    %v1283 = vld [vmem:[#allocation5 + $0x70] sm:$0xff]
    %v1284 = vld [vmem:[#allocation5 + $0x78] sm:$0xff]
    %v1285 = vld [vmem:[#allocation5 + $0x80] sm:$0xff]
    %v1286 = vld [vmem:[#allocation5 + $0x88] sm:$0xff]
    %v1287 = vld [vmem:[#allocation5 + $0x90] sm:$0xff]
    %v1288 = vld [vmem:[#allocation5 + $0x98] sm:$0xff]
    %v1289 = vld [vmem:[#allocation5 + $0xa0] sm:$0xff]
    %v1290 = vld [vmem:[#allocation5 + $0xa8] sm:$0xff]
    %v1291 = vld [vmem:[#allocation5 + $0xb0] sm:$0xff]
    %v1292 = vld [vmem:[#allocation5 + $0xb8] sm:$0xff]
    %v1293 = vld [vmem:[#allocation5 + $0xc0] sm:$0xff]
    %v1294 = vld [vmem:[#allocation5 + $0xc8] sm:$0xff]
    %v1295 = vld [vmem:[#allocation5 + $0xd0] sm:$0xff]
    %v1296 = vld [vmem:[#allocation5 + $0xd8] sm:$0xff]
    %v1297 = vld [vmem:[#allocation5 + $0xe0] sm:$0xff]
    %v1298 = vld [vmem:[#allocation5 + $0xe8] sm:$0xff]
    %v1299 = vld [vmem:[#allocation5 + $0xf0] sm:$0xff]
    %v1300 = vld [vmem:[#allocation5 + $0xf8] sm:$0xff]
    %v1301 = vld [vmem:[#allocation5 + $0x100] sm:$0xff]
    %v1302 = vld [vmem:[#allocation5 + $0x108] sm:$0xff]
    %v1303 = vld [vmem:[#allocation5 + $0x110] sm:$0xff]
    %v1304 = vld [vmem:[#allocation5 + $0x118] sm:$0xff]
    %v1305 = vld [vmem:[#allocation5 + $0x120] sm:$0xff]
    %v1306 = vld [vmem:[#allocation5 + $0x128] sm:$0xff]
    %v1307 = vld [vmem:[#allocation5 + $0x130] sm:$0xff]
    %v1308 = vld [vmem:[#allocation5 + $0x138] sm:$0xff]
    %v1309 = vld [vmem:[#allocation5 + $0x140] sm:$0xff]
    %v1310 = vld [vmem:[#allocation5 + $0x148] sm:$0xff]
    %v1311 = vld [vmem:[#allocation5 + $0x150] sm:$0xff]
    %v1312 = vld [vmem:[#allocation5 + $0x158] sm:$0xff]
    %v1313 = vld [vmem:[#allocation5 + $0x160] sm:$0xff]
    %v1314 = vld [vmem:[#allocation5 + $0x168] sm:$0xff]
    %v1315 = vld [vmem:[#allocation5 + $0x170] sm:$0xff]
    %v1316 = vld [vmem:[#allocation5 + $0x178] sm:$0xff]
    %v1317 = vld [vmem:[#allocation5 + $0x180] sm:$0xff]
    %v1318 = vld [vmem:[#allocation5 + $0x188] sm:$0xff]
    %v1319 = vld [vmem:[#allocation5 + $0x190] sm:$0xff]
    %v1320 = vld [vmem:[#allocation5 + $0x198] sm:$0xff]
    %v1321 = vld [vmem:[#allocation5 + $0x1a0] sm:$0xff]
    %v1322 = vld [vmem:[#allocation5 + $0x1a8] sm:$0xff]
    %v1323 = vld [vmem:[#allocation5 + $0x1b0] sm:$0xff]
    %v1324 = vld [vmem:[#allocation5 + $0x1b8] sm:$0xff]
    %v1325 = vld [vmem:[#allocation5 + $0x1c0] sm:$0xff]
    %v1326 = vld [vmem:[#allocation5 + $0x1c8] sm:$0xff]
    %v1327 = vld [vmem:[#allocation5 + $0x1d0] sm:$0xff]
    %v1328 = vld [vmem:[#allocation5 + $0x1d8] sm:$0xff]
    %v1329 = vld [vmem:[#allocation5 + $0x1e0] sm:$0xff]
    %v1330 = vld [vmem:[#allocation5 + $0x1e8] sm:$0xff]
    %v1331 = vld [vmem:[#allocation5 + $0x1f0] sm:$0xff]
    %v1332 = vld [vmem:[#allocation5 + $0x1f8] sm:$0xff]
    %v1335 = vrot.slane %v1265, 2
    %v1336 = vrot.slane %v1266, 1
    %v1337 = vsel %vm717, %v1336, %v1335
    %1339 = vmatpush.msra.mxu0 %v1329
    %1340 = vmatpush.msra.mxu0 %v1325
    %1341 = vmatpush.msra.mxu0 %v1321
    %1342 = vmatpush.msra.mxu0 %v1317
    %1343 = vmatpush.msra.mxu0 %v1313
    %1344 = vmatpush.msra.mxu0 %v1309
    %1345 = vmatpush.msra.mxu0 %v1305
    %1346 = vmatpush.msra.mxu0 %v1301
    %1347 = vmatpush.msra.mxu0 %v1297
    %1348 = vmatpush.msra.mxu0 %v1293
    %1349 = vmatpush.msra.mxu0 %v1289
    %1350 = vmatpush.msra.mxu0 %v1285
    %1351 = vmatpush.msra.mxu0 %v1281
    %1352 = vmatpush.msra.mxu0 %v1277
    %1353 = vmatpush.msra.mxu0 %v1273
    %1354 = vmatpush.msra.mxu0 %v1269
    %1355 = vmatmul.f32.gmra.mxu0 %v1337
    %v1356 = vpop.f32.mrf.mxu0
    %v1357 = vadd.f32 0.0, %v1356
    %1358 = vdwg.mxu0
    %1359 = vmatpush.msra.mxu0 %v1330
    %1360 = vmatpush.msra.mxu0 %v1326
    %1361 = vmatpush.msra.mxu0 %v1322
    %1362 = vmatpush.msra.mxu0 %v1318
    %1363 = vmatpush.msra.mxu0 %v1314
    %1364 = vmatpush.msra.mxu0 %v1310
    %1365 = vmatpush.msra.mxu0 %v1306
    %1366 = vmatpush.msra.mxu0 %v1302
    %1367 = vmatpush.msra.mxu0 %v1298
    %1368 = vmatpush.msra.mxu0 %v1294
    %1369 = vmatpush.msra.mxu0 %v1290
    %1370 = vmatpush.msra.mxu0 %v1286
    %1371 = vmatpush.msra.mxu0 %v1282
    %1372 = vmatpush.msra.mxu0 %v1278
    %1373 = vmatpush.msra.mxu0 %v1274
    %1374 = vmatpush.msra.mxu0 %v1270
    %1375 = vmatmul.f32.gmra.mxu0 %v1337
    %v1376 = vpop.f32.mrf.mxu0
    %v1377 = vadd.f32 0.0, %v1376
    %1378 = vdwg.mxu0
    %1379 = vmatpush.msra.mxu0 %v1331
    %1380 = vmatpush.msra.mxu0 %v1327
    %1381 = vmatpush.msra.mxu0 %v1323
    %1382 = vmatpush.msra.mxu0 %v1319
    %1383 = vmatpush.msra.mxu0 %v1315
    %1384 = vmatpush.msra.mxu0 %v1311
    %1385 = vmatpush.msra.mxu0 %v1307
    %1386 = vmatpush.msra.mxu0 %v1303
    %1387 = vmatpush.msra.mxu0 %v1299
    %1388 = vmatpush.msra.mxu0 %v1295
    %1389 = vmatpush.msra.mxu0 %v1291
    %1390 = vmatpush.msra.mxu0 %v1287
    %1391 = vmatpush.msra.mxu0 %v1283
    %1392 = vmatpush.msra.mxu0 %v1279
    %1393 = vmatpush.msra.mxu0 %v1275
    %1394 = vmatpush.msra.mxu0 %v1271
    %1395 = vmatmul.f32.gmra.mxu0 %v1337
    %v1396 = vpop.f32.mrf.mxu0
    %v1397 = vadd.f32 0.0, %v1396
    %1398 = vdwg.mxu0
    %1399 = vmatpush.msra.mxu0 %v1332
    %1400 = vmatpush.msra.mxu0 %v1328
    %1401 = vmatpush.msra.mxu0 %v1324
    %1402 = vmatpush.msra.mxu0 %v1320
    %1403 = vmatpush.msra.mxu0 %v1316
    %1404 = vmatpush.msra.mxu0 %v1312
    %1405 = vmatpush.msra.mxu0 %v1308
    %1406 = vmatpush.msra.mxu0 %v1304
    %1407 = vmatpush.msra.mxu0 %v1300
    %1408 = vmatpush.msra.mxu0 %v1296
    %1409 = vmatpush.msra.mxu0 %v1292
    %1410 = vmatpush.msra.mxu0 %v1288
    %1411 = vmatpush.msra.mxu0 %v1284
    %1412 = vmatpush.msra.mxu0 %v1280
    %1413 = vmatpush.msra.mxu0 %v1276
    %1414 = vmatpush.msra.mxu0 %v1272
    %1415 = vmatmul.f32.gmra.mxu0 %v1337
    %v1416 = vpop.f32.mrf.mxu0
    %v1417 = vadd.f32 0.0, %v1416
    %1418 = vdwg.mxu0
    %v1423 = vrot.slane %v1357, 5
    %v1424 = vrot.slane %v1377, 5
    %v1425 = vrot.slane %v1397, 5
    %v1426 = vrot.slane %v1417, 5
    %v1427 = vrot.slane %v1357, 6
    %v1428 = vrot.slane %v1377, 6
    %v1429 = vrot.slane %v1397, 6
    %v1430 = vrot.slane %v1417, 6
    %v1439 = vadd.f32 %v280, %v1423
    %v1440 = vadd.f32 %v303, %v1424
    %v1441 = vadd.f32 %v326, %v1425
    %v1442 = vadd.f32 %v349, %v1426
    %v1443 = vadd.f32 %v283, %v1427
    %v1444 = vadd.f32 %v306, %v1428
    %v1445 = vadd.f32 %v329, %v1429
    %v1446 = vadd.f32 %v352, %v1430
    %v1447 = vxor.u32 %v1439, 2147483648
    %v1448 = vxor.u32 %v1443, 2147483648
    %v1449 = vmul.f32 %v1447, 1.442695
    %v1450 = vpow.pop %v1449
    %v1451 = vmul.f32 %v1448, 1.442695
    %v1452 = vpow.pop %v1451
    %v1453 = vadd.f32 %v1450, 1.0
    %v1454 = vadd.f32 %v1452, 1.0
    %v1455 = vrcp.pop %v1453
    %v1456 = vmul.f32 %v1453, %v1455
    %v1457 = vsub.f32 1.0, %v1456
    %v1458 = vmul.f32 %v1455, %v1457
    %v1459 = vadd.f32 %v1455, %v1458
    %vm1460 = vweird.f32 %v1453
    %vm1461 = vweird.f32 %v1455
    %vm1462 = vmor %vm1460, %vm1461
    %v1463 = vsel %vm1462, %v1455, %v1459
    %v1464 = vand.u32 2147483647, %v1453
    %vm1465 = vcmp.eq.f32.partialorder %v1464, 8.507059e+37
    %v1466 = vand.u32 %v1453, 2147483648
    %v1467 = vor.u32 1.1754944e-38, %v1466
    %v1468 = vsel %vm1465, %v1467, %v1463
    %v1469 = vmul.f32 1.0, %v1468
    %v1470 = vrcp.pop %v1454
    %v1471 = vmul.f32 %v1454, %v1470
    %v1472 = vsub.f32 1.0, %v1471
    %v1473 = vmul.f32 %v1470, %v1472
    %v1474 = vadd.f32 %v1470, %v1473
    %vm1475 = vweird.f32 %v1454
    %vm1476 = vweird.f32 %v1470
    %vm1477 = vmor %vm1475, %vm1476
    %v1478 = vsel %vm1477, %v1470, %v1474
    %v1479 = vand.u32 2147483647, %v1454
    %vm1480 = vcmp.eq.f32.partialorder %v1479, 8.507059e+37
    %v1481 = vand.u32 %v1454, 2147483648
    %v1482 = vor.u32 1.1754944e-38, %v1481
    %v1483 = vsel %vm1480, %v1482, %v1478
    %v1484 = vmul.f32 1.0, %v1483
    %v1485 = vxor.u32 %v1440, 2147483648
    %v1486 = vxor.u32 %v1444, 2147483648
    %v1487 = vmul.f32 %v1485, 1.442695
    %v1488 = vpow.pop %v1487
    %v1489 = vmul.f32 %v1486, 1.442695
    %v1490 = vpow.pop %v1489
    %v1491 = vadd.f32 %v1488, 1.0
    %v1492 = vadd.f32 %v1490, 1.0
    %v1493 = vrcp.pop %v1491
    %v1494 = vmul.f32 %v1491, %v1493
    %v1495 = vsub.f32 1.0, %v1494
    %v1496 = vmul.f32 %v1493, %v1495
    %v1497 = vadd.f32 %v1493, %v1496
    %vm1498 = vweird.f32 %v1491
    %vm1499 = vweird.f32 %v1493
    %vm1500 = vmor %vm1498, %vm1499
    %v1501 = vsel %vm1500, %v1493, %v1497
    %v1502 = vand.u32 2147483647, %v1491
    %vm1503 = vcmp.eq.f32.partialorder %v1502, 8.507059e+37
    %v1504 = vand.u32 %v1491, 2147483648
    %v1505 = vor.u32 1.1754944e-38, %v1504
    %v1506 = vsel %vm1503, %v1505, %v1501
    %v1507 = vmul.f32 1.0, %v1506
    %v1508 = vrcp.pop %v1492
    %v1509 = vmul.f32 %v1492, %v1508
    %v1510 = vsub.f32 1.0, %v1509
    %v1511 = vmul.f32 %v1508, %v1510
    %v1512 = vadd.f32 %v1508, %v1511
    %vm1513 = vweird.f32 %v1492
    %vm1514 = vweird.f32 %v1508
    %vm1515 = vmor %vm1513, %vm1514
    %v1516 = vsel %vm1515, %v1508, %v1512
    %v1517 = vand.u32 2147483647, %v1492
    %vm1518 = vcmp.eq.f32.partialorder %v1517, 8.507059e+37
    %v1519 = vand.u32 %v1492, 2147483648
    %v1520 = vor.u32 1.1754944e-38, %v1519
    %v1521 = vsel %vm1518, %v1520, %v1516
    %v1522 = vmul.f32 1.0, %v1521
    %v1523 = vtanh.pop %v1441
    %v1524 = vtanh.pop %v1445
    %v1525 = vxor.u32 %v1442, 2147483648
    %v1526 = vxor.u32 %v1446, 2147483648
    %v1527 = vmul.f32 %v1525, 1.442695
    %v1528 = vpow.pop %v1527
    %v1529 = vmul.f32 %v1526, 1.442695
    %v1530 = vpow.pop %v1529
    %v1531 = vadd.f32 %v1528, 1.0
    %v1532 = vadd.f32 %v1530, 1.0
    %v1533 = vrcp.pop %v1531
    %v1534 = vmul.f32 %v1531, %v1533
    %v1535 = vsub.f32 1.0, %v1534
    %v1536 = vmul.f32 %v1533, %v1535
    %v1537 = vadd.f32 %v1533, %v1536
    %vm1538 = vweird.f32 %v1531
    %vm1539 = vweird.f32 %v1533
    %vm1540 = vmor %vm1538, %vm1539
    %v1541 = vsel %vm1540, %v1533, %v1537
    %v1542 = vand.u32 2147483647, %v1531
    %vm1543 = vcmp.eq.f32.partialorder %v1542, 8.507059e+37
    %v1544 = vand.u32 %v1531, 2147483648
    %v1545 = vor.u32 1.1754944e-38, %v1544
    %v1546 = vsel %vm1543, %v1545, %v1541
    %v1547 = vmul.f32 1.0, %v1546
    %v1548 = vrcp.pop %v1532
    %v1549 = vmul.f32 %v1532, %v1548
    %v1550 = vsub.f32 1.0, %v1549
    %v1551 = vmul.f32 %v1548, %v1550
    %v1552 = vadd.f32 %v1548, %v1551
    %vm1553 = vweird.f32 %v1532
    %vm1554 = vweird.f32 %v1548
    %vm1555 = vmor %vm1553, %vm1554
    %v1556 = vsel %vm1555, %v1548, %v1552
    %v1557 = vand.u32 2147483647, %v1532
    %vm1558 = vcmp.eq.f32.partialorder %v1557, 8.507059e+37
    %v1559 = vand.u32 %v1532, 2147483648
    %v1560 = vor.u32 1.1754944e-38, %v1559
    %v1561 = vsel %vm1558, %v1560, %v1556
    %v1562 = vmul.f32 1.0, %v1561
    %v1565 = vrot.slane %v1261, 7
    %v1566 = vrot.slane %v1262, 7
    %v1569 = vmul.f32 %v1507, %v1565
    %v1570 = vmul.f32 %v1522, %v1566
    %v1571 = vmul.f32 %v1469, %v1523
    %v1572 = vmul.f32 %v1484, %v1524
    %v1573 = vadd.f32 %v1569, %v1571
    %v1574 = vadd.f32 %v1570, %v1572
    %v1575 = vtanh.pop %v1573
    %v1576 = vtanh.pop %v1574
    %v1577 = vmul.f32 %v1547, %v1575
    %v1578 = vmul.f32 %v1562, %v1576
    %1579 = vst [vmem:[#allocation2] sm:$0x8] %v1577
    %1580 = vst [vmem:[#allocation2 + $0x8] sm:$0x8] %v1578
    %v1581 = vld [vmem:[#allocation5] sm:$0xff]
    %v1582 = vld [vmem:[#allocation5 + $0x8] sm:$0xff]
    %v1583 = vld [vmem:[#allocation5 + $0x10] sm:$0xff]
    %v1584 = vld [vmem:[#allocation5 + $0x18] sm:$0xff]
    %v1585 = vld [vmem:[#allocation5 + $0x20] sm:$0xff]
    %v1586 = vld [vmem:[#allocation5 + $0x28] sm:$0xff]
    %v1587 = vld [vmem:[#allocation5 + $0x30] sm:$0xff]
    %v1588 = vld [vmem:[#allocation5 + $0x38] sm:$0xff]
    %v1589 = vld [vmem:[#allocation5 + $0x40] sm:$0xff]
    %v1590 = vld [vmem:[#allocation5 + $0x48] sm:$0xff]
    %v1591 = vld [vmem:[#allocation5 + $0x50] sm:$0xff]
    %v1592 = vld [vmem:[#allocation5 + $0x58] sm:$0xff]
    %v1593 = vld [vmem:[#allocation5 + $0x60] sm:$0xff]
    %v1594 = vld [vmem:[#allocation5 + $0x68] sm:$0xff]
    %v1595 = vld [vmem:[#allocation5 + $0x70] sm:$0xff]
    %v1596 = vld [vmem:[#allocation5 + $0x78] sm:$0xff]
    %v1597 = vld [vmem:[#allocation5 + $0x80] sm:$0xff]
    %v1598 = vld [vmem:[#allocation5 + $0x88] sm:$0xff]
    %v1599 = vld [vmem:[#allocation5 + $0x90] sm:$0xff]
    %v1600 = vld [vmem:[#allocation5 + $0x98] sm:$0xff]
    %v1601 = vld [vmem:[#allocation5 + $0xa0] sm:$0xff]
    %v1602 = vld [vmem:[#allocation5 + $0xa8] sm:$0xff]
    %v1603 = vld [vmem:[#allocation5 + $0xb0] sm:$0xff]
    %v1604 = vld [vmem:[#allocation5 + $0xb8] sm:$0xff]
    %v1605 = vld [vmem:[#allocation5 + $0xc0] sm:$0xff]
    %v1606 = vld [vmem:[#allocation5 + $0xc8] sm:$0xff]
    %v1607 = vld [vmem:[#allocation5 + $0xd0] sm:$0xff]
    %v1608 = vld [vmem:[#allocation5 + $0xd8] sm:$0xff]
    %v1609 = vld [vmem:[#allocation5 + $0xe0] sm:$0xff]
    %v1610 = vld [vmem:[#allocation5 + $0xe8] sm:$0xff]
    %v1611 = vld [vmem:[#allocation5 + $0xf0] sm:$0xff]
    %v1612 = vld [vmem:[#allocation5 + $0xf8] sm:$0xff]
    %v1613 = vld [vmem:[#allocation5 + $0x100] sm:$0xff]
    %v1614 = vld [vmem:[#allocation5 + $0x108] sm:$0xff]
    %v1615 = vld [vmem:[#allocation5 + $0x110] sm:$0xff]
    %v1616 = vld [vmem:[#allocation5 + $0x118] sm:$0xff]
    %v1617 = vld [vmem:[#allocation5 + $0x120] sm:$0xff]
    %v1618 = vld [vmem:[#allocation5 + $0x128] sm:$0xff]
    %v1619 = vld [vmem:[#allocation5 + $0x130] sm:$0xff]
    %v1620 = vld [vmem:[#allocation5 + $0x138] sm:$0xff]
    %v1621 = vld [vmem:[#allocation5 + $0x140] sm:$0xff]
    %v1622 = vld [vmem:[#allocation5 + $0x148] sm:$0xff]
    %v1623 = vld [vmem:[#allocation5 + $0x150] sm:$0xff]
    %v1624 = vld [vmem:[#allocation5 + $0x158] sm:$0xff]
    %v1625 = vld [vmem:[#allocation5 + $0x160] sm:$0xff]
    %v1626 = vld [vmem:[#allocation5 + $0x168] sm:$0xff]
    %v1627 = vld [vmem:[#allocation5 + $0x170] sm:$0xff]
    %v1628 = vld [vmem:[#allocation5 + $0x178] sm:$0xff]
    %v1629 = vld [vmem:[#allocation5 + $0x180] sm:$0xff]
    %v1630 = vld [vmem:[#allocation5 + $0x188] sm:$0xff]
    %v1631 = vld [vmem:[#allocation5 + $0x190] sm:$0xff]
    %v1632 = vld [vmem:[#allocation5 + $0x198] sm:$0xff]
    %v1633 = vld [vmem:[#allocation5 + $0x1a0] sm:$0xff]
    %v1634 = vld [vmem:[#allocation5 + $0x1a8] sm:$0xff]
    %v1635 = vld [vmem:[#allocation5 + $0x1b0] sm:$0xff]
    %v1636 = vld [vmem:[#allocation5 + $0x1b8] sm:$0xff]
    %v1637 = vld [vmem:[#allocation5 + $0x1c0] sm:$0xff]
    %v1638 = vld [vmem:[#allocation5 + $0x1c8] sm:$0xff]
    %v1639 = vld [vmem:[#allocation5 + $0x1d0] sm:$0xff]
    %v1640 = vld [vmem:[#allocation5 + $0x1d8] sm:$0xff]
    %v1641 = vld [vmem:[#allocation5 + $0x1e0] sm:$0xff]
    %v1642 = vld [vmem:[#allocation5 + $0x1e8] sm:$0xff]
    %v1643 = vld [vmem:[#allocation5 + $0x1f0] sm:$0xff]
    %v1644 = vld [vmem:[#allocation5 + $0x1f8] sm:$0xff]
    %v1647 = vrot.slane %v1577, 3
    %v1648 = vrot.slane %v1578, 2
    %v1649 = vsel %vm717, %v1648, %v1647
    %1651 = vmatpush.msra.mxu0 %v1641
    %1652 = vmatpush.msra.mxu0 %v1637
    %1653 = vmatpush.msra.mxu0 %v1633
    %1654 = vmatpush.msra.mxu0 %v1629
    %1655 = vmatpush.msra.mxu0 %v1625
    %1656 = vmatpush.msra.mxu0 %v1621
    %1657 = vmatpush.msra.mxu0 %v1617
    %1658 = vmatpush.msra.mxu0 %v1613
    %1659 = vmatpush.msra.mxu0 %v1609
    %1660 = vmatpush.msra.mxu0 %v1605
    %1661 = vmatpush.msra.mxu0 %v1601
    %1662 = vmatpush.msra.mxu0 %v1597
    %1663 = vmatpush.msra.mxu0 %v1593
    %1664 = vmatpush.msra.mxu0 %v1589
    %1665 = vmatpush.msra.mxu0 %v1585
    %1666 = vmatpush.msra.mxu0 %v1581
    %1667 = vmatmul.f32.gmra.mxu0 %v1649
    %v1668 = vpop.f32.mrf.mxu0
    %v1669 = vadd.f32 0.0, %v1668
    %1670 = vdwg.mxu0
    %1671 = vmatpush.msra.mxu0 %v1642
    %1672 = vmatpush.msra.mxu0 %v1638
    %1673 = vmatpush.msra.mxu0 %v1634
    %1674 = vmatpush.msra.mxu0 %v1630
    %1675 = vmatpush.msra.mxu0 %v1626
    %1676 = vmatpush.msra.mxu0 %v1622
    %1677 = vmatpush.msra.mxu0 %v1618
    %1678 = vmatpush.msra.mxu0 %v1614
    %1679 = vmatpush.msra.mxu0 %v1610
    %1680 = vmatpush.msra.mxu0 %v1606
    %1681 = vmatpush.msra.mxu0 %v1602
    %1682 = vmatpush.msra.mxu0 %v1598
    %1683 = vmatpush.msra.mxu0 %v1594
    %1684 = vmatpush.msra.mxu0 %v1590
    %1685 = vmatpush.msra.mxu0 %v1586
    %1686 = vmatpush.msra.mxu0 %v1582
    %1687 = vmatmul.f32.gmra.mxu0 %v1649
    %v1688 = vpop.f32.mrf.mxu0
    %v1689 = vadd.f32 0.0, %v1688
    %1690 = vdwg.mxu0
    %1691 = vmatpush.msra.mxu0 %v1643
    %1692 = vmatpush.msra.mxu0 %v1639
    %1693 = vmatpush.msra.mxu0 %v1635
    %1694 = vmatpush.msra.mxu0 %v1631
    %1695 = vmatpush.msra.mxu0 %v1627
    %1696 = vmatpush.msra.mxu0 %v1623
    %1697 = vmatpush.msra.mxu0 %v1619
    %1698 = vmatpush.msra.mxu0 %v1615
    %1699 = vmatpush.msra.mxu0 %v1611
    %1700 = vmatpush.msra.mxu0 %v1607
    %1701 = vmatpush.msra.mxu0 %v1603
    %1702 = vmatpush.msra.mxu0 %v1599
    %1703 = vmatpush.msra.mxu0 %v1595
    %1704 = vmatpush.msra.mxu0 %v1591
    %1705 = vmatpush.msra.mxu0 %v1587
    %1706 = vmatpush.msra.mxu0 %v1583
    %1707 = vmatmul.f32.gmra.mxu0 %v1649
    %v1708 = vpop.f32.mrf.mxu0
    %v1709 = vadd.f32 0.0, %v1708
    %1710 = vdwg.mxu0
    %1711 = vmatpush.msra.mxu0 %v1644
    %1712 = vmatpush.msra.mxu0 %v1640
    %1713 = vmatpush.msra.mxu0 %v1636
    %1714 = vmatpush.msra.mxu0 %v1632
    %1715 = vmatpush.msra.mxu0 %v1628
    %1716 = vmatpush.msra.mxu0 %v1624
    %1717 = vmatpush.msra.mxu0 %v1620
    %1718 = vmatpush.msra.mxu0 %v1616
    %1719 = vmatpush.msra.mxu0 %v1612
    %1720 = vmatpush.msra.mxu0 %v1608
    %1721 = vmatpush.msra.mxu0 %v1604
    %1722 = vmatpush.msra.mxu0 %v1600
    %1723 = vmatpush.msra.mxu0 %v1596
    %1724 = vmatpush.msra.mxu0 %v1592
    %1725 = vmatpush.msra.mxu0 %v1588
    %1726 = vmatpush.msra.mxu0 %v1584
    %1727 = vmatmul.f32.gmra.mxu0 %v1649
    %v1728 = vpop.f32.mrf.mxu0
    %v1729 = vadd.f32 0.0, %v1728
    %1730 = vdwg.mxu0
    %v1735 = vrot.slane %v1669, 4
    %v1736 = vrot.slane %v1689, 4
    %v1737 = vrot.slane %v1709, 4
    %v1738 = vrot.slane %v1729, 4
    %v1739 = vrot.slane %v1669, 5
    %v1740 = vrot.slane %v1689, 5
    %v1741 = vrot.slane %v1709, 5
    %v1742 = vrot.slane %v1729, 5
    %v1751 = vadd.f32 %v280, %v1735
    %v1752 = vadd.f32 %v303, %v1736
    %v1753 = vadd.f32 %v326, %v1737
    %v1754 = vadd.f32 %v349, %v1738
    %v1755 = vadd.f32 %v283, %v1739
    %v1756 = vadd.f32 %v306, %v1740
    %v1757 = vadd.f32 %v329, %v1741
    %v1758 = vadd.f32 %v352, %v1742
    %v1759 = vxor.u32 %v1751, 2147483648
    %v1760 = vxor.u32 %v1755, 2147483648
    %v1761 = vmul.f32 %v1759, 1.442695
    %v1762 = vpow.pop %v1761
    %v1763 = vmul.f32 %v1760, 1.442695
    %v1764 = vpow.pop %v1763
    %v1765 = vadd.f32 %v1762, 1.0
    %v1766 = vadd.f32 %v1764, 1.0
    %v1767 = vrcp.pop %v1765
    %v1768 = vmul.f32 %v1765, %v1767
    %v1769 = vsub.f32 1.0, %v1768
    %v1770 = vmul.f32 %v1767, %v1769
    %v1771 = vadd.f32 %v1767, %v1770
    %vm1772 = vweird.f32 %v1765
    %vm1773 = vweird.f32 %v1767
    %vm1774 = vmor %vm1772, %vm1773
    %v1775 = vsel %vm1774, %v1767, %v1771
    %v1776 = vand.u32 2147483647, %v1765
    %vm1777 = vcmp.eq.f32.partialorder %v1776, 8.507059e+37
    %v1778 = vand.u32 %v1765, 2147483648
    %v1779 = vor.u32 1.1754944e-38, %v1778
    %v1780 = vsel %vm1777, %v1779, %v1775
    %v1781 = vmul.f32 1.0, %v1780
    %v1782 = vrcp.pop %v1766
    %v1783 = vmul.f32 %v1766, %v1782
    %v1784 = vsub.f32 1.0, %v1783
    %v1785 = vmul.f32 %v1782, %v1784
    %v1786 = vadd.f32 %v1782, %v1785
    %vm1787 = vweird.f32 %v1766
    %vm1788 = vweird.f32 %v1782
    %vm1789 = vmor %vm1787, %vm1788
    %v1790 = vsel %vm1789, %v1782, %v1786
    %v1791 = vand.u32 2147483647, %v1766
    %vm1792 = vcmp.eq.f32.partialorder %v1791, 8.507059e+37
    %v1793 = vand.u32 %v1766, 2147483648
    %v1794 = vor.u32 1.1754944e-38, %v1793
    %v1795 = vsel %vm1792, %v1794, %v1790
    %v1796 = vmul.f32 1.0, %v1795
    %v1797 = vxor.u32 %v1752, 2147483648
    %v1798 = vxor.u32 %v1756, 2147483648
    %v1799 = vmul.f32 %v1797, 1.442695
    %v1800 = vpow.pop %v1799
    %v1801 = vmul.f32 %v1798, 1.442695
    %v1802 = vpow.pop %v1801
    %v1803 = vadd.f32 %v1800, 1.0
    %v1804 = vadd.f32 %v1802, 1.0
    %v1805 = vrcp.pop %v1803
    %v1806 = vmul.f32 %v1803, %v1805
    %v1807 = vsub.f32 1.0, %v1806
    %v1808 = vmul.f32 %v1805, %v1807
    %v1809 = vadd.f32 %v1805, %v1808
    %vm1810 = vweird.f32 %v1803
    %vm1811 = vweird.f32 %v1805
    %vm1812 = vmor %vm1810, %vm1811
    %v1813 = vsel %vm1812, %v1805, %v1809
    %v1814 = vand.u32 2147483647, %v1803
    %vm1815 = vcmp.eq.f32.partialorder %v1814, 8.507059e+37
    %v1816 = vand.u32 %v1803, 2147483648
    %v1817 = vor.u32 1.1754944e-38, %v1816
    %v1818 = vsel %vm1815, %v1817, %v1813
    %v1819 = vmul.f32 1.0, %v1818
    %v1820 = vrcp.pop %v1804
    %v1821 = vmul.f32 %v1804, %v1820
    %v1822 = vsub.f32 1.0, %v1821
    %v1823 = vmul.f32 %v1820, %v1822
    %v1824 = vadd.f32 %v1820, %v1823
    %vm1825 = vweird.f32 %v1804
    %vm1826 = vweird.f32 %v1820
    %vm1827 = vmor %vm1825, %vm1826
    %v1828 = vsel %vm1827, %v1820, %v1824
    %v1829 = vand.u32 2147483647, %v1804
    %vm1830 = vcmp.eq.f32.partialorder %v1829, 8.507059e+37
    %v1831 = vand.u32 %v1804, 2147483648
    %v1832 = vor.u32 1.1754944e-38, %v1831
    %v1833 = vsel %vm1830, %v1832, %v1828
    %v1834 = vmul.f32 1.0, %v1833
    %v1835 = vtanh.pop %v1753
    %v1836 = vtanh.pop %v1757
    %v1837 = vxor.u32 %v1754, 2147483648
    %v1838 = vxor.u32 %v1758, 2147483648
    %v1839 = vmul.f32 %v1837, 1.442695
    %v1840 = vpow.pop %v1839
    %v1841 = vmul.f32 %v1838, 1.442695
    %v1842 = vpow.pop %v1841
    %v1843 = vadd.f32 %v1840, 1.0
    %v1844 = vadd.f32 %v1842, 1.0
    %v1845 = vrcp.pop %v1843
    %v1846 = vmul.f32 %v1843, %v1845
    %v1847 = vsub.f32 1.0, %v1846
    %v1848 = vmul.f32 %v1845, %v1847
    %v1849 = vadd.f32 %v1845, %v1848
    %vm1850 = vweird.f32 %v1843
    %vm1851 = vweird.f32 %v1845
    %vm1852 = vmor %vm1850, %vm1851
    %v1853 = vsel %vm1852, %v1845, %v1849
    %v1854 = vand.u32 2147483647, %v1843
    %vm1855 = vcmp.eq.f32.partialorder %v1854, 8.507059e+37
    %v1856 = vand.u32 %v1843, 2147483648
    %v1857 = vor.u32 1.1754944e-38, %v1856
    %v1858 = vsel %vm1855, %v1857, %v1853
    %v1859 = vmul.f32 1.0, %v1858
    %v1860 = vrcp.pop %v1844
    %v1861 = vmul.f32 %v1844, %v1860
    %v1862 = vsub.f32 1.0, %v1861
    %v1863 = vmul.f32 %v1860, %v1862
    %v1864 = vadd.f32 %v1860, %v1863
    %vm1865 = vweird.f32 %v1844
    %vm1866 = vweird.f32 %v1860
    %vm1867 = vmor %vm1865, %vm1866
    %v1868 = vsel %vm1867, %v1860, %v1864
    %v1869 = vand.u32 2147483647, %v1844
    %vm1870 = vcmp.eq.f32.partialorder %v1869, 8.507059e+37
    %v1871 = vand.u32 %v1844, 2147483648
    %v1872 = vor.u32 1.1754944e-38, %v1871
    %v1873 = vsel %vm1870, %v1872, %v1868
    %v1874 = vmul.f32 1.0, %v1873
    %v1877 = vrot.slane %v1573, 7
    %v1878 = vrot.slane %v1574, 7
    %v1881 = vmul.f32 %v1819, %v1877
    %v1882 = vmul.f32 %v1834, %v1878
    %v1883 = vmul.f32 %v1781, %v1835
    %v1884 = vmul.f32 %v1796, %v1836
    %v1885 = vadd.f32 %v1881, %v1883
    %v1886 = vadd.f32 %v1882, %v1884
    %v1887 = vtanh.pop %v1885
    %v1888 = vtanh.pop %v1886
    %v1889 = vmul.f32 %v1859, %v1887
    %v1890 = vmul.f32 %v1874, %v1888
    %1891 = vst [vmem:[#allocation2] sm:$0x10] %v1889
    %1892 = vst [vmem:[#allocation2 + $0x8] sm:$0x10] %v1890
    %v1893 = vld [vmem:[#allocation5] sm:$0xff]
    %v1894 = vld [vmem:[#allocation5 + $0x8] sm:$0xff]
    %v1895 = vld [vmem:[#allocation5 + $0x10] sm:$0xff]
    %v1896 = vld [vmem:[#allocation5 + $0x18] sm:$0xff]
    %v1897 = vld [vmem:[#allocation5 + $0x20] sm:$0xff]
    %v1898 = vld [vmem:[#allocation5 + $0x28] sm:$0xff]
    %v1899 = vld [vmem:[#allocation5 + $0x30] sm:$0xff]
    %v1900 = vld [vmem:[#allocation5 + $0x38] sm:$0xff]
    %v1901 = vld [vmem:[#allocation5 + $0x40] sm:$0xff]
    %v1902 = vld [vmem:[#allocation5 + $0x48] sm:$0xff]
    %v1903 = vld [vmem:[#allocation5 + $0x50] sm:$0xff]
    %v1904 = vld [vmem:[#allocation5 + $0x58] sm:$0xff]
    %v1905 = vld [vmem:[#allocation5 + $0x60] sm:$0xff]
    %v1906 = vld [vmem:[#allocation5 + $0x68] sm:$0xff]
    %v1907 = vld [vmem:[#allocation5 + $0x70] sm:$0xff]
    %v1908 = vld [vmem:[#allocation5 + $0x78] sm:$0xff]
    %v1909 = vld [vmem:[#allocation5 + $0x80] sm:$0xff]
    %v1910 = vld [vmem:[#allocation5 + $0x88] sm:$0xff]
    %v1911 = vld [vmem:[#allocation5 + $0x90] sm:$0xff]
    %v1912 = vld [vmem:[#allocation5 + $0x98] sm:$0xff]
    %v1913 = vld [vmem:[#allocation5 + $0xa0] sm:$0xff]
    %v1914 = vld [vmem:[#allocation5 + $0xa8] sm:$0xff]
    %v1915 = vld [vmem:[#allocation5 + $0xb0] sm:$0xff]
    %v1916 = vld [vmem:[#allocation5 + $0xb8] sm:$0xff]
    %v1917 = vld [vmem:[#allocation5 + $0xc0] sm:$0xff]
    %v1918 = vld [vmem:[#allocation5 + $0xc8] sm:$0xff]
    %v1919 = vld [vmem:[#allocation5 + $0xd0] sm:$0xff]
    %v1920 = vld [vmem:[#allocation5 + $0xd8] sm:$0xff]
    %v1921 = vld [vmem:[#allocation5 + $0xe0] sm:$0xff]
    %v1922 = vld [vmem:[#allocation5 + $0xe8] sm:$0xff]
    %v1923 = vld [vmem:[#allocation5 + $0xf0] sm:$0xff]
    %v1924 = vld [vmem:[#allocation5 + $0xf8] sm:$0xff]
    %v1925 = vld [vmem:[#allocation5 + $0x100] sm:$0xff]
    %v1926 = vld [vmem:[#allocation5 + $0x108] sm:$0xff]
    %v1927 = vld [vmem:[#allocation5 + $0x110] sm:$0xff]
    %v1928 = vld [vmem:[#allocation5 + $0x118] sm:$0xff]
    %v1929 = vld [vmem:[#allocation5 + $0x120] sm:$0xff]
    %v1930 = vld [vmem:[#allocation5 + $0x128] sm:$0xff]
    %v1931 = vld [vmem:[#allocation5 + $0x130] sm:$0xff]
    %v1932 = vld [vmem:[#allocation5 + $0x138] sm:$0xff]
    %v1933 = vld [vmem:[#allocation5 + $0x140] sm:$0xff]
    %v1934 = vld [vmem:[#allocation5 + $0x148] sm:$0xff]
    %v1935 = vld [vmem:[#allocation5 + $0x150] sm:$0xff]
    %v1936 = vld [vmem:[#allocation5 + $0x158] sm:$0xff]
    %v1937 = vld [vmem:[#allocation5 + $0x160] sm:$0xff]
    %v1938 = vld [vmem:[#allocation5 + $0x168] sm:$0xff]
    %v1939 = vld [vmem:[#allocation5 + $0x170] sm:$0xff]
    %v1940 = vld [vmem:[#allocation5 + $0x178] sm:$0xff]
    %v1941 = vld [vmem:[#allocation5 + $0x180] sm:$0xff]
    %v1942 = vld [vmem:[#allocation5 + $0x188] sm:$0xff]
    %v1943 = vld [vmem:[#allocation5 + $0x190] sm:$0xff]
    %v1944 = vld [vmem:[#allocation5 + $0x198] sm:$0xff]
    %v1945 = vld [vmem:[#allocation5 + $0x1a0] sm:$0xff]
    %v1946 = vld [vmem:[#allocation5 + $0x1a8] sm:$0xff]
    %v1947 = vld [vmem:[#allocation5 + $0x1b0] sm:$0xff]
    %v1948 = vld [vmem:[#allocation5 + $0x1b8] sm:$0xff]
    %v1949 = vld [vmem:[#allocation5 + $0x1c0] sm:$0xff]
    %v1950 = vld [vmem:[#allocation5 + $0x1c8] sm:$0xff]
    %v1951 = vld [vmem:[#allocation5 + $0x1d0] sm:$0xff]
    %v1952 = vld [vmem:[#allocation5 + $0x1d8] sm:$0xff]
    %v1953 = vld [vmem:[#allocation5 + $0x1e0] sm:$0xff]
    %v1954 = vld [vmem:[#allocation5 + $0x1e8] sm:$0xff]
    %v1955 = vld [vmem:[#allocation5 + $0x1f0] sm:$0xff]
    %v1956 = vld [vmem:[#allocation5 + $0x1f8] sm:$0xff]
    %v1959 = vrot.slane %v1889, 4
    %v1960 = vrot.slane %v1890, 3
    %v1961 = vsel %vm717, %v1960, %v1959
    %1963 = vmatpush.msra.mxu0 %v1953
    %1964 = vmatpush.msra.mxu0 %v1949
    %1965 = vmatpush.msra.mxu0 %v1945
    %1966 = vmatpush.msra.mxu0 %v1941
    %1967 = vmatpush.msra.mxu0 %v1937
    %1968 = vmatpush.msra.mxu0 %v1933
    %1969 = vmatpush.msra.mxu0 %v1929
    %1970 = vmatpush.msra.mxu0 %v1925
    %1971 = vmatpush.msra.mxu0 %v1921
    %1972 = vmatpush.msra.mxu0 %v1917
    %1973 = vmatpush.msra.mxu0 %v1913
    %1974 = vmatpush.msra.mxu0 %v1909
    %1975 = vmatpush.msra.mxu0 %v1905
    %1976 = vmatpush.msra.mxu0 %v1901
    %1977 = vmatpush.msra.mxu0 %v1897
    %1978 = vmatpush.msra.mxu0 %v1893
    %1979 = vmatmul.f32.gmra.mxu0 %v1961
    %v1980 = vpop.f32.mrf.mxu0
    %v1981 = vadd.f32 0.0, %v1980
    %1982 = vdwg.mxu0
    %1983 = vmatpush.msra.mxu0 %v1954
    %1984 = vmatpush.msra.mxu0 %v1950
    %1985 = vmatpush.msra.mxu0 %v1946
    %1986 = vmatpush.msra.mxu0 %v1942
    %1987 = vmatpush.msra.mxu0 %v1938
    %1988 = vmatpush.msra.mxu0 %v1934
    %1989 = vmatpush.msra.mxu0 %v1930
    %1990 = vmatpush.msra.mxu0 %v1926
    %1991 = vmatpush.msra.mxu0 %v1922
    %1992 = vmatpush.msra.mxu0 %v1918
    %1993 = vmatpush.msra.mxu0 %v1914
    %1994 = vmatpush.msra.mxu0 %v1910
    %1995 = vmatpush.msra.mxu0 %v1906
    %1996 = vmatpush.msra.mxu0 %v1902
    %1997 = vmatpush.msra.mxu0 %v1898
    %1998 = vmatpush.msra.mxu0 %v1894
    %1999 = vmatmul.f32.gmra.mxu0 %v1961
    %v2000 = vpop.f32.mrf.mxu0
    %v2001 = vadd.f32 0.0, %v2000
    %2002 = vdwg.mxu0
    %2003 = vmatpush.msra.mxu0 %v1955
    %2004 = vmatpush.msra.mxu0 %v1951
    %2005 = vmatpush.msra.mxu0 %v1947
    %2006 = vmatpush.msra.mxu0 %v1943
    %2007 = vmatpush.msra.mxu0 %v1939
    %2008 = vmatpush.msra.mxu0 %v1935
    %2009 = vmatpush.msra.mxu0 %v1931
    %2010 = vmatpush.msra.mxu0 %v1927
    %2011 = vmatpush.msra.mxu0 %v1923
    %2012 = vmatpush.msra.mxu0 %v1919
    %2013 = vmatpush.msra.mxu0 %v1915
    %2014 = vmatpush.msra.mxu0 %v1911
    %2015 = vmatpush.msra.mxu0 %v1907
    %2016 = vmatpush.msra.mxu0 %v1903
    %2017 = vmatpush.msra.mxu0 %v1899
    %2018 = vmatpush.msra.mxu0 %v1895
    %2019 = vmatmul.f32.gmra.mxu0 %v1961
    %v2020 = vpop.f32.mrf.mxu0
    %v2021 = vadd.f32 0.0, %v2020
    %2022 = vdwg.mxu0
    %2023 = vmatpush.msra.mxu0 %v1956
    %2024 = vmatpush.msra.mxu0 %v1952
    %2025 = vmatpush.msra.mxu0 %v1948
    %2026 = vmatpush.msra.mxu0 %v1944
    %2027 = vmatpush.msra.mxu0 %v1940
    %2028 = vmatpush.msra.mxu0 %v1936
    %2029 = vmatpush.msra.mxu0 %v1932
    %2030 = vmatpush.msra.mxu0 %v1928
    %2031 = vmatpush.msra.mxu0 %v1924
    %2032 = vmatpush.msra.mxu0 %v1920
    %2033 = vmatpush.msra.mxu0 %v1916
    %2034 = vmatpush.msra.mxu0 %v1912
    %2035 = vmatpush.msra.mxu0 %v1908
    %2036 = vmatpush.msra.mxu0 %v1904
    %2037 = vmatpush.msra.mxu0 %v1900
    %2038 = vmatpush.msra.mxu0 %v1896
    %2039 = vmatmul.f32.gmra.mxu0 %v1961
    %v2040 = vpop.f32.mrf.mxu0
    %v2041 = vadd.f32 0.0, %v2040
    %2042 = vdwg.mxu0
    %v2047 = vrot.slane %v1981, 3
    %v2048 = vrot.slane %v2001, 3
    %v2049 = vrot.slane %v2021, 3
    %v2050 = vrot.slane %v2041, 3
    %v2051 = vrot.slane %v1981, 4
    %v2052 = vrot.slane %v2001, 4
    %v2053 = vrot.slane %v2021, 4
    %v2054 = vrot.slane %v2041, 4
    %v2063 = vadd.f32 %v280, %v2047
    %v2064 = vadd.f32 %v303, %v2048
    %v2065 = vadd.f32 %v326, %v2049
    %v2066 = vadd.f32 %v349, %v2050
    %v2067 = vadd.f32 %v283, %v2051
    %v2068 = vadd.f32 %v306, %v2052
    %v2069 = vadd.f32 %v329, %v2053
    %v2070 = vadd.f32 %v352, %v2054
    %v2071 = vxor.u32 %v2063, 2147483648
    %v2072 = vxor.u32 %v2067, 2147483648
    %v2073 = vmul.f32 %v2071, 1.442695
    %v2074 = vpow.pop %v2073
    %v2075 = vmul.f32 %v2072, 1.442695
    %v2076 = vpow.pop %v2075
    %v2077 = vadd.f32 %v2074, 1.0
    %v2078 = vadd.f32 %v2076, 1.0
    %v2079 = vrcp.pop %v2077
    %v2080 = vmul.f32 %v2077, %v2079
    %v2081 = vsub.f32 1.0, %v2080
    %v2082 = vmul.f32 %v2079, %v2081
    %v2083 = vadd.f32 %v2079, %v2082
    %vm2084 = vweird.f32 %v2077
    %vm2085 = vweird.f32 %v2079
    %vm2086 = vmor %vm2084, %vm2085
    %v2087 = vsel %vm2086, %v2079, %v2083
    %v2088 = vand.u32 2147483647, %v2077
    %vm2089 = vcmp.eq.f32.partialorder %v2088, 8.507059e+37
    %v2090 = vand.u32 %v2077, 2147483648
    %v2091 = vor.u32 1.1754944e-38, %v2090
    %v2092 = vsel %vm2089, %v2091, %v2087
    %v2093 = vmul.f32 1.0, %v2092
    %v2094 = vrcp.pop %v2078
    %v2095 = vmul.f32 %v2078, %v2094
    %v2096 = vsub.f32 1.0, %v2095
    %v2097 = vmul.f32 %v2094, %v2096
    %v2098 = vadd.f32 %v2094, %v2097
    %vm2099 = vweird.f32 %v2078
    %vm2100 = vweird.f32 %v2094
    %vm2101 = vmor %vm2099, %vm2100
    %v2102 = vsel %vm2101, %v2094, %v2098
    %v2103 = vand.u32 2147483647, %v2078
    %vm2104 = vcmp.eq.f32.partialorder %v2103, 8.507059e+37
    %v2105 = vand.u32 %v2078, 2147483648
    %v2106 = vor.u32 1.1754944e-38, %v2105
    %v2107 = vsel %vm2104, %v2106, %v2102
    %v2108 = vmul.f32 1.0, %v2107
    %v2109 = vxor.u32 %v2064, 2147483648
    %v2110 = vxor.u32 %v2068, 2147483648
    %v2111 = vmul.f32 %v2109, 1.442695
    %v2112 = vpow.pop %v2111
    %v2113 = vmul.f32 %v2110, 1.442695
    %v2114 = vpow.pop %v2113
    %v2115 = vadd.f32 %v2112, 1.0
    %v2116 = vadd.f32 %v2114, 1.0
    %v2117 = vrcp.pop %v2115
    %v2118 = vmul.f32 %v2115, %v2117
    %v2119 = vsub.f32 1.0, %v2118
    %v2120 = vmul.f32 %v2117, %v2119
    %v2121 = vadd.f32 %v2117, %v2120
    %vm2122 = vweird.f32 %v2115
    %vm2123 = vweird.f32 %v2117
    %vm2124 = vmor %vm2122, %vm2123
    %v2125 = vsel %vm2124, %v2117, %v2121
    %v2126 = vand.u32 2147483647, %v2115
    %vm2127 = vcmp.eq.f32.partialorder %v2126, 8.507059e+37
    %v2128 = vand.u32 %v2115, 2147483648
    %v2129 = vor.u32 1.1754944e-38, %v2128
    %v2130 = vsel %vm2127, %v2129, %v2125
    %v2131 = vmul.f32 1.0, %v2130
    %v2132 = vrcp.pop %v2116
    %v2133 = vmul.f32 %v2116, %v2132
    %v2134 = vsub.f32 1.0, %v2133
    %v2135 = vmul.f32 %v2132, %v2134
    %v2136 = vadd.f32 %v2132, %v2135
    %vm2137 = vweird.f32 %v2116
    %vm2138 = vweird.f32 %v2132
    %vm2139 = vmor %vm2137, %vm2138
    %v2140 = vsel %vm2139, %v2132, %v2136
    %v2141 = vand.u32 2147483647, %v2116
    %vm2142 = vcmp.eq.f32.partialorder %v2141, 8.507059e+37
    %v2143 = vand.u32 %v2116, 2147483648
    %v2144 = vor.u32 1.1754944e-38, %v2143
    %v2145 = vsel %vm2142, %v2144, %v2140
    %v2146 = vmul.f32 1.0, %v2145
    %v2147 = vtanh.pop %v2065
    %v2148 = vtanh.pop %v2069
    %v2149 = vxor.u32 %v2066, 2147483648
    %v2150 = vxor.u32 %v2070, 2147483648
    %v2151 = vmul.f32 %v2149, 1.442695
    %v2152 = vpow.pop %v2151
    %v2153 = vmul.f32 %v2150, 1.442695
    %v2154 = vpow.pop %v2153
    %v2155 = vadd.f32 %v2152, 1.0
    %v2156 = vadd.f32 %v2154, 1.0
    %v2157 = vrcp.pop %v2155
    %v2158 = vmul.f32 %v2155, %v2157
    %v2159 = vsub.f32 1.0, %v2158
    %v2160 = vmul.f32 %v2157, %v2159
    %v2161 = vadd.f32 %v2157, %v2160
    %vm2162 = vweird.f32 %v2155
    %vm2163 = vweird.f32 %v2157
    %vm2164 = vmor %vm2162, %vm2163
    %v2165 = vsel %vm2164, %v2157, %v2161
    %v2166 = vand.u32 2147483647, %v2155
    %vm2167 = vcmp.eq.f32.partialorder %v2166, 8.507059e+37
    %v2168 = vand.u32 %v2155, 2147483648
    %v2169 = vor.u32 1.1754944e-38, %v2168
    %v2170 = vsel %vm2167, %v2169, %v2165
    %v2171 = vmul.f32 1.0, %v2170
    %v2172 = vrcp.pop %v2156
    %v2173 = vmul.f32 %v2156, %v2172
    %v2174 = vsub.f32 1.0, %v2173
    %v2175 = vmul.f32 %v2172, %v2174
    %v2176 = vadd.f32 %v2172, %v2175
    %vm2177 = vweird.f32 %v2156
    %vm2178 = vweird.f32 %v2172
    %vm2179 = vmor %vm2177, %vm2178
    %v2180 = vsel %vm2179, %v2172, %v2176
    %v2181 = vand.u32 2147483647, %v2156
    %vm2182 = vcmp.eq.f32.partialorder %v2181, 8.507059e+37
    %v2183 = vand.u32 %v2156, 2147483648
    %v2184 = vor.u32 1.1754944e-38, %v2183
    %v2185 = vsel %vm2182, %v2184, %v2180
    %v2186 = vmul.f32 1.0, %v2185
    %v2189 = vrot.slane %v1885, 7
    %v2190 = vrot.slane %v1886, 7
    %v2193 = vmul.f32 %v2131, %v2189
    %v2194 = vmul.f32 %v2146, %v2190
    %v2195 = vmul.f32 %v2093, %v2147
    %v2196 = vmul.f32 %v2108, %v2148
    %v2197 = vadd.f32 %v2193, %v2195
    %v2198 = vadd.f32 %v2194, %v2196
    %v2199 = vtanh.pop %v2197
    %v2200 = vtanh.pop %v2198
    %v2201 = vmul.f32 %v2171, %v2199
    %v2202 = vmul.f32 %v2186, %v2200
    %2203 = vst [vmem:[#allocation2] sm:$0x20] %v2201
    %2204 = vst [vmem:[#allocation2 + $0x8] sm:$0x20] %v2202
    %v2205 = vld [vmem:[#allocation5] sm:$0xff]
    %v2206 = vld [vmem:[#allocation5 + $0x8] sm:$0xff]
    %v2207 = vld [vmem:[#allocation5 + $0x10] sm:$0xff]
    %v2208 = vld [vmem:[#allocation5 + $0x18] sm:$0xff]
    %v2209 = vld [vmem:[#allocation5 + $0x20] sm:$0xff]
    %v2210 = vld [vmem:[#allocation5 + $0x28] sm:$0xff]
    %v2211 = vld [vmem:[#allocation5 + $0x30] sm:$0xff]
    %v2212 = vld [vmem:[#allocation5 + $0x38] sm:$0xff]
    %v2213 = vld [vmem:[#allocation5 + $0x40] sm:$0xff]
    %v2214 = vld [vmem:[#allocation5 + $0x48] sm:$0xff]
    %v2215 = vld [vmem:[#allocation5 + $0x50] sm:$0xff]
    %v2216 = vld [vmem:[#allocation5 + $0x58] sm:$0xff]
    %v2217 = vld [vmem:[#allocation5 + $0x60] sm:$0xff]
    %v2218 = vld [vmem:[#allocation5 + $0x68] sm:$0xff]
    %v2219 = vld [vmem:[#allocation5 + $0x70] sm:$0xff]
    %v2220 = vld [vmem:[#allocation5 + $0x78] sm:$0xff]
    %v2221 = vld [vmem:[#allocation5 + $0x80] sm:$0xff]
    %v2222 = vld [vmem:[#allocation5 + $0x88] sm:$0xff]
    %v2223 = vld [vmem:[#allocation5 + $0x90] sm:$0xff]
    %v2224 = vld [vmem:[#allocation5 + $0x98] sm:$0xff]
    %v2225 = vld [vmem:[#allocation5 + $0xa0] sm:$0xff]
    %v2226 = vld [vmem:[#allocation5 + $0xa8] sm:$0xff]
    %v2227 = vld [vmem:[#allocation5 + $0xb0] sm:$0xff]
    %v2228 = vld [vmem:[#allocation5 + $0xb8] sm:$0xff]
    %v2229 = vld [vmem:[#allocation5 + $0xc0] sm:$0xff]
    %v2230 = vld [vmem:[#allocation5 + $0xc8] sm:$0xff]
    %v2231 = vld [vmem:[#allocation5 + $0xd0] sm:$0xff]
    %v2232 = vld [vmem:[#allocation5 + $0xd8] sm:$0xff]
    %v2233 = vld [vmem:[#allocation5 + $0xe0] sm:$0xff]
    %v2234 = vld [vmem:[#allocation5 + $0xe8] sm:$0xff]
    %v2235 = vld [vmem:[#allocation5 + $0xf0] sm:$0xff]
    %v2236 = vld [vmem:[#allocation5 + $0xf8] sm:$0xff]
    %v2237 = vld [vmem:[#allocation5 + $0x100] sm:$0xff]
    %v2238 = vld [vmem:[#allocation5 + $0x108] sm:$0xff]
    %v2239 = vld [vmem:[#allocation5 + $0x110] sm:$0xff]
    %v2240 = vld [vmem:[#allocation5 + $0x118] sm:$0xff]
    %v2241 = vld [vmem:[#allocation5 + $0x120] sm:$0xff]
    %v2242 = vld [vmem:[#allocation5 + $0x128] sm:$0xff]
    %v2243 = vld [vmem:[#allocation5 + $0x130] sm:$0xff]
    %v2244 = vld [vmem:[#allocation5 + $0x138] sm:$0xff]
    %v2245 = vld [vmem:[#allocation5 + $0x140] sm:$0xff]
    %v2246 = vld [vmem:[#allocation5 + $0x148] sm:$0xff]
    %v2247 = vld [vmem:[#allocation5 + $0x150] sm:$0xff]
    %v2248 = vld [vmem:[#allocation5 + $0x158] sm:$0xff]
    %v2249 = vld [vmem:[#allocation5 + $0x160] sm:$0xff]
    %v2250 = vld [vmem:[#allocation5 + $0x168] sm:$0xff]
    %v2251 = vld [vmem:[#allocation5 + $0x170] sm:$0xff]
    %v2252 = vld [vmem:[#allocation5 + $0x178] sm:$0xff]
    %v2253 = vld [vmem:[#allocation5 + $0x180] sm:$0xff]
    %v2254 = vld [vmem:[#allocation5 + $0x188] sm:$0xff]
    %v2255 = vld [vmem:[#allocation5 + $0x190] sm:$0xff]
    %v2256 = vld [vmem:[#allocation5 + $0x198] sm:$0xff]
    %v2257 = vld [vmem:[#allocation5 + $0x1a0] sm:$0xff]
    %v2258 = vld [vmem:[#allocation5 + $0x1a8] sm:$0xff]
    %v2259 = vld [vmem:[#allocation5 + $0x1b0] sm:$0xff]
    %v2260 = vld [vmem:[#allocation5 + $0x1b8] sm:$0xff]
    %v2261 = vld [vmem:[#allocation5 + $0x1c0] sm:$0xff]
    %v2262 = vld [vmem:[#allocation5 + $0x1c8] sm:$0xff]
    %v2263 = vld [vmem:[#allocation5 + $0x1d0] sm:$0xff]
    %v2264 = vld [vmem:[#allocation5 + $0x1d8] sm:$0xff]
    %v2265 = vld [vmem:[#allocation5 + $0x1e0] sm:$0xff]
    %v2266 = vld [vmem:[#allocation5 + $0x1e8] sm:$0xff]
    %v2267 = vld [vmem:[#allocation5 + $0x1f0] sm:$0xff]
    %v2268 = vld [vmem:[#allocation5 + $0x1f8] sm:$0xff]
    %v2271 = vrot.slane %v2201, 5
    %v2272 = vrot.slane %v2202, 4
    %v2273 = vsel %vm717, %v2272, %v2271
    %2275 = vmatpush.msra.mxu0 %v2265
    %2276 = vmatpush.msra.mxu0 %v2261
    %2277 = vmatpush.msra.mxu0 %v2257
    %2278 = vmatpush.msra.mxu0 %v2253
    %2279 = vmatpush.msra.mxu0 %v2249
    %2280 = vmatpush.msra.mxu0 %v2245
    %2281 = vmatpush.msra.mxu0 %v2241
    %2282 = vmatpush.msra.mxu0 %v2237
    %2283 = vmatpush.msra.mxu0 %v2233
    %2284 = vmatpush.msra.mxu0 %v2229
    %2285 = vmatpush.msra.mxu0 %v2225
    %2286 = vmatpush.msra.mxu0 %v2221
    %2287 = vmatpush.msra.mxu0 %v2217
    %2288 = vmatpush.msra.mxu0 %v2213
    %2289 = vmatpush.msra.mxu0 %v2209
    %2290 = vmatpush.msra.mxu0 %v2205
    %2291 = vmatmul.f32.gmra.mxu0 %v2273
    %v2292 = vpop.f32.mrf.mxu0
    %v2293 = vadd.f32 0.0, %v2292
    %2294 = vdwg.mxu0
    %2295 = vmatpush.msra.mxu0 %v2266
    %2296 = vmatpush.msra.mxu0 %v2262
    %2297 = vmatpush.msra.mxu0 %v2258
    %2298 = vmatpush.msra.mxu0 %v2254
    %2299 = vmatpush.msra.mxu0 %v2250
    %2300 = vmatpush.msra.mxu0 %v2246
    %2301 = vmatpush.msra.mxu0 %v2242
    %2302 = vmatpush.msra.mxu0 %v2238
    %2303 = vmatpush.msra.mxu0 %v2234
    %2304 = vmatpush.msra.mxu0 %v2230
    %2305 = vmatpush.msra.mxu0 %v2226
    %2306 = vmatpush.msra.mxu0 %v2222
    %2307 = vmatpush.msra.mxu0 %v2218
    %2308 = vmatpush.msra.mxu0 %v2214
    %2309 = vmatpush.msra.mxu0 %v2210
    %2310 = vmatpush.msra.mxu0 %v2206
    %2311 = vmatmul.f32.gmra.mxu0 %v2273
    %v2312 = vpop.f32.mrf.mxu0
    %v2313 = vadd.f32 0.0, %v2312
    %2314 = vdwg.mxu0
    %2315 = vmatpush.msra.mxu0 %v2267
    %2316 = vmatpush.msra.mxu0 %v2263
    %2317 = vmatpush.msra.mxu0 %v2259
    %2318 = vmatpush.msra.mxu0 %v2255
    %2319 = vmatpush.msra.mxu0 %v2251
    %2320 = vmatpush.msra.mxu0 %v2247
    %2321 = vmatpush.msra.mxu0 %v2243
    %2322 = vmatpush.msra.mxu0 %v2239
    %2323 = vmatpush.msra.mxu0 %v2235
    %2324 = vmatpush.msra.mxu0 %v2231
    %2325 = vmatpush.msra.mxu0 %v2227
    %2326 = vmatpush.msra.mxu0 %v2223
    %2327 = vmatpush.msra.mxu0 %v2219
    %2328 = vmatpush.msra.mxu0 %v2215
    %2329 = vmatpush.msra.mxu0 %v2211
    %2330 = vmatpush.msra.mxu0 %v2207
    %2331 = vmatmul.f32.gmra.mxu0 %v2273
    %v2332 = vpop.f32.mrf.mxu0
    %v2333 = vadd.f32 0.0, %v2332
    %2334 = vdwg.mxu0
    %2335 = vmatpush.msra.mxu0 %v2268
    %2336 = vmatpush.msra.mxu0 %v2264
    %2337 = vmatpush.msra.mxu0 %v2260
    %2338 = vmatpush.msra.mxu0 %v2256
    %2339 = vmatpush.msra.mxu0 %v2252
    %2340 = vmatpush.msra.mxu0 %v2248
    %2341 = vmatpush.msra.mxu0 %v2244
    %2342 = vmatpush.msra.mxu0 %v2240
    %2343 = vmatpush.msra.mxu0 %v2236
    %2344 = vmatpush.msra.mxu0 %v2232
    %2345 = vmatpush.msra.mxu0 %v2228
    %2346 = vmatpush.msra.mxu0 %v2224
    %2347 = vmatpush.msra.mxu0 %v2220
    %2348 = vmatpush.msra.mxu0 %v2216
    %2349 = vmatpush.msra.mxu0 %v2212
    %2350 = vmatpush.msra.mxu0 %v2208
    %2351 = vmatmul.f32.gmra.mxu0 %v2273
    %v2352 = vpop.f32.mrf.mxu0
    %v2353 = vadd.f32 0.0, %v2352
    %2354 = vdwg.mxu0
    %v2359 = vrot.slane %v2293, 2
    %v2360 = vrot.slane %v2313, 2
    %v2361 = vrot.slane %v2333, 2
    %v2362 = vrot.slane %v2353, 2
    %v2363 = vrot.slane %v2293, 3
    %v2364 = vrot.slane %v2313, 3
    %v2365 = vrot.slane %v2333, 3
    %v2366 = vrot.slane %v2353, 3
    %v2375 = vadd.f32 %v280, %v2359
    %v2376 = vadd.f32 %v303, %v2360
    %v2377 = vadd.f32 %v326, %v2361
    %v2378 = vadd.f32 %v349, %v2362
    %v2379 = vadd.f32 %v283, %v2363
    %v2380 = vadd.f32 %v306, %v2364
    %v2381 = vadd.f32 %v329, %v2365
    %v2382 = vadd.f32 %v352, %v2366
    %v2383 = vxor.u32 %v2375, 2147483648
    %v2384 = vxor.u32 %v2379, 2147483648
    %v2385 = vmul.f32 %v2383, 1.442695
    %v2386 = vpow.pop %v2385
    %v2387 = vmul.f32 %v2384, 1.442695
    %v2388 = vpow.pop %v2387
    %v2389 = vadd.f32 %v2386, 1.0
    %v2390 = vadd.f32 %v2388, 1.0
    %v2391 = vrcp.pop %v2389
    %v2392 = vmul.f32 %v2389, %v2391
    %v2393 = vsub.f32 1.0, %v2392
    %v2394 = vmul.f32 %v2391, %v2393
    %v2395 = vadd.f32 %v2391, %v2394
    %vm2396 = vweird.f32 %v2389
    %vm2397 = vweird.f32 %v2391
    %vm2398 = vmor %vm2396, %vm2397
    %v2399 = vsel %vm2398, %v2391, %v2395
    %v2400 = vand.u32 2147483647, %v2389
    %vm2401 = vcmp.eq.f32.partialorder %v2400, 8.507059e+37
    %v2402 = vand.u32 %v2389, 2147483648
    %v2403 = vor.u32 1.1754944e-38, %v2402
    %v2404 = vsel %vm2401, %v2403, %v2399
    %v2405 = vmul.f32 1.0, %v2404
    %v2406 = vrcp.pop %v2390
    %v2407 = vmul.f32 %v2390, %v2406
    %v2408 = vsub.f32 1.0, %v2407
    %v2409 = vmul.f32 %v2406, %v2408
    %v2410 = vadd.f32 %v2406, %v2409
    %vm2411 = vweird.f32 %v2390
    %vm2412 = vweird.f32 %v2406
    %vm2413 = vmor %vm2411, %vm2412
    %v2414 = vsel %vm2413, %v2406, %v2410
    %v2415 = vand.u32 2147483647, %v2390
    %vm2416 = vcmp.eq.f32.partialorder %v2415, 8.507059e+37
    %v2417 = vand.u32 %v2390, 2147483648
    %v2418 = vor.u32 1.1754944e-38, %v2417
    %v2419 = vsel %vm2416, %v2418, %v2414
    %v2420 = vmul.f32 1.0, %v2419
    %v2421 = vxor.u32 %v2376, 2147483648
    %v2422 = vxor.u32 %v2380, 2147483648
    %v2423 = vmul.f32 %v2421, 1.442695
    %v2424 = vpow.pop %v2423
    %v2425 = vmul.f32 %v2422, 1.442695
    %v2426 = vpow.pop %v2425
    %v2427 = vadd.f32 %v2424, 1.0
    %v2428 = vadd.f32 %v2426, 1.0
    %v2429 = vrcp.pop %v2427
    %v2430 = vmul.f32 %v2427, %v2429
    %v2431 = vsub.f32 1.0, %v2430
    %v2432 = vmul.f32 %v2429, %v2431
    %v2433 = vadd.f32 %v2429, %v2432
    %vm2434 = vweird.f32 %v2427
    %vm2435 = vweird.f32 %v2429
    %vm2436 = vmor %vm2434, %vm2435
    %v2437 = vsel %vm2436, %v2429, %v2433
    %v2438 = vand.u32 2147483647, %v2427
    %vm2439 = vcmp.eq.f32.partialorder %v2438, 8.507059e+37
    %v2440 = vand.u32 %v2427, 2147483648
    %v2441 = vor.u32 1.1754944e-38, %v2440
    %v2442 = vsel %vm2439, %v2441, %v2437
    %v2443 = vmul.f32 1.0, %v2442
    %v2444 = vrcp.pop %v2428
    %v2445 = vmul.f32 %v2428, %v2444
    %v2446 = vsub.f32 1.0, %v2445
    %v2447 = vmul.f32 %v2444, %v2446
    %v2448 = vadd.f32 %v2444, %v2447
    %vm2449 = vweird.f32 %v2428
    %vm2450 = vweird.f32 %v2444
    %vm2451 = vmor %vm2449, %vm2450
    %v2452 = vsel %vm2451, %v2444, %v2448
    %v2453 = vand.u32 2147483647, %v2428
    %vm2454 = vcmp.eq.f32.partialorder %v2453, 8.507059e+37
    %v2455 = vand.u32 %v2428, 2147483648
    %v2456 = vor.u32 1.1754944e-38, %v2455
    %v2457 = vsel %vm2454, %v2456, %v2452
    %v2458 = vmul.f32 1.0, %v2457
    %v2459 = vtanh.pop %v2377
    %v2460 = vtanh.pop %v2381
    %v2461 = vxor.u32 %v2378, 2147483648
    %v2462 = vxor.u32 %v2382, 2147483648
    %v2463 = vmul.f32 %v2461, 1.442695
    %v2464 = vpow.pop %v2463
    %v2465 = vmul.f32 %v2462, 1.442695
    %v2466 = vpow.pop %v2465
    %v2467 = vadd.f32 %v2464, 1.0
    %v2468 = vadd.f32 %v2466, 1.0
    %v2469 = vrcp.pop %v2467
    %v2470 = vmul.f32 %v2467, %v2469
    %v2471 = vsub.f32 1.0, %v2470
    %v2472 = vmul.f32 %v2469, %v2471
    %v2473 = vadd.f32 %v2469, %v2472
    %vm2474 = vweird.f32 %v2467
    %vm2475 = vweird.f32 %v2469
    %vm2476 = vmor %vm2474, %vm2475
    %v2477 = vsel %vm2476, %v2469, %v2473
    %v2478 = vand.u32 2147483647, %v2467
    %vm2479 = vcmp.eq.f32.partialorder %v2478, 8.507059e+37
    %v2480 = vand.u32 %v2467, 2147483648
    %v2481 = vor.u32 1.1754944e-38, %v2480
    %v2482 = vsel %vm2479, %v2481, %v2477
    %v2483 = vmul.f32 1.0, %v2482
    %v2484 = vrcp.pop %v2468
    %v2485 = vmul.f32 %v2468, %v2484
    %v2486 = vsub.f32 1.0, %v2485
    %v2487 = vmul.f32 %v2484, %v2486
    %v2488 = vadd.f32 %v2484, %v2487
    %vm2489 = vweird.f32 %v2468
    %vm2490 = vweird.f32 %v2484
    %vm2491 = vmor %vm2489, %vm2490
    %v2492 = vsel %vm2491, %v2484, %v2488
    %v2493 = vand.u32 2147483647, %v2468
    %vm2494 = vcmp.eq.f32.partialorder %v2493, 8.507059e+37
    %v2495 = vand.u32 %v2468, 2147483648
    %v2496 = vor.u32 1.1754944e-38, %v2495
    %v2497 = vsel %vm2494, %v2496, %v2492
    %v2498 = vmul.f32 1.0, %v2497
    %v2501 = vrot.slane %v2197, 7
    %v2502 = vrot.slane %v2198, 7
    %v2505 = vmul.f32 %v2443, %v2501
    %v2506 = vmul.f32 %v2458, %v2502
    %v2507 = vmul.f32 %v2405, %v2459
    %v2508 = vmul.f32 %v2420, %v2460
    %v2509 = vadd.f32 %v2505, %v2507
    %v2510 = vadd.f32 %v2506, %v2508
    %v2511 = vtanh.pop %v2509
    %v2512 = vtanh.pop %v2510
    %v2513 = vmul.f32 %v2483, %v2511
    %v2514 = vmul.f32 %v2498, %v2512
    %2515 = vst [vmem:[#allocation2] sm:$0x40] %v2513
    %2516 = vst [vmem:[#allocation2 + $0x8] sm:$0x40] %v2514
    %v2517 = vld [vmem:[#allocation5] sm:$0xff]
    %v2518 = vld [vmem:[#allocation5 + $0x8] sm:$0xff]
    %v2519 = vld [vmem:[#allocation5 + $0x10] sm:$0xff]
    %v2520 = vld [vmem:[#allocation5 + $0x18] sm:$0xff]
    %v2521 = vld [vmem:[#allocation5 + $0x20] sm:$0xff]
    %v2522 = vld [vmem:[#allocation5 + $0x28] sm:$0xff]
    %v2523 = vld [vmem:[#allocation5 + $0x30] sm:$0xff]
    %v2524 = vld [vmem:[#allocation5 + $0x38] sm:$0xff]
    %v2525 = vld [vmem:[#allocation5 + $0x40] sm:$0xff]
    %v2526 = vld [vmem:[#allocation5 + $0x48] sm:$0xff]
    %v2527 = vld [vmem:[#allocation5 + $0x50] sm:$0xff]
    %v2528 = vld [vmem:[#allocation5 + $0x58] sm:$0xff]
    %v2529 = vld [vmem:[#allocation5 + $0x60] sm:$0xff]
    %v2530 = vld [vmem:[#allocation5 + $0x68] sm:$0xff]
    %v2531 = vld [vmem:[#allocation5 + $0x70] sm:$0xff]
    %v2532 = vld [vmem:[#allocation5 + $0x78] sm:$0xff]
    %v2533 = vld [vmem:[#allocation5 + $0x80] sm:$0xff]
    %v2534 = vld [vmem:[#allocation5 + $0x88] sm:$0xff]
    %v2535 = vld [vmem:[#allocation5 + $0x90] sm:$0xff]
    %v2536 = vld [vmem:[#allocation5 + $0x98] sm:$0xff]
    %v2537 = vld [vmem:[#allocation5 + $0xa0] sm:$0xff]
    %v2538 = vld [vmem:[#allocation5 + $0xa8] sm:$0xff]
    %v2539 = vld [vmem:[#allocation5 + $0xb0] sm:$0xff]
    %v2540 = vld [vmem:[#allocation5 + $0xb8] sm:$0xff]
    %v2541 = vld [vmem:[#allocation5 + $0xc0] sm:$0xff]
    %v2542 = vld [vmem:[#allocation5 + $0xc8] sm:$0xff]
    %v2543 = vld [vmem:[#allocation5 + $0xd0] sm:$0xff]
    %v2544 = vld [vmem:[#allocation5 + $0xd8] sm:$0xff]
    %v2545 = vld [vmem:[#allocation5 + $0xe0] sm:$0xff]
    %v2546 = vld [vmem:[#allocation5 + $0xe8] sm:$0xff]
    %v2547 = vld [vmem:[#allocation5 + $0xf0] sm:$0xff]
    %v2548 = vld [vmem:[#allocation5 + $0xf8] sm:$0xff]
    %v2549 = vld [vmem:[#allocation5 + $0x100] sm:$0xff]
    %v2550 = vld [vmem:[#allocation5 + $0x108] sm:$0xff]
    %v2551 = vld [vmem:[#allocation5 + $0x110] sm:$0xff]
    %v2552 = vld [vmem:[#allocation5 + $0x118] sm:$0xff]
    %v2553 = vld [vmem:[#allocation5 + $0x120] sm:$0xff]
    %v2554 = vld [vmem:[#allocation5 + $0x128] sm:$0xff]
    %v2555 = vld [vmem:[#allocation5 + $0x130] sm:$0xff]
    %v2556 = vld [vmem:[#allocation5 + $0x138] sm:$0xff]
    %v2557 = vld [vmem:[#allocation5 + $0x140] sm:$0xff]
    %v2558 = vld [vmem:[#allocation5 + $0x148] sm:$0xff]
    %v2559 = vld [vmem:[#allocation5 + $0x150] sm:$0xff]
    %v2560 = vld [vmem:[#allocation5 + $0x158] sm:$0xff]
    %v2561 = vld [vmem:[#allocation5 + $0x160] sm:$0xff]
    %v2562 = vld [vmem:[#allocation5 + $0x168] sm:$0xff]
    %v2563 = vld [vmem:[#allocation5 + $0x170] sm:$0xff]
    %v2564 = vld [vmem:[#allocation5 + $0x178] sm:$0xff]
    %v2565 = vld [vmem:[#allocation5 + $0x180] sm:$0xff]
    %v2566 = vld [vmem:[#allocation5 + $0x188] sm:$0xff]
    %v2567 = vld [vmem:[#allocation5 + $0x190] sm:$0xff]
    %v2568 = vld [vmem:[#allocation5 + $0x198] sm:$0xff]
    %v2569 = vld [vmem:[#allocation5 + $0x1a0] sm:$0xff]
    %v2570 = vld [vmem:[#allocation5 + $0x1a8] sm:$0xff]
    %v2571 = vld [vmem:[#allocation5 + $0x1b0] sm:$0xff]
    %v2572 = vld [vmem:[#allocation5 + $0x1b8] sm:$0xff]
    %v2573 = vld [vmem:[#allocation5 + $0x1c0] sm:$0xff]
    %v2574 = vld [vmem:[#allocation5 + $0x1c8] sm:$0xff]
    %v2575 = vld [vmem:[#allocation5 + $0x1d0] sm:$0xff]
    %v2576 = vld [vmem:[#allocation5 + $0x1d8] sm:$0xff]
    %v2577 = vld [vmem:[#allocation5 + $0x1e0] sm:$0xff]
    %v2578 = vld [vmem:[#allocation5 + $0x1e8] sm:$0xff]
    %v2579 = vld [vmem:[#allocation5 + $0x1f0] sm:$0xff]
    %v2580 = vld [vmem:[#allocation5 + $0x1f8] sm:$0xff]
    %v2583 = vrot.slane %v2513, 6
    %v2584 = vrot.slane %v2514, 5
    %v2585 = vsel %vm717, %v2584, %v2583
    %2587 = vmatpush.msra.mxu0 %v2577
    %2588 = vmatpush.msra.mxu0 %v2573
    %2589 = vmatpush.msra.mxu0 %v2569
    %2590 = vmatpush.msra.mxu0 %v2565
    %2591 = vmatpush.msra.mxu0 %v2561
    %2592 = vmatpush.msra.mxu0 %v2557
    %2593 = vmatpush.msra.mxu0 %v2553
    %2594 = vmatpush.msra.mxu0 %v2549
    %2595 = vmatpush.msra.mxu0 %v2545
    %2596 = vmatpush.msra.mxu0 %v2541
    %2597 = vmatpush.msra.mxu0 %v2537
    %2598 = vmatpush.msra.mxu0 %v2533
    %2599 = vmatpush.msra.mxu0 %v2529
    %2600 = vmatpush.msra.mxu0 %v2525
    %2601 = vmatpush.msra.mxu0 %v2521
    %2602 = vmatpush.msra.mxu0 %v2517
    %2603 = vmatmul.f32.gmra.mxu0 %v2585
    %v2604 = vpop.f32.mrf.mxu0
    %v2605 = vadd.f32 0.0, %v2604
    %2606 = vdwg.mxu0
    %2607 = vmatpush.msra.mxu0 %v2578
    %2608 = vmatpush.msra.mxu0 %v2574
    %2609 = vmatpush.msra.mxu0 %v2570
    %2610 = vmatpush.msra.mxu0 %v2566
    %2611 = vmatpush.msra.mxu0 %v2562
    %2612 = vmatpush.msra.mxu0 %v2558
    %2613 = vmatpush.msra.mxu0 %v2554
    %2614 = vmatpush.msra.mxu0 %v2550
    %2615 = vmatpush.msra.mxu0 %v2546
    %2616 = vmatpush.msra.mxu0 %v2542
    %2617 = vmatpush.msra.mxu0 %v2538
    %2618 = vmatpush.msra.mxu0 %v2534
    %2619 = vmatpush.msra.mxu0 %v2530
    %2620 = vmatpush.msra.mxu0 %v2526
    %2621 = vmatpush.msra.mxu0 %v2522
    %2622 = vmatpush.msra.mxu0 %v2518
    %2623 = vmatmul.f32.gmra.mxu0 %v2585
    %v2624 = vpop.f32.mrf.mxu0
    %v2625 = vadd.f32 0.0, %v2624
    %2626 = vdwg.mxu0
    %2627 = vmatpush.msra.mxu0 %v2579
    %2628 = vmatpush.msra.mxu0 %v2575
    %2629 = vmatpush.msra.mxu0 %v2571
    %2630 = vmatpush.msra.mxu0 %v2567
    %2631 = vmatpush.msra.mxu0 %v2563
    %2632 = vmatpush.msra.mxu0 %v2559
    %2633 = vmatpush.msra.mxu0 %v2555
    %2634 = vmatpush.msra.mxu0 %v2551
    %2635 = vmatpush.msra.mxu0 %v2547
    %2636 = vmatpush.msra.mxu0 %v2543
    %2637 = vmatpush.msra.mxu0 %v2539
    %2638 = vmatpush.msra.mxu0 %v2535
    %2639 = vmatpush.msra.mxu0 %v2531
    %2640 = vmatpush.msra.mxu0 %v2527
    %2641 = vmatpush.msra.mxu0 %v2523
    %2642 = vmatpush.msra.mxu0 %v2519
    %2643 = vmatmul.f32.gmra.mxu0 %v2585
    %v2644 = vpop.f32.mrf.mxu0
    %v2645 = vadd.f32 0.0, %v2644
    %2646 = vdwg.mxu0
    %2647 = vmatpush.msra.mxu0 %v2580
    %2648 = vmatpush.msra.mxu0 %v2576
    %2649 = vmatpush.msra.mxu0 %v2572
    %2650 = vmatpush.msra.mxu0 %v2568
    %2651 = vmatpush.msra.mxu0 %v2564
    %2652 = vmatpush.msra.mxu0 %v2560
    %2653 = vmatpush.msra.mxu0 %v2556
    %2654 = vmatpush.msra.mxu0 %v2552
    %2655 = vmatpush.msra.mxu0 %v2548
    %2656 = vmatpush.msra.mxu0 %v2544
    %2657 = vmatpush.msra.mxu0 %v2540
    %2658 = vmatpush.msra.mxu0 %v2536
    %2659 = vmatpush.msra.mxu0 %v2532
    %2660 = vmatpush.msra.mxu0 %v2528
    %2661 = vmatpush.msra.mxu0 %v2524
    %2662 = vmatpush.msra.mxu0 %v2520
    %2663 = vmatmul.f32.gmra.mxu0 %v2585
    %v2664 = vpop.f32.mrf.mxu0
    %v2665 = vadd.f32 0.0, %v2664
    %2666 = vdwg.mxu0
    %v2671 = vrot.slane %v2605, 1
    %v2672 = vrot.slane %v2625, 1
    %v2673 = vrot.slane %v2645, 1
    %v2674 = vrot.slane %v2665, 1
    %v2675 = vrot.slane %v2605, 2
    %v2676 = vrot.slane %v2625, 2
    %v2677 = vrot.slane %v2645, 2
    %v2678 = vrot.slane %v2665, 2
    %v2687 = vadd.f32 %v280, %v2671
    %v2688 = vadd.f32 %v303, %v2672
    %v2689 = vadd.f32 %v326, %v2673
    %v2690 = vadd.f32 %v349, %v2674
    %v2691 = vadd.f32 %v283, %v2675
    %v2692 = vadd.f32 %v306, %v2676
    %v2693 = vadd.f32 %v329, %v2677
    %v2694 = vadd.f32 %v352, %v2678
    %v2695 = vxor.u32 %v2687, 2147483648
    %v2696 = vxor.u32 %v2691, 2147483648
    %v2697 = vmul.f32 %v2695, 1.442695
    %v2698 = vpow.pop %v2697
    %v2699 = vmul.f32 %v2696, 1.442695
    %v2700 = vpow.pop %v2699
    %v2701 = vadd.f32 %v2698, 1.0
    %v2702 = vadd.f32 %v2700, 1.0
    %v2703 = vrcp.pop %v2701
    %v2704 = vmul.f32 %v2701, %v2703
    %v2705 = vsub.f32 1.0, %v2704
    %v2706 = vmul.f32 %v2703, %v2705
    %v2707 = vadd.f32 %v2703, %v2706
    %vm2708 = vweird.f32 %v2701
    %vm2709 = vweird.f32 %v2703
    %vm2710 = vmor %vm2708, %vm2709
    %v2711 = vsel %vm2710, %v2703, %v2707
    %v2712 = vand.u32 2147483647, %v2701
    %vm2713 = vcmp.eq.f32.partialorder %v2712, 8.507059e+37
    %v2714 = vand.u32 %v2701, 2147483648
    %v2715 = vor.u32 1.1754944e-38, %v2714
    %v2716 = vsel %vm2713, %v2715, %v2711
    %v2717 = vmul.f32 1.0, %v2716
    %v2718 = vrcp.pop %v2702
    %v2719 = vmul.f32 %v2702, %v2718
    %v2720 = vsub.f32 1.0, %v2719
    %v2721 = vmul.f32 %v2718, %v2720
    %v2722 = vadd.f32 %v2718, %v2721
    %vm2723 = vweird.f32 %v2702
    %vm2724 = vweird.f32 %v2718
    %vm2725 = vmor %vm2723, %vm2724
    %v2726 = vsel %vm2725, %v2718, %v2722
    %v2727 = vand.u32 2147483647, %v2702
    %vm2728 = vcmp.eq.f32.partialorder %v2727, 8.507059e+37
    %v2729 = vand.u32 %v2702, 2147483648
    %v2730 = vor.u32 1.1754944e-38, %v2729
    %v2731 = vsel %vm2728, %v2730, %v2726
    %v2732 = vmul.f32 1.0, %v2731
    %v2733 = vxor.u32 %v2688, 2147483648
    %v2734 = vxor.u32 %v2692, 2147483648
    %v2735 = vmul.f32 %v2733, 1.442695
    %v2736 = vpow.pop %v2735
    %v2737 = vmul.f32 %v2734, 1.442695
    %v2738 = vpow.pop %v2737
    %v2739 = vadd.f32 %v2736, 1.0
    %v2740 = vadd.f32 %v2738, 1.0
    %v2741 = vrcp.pop %v2739
    %v2742 = vmul.f32 %v2739, %v2741
    %v2743 = vsub.f32 1.0, %v2742
    %v2744 = vmul.f32 %v2741, %v2743
    %v2745 = vadd.f32 %v2741, %v2744
    %vm2746 = vweird.f32 %v2739
    %vm2747 = vweird.f32 %v2741
    %vm2748 = vmor %vm2746, %vm2747
    %v2749 = vsel %vm2748, %v2741, %v2745
    %v2750 = vand.u32 2147483647, %v2739
    %vm2751 = vcmp.eq.f32.partialorder %v2750, 8.507059e+37
    %v2752 = vand.u32 %v2739, 2147483648
    %v2753 = vor.u32 1.1754944e-38, %v2752
    %v2754 = vsel %vm2751, %v2753, %v2749
    %v2755 = vmul.f32 1.0, %v2754
    %v2756 = vrcp.pop %v2740
    %v2757 = vmul.f32 %v2740, %v2756
    %v2758 = vsub.f32 1.0, %v2757
    %v2759 = vmul.f32 %v2756, %v2758
    %v2760 = vadd.f32 %v2756, %v2759
    %vm2761 = vweird.f32 %v2740
    %vm2762 = vweird.f32 %v2756
    %vm2763 = vmor %vm2761, %vm2762
    %v2764 = vsel %vm2763, %v2756, %v2760
    %v2765 = vand.u32 2147483647, %v2740
    %vm2766 = vcmp.eq.f32.partialorder %v2765, 8.507059e+37
    %v2767 = vand.u32 %v2740, 2147483648
    %v2768 = vor.u32 1.1754944e-38, %v2767
    %v2769 = vsel %vm2766, %v2768, %v2764
    %v2770 = vmul.f32 1.0, %v2769
    %v2771 = vtanh.pop %v2689
    %v2772 = vtanh.pop %v2693
    %v2773 = vxor.u32 %v2690, 2147483648
    %v2774 = vxor.u32 %v2694, 2147483648
    %v2775 = vmul.f32 %v2773, 1.442695
    %v2776 = vpow.pop %v2775
    %v2777 = vmul.f32 %v2774, 1.442695
    %v2778 = vpow.pop %v2777
    %v2779 = vadd.f32 %v2776, 1.0
    %v2780 = vadd.f32 %v2778, 1.0
    %v2781 = vrcp.pop %v2779
    %v2782 = vmul.f32 %v2779, %v2781
    %v2783 = vsub.f32 1.0, %v2782
    %v2784 = vmul.f32 %v2781, %v2783
    %v2785 = vadd.f32 %v2781, %v2784
    %vm2786 = vweird.f32 %v2779
    %vm2787 = vweird.f32 %v2781
    %vm2788 = vmor %vm2786, %vm2787
    %v2789 = vsel %vm2788, %v2781, %v2785
    %v2790 = vand.u32 2147483647, %v2779
    %vm2791 = vcmp.eq.f32.partialorder %v2790, 8.507059e+37
    %v2792 = vand.u32 %v2779, 2147483648
    %v2793 = vor.u32 1.1754944e-38, %v2792
    %v2794 = vsel %vm2791, %v2793, %v2789
    %v2795 = vmul.f32 1.0, %v2794
    %v2796 = vrcp.pop %v2780
    %v2797 = vmul.f32 %v2780, %v2796
    %v2798 = vsub.f32 1.0, %v2797
    %v2799 = vmul.f32 %v2796, %v2798
    %v2800 = vadd.f32 %v2796, %v2799
    %vm2801 = vweird.f32 %v2780
    %vm2802 = vweird.f32 %v2796
    %vm2803 = vmor %vm2801, %vm2802
    %v2804 = vsel %vm2803, %v2796, %v2800
    %v2805 = vand.u32 2147483647, %v2780
    %vm2806 = vcmp.eq.f32.partialorder %v2805, 8.507059e+37
    %v2807 = vand.u32 %v2780, 2147483648
    %v2808 = vor.u32 1.1754944e-38, %v2807
    %v2809 = vsel %vm2806, %v2808, %v2804
    %v2810 = vmul.f32 1.0, %v2809
    %v2813 = vrot.slane %v2509, 7
    %v2814 = vrot.slane %v2510, 7
    %v2817 = vmul.f32 %v2755, %v2813
    %v2818 = vmul.f32 %v2770, %v2814
    %v2819 = vmul.f32 %v2717, %v2771
    %v2820 = vmul.f32 %v2732, %v2772
    %v2821 = vadd.f32 %v2817, %v2819
    %v2822 = vadd.f32 %v2818, %v2820
    %v2823 = vtanh.pop %v2821
    %v2824 = vtanh.pop %v2822
    %v2825 = vmul.f32 %v2795, %v2823
    %v2826 = vmul.f32 %v2810, %v2824
    %2827 = vst [vmem:[#allocation2] sm:$0x80] %v2825
    %2828 = vst [vmem:[#allocation2 + $0x8] sm:$0x80] %v2826
    %v2829 = vld [vmem:[#allocation2] sm:$0xff]
    %v2830 = vld [vmem:[#allocation2 + $0x8] sm:$0xff]
    %v2831 = vld [vmem:[#allocation9] sm:$0xff]
    %v2832 = vld [vmem:[#allocation9 + $0x8] sm:$0xff]
    %v2833 = vld [vmem:[#allocation9 + $0x10] sm:$0xff]
    %v2834 = vld [vmem:[#allocation9 + $0x18] sm:$0xff]
    %v2835 = vld [vmem:[#allocation9 + $0x20] sm:$0xff]
    %v2836 = vld [vmem:[#allocation9 + $0x28] sm:$0xff]
    %v2837 = vld [vmem:[#allocation9 + $0x30] sm:$0xff]
    %v2838 = vld [vmem:[#allocation9 + $0x38] sm:$0xff]
    %v2839 = vld [vmem:[#allocation9 + $0x40] sm:$0xff]
    %v2840 = vld [vmem:[#allocation9 + $0x48] sm:$0xff]
    %v2841 = vld [vmem:[#allocation9 + $0x50] sm:$0xff]
    %v2842 = vld [vmem:[#allocation9 + $0x58] sm:$0xff]
    %v2843 = vld [vmem:[#allocation9 + $0x60] sm:$0xff]
    %v2844 = vld [vmem:[#allocation9 + $0x68] sm:$0xff]
    %v2845 = vld [vmem:[#allocation9 + $0x70] sm:$0xff]
    %v2846 = vld [vmem:[#allocation9 + $0x78] sm:$0xff]
    %v2847 = vld [vmem:[#allocation9 + $0x80] sm:$0xff]
    %v2848 = vld [vmem:[#allocation9 + $0x88] sm:$0xff]
    %v2849 = vld [vmem:[#allocation9 + $0x90] sm:$0xff]
    %v2850 = vld [vmem:[#allocation9 + $0x98] sm:$0xff]
    %v2851 = vld [vmem:[#allocation9 + $0xa0] sm:$0xff]
    %v2852 = vld [vmem:[#allocation9 + $0xa8] sm:$0xff]
    %v2853 = vld [vmem:[#allocation9 + $0xb0] sm:$0xff]
    %v2854 = vld [vmem:[#allocation9 + $0xb8] sm:$0xff]
    %v2855 = vld [vmem:[#allocation9 + $0xc0] sm:$0xff]
    %v2856 = vld [vmem:[#allocation9 + $0xc8] sm:$0xff]
    %v2857 = vld [vmem:[#allocation9 + $0xd0] sm:$0xff]
    %v2858 = vld [vmem:[#allocation9 + $0xd8] sm:$0xff]
    %v2859 = vld [vmem:[#allocation9 + $0xe0] sm:$0xff]
    %v2860 = vld [vmem:[#allocation9 + $0xe8] sm:$0xff]
    %v2861 = vld [vmem:[#allocation9 + $0xf0] sm:$0xff]
    %v2862 = vld [vmem:[#allocation9 + $0xf8] sm:$0xff]
    %v2863 = vld [vmem:[#allocation9 + $0x100] sm:$0xff]
    %v2864 = vld [vmem:[#allocation9 + $0x108] sm:$0xff]
    %v2865 = vld [vmem:[#allocation9 + $0x110] sm:$0xff]
    %v2866 = vld [vmem:[#allocation9 + $0x118] sm:$0xff]
    %v2867 = vld [vmem:[#allocation9 + $0x120] sm:$0xff]
    %v2868 = vld [vmem:[#allocation9 + $0x128] sm:$0xff]
    %v2869 = vld [vmem:[#allocation9 + $0x130] sm:$0xff]
    %v2870 = vld [vmem:[#allocation9 + $0x138] sm:$0xff]
    %v2871 = vld [vmem:[#allocation9 + $0x140] sm:$0xff]
    %v2872 = vld [vmem:[#allocation9 + $0x148] sm:$0xff]
    %v2873 = vld [vmem:[#allocation9 + $0x150] sm:$0xff]
    %v2874 = vld [vmem:[#allocation9 + $0x158] sm:$0xff]
    %v2875 = vld [vmem:[#allocation9 + $0x160] sm:$0xff]
    %v2876 = vld [vmem:[#allocation9 + $0x168] sm:$0xff]
    %v2877 = vld [vmem:[#allocation9 + $0x170] sm:$0xff]
    %v2878 = vld [vmem:[#allocation9 + $0x178] sm:$0xff]
    %v2879 = vld [vmem:[#allocation9 + $0x180] sm:$0xff]
    %v2880 = vld [vmem:[#allocation9 + $0x188] sm:$0xff]
    %v2881 = vld [vmem:[#allocation9 + $0x190] sm:$0xff]
    %v2882 = vld [vmem:[#allocation9 + $0x198] sm:$0xff]
    %v2883 = vld [vmem:[#allocation9 + $0x1a0] sm:$0xff]
    %v2884 = vld [vmem:[#allocation9 + $0x1a8] sm:$0xff]
    %v2885 = vld [vmem:[#allocation9 + $0x1b0] sm:$0xff]
    %v2886 = vld [vmem:[#allocation9 + $0x1b8] sm:$0xff]
    %v2887 = vld [vmem:[#allocation9 + $0x1c0] sm:$0xff]
    %v2888 = vld [vmem:[#allocation9 + $0x1c8] sm:$0xff]
    %v2889 = vld [vmem:[#allocation9 + $0x1d0] sm:$0xff]
    %v2890 = vld [vmem:[#allocation9 + $0x1d8] sm:$0xff]
    %v2891 = vld [vmem:[#allocation9 + $0x1e0] sm:$0xff]
    %v2892 = vld [vmem:[#allocation9 + $0x1e8] sm:$0xff]
    %v2893 = vld [vmem:[#allocation9 + $0x1f0] sm:$0xff]
    %v2894 = vld [vmem:[#allocation9 + $0x1f8] sm:$0xff]
    %v2895 = vld [vmem:[#allocation9 + $0x200] sm:$0xff]
    %v2896 = vld [vmem:[#allocation9 + $0x208] sm:$0xff]
    %v2897 = vld [vmem:[#allocation9 + $0x210] sm:$0xff]
    %v2898 = vld [vmem:[#allocation9 + $0x218] sm:$0xff]
    %v2899 = vld [vmem:[#allocation9 + $0x220] sm:$0xff]
    %v2900 = vld [vmem:[#allocation9 + $0x228] sm:$0xff]
    %v2901 = vld [vmem:[#allocation9 + $0x230] sm:$0xff]
    %v2902 = vld [vmem:[#allocation9 + $0x238] sm:$0xff]
    %v2903 = vld [vmem:[#allocation9 + $0x240] sm:$0xff]
    %v2904 = vld [vmem:[#allocation9 + $0x248] sm:$0xff]
    %v2905 = vld [vmem:[#allocation9 + $0x250] sm:$0xff]
    %v2906 = vld [vmem:[#allocation9 + $0x258] sm:$0xff]
    %v2907 = vld [vmem:[#allocation9 + $0x260] sm:$0xff]
    %v2908 = vld [vmem:[#allocation9 + $0x268] sm:$0xff]
    %v2909 = vld [vmem:[#allocation9 + $0x270] sm:$0xff]
    %v2910 = vld [vmem:[#allocation9 + $0x278] sm:$0xff]
    %v2911 = vld [vmem:[#allocation9 + $0x280] sm:$0xff]
    %v2912 = vld [vmem:[#allocation9 + $0x288] sm:$0xff]
    %v2913 = vld [vmem:[#allocation9 + $0x290] sm:$0xff]
    %v2914 = vld [vmem:[#allocation9 + $0x298] sm:$0xff]
    %v2915 = vld [vmem:[#allocation9 + $0x2a0] sm:$0xff]
    %v2916 = vld [vmem:[#allocation9 + $0x2a8] sm:$0xff]
    %v2917 = vld [vmem:[#allocation9 + $0x2b0] sm:$0xff]
    %v2918 = vld [vmem:[#allocation9 + $0x2b8] sm:$0xff]
    %v2919 = vld [vmem:[#allocation9 + $0x2c0] sm:$0xff]
    %v2920 = vld [vmem:[#allocation9 + $0x2c8] sm:$0xff]
    %v2921 = vld [vmem:[#allocation9 + $0x2d0] sm:$0xff]
    %v2922 = vld [vmem:[#allocation9 + $0x2d8] sm:$0xff]
    %v2923 = vld [vmem:[#allocation9 + $0x2e0] sm:$0xff]
    %v2924 = vld [vmem:[#allocation9 + $0x2e8] sm:$0xff]
    %v2925 = vld [vmem:[#allocation9 + $0x2f0] sm:$0xff]
    %v2926 = vld [vmem:[#allocation9 + $0x2f8] sm:$0xff]
    %v2927 = vld [vmem:[#allocation11] sm:$0x3f]
    %v2929 = vperm.slane %v2927, 0
    %v2930 = vperm.slane %v2927, 1
    %v2931 = vperm.slane %v2927, 2
    %v2932 = vperm.slane %v2927, 3
    %v2933 = vperm.slane %v2927, 4
    %v2934 = vperm.slane %v2927, 5
    %2941 = vmatpush.msra.mxu0 %v2921
    %2942 = vmatpush.msra.mxu0 %v2915
    %2943 = vmatpush.msra.mxu0 %v2909
    %2944 = vmatpush.msra.mxu0 %v2903
    %2945 = vmatpush.msra.mxu0 %v2897
    %2946 = vmatpush.msra.mxu0 %v2891
    %2947 = vmatpush.msra.mxu0 %v2885
    %2948 = vmatpush.msra.mxu0 %v2879
    %2949 = vmatpush.msra.mxu0 %v2873
    %2950 = vmatpush.msra.mxu0 %v2867
    %2951 = vmatpush.msra.mxu0 %v2861
    %2952 = vmatpush.msra.mxu0 %v2855
    %2953 = vmatpush.msra.mxu0 %v2849
    %2954 = vmatpush.msra.mxu0 %v2843
    %2955 = vmatpush.msra.mxu0 %v2837
    %2956 = vmatpush.msra.mxu0 %v2831
    %2957 = vmatmul.f32.gmra.mxu0 %v2829
    %v2958 = vpop.f32.mrf.mxu0
    %v2959 = vadd.f32 %v2929, %v2958
    %2960 = vmatmul.f32.gmra.mxu0 %v2830
    %v2961 = vpop.f32.mrf.mxu0
    %v2962 = vadd.f32 %v2929, %v2961
    %2963 = vdwg.mxu0
    %2964 = vmatpush.msra.mxu0 %v2922
    %2965 = vmatpush.msra.mxu0 %v2916
    %2966 = vmatpush.msra.mxu0 %v2910
    %2967 = vmatpush.msra.mxu0 %v2904
    %2968 = vmatpush.msra.mxu0 %v2898
    %2969 = vmatpush.msra.mxu0 %v2892
    %2970 = vmatpush.msra.mxu0 %v2886
    %2971 = vmatpush.msra.mxu0 %v2880
    %2972 = vmatpush.msra.mxu0 %v2874
    %2973 = vmatpush.msra.mxu0 %v2868
    %2974 = vmatpush.msra.mxu0 %v2862
    %2975 = vmatpush.msra.mxu0 %v2856
    %2976 = vmatpush.msra.mxu0 %v2850
    %2977 = vmatpush.msra.mxu0 %v2844
    %2978 = vmatpush.msra.mxu0 %v2838
    %2979 = vmatpush.msra.mxu0 %v2832
    %2980 = vmatmul.f32.gmra.mxu0 %v2829
    %v2981 = vpop.f32.mrf.mxu0
    %v2982 = vadd.f32 %v2930, %v2981
    %2983 = vmatmul.f32.gmra.mxu0 %v2830
    %v2984 = vpop.f32.mrf.mxu0
    %v2985 = vadd.f32 %v2930, %v2984
    %2986 = vdwg.mxu0
    %2987 = vmatpush.msra.mxu0 %v2923
    %2988 = vmatpush.msra.mxu0 %v2917
    %2989 = vmatpush.msra.mxu0 %v2911
    %2990 = vmatpush.msra.mxu0 %v2905
    %2991 = vmatpush.msra.mxu0 %v2899
    %2992 = vmatpush.msra.mxu0 %v2893
    %2993 = vmatpush.msra.mxu0 %v2887
    %2994 = vmatpush.msra.mxu0 %v2881
    %2995 = vmatpush.msra.mxu0 %v2875
    %2996 = vmatpush.msra.mxu0 %v2869
    %2997 = vmatpush.msra.mxu0 %v2863
    %2998 = vmatpush.msra.mxu0 %v2857
    %2999 = vmatpush.msra.mxu0 %v2851
    %3000 = vmatpush.msra.mxu0 %v2845
    %3001 = vmatpush.msra.mxu0 %v2839
    %3002 = vmatpush.msra.mxu0 %v2833
    %3003 = vmatmul.f32.gmra.mxu0 %v2829
    %v3004 = vpop.f32.mrf.mxu0
    %v3005 = vadd.f32 %v2931, %v3004
    %3006 = vmatmul.f32.gmra.mxu0 %v2830
    %v3007 = vpop.f32.mrf.mxu0
    %v3008 = vadd.f32 %v2931, %v3007
    %3009 = vdwg.mxu0
    %3010 = vmatpush.msra.mxu0 %v2924
    %3011 = vmatpush.msra.mxu0 %v2918
    %3012 = vmatpush.msra.mxu0 %v2912
    %3013 = vmatpush.msra.mxu0 %v2906
    %3014 = vmatpush.msra.mxu0 %v2900
    %3015 = vmatpush.msra.mxu0 %v2894
    %3016 = vmatpush.msra.mxu0 %v2888
    %3017 = vmatpush.msra.mxu0 %v2882
    %3018 = vmatpush.msra.mxu0 %v2876
    %3019 = vmatpush.msra.mxu0 %v2870
    %3020 = vmatpush.msra.mxu0 %v2864
    %3021 = vmatpush.msra.mxu0 %v2858
    %3022 = vmatpush.msra.mxu0 %v2852
    %3023 = vmatpush.msra.mxu0 %v2846
    %3024 = vmatpush.msra.mxu0 %v2840
    %3025 = vmatpush.msra.mxu0 %v2834
    %3026 = vmatmul.f32.gmra.mxu0 %v2829
    %v3027 = vpop.f32.mrf.mxu0
    %v3028 = vadd.f32 %v2932, %v3027
    %3029 = vmatmul.f32.gmra.mxu0 %v2830
    %v3030 = vpop.f32.mrf.mxu0
    %v3031 = vadd.f32 %v2932, %v3030
    %3032 = vdwg.mxu0
    %3033 = vmatpush.msra.mxu0 %v2925
    %3034 = vmatpush.msra.mxu0 %v2919
    %3035 = vmatpush.msra.mxu0 %v2913
    %3036 = vmatpush.msra.mxu0 %v2907
    %3037 = vmatpush.msra.mxu0 %v2901
    %3038 = vmatpush.msra.mxu0 %v2895
    %3039 = vmatpush.msra.mxu0 %v2889
    %3040 = vmatpush.msra.mxu0 %v2883
    %3041 = vmatpush.msra.mxu0 %v2877
    %3042 = vmatpush.msra.mxu0 %v2871
    %3043 = vmatpush.msra.mxu0 %v2865
    %3044 = vmatpush.msra.mxu0 %v2859
    %3045 = vmatpush.msra.mxu0 %v2853
    %3046 = vmatpush.msra.mxu0 %v2847
    %3047 = vmatpush.msra.mxu0 %v2841
    %3048 = vmatpush.msra.mxu0 %v2835
    %3049 = vmatmul.f32.gmra.mxu0 %v2829
    %v3050 = vpop.f32.mrf.mxu0
    %v3051 = vadd.f32 %v2933, %v3050
    %3052 = vmatmul.f32.gmra.mxu0 %v2830
    %v3053 = vpop.f32.mrf.mxu0
    %v3054 = vadd.f32 %v2933, %v3053
    %3055 = vdwg.mxu0
    %3056 = vmatpush.msra.mxu0 %v2926
    %3057 = vmatpush.msra.mxu0 %v2920
    %3058 = vmatpush.msra.mxu0 %v2914
    %3059 = vmatpush.msra.mxu0 %v2908
    %3060 = vmatpush.msra.mxu0 %v2902
    %3061 = vmatpush.msra.mxu0 %v2896
    %3062 = vmatpush.msra.mxu0 %v2890
    %3063 = vmatpush.msra.mxu0 %v2884
    %3064 = vmatpush.msra.mxu0 %v2878
    %3065 = vmatpush.msra.mxu0 %v2872
    %3066 = vmatpush.msra.mxu0 %v2866
    %3067 = vmatpush.msra.mxu0 %v2860
    %3068 = vmatpush.msra.mxu0 %v2854
    %3069 = vmatpush.msra.mxu0 %v2848
    %3070 = vmatpush.msra.mxu0 %v2842
    %3071 = vmatpush.msra.mxu0 %v2836
    %3072 = vmatmul.f32.gmra.mxu0 %v2829
    %v3073 = vpop.f32.mrf.mxu0
    %v3074 = vadd.f32 %v2934, %v3073
    %3075 = vmatmul.f32.gmra.mxu0 %v2830
    %v3076 = vpop.f32.mrf.mxu0
    %v3077 = vadd.f32 %v2934, %v3076
    %3078 = vdwg.mxu0
    %3079 = vmatpush.xpose.msra.mxu0 0.0
    %3080 = vmatpush.xpose.msra.mxu0 0.0
    %3081 = vmatpush.xpose.msra.mxu0 0.0
    %3082 = vmatpush.xpose.msra.mxu0 0.0
    %3083 = vmatpush.xpose.msra.mxu0 0.0
    %3084 = vmatpush.xpose.msra.mxu0 0.0
    %3085 = vmatpush.xpose.msra.mxu0 0.0
    %3086 = vmatpush.xpose.msra.mxu0 0.0
    %3087 = vmatpush.xpose.msra.mxu0 0.0
    %3088 = vmatpush.xpose.msra.mxu0 0.0
    %3089 = vmatpush.xpose.msra.mxu0 0.0
    %3090 = vmatpush.xpose.msra.mxu0 0.0
    %3091 = vmatpush.xpose.msra.mxu0 0.0
    %3092 = vmatpush.xpose.msra.mxu0 0.0
    %3093 = vmatpush.xpose.msra.mxu0 0.0
    %3094 = vmatpush.xpose.msra.mxu0 %v3005
    %3095 = vmatmul.f32.gmra.mxu0 %v2959
    %v3096 = vpop.f32.mrf.mxu0
    %v3097 = vadd.f32 0.0, %v3096
    %3098 = vdwg.mxu0
    %3099 = vmatpush.xpose.msra.mxu0 0.0
    %3100 = vmatpush.xpose.msra.mxu0 0.0
    %3101 = vmatpush.xpose.msra.mxu0 0.0
    %3102 = vmatpush.xpose.msra.mxu0 0.0
    %3103 = vmatpush.xpose.msra.mxu0 0.0
    %3104 = vmatpush.xpose.msra.mxu0 0.0
    %3105 = vmatpush.xpose.msra.mxu0 0.0
    %3106 = vmatpush.xpose.msra.mxu0 0.0
    %3107 = vmatpush.xpose.msra.mxu0 0.0
    %3108 = vmatpush.xpose.msra.mxu0 0.0
    %3109 = vmatpush.xpose.msra.mxu0 0.0
    %3110 = vmatpush.xpose.msra.mxu0 0.0
    %3111 = vmatpush.xpose.msra.mxu0 0.0
    %3112 = vmatpush.xpose.msra.mxu0 0.0
    %3113 = vmatpush.xpose.msra.mxu0 0.0
    %3114 = vmatpush.xpose.msra.mxu0 %v3008
    %3115 = vmatmul.f32.gmra.mxu0 %v2962
    %v3116 = vpop.f32.mrf.mxu0
    %v3117 = vadd.f32 0.0, %v3116
    %3118 = vdwg.mxu0
    %v3119 = vmul.f32 %v3097, 0.088388346
    %v3120 = vmul.f32 %v3117, 0.088388346
    %vm3121 = vcmask 64512
    %v3122 = vsel %vm3121, %v3119, -inf
    %3123 = vmax.xlane.f32.xlu0 %v3122
    %v3124 = vpop.xlane.xlu0 %3123
    %v3125 = vsel %vm3121, %v3120, -inf
    %3126 = vmax.xlane.f32.xlu0 %v3125
    %v3127 = vpop.xlane.xlu0 %3126
    %v3128 = vsub.f32 %v3119, %v3124
    %v3129 = vsub.f32 %v3120, %v3127
    %v3130 = vmul.f32 %v3128, 1.442695
    %v3131 = vpow.pop %v3130
    %v3132 = vmul.f32 %v3129, 1.442695
    %v3133 = vpow.pop %v3132
    %v3134 = vsel %vm3121, %v3131, 0.0
    %3135 = vadd.xlane.f32.xlu0 %v3134
    %v3136 = vpop.xlane.xlu0 %3135
    %v3137 = vsel %vm3121, %v3133, 0.0
    %3138 = vadd.xlane.f32.xlu0 %v3137
    %v3139 = vpop.xlane.xlu0 %3138
    %v3140 = vrcp.pop %v3136
    %v3141 = vmul.f32 %v3136, %v3140
    %v3142 = vsub.f32 1.0, %v3141
    %v3143 = vmul.f32 %v3140, %v3142
    %v3144 = vadd.f32 %v3140, %v3143
    %vm3145 = vweird.f32 %v3136
    %vm3146 = vweird.f32 %v3140
    %vm3147 = vmor %vm3145, %vm3146
    %v3148 = vsel %vm3147, %v3140, %v3144
    %v3149 = vand.u32 2147483647, %v3136
    %vm3150 = vcmp.eq.f32.partialorder %v3149, 8.507059e+37
    %v3151 = vand.u32 %v3136, 2147483648
    %v3152 = vor.u32 1.1754944e-38, %v3151
    %v3153 = vsel %vm3150, %v3152, %v3148
    %v3154 = vmul.f32 %v3131, %v3153
    %v3155 = vrcp.pop %v3139
    %v3156 = vmul.f32 %v3139, %v3155
    %v3157 = vsub.f32 1.0, %v3156
    %v3158 = vmul.f32 %v3155, %v3157
    %v3159 = vadd.f32 %v3155, %v3158
    %vm3160 = vweird.f32 %v3139
    %vm3161 = vweird.f32 %v3155
    %vm3162 = vmor %vm3160, %vm3161
    %v3163 = vsel %vm3162, %v3155, %v3159
    %v3164 = vand.u32 2147483647, %v3139
    %vm3165 = vcmp.eq.f32.partialorder %v3164, 8.507059e+37
    %v3166 = vand.u32 %v3139, 2147483648
    %v3167 = vor.u32 1.1754944e-38, %v3166
    %v3168 = vsel %vm3165, %v3167, %v3163
    %v3169 = vmul.f32 %v3133, %v3168
    %v3171 = vsel %vm3121, %v3154, 0
    %3173 = vmatpush.msra.mxu0 0.0
    %3174 = vmatpush.msra.mxu0 0.0
    %3175 = vmatpush.msra.mxu0 0.0
    %3176 = vmatpush.msra.mxu0 0.0
    %3177 = vmatpush.msra.mxu0 0.0
    %3178 = vmatpush.msra.mxu0 0.0
    %3179 = vmatpush.msra.mxu0 0.0
    %3180 = vmatpush.msra.mxu0 0.0
    %3181 = vmatpush.msra.mxu0 0.0
    %3182 = vmatpush.msra.mxu0 0.0
    %3183 = vmatpush.msra.mxu0 0.0
    %3184 = vmatpush.msra.mxu0 0.0
    %3185 = vmatpush.msra.mxu0 0.0
    %3186 = vmatpush.msra.mxu0 0.0
    %3187 = vmatpush.msra.mxu0 0.0
    %3188 = vmatpush.msra.mxu0 %v3051
    %3189 = vmatmul.f32.gmra.mxu0 %v3171
    %v3190 = vpop.f32.mrf.mxu0
    %v3191 = vadd.f32 0.0, %v3190
    %3192 = vdwg.mxu0
    %v3194 = vsel %vm3121, %v3169, 0
    %3196 = vmatpush.msra.mxu0 0.0
    %3197 = vmatpush.msra.mxu0 0.0
    %3198 = vmatpush.msra.mxu0 0.0
    %3199 = vmatpush.msra.mxu0 0.0
    %3200 = vmatpush.msra.mxu0 0.0
    %3201 = vmatpush.msra.mxu0 0.0
    %3202 = vmatpush.msra.mxu0 0.0
    %3203 = vmatpush.msra.mxu0 0.0
    %3204 = vmatpush.msra.mxu0 0.0
    %3205 = vmatpush.msra.mxu0 0.0
    %3206 = vmatpush.msra.mxu0 0.0
    %3207 = vmatpush.msra.mxu0 0.0
    %3208 = vmatpush.msra.mxu0 0.0
    %3209 = vmatpush.msra.mxu0 0.0
    %3210 = vmatpush.msra.mxu0 0.0
    %3211 = vmatpush.msra.mxu0 %v3054
    %3212 = vmatmul.f32.gmra.mxu0 %v3194
    %v3213 = vpop.f32.mrf.mxu0
    %v3214 = vadd.f32 0.0, %v3213
    %3215 = vdwg.mxu0
    %3216 = vmatpush.xpose.msra.mxu0 0.0
    %3217 = vmatpush.xpose.msra.mxu0 0.0
    %3218 = vmatpush.xpose.msra.mxu0 0.0
    %3219 = vmatpush.xpose.msra.mxu0 0.0
    %3220 = vmatpush.xpose.msra.mxu0 0.0
    %3221 = vmatpush.xpose.msra.mxu0 0.0
    %3222 = vmatpush.xpose.msra.mxu0 0.0
    %3223 = vmatpush.xpose.msra.mxu0 0.0
    %3224 = vmatpush.xpose.msra.mxu0 0.0
    %3225 = vmatpush.xpose.msra.mxu0 0.0
    %3226 = vmatpush.xpose.msra.mxu0 0.0
    %3227 = vmatpush.xpose.msra.mxu0 0.0
    %3228 = vmatpush.xpose.msra.mxu0 0.0
    %3229 = vmatpush.xpose.msra.mxu0 0.0
    %3230 = vmatpush.xpose.msra.mxu0 0.0
    %3231 = vmatpush.xpose.msra.mxu0 %v3028
    %3232 = vmatmul.f32.gmra.mxu0 %v2982
    %v3233 = vpop.f32.mrf.mxu0
    %v3234 = vadd.f32 0.0, %v3233
    %3235 = vdwg.mxu0
    %3236 = vmatpush.xpose.msra.mxu0 0.0
    %3237 = vmatpush.xpose.msra.mxu0 0.0
    %3238 = vmatpush.xpose.msra.mxu0 0.0
    %3239 = vmatpush.xpose.msra.mxu0 0.0
    %3240 = vmatpush.xpose.msra.mxu0 0.0
    %3241 = vmatpush.xpose.msra.mxu0 0.0
    %3242 = vmatpush.xpose.msra.mxu0 0.0
    %3243 = vmatpush.xpose.msra.mxu0 0.0
    %3244 = vmatpush.xpose.msra.mxu0 0.0
    %3245 = vmatpush.xpose.msra.mxu0 0.0
    %3246 = vmatpush.xpose.msra.mxu0 0.0
    %3247 = vmatpush.xpose.msra.mxu0 0.0
    %3248 = vmatpush.xpose.msra.mxu0 0.0
    %3249 = vmatpush.xpose.msra.mxu0 0.0
    %3250 = vmatpush.xpose.msra.mxu0 0.0
    %3251 = vmatpush.xpose.msra.mxu0 %v3031
    %3252 = vmatmul.f32.gmra.mxu0 %v2985
    %v3253 = vpop.f32.mrf.mxu0
    %v3254 = vadd.f32 0.0, %v3253
    %3255 = vdwg.mxu0
    %v3256 = vmul.f32 %v3234, 0.088388346
    %v3257 = vmul.f32 %v3254, 0.088388346
    %v3258 = vsel %vm3121, %v3256, -inf
    %3259 = vmax.xlane.f32.xlu0 %v3258
    %v3260 = vpop.xlane.xlu0 %3259
    %v3261 = vsel %vm3121, %v3257, -inf
    %3262 = vmax.xlane.f32.xlu0 %v3261
    %v3263 = vpop.xlane.xlu0 %3262
    %v3264 = vsub.f32 %v3256, %v3260
    %v3265 = vsub.f32 %v3257, %v3263
    %v3266 = vmul.f32 %v3264, 1.442695
    %v3267 = vpow.pop %v3266
    %v3268 = vmul.f32 %v3265, 1.442695
    %v3269 = vpow.pop %v3268
    %v3270 = vsel %vm3121, %v3267, 0.0
    %3271 = vadd.xlane.f32.xlu0 %v3270
    %v3272 = vpop.xlane.xlu0 %3271
    %v3273 = vsel %vm3121, %v3269, 0.0
    %3274 = vadd.xlane.f32.xlu0 %v3273
    %v3275 = vpop.xlane.xlu0 %3274
    %v3276 = vrcp.pop %v3272
    %v3277 = vmul.f32 %v3272, %v3276
    %v3278 = vsub.f32 1.0, %v3277
    %v3279 = vmul.f32 %v3276, %v3278
    %v3280 = vadd.f32 %v3276, %v3279
    %vm3281 = vweird.f32 %v3272
    %vm3282 = vweird.f32 %v3276
    %vm3283 = vmor %vm3281, %vm3282
    %v3284 = vsel %vm3283, %v3276, %v3280
    %v3285 = vand.u32 2147483647, %v3272
    %vm3286 = vcmp.eq.f32.partialorder %v3285, 8.507059e+37
    %v3287 = vand.u32 %v3272, 2147483648
    %v3288 = vor.u32 1.1754944e-38, %v3287
    %v3289 = vsel %vm3286, %v3288, %v3284
    %v3290 = vmul.f32 %v3267, %v3289
    %v3291 = vrcp.pop %v3275
    %v3292 = vmul.f32 %v3275, %v3291
    %v3293 = vsub.f32 1.0, %v3292
    %v3294 = vmul.f32 %v3291, %v3293
    %v3295 = vadd.f32 %v3291, %v3294
    %vm3296 = vweird.f32 %v3275
    %vm3297 = vweird.f32 %v3291
    %vm3298 = vmor %vm3296, %vm3297
    %v3299 = vsel %vm3298, %v3291, %v3295
    %v3300 = vand.u32 2147483647, %v3275
    %vm3301 = vcmp.eq.f32.partialorder %v3300, 8.507059e+37
    %v3302 = vand.u32 %v3275, 2147483648
    %v3303 = vor.u32 1.1754944e-38, %v3302
    %v3304 = vsel %vm3301, %v3303, %v3299
    %v3305 = vmul.f32 %v3269, %v3304
    %v3307 = vsel %vm3121, %v3290, 0
    %3309 = vmatpush.msra.mxu0 0.0
    %3310 = vmatpush.msra.mxu0 0.0
    %3311 = vmatpush.msra.mxu0 0.0
    %3312 = vmatpush.msra.mxu0 0.0
    %3313 = vmatpush.msra.mxu0 0.0
    %3314 = vmatpush.msra.mxu0 0.0
    %3315 = vmatpush.msra.mxu0 0.0
    %3316 = vmatpush.msra.mxu0 0.0
    %3317 = vmatpush.msra.mxu0 0.0
    %3318 = vmatpush.msra.mxu0 0.0
    %3319 = vmatpush.msra.mxu0 0.0
    %3320 = vmatpush.msra.mxu0 0.0
    %3321 = vmatpush.msra.mxu0 0.0
    %3322 = vmatpush.msra.mxu0 0.0
    %3323 = vmatpush.msra.mxu0 0.0
    %3324 = vmatpush.msra.mxu0 %v3074
    %3325 = vmatmul.f32.gmra.mxu0 %v3307
    %v3326 = vpop.f32.mrf.mxu0
    %v3327 = vadd.f32 0.0, %v3326
    %3328 = vdwg.mxu0
    %v3330 = vsel %vm3121, %v3305, 0
    %3332 = vmatpush.msra.mxu0 0.0
    %3333 = vmatpush.msra.mxu0 0.0
    %3334 = vmatpush.msra.mxu0 0.0
    %3335 = vmatpush.msra.mxu0 0.0
    %3336 = vmatpush.msra.mxu0 0.0
    %3337 = vmatpush.msra.mxu0 0.0
    %3338 = vmatpush.msra.mxu0 0.0
    %3339 = vmatpush.msra.mxu0 0.0
    %3340 = vmatpush.msra.mxu0 0.0
    %3341 = vmatpush.msra.mxu0 0.0
    %3342 = vmatpush.msra.mxu0 0.0
    %3343 = vmatpush.msra.mxu0 0.0
    %3344 = vmatpush.msra.mxu0 0.0
    %3345 = vmatpush.msra.mxu0 0.0
    %3346 = vmatpush.msra.mxu0 0.0
    %3347 = vmatpush.msra.mxu0 %v3077
    %3348 = vmatmul.f32.gmra.mxu0 %v3330
    %v3349 = vpop.f32.mrf.mxu0
    %v3350 = vadd.f32 0.0, %v3349
    %3351 = vdwg.mxu0
    %v3352 = vld [vmem:[#allocation12] sm:$0xff]
    %v3353 = vld [vmem:[#allocation12 + $0x8] sm:$0xff]
    %v3354 = vld [vmem:[#allocation12 + $0x10] sm:$0xff]
    %v3355 = vld [vmem:[#allocation12 + $0x18] sm:$0xff]
    %v3356 = vld [vmem:[#allocation12 + $0x20] sm:$0xff]
    %v3357 = vld [vmem:[#allocation12 + $0x28] sm:$0xff]
    %v3358 = vld [vmem:[#allocation12 + $0x30] sm:$0xff]
    %v3359 = vld [vmem:[#allocation12 + $0x38] sm:$0xff]
    %v3360 = vld [vmem:[#allocation12 + $0x40] sm:$0xff]
    %v3361 = vld [vmem:[#allocation12 + $0x48] sm:$0xff]
    %v3362 = vld [vmem:[#allocation12 + $0x50] sm:$0xff]
    %v3363 = vld [vmem:[#allocation12 + $0x58] sm:$0xff]
    %v3364 = vld [vmem:[#allocation12 + $0x60] sm:$0xff]
    %v3365 = vld [vmem:[#allocation12 + $0x68] sm:$0xff]
    %v3366 = vld [vmem:[#allocation12 + $0x70] sm:$0xff]
    %v3367 = vld [vmem:[#allocation12 + $0x78] sm:$0xff]
    %v3368 = vld [vmem:[#allocation12 + $0x80] sm:$0xff]
    %v3369 = vld [vmem:[#allocation12 + $0x88] sm:$0xff]
    %v3370 = vld [vmem:[#allocation12 + $0x90] sm:$0xff]
    %v3371 = vld [vmem:[#allocation12 + $0x98] sm:$0xff]
    %v3372 = vld [vmem:[#allocation12 + $0xa0] sm:$0xff]
    %v3373 = vld [vmem:[#allocation12 + $0xa8] sm:$0xff]
    %v3374 = vld [vmem:[#allocation12 + $0xb0] sm:$0xff]
    %v3375 = vld [vmem:[#allocation12 + $0xb8] sm:$0xff]
    %v3376 = vld [vmem:[#allocation12 + $0xc0] sm:$0xff]
    %v3377 = vld [vmem:[#allocation12 + $0xc8] sm:$0xff]
    %v3378 = vld [vmem:[#allocation12 + $0xd0] sm:$0xff]
    %v3379 = vld [vmem:[#allocation12 + $0xd8] sm:$0xff]
    %v3380 = vld [vmem:[#allocation12 + $0xe0] sm:$0xff]
    %v3381 = vld [vmem:[#allocation12 + $0xe8] sm:$0xff]
    %v3382 = vld [vmem:[#allocation12 + $0xf0] sm:$0xff]
    %v3383 = vld [vmem:[#allocation12 + $0xf8] sm:$0xff]
    %v3384 = vld [vmem:[%s8] sm:$0x1]
    %v3386 = vperm.slane %v3384, 0
    %3388 = vmatpush.msra.mxu0 %v3367
    %3389 = vmatpush.msra.mxu0 %v3366
    %3390 = vmatpush.msra.mxu0 %v3365
    %3391 = vmatpush.msra.mxu0 %v3364
    %3392 = vmatpush.msra.mxu0 %v3363
    %3393 = vmatpush.msra.mxu0 %v3362
    %3394 = vmatpush.msra.mxu0 %v3361
    %3395 = vmatpush.msra.mxu0 %v3360
    %3396 = vmatpush.msra.mxu0 %v3359
    %3397 = vmatpush.msra.mxu0 %v3358
    %3398 = vmatpush.msra.mxu0 %v3357
    %3399 = vmatpush.msra.mxu0 %v3356
    %3400 = vmatpush.msra.mxu0 %v3355
    %3401 = vmatpush.msra.mxu0 %v3354
    %3402 = vmatpush.msra.mxu0 %v3353
    %3403 = vmatpush.msra.mxu0 %v3352
    %3404 = vmatmul.f32.gmra.mxu0 %v3191
    %v3405 = vpop.f32.mrf.mxu0
    %v3406 = vadd.f32 %v3386, %v3405
    %3407 = vmatmul.f32.gmra.mxu0 %v3214
    %v3408 = vpop.f32.mrf.mxu0
    %v3409 = vadd.f32 %v3386, %v3408
    %3410 = vdwg.mxu0
    %3411 = vmatpush.msra.mxu0 %v3383
    %3412 = vmatpush.msra.mxu0 %v3382
    %3413 = vmatpush.msra.mxu0 %v3381
    %3414 = vmatpush.msra.mxu0 %v3380
    %3415 = vmatpush.msra.mxu0 %v3379
    %3416 = vmatpush.msra.mxu0 %v3378
    %3417 = vmatpush.msra.mxu0 %v3377
    %3418 = vmatpush.msra.mxu0 %v3376
    %3419 = vmatpush.msra.mxu0 %v3375
    %3420 = vmatpush.msra.mxu0 %v3374
    %3421 = vmatpush.msra.mxu0 %v3373
    %3422 = vmatpush.msra.mxu0 %v3372
    %3423 = vmatpush.msra.mxu0 %v3371
    %3424 = vmatpush.msra.mxu0 %v3370
    %3425 = vmatpush.msra.mxu0 %v3369
    %3426 = vmatpush.msra.mxu0 %v3368
    %3427 = vmatmul.f32.gmra.mxu0 %v3327
    %v3428 = vpop.f32.mrf.mxu0
    %v3429 = vadd.f32 %v3406, %v3428
    %3430 = vmatmul.f32.gmra.mxu0 %v3350
    %v3431 = vpop.f32.mrf.mxu0
    %v3432 = vadd.f32 %v3409, %v3431
    %3433 = vdwg.mxu0
    %s3434 = sld [smem:[#allocation3]]
    %v3435 = vstv %s3434
    %v3436 = vmul.f32 %v3435, %v3429
    %v3437 = vmul.f32 %v3435, %v3432
    %v3438 = vadd.f32 %v2829, %v3436
    %v3439 = vadd.f32 %v2830, %v3437
    %v3440 = vld [vmem:[%s0] sm:$0xff]
    %v3441 = vld [vmem:[%s0 + $0x8] sm:$0xff]
    %v3442 = vld [vmem:[%s0 + $0x10] sm:$0xff]
    %v3443 = vld [vmem:[%s0 + $0x18] sm:$0xff]
    %vm3448 = vcmask 1046528
    %v3449 = vrot.slane %v3440, 1
    %v3450 = vrot.slane %v3441, 1
    %v3451 = vsel %vm3448, %v3449, %v3450
    %v3452 = vrot.slane %v3442, 1
    %v3453 = vrot.slane %v3443, 1
    %v3454 = vsel %vm3448, %v3452, %v3453
    %3455 = vrot.lane.b32.xlu0 %v3451, 8
    %v3456 = vpop.permute.xlu0 %3455
    %3457 = vrot.lane.b32.xlu0 %v3450, 8
    %v3458 = vpop.permute.xlu0 %3457
    %3459 = vrot.lane.b32.xlu0 %v3454, 8
    %v3460 = vpop.permute.xlu0 %3459
    %3461 = vrot.lane.b32.xlu0 %v3453, 8
    %v3462 = vpop.permute.xlu0 %3461
    %vm3467 = vcmask 1045504
    %v3468 = vrot.slane %v3440, 2
    %v3469 = vrot.slane %v3441, 2
    %v3470 = vsel %vm3467, %v3468, %v3469
    %v3471 = vrot.slane %v3442, 2
    %v3472 = vrot.slane %v3443, 2
    %v3473 = vsel %vm3467, %v3471, %v3472
    %3474 = vrot.lane.b32.xlu0 %v3470, 16
    %v3475 = vpop.permute.xlu0 %3474
    %3476 = vrot.lane.b32.xlu0 %v3469, 16
    %v3477 = vpop.permute.xlu0 %3476
    %3478 = vrot.lane.b32.xlu0 %v3473, 16
    %v3479 = vpop.permute.xlu0 %3478
    %3480 = vrot.lane.b32.xlu0 %v3472, 16
    %v3481 = vpop.permute.xlu0 %3480
    %vm3486 = vcmask 1044480
    %v3487 = vrot.slane %v3440, 3
    %v3488 = vrot.slane %v3441, 3
    %v3489 = vsel %vm3486, %v3487, %v3488
    %v3490 = vrot.slane %v3442, 3
    %v3491 = vrot.slane %v3443, 3
    %v3492 = vsel %vm3486, %v3490, %v3491
    %3493 = vrot.lane.b32.xlu0 %v3489, 24
    %v3494 = vpop.permute.xlu0 %3493
    %3495 = vrot.lane.b32.xlu0 %v3488, 24
    %v3496 = vpop.permute.xlu0 %3495
    %3497 = vrot.lane.b32.xlu0 %v3492, 24
    %v3498 = vpop.permute.xlu0 %3497
    %3499 = vrot.lane.b32.xlu0 %v3491, 24
    %v3500 = vpop.permute.xlu0 %3499
    %v3505 = vsel %vm3121, %v3440, %v3456
    %v3506 = vsel %vm3121, %v3441, %v3458
    %v3507 = vsel %vm3121, %v3442, %v3460
    %v3508 = vsel %vm3121, %v3443, %v3462
    %v3509 = vsel %vm255, %v3505, %v3475
    %v3510 = vsel %vm255, %v3506, %v3477
    %v3511 = vsel %vm255, %v3507, %v3479
    %v3512 = vsel %vm255, %v3508, %v3481
    %vm3513 = vcmask 195584
    %v3514 = vsel %vm3513, %v3509, %v3494
    %v3515 = vsel %vm3513, %v3510, %v3496
    %v3516 = vsel %vm3513, %v3511, %v3498
    %v3517 = vsel %vm3513, %v3512, %v3500
    %v3522 = vrot.slane %v3514, 1
    %v3523 = vrot.slane %v3514, 2
    %v3524 = vrot.slane %v3514, 3
    %v3525 = vrot.slane %v3514, 4
    %v3526 = vrot.slane %v3514, 5
    %v3527 = vrot.slane %v3514, 6
    %v3528 = vrot.slane %v3514, 7
    %v3529 = vrot.slane %v3515, 1
    %v3530 = vrot.slane %v3515, 2
    %v3531 = vrot.slane %v3515, 3
    %v3532 = vrot.slane %v3515, 4
    %v3533 = vrot.slane %v3516, 1
    %v3534 = vrot.slane %v3516, 2
    %v3535 = vrot.slane %v3516, 3
    %v3536 = vrot.slane %v3516, 4
    %v3537 = vrot.slane %v3516, 5
    %v3538 = vrot.slane %v3516, 6
    %v3539 = vrot.slane %v3516, 7
    %v3540 = vrot.slane %v3517, 1
    %v3541 = vrot.slane %v3517, 2
    %v3542 = vrot.slane %v3517, 3
    %v3543 = vrot.slane %v3517, 4
    %v3544 = vld [vmem:[%s9] sm:$0xff]
    %v3545 = vld [vmem:[%s9 + $0x8] sm:$0xff]
    %v3546 = vld [vmem:[%s9 + $0x10] sm:$0xff]
    %v3547 = vld [vmem:[%s9 + $0x18] sm:$0xff]
    %v3548 = vld [vmem:[#allocation14] sm:$0x1]
    %v3550 = vperm.slane %v3548, 0
    %3552 = vst [vmem:[#allocation1] ss:$9 sm:$0xff] %v3514
    %s3553 = scalar_lea.vmem [#allocation1], 1
    %3554 = vst [vmem:[%s3553] ss:$9 sm:$0xff] %v3522
    %s3555 = scalar_lea.vmem [#allocation1], 2
    %3556 = vst [vmem:[%s3555] ss:$9 sm:$0xff] %v3523
    %s3557 = scalar_lea.vmem [#allocation1], 3
    %3558 = vst [vmem:[%s3557] ss:$9 sm:$0xff] %v3524
    %s3559 = scalar_lea.vmem [#allocation1], 4
    %3560 = vst [vmem:[%s3559] ss:$9 sm:$0xff] %v3525
    %s3561 = scalar_lea.vmem [#allocation1], 5
    %3562 = vst [vmem:[%s3561] ss:$9 sm:$0xff] %v3526
    %s3563 = scalar_lea.vmem [#allocation1], 6
    %3564 = vst [vmem:[%s3563] ss:$9 sm:$0xff] %v3527
    %s3565 = scalar_lea.vmem [#allocation1], 7
    %3566 = vst [vmem:[%s3565] ss:$9 sm:$0xff] %v3528
    %v3567 = vld [vmem:[#allocation1] sm:$0xff]
    %3568 = vst [vmem:[#allocation1] ss:$9 sm:$0xff] %v3515
    %3569 = vst [vmem:[%s3553] ss:$9 sm:$0xff] %v3529
    %3570 = vst [vmem:[%s3555] ss:$9 sm:$0xff] %v3530
    %3571 = vst [vmem:[%s3557] ss:$9 sm:$0xff] %v3531
    %3572 = vst [vmem:[%s3559] ss:$9 sm:$0xff] %v3532
    %3573 = vst [vmem:[%s3561] ss:$9 sm:$0xff] %v3516
    %3574 = vst [vmem:[%s3563] ss:$9 sm:$0xff] %v3533
    %3575 = vst [vmem:[%s3565] ss:$9 sm:$0xff] %v3534
    %v3576 = vld [vmem:[#allocation1] sm:$0xff]
    %3577 = vst [vmem:[#allocation1] ss:$9 sm:$0xff] %v3535
    %3578 = vst [vmem:[%s3553] ss:$9 sm:$0xff] %v3536
    %3579 = vst [vmem:[%s3555] ss:$9 sm:$0xff] %v3537
    %3580 = vst [vmem:[%s3557] ss:$9 sm:$0xff] %v3538
    %3581 = vst [vmem:[%s3559] ss:$9 sm:$0xff] %v3539
    %3582 = vst [vmem:[%s3561] ss:$9 sm:$0xff] %v3517
    %3583 = vst [vmem:[%s3563] ss:$9 sm:$0xff] %v3540
    %3584 = vst [vmem:[%s3565] ss:$9 sm:$0xff] %v3541
    %v3585 = vld [vmem:[#allocation1] sm:$0xff]
    %3586 = vst [vmem:[#allocation1] ss:$9 sm:$0xff] %v3542
    %3587 = vst [vmem:[%s3553] ss:$9 sm:$0xff] %v3543
    %v3588 = vld [vmem:[#allocation1] sm:$0xff]
    %vm3589 = vcmask 261120
    %v3590 = vsel %vm3589, %v3567, 0
    %v3592 = vsel %vm3589, %v3576, 0
    %v3594 = vsel %vm3589, %v3585, 0
    %v3596 = vsel %vm3589, %v3588, 0
    %3598 = vmatpush.msra.mxu0 0.0
    %3599 = vmatpush.msra.mxu0 0.0
    %3600 = vmatpush.msra.mxu0 0.0
    %3601 = vmatpush.msra.mxu0 0.0
    %3602 = vmatpush.msra.mxu0 0.0
    %3603 = vmatpush.msra.mxu0 0.0
    %3604 = vmatpush.msra.mxu0 0.0
    %3605 = vmatpush.msra.mxu0 0.0
    %3606 = vmatpush.msra.mxu0 0.0
    %3607 = vmatpush.msra.mxu0 0.0
    %3608 = vmatpush.msra.mxu0 0.0
    %3609 = vmatpush.msra.mxu0 0.0
    %3610 = vmatpush.msra.mxu0 %v3547
    %3611 = vmatpush.msra.mxu0 %v3546
    %3612 = vmatpush.msra.mxu0 %v3545
    %3613 = vmatpush.msra.mxu0 %v3544
    %3614 = vmatmul.f32.gmra.mxu0 %v3590
    %v3615 = vpop.f32.mrf.mxu0
    %v3616 = vadd.f32 %v3550, %v3615
    %3617 = vmatmul.f32.gmra.mxu0 %v3592
    %v3618 = vpop.f32.mrf.mxu0
    %v3619 = vadd.f32 %v3550, %v3618
    %3620 = vmatmul.f32.gmra.mxu0 %v3594
    %v3621 = vpop.f32.mrf.mxu0
    %v3622 = vadd.f32 %v3550, %v3621
    %3623 = vmatmul.f32.gmra.mxu0 %v3596
    %v3624 = vpop.f32.mrf.mxu0
    %v3625 = vadd.f32 %v3550, %v3624
    %3626 = vdwg.mxu0
    %v3627 = vmax.f32 %v3616, 0.0
    %v3628 = vmax.f32 %v3619, 0.0
    %v3629 = vmax.f32 %v3622, 0.0
    %v3630 = vmax.f32 %v3625, 0.0
    %v3631 = vld [vmem:[#allocation15] sm:$0xff]
    %v3632 = vld [vmem:[#allocation15 + $0x8] sm:$0xff]
    %v3633 = vld [vmem:[#allocation15 + $0x10] sm:$0xff]
    %v3634 = vld [vmem:[#allocation15 + $0x18] sm:$0xff]
    %v3635 = vld [vmem:[#allocation15 + $0x20] sm:$0xff]
    %v3636 = vld [vmem:[#allocation15 + $0x28] sm:$0xff]
    %v3637 = vld [vmem:[%s13] sm:$0x1]
    %v3638 = vld [vmem:[%s13 + $0x1] sm:$0x1]
    %v3639 = vld [vmem:[%s13 + $0x2] sm:$0x1]
    %v3640 = vld [vmem:[%s12] sm:$0xff]
    %v3641 = vld [vmem:[%s12 + $0x8] sm:$0xff]
    %v3642 = vld [vmem:[%s12 + $0x10] sm:$0xff]
    %v3643 = vld [vmem:[%s12 + $0x18] sm:$0xff]
    %v3644 = vld [vmem:[%s12 + $0x20] sm:$0xff]
    %v3645 = vld [vmem:[%s12 + $0x28] sm:$0xff]
    %v3646 = vld [vmem:[%s12 + $0x30] sm:$0xff]
    %v3647 = vld [vmem:[%s12 + $0x38] sm:$0xff]
    %v3648 = vld [vmem:[%s12 + $0x40] sm:$0xff]
    %v3649 = vld [vmem:[%s12 + $0x48] sm:$0xff]
    %v3650 = vld [vmem:[%s12 + $0x50] sm:$0xff]
    %v3651 = vld [vmem:[%s12 + $0x58] sm:$0xff]
    %v3652 = vld [vmem:[#allocation17] sm:$0x1]
    %v3653 = vld [vmem:[#allocation17 + $0x1] sm:$0x1]
    %v3654 = vld [vmem:[#allocation17 + $0x2] sm:$0x1]
    %v3656 = vperm.slane %v3637, 0
    %v3659 = vsel %vm255, %v3627, 0
    %v3662 = vsel %vm255, %v3628, 0
    %v3665 = vsel %vm255, %v3629, 0
    %v3668 = vsel %vm255, %v3630, 0
    %3670 = vmatpush.msra.mxu0 0.0
    %3671 = vmatpush.msra.mxu0 0.0
    %3672 = vmatpush.msra.mxu0 0.0
    %3673 = vmatpush.msra.mxu0 0.0
    %3674 = vmatpush.msra.mxu0 0.0
    %3675 = vmatpush.msra.mxu0 0.0
    %3676 = vmatpush.msra.mxu0 0.0
    %3677 = vmatpush.msra.mxu0 0.0
    %3678 = vmatpush.msra.mxu0 0.0
    %3679 = vmatpush.msra.mxu0 0.0
    %3680 = vmatpush.msra.mxu0 0.0
    %3681 = vmatpush.msra.mxu0 0.0
    %3682 = vmatpush.msra.mxu0 0.0
    %3683 = vmatpush.msra.mxu0 0.0
    %3684 = vmatpush.msra.mxu0 %v3632
    %3685 = vmatpush.msra.mxu0 %v3631
    %3686 = vmatmul.f32.gmra.mxu0 %v3659
    %v3687 = vpop.f32.mrf.mxu0
    %v3688 = vadd.f32 %v3656, %v3687
    %3689 = vmatmul.f32.gmra.mxu0 %v3662
    %v3690 = vpop.f32.mrf.mxu0
    %v3691 = vadd.f32 %v3656, %v3690
    %3692 = vmatmul.f32.gmra.mxu0 %v3665
    %v3693 = vpop.f32.mrf.mxu0
    %v3694 = vadd.f32 %v3656, %v3693
    %3695 = vmatmul.f32.gmra.mxu0 %v3668
    %v3696 = vpop.f32.mrf.mxu0
    %v3697 = vadd.f32 %v3656, %v3696
    %3698 = vdwg.mxu0
    %v3703 = vrot.slane %v3688, 1
    %v3704 = vrot.slane %v3688, 2
    %v3705 = vrot.slane %v3688, 3
    %v3706 = vrot.slane %v3688, 4
    %v3707 = vrot.slane %v3688, 5
    %v3708 = vrot.slane %v3688, 6
    %v3709 = vrot.slane %v3688, 7
    %v3710 = vrot.slane %v3691, 1
    %v3711 = vrot.slane %v3691, 2
    %v3712 = vrot.slane %v3691, 3
    %v3713 = vrot.slane %v3691, 4
    %v3714 = vrot.slane %v3691, 5
    %v3715 = vrot.slane %v3691, 6
    %v3716 = vrot.slane %v3691, 7
    %v3717 = vrot.slane %v3694, 1
    %v3718 = vrot.slane %v3694, 2
    %v3719 = vrot.slane %v3694, 3
    %v3720 = vrot.slane %v3694, 4
    %v3721 = vrot.slane %v3694, 5
    %v3722 = vrot.slane %v3694, 6
    %v3723 = vrot.slane %v3694, 7
    %v3724 = vrot.slane %v3697, 1
    %v3748 = vperm.slane %v3638, 0
    %3750 = vmatpush.msra.mxu0 0.0
    %3751 = vmatpush.msra.mxu0 0.0
    %3752 = vmatpush.msra.mxu0 0.0
    %3753 = vmatpush.msra.mxu0 0.0
    %3754 = vmatpush.msra.mxu0 0.0
    %3755 = vmatpush.msra.mxu0 0.0
    %3756 = vmatpush.msra.mxu0 0.0
    %3757 = vmatpush.msra.mxu0 0.0
    %3758 = vmatpush.msra.mxu0 0.0
    %3759 = vmatpush.msra.mxu0 0.0
    %3760 = vmatpush.msra.mxu0 0.0
    %3761 = vmatpush.msra.mxu0 0.0
    %3762 = vmatpush.msra.mxu0 0.0
    %3763 = vmatpush.msra.mxu0 0.0
    %3764 = vmatpush.msra.mxu0 %v3634
    %3765 = vmatpush.msra.mxu0 %v3633
    %3766 = vmatmul.f32.gmra.mxu0 %v3659
    %v3767 = vpop.f32.mrf.mxu0
    %v3768 = vadd.f32 %v3748, %v3767
    %3769 = vmatmul.f32.gmra.mxu0 %v3662
    %v3770 = vpop.f32.mrf.mxu0
    %v3771 = vadd.f32 %v3748, %v3770
    %3772 = vmatmul.f32.gmra.mxu0 %v3665
    %v3773 = vpop.f32.mrf.mxu0
    %v3774 = vadd.f32 %v3748, %v3773
    %3775 = vmatmul.f32.gmra.mxu0 %v3668
    %v3776 = vpop.f32.mrf.mxu0
    %v3777 = vadd.f32 %v3748, %v3776
    %3778 = vdwg.mxu0
    %v3783 = vrot.slane %v3768, 1
    %v3784 = vrot.slane %v3768, 2
    %v3785 = vrot.slane %v3768, 3
    %v3786 = vrot.slane %v3768, 4
    %v3787 = vrot.slane %v3768, 5
    %v3788 = vrot.slane %v3768, 6
    %v3789 = vrot.slane %v3768, 7
    %v3790 = vrot.slane %v3771, 1
    %v3791 = vrot.slane %v3771, 2
    %v3792 = vrot.slane %v3771, 3
    %v3793 = vrot.slane %v3771, 4
    %v3794 = vrot.slane %v3771, 5
    %v3795 = vrot.slane %v3771, 6
    %v3796 = vrot.slane %v3771, 7
    %v3797 = vrot.slane %v3774, 1
    %v3798 = vrot.slane %v3774, 2
    %v3799 = vrot.slane %v3774, 3
    %v3800 = vrot.slane %v3774, 4
    %v3801 = vrot.slane %v3774, 5
    %v3802 = vrot.slane %v3774, 6
    %v3803 = vrot.slane %v3774, 7
    %v3804 = vrot.slane %v3777, 1
    %v3828 = vperm.slane %v3639, 0
    %3830 = vmatpush.msra.mxu0 0.0
    %3831 = vmatpush.msra.mxu0 0.0
    %3832 = vmatpush.msra.mxu0 0.0
    %3833 = vmatpush.msra.mxu0 0.0
    %3834 = vmatpush.msra.mxu0 0.0
    %3835 = vmatpush.msra.mxu0 0.0
    %3836 = vmatpush.msra.mxu0 0.0
    %3837 = vmatpush.msra.mxu0 0.0
    %3838 = vmatpush.msra.mxu0 0.0
    %3839 = vmatpush.msra.mxu0 0.0
    %3840 = vmatpush.msra.mxu0 0.0
    %3841 = vmatpush.msra.mxu0 0.0
    %3842 = vmatpush.msra.mxu0 0.0
    %3843 = vmatpush.msra.mxu0 0.0
    %3844 = vmatpush.msra.mxu0 %v3636
    %3845 = vmatpush.msra.mxu0 %v3635
    %3846 = vmatmul.f32.gmra.mxu0 %v3659
    %v3847 = vpop.f32.mrf.mxu0
    %v3848 = vadd.f32 %v3828, %v3847
    %3849 = vmatmul.f32.gmra.mxu0 %v3662
    %v3850 = vpop.f32.mrf.mxu0
    %v3851 = vadd.f32 %v3828, %v3850
    %3852 = vmatmul.f32.gmra.mxu0 %v3665
    %v3853 = vpop.f32.mrf.mxu0
    %v3854 = vadd.f32 %v3828, %v3853
    %3855 = vmatmul.f32.gmra.mxu0 %v3668
    %v3856 = vpop.f32.mrf.mxu0
    %v3857 = vadd.f32 %v3828, %v3856
    %3858 = vdwg.mxu0
    %v3863 = vrot.slane %v3848, 1
    %v3864 = vrot.slane %v3848, 2
    %v3865 = vrot.slane %v3848, 3
    %v3866 = vrot.slane %v3848, 4
    %v3867 = vrot.slane %v3848, 5
    %v3868 = vrot.slane %v3848, 6
    %v3869 = vrot.slane %v3848, 7
    %v3870 = vrot.slane %v3851, 1
    %v3871 = vrot.slane %v3851, 2
    %v3872 = vrot.slane %v3851, 3
    %v3873 = vrot.slane %v3851, 4
    %v3874 = vrot.slane %v3851, 5
    %v3875 = vrot.slane %v3851, 6
    %v3876 = vrot.slane %v3851, 7
    %v3877 = vrot.slane %v3854, 1
    %v3878 = vrot.slane %v3854, 2
    %v3879 = vrot.slane %v3854, 3
    %v3880 = vrot.slane %v3854, 4
    %v3881 = vrot.slane %v3854, 5
    %v3882 = vrot.slane %v3854, 6
    %v3883 = vrot.slane %v3854, 7
    %v3884 = vrot.slane %v3857, 1
    %v3908 = vperm.slane %v3652, 0
    %v3911 = vsel %vm3589, 0.0, 0
    %3913 = vmatpush.msra.mxu0 0.0
    %3914 = vmatpush.msra.mxu0 0.0
    %3915 = vmatpush.msra.mxu0 0.0
    %3916 = vmatpush.msra.mxu0 0.0
    %3917 = vmatpush.msra.mxu0 0.0
    %3918 = vmatpush.msra.mxu0 0.0
    %3919 = vmatpush.msra.mxu0 0.0
    %3920 = vmatpush.msra.mxu0 0.0
    %3921 = vmatpush.msra.mxu0 0.0
    %3922 = vmatpush.msra.mxu0 0.0
    %3923 = vmatpush.msra.mxu0 0.0
    %3924 = vmatpush.msra.mxu0 0.0
    %3925 = vmatpush.msra.mxu0 %v3643
    %3926 = vmatpush.msra.mxu0 %v3642
    %3927 = vmatpush.msra.mxu0 %v3641
    %3928 = vmatpush.msra.mxu0 %v3640
    %3929 = vmatmul.f32.gmra.mxu0 %v3911
    %v3930 = vpop.f32.mrf.mxu0
    %v3931 = vadd.f32 %v3908, %v3930
    %3932 = vdwg.mxu0
    %v3934 = vperm.slane %v3653, 0
    %3936 = vmatpush.msra.mxu0 0.0
    %3937 = vmatpush.msra.mxu0 0.0
    %3938 = vmatpush.msra.mxu0 0.0
    %3939 = vmatpush.msra.mxu0 0.0
    %3940 = vmatpush.msra.mxu0 0.0
    %3941 = vmatpush.msra.mxu0 0.0
    %3942 = vmatpush.msra.mxu0 0.0
    %3943 = vmatpush.msra.mxu0 0.0
    %3944 = vmatpush.msra.mxu0 0.0
    %3945 = vmatpush.msra.mxu0 0.0
    %3946 = vmatpush.msra.mxu0 0.0
    %3947 = vmatpush.msra.mxu0 0.0
    %3948 = vmatpush.msra.mxu0 %v3647
    %3949 = vmatpush.msra.mxu0 %v3646
    %3950 = vmatpush.msra.mxu0 %v3645
    %3951 = vmatpush.msra.mxu0 %v3644
    %3952 = vmatmul.f32.gmra.mxu0 %v3911
    %v3953 = vpop.f32.mrf.mxu0
    %v3954 = vadd.f32 %v3934, %v3953
    %3955 = vdwg.mxu0
    %v3957 = vperm.slane %v3654, 0
    %3959 = vmatpush.msra.mxu0 0.0
    %3960 = vmatpush.msra.mxu0 0.0
    %3961 = vmatpush.msra.mxu0 0.0
    %3962 = vmatpush.msra.mxu0 0.0
    %3963 = vmatpush.msra.mxu0 0.0
    %3964 = vmatpush.msra.mxu0 0.0
    %3965 = vmatpush.msra.mxu0 0.0
    %3966 = vmatpush.msra.mxu0 0.0
    %3967 = vmatpush.msra.mxu0 0.0
    %3968 = vmatpush.msra.mxu0 0.0
    %3969 = vmatpush.msra.mxu0 0.0
    %3970 = vmatpush.msra.mxu0 0.0
    %3971 = vmatpush.msra.mxu0 %v3651
    %3972 = vmatpush.msra.mxu0 %v3650
    %3973 = vmatpush.msra.mxu0 %v3649
    %3974 = vmatpush.msra.mxu0 %v3648
    %3975 = vmatmul.f32.gmra.mxu0 %v3911
    %v3976 = vpop.f32.mrf.mxu0
    %v3977 = vadd.f32 %v3957, %v3976
    %3978 = vdwg.mxu0
    %v3980 = vrot.slane %v3931, 1
    %v3982 = vadd.f32 %v3688, %v3931
    %v3983 = vadd.f32 %v3714, %v3980
    %v3984 = vxor.u32 %v3982, 2147483648
    %v3985 = vxor.u32 %v3983, 2147483648
    %v3986 = vmul.f32 %v3984, 1.442695
    %v3987 = vpow.pop %v3986
    %v3988 = vmul.f32 %v3985, 1.442695
    %v3989 = vpow.pop %v3988
    %v3990 = vadd.f32 %v3987, 1.0
    %v3991 = vadd.f32 %v3989, 1.0
    %v3992 = vrcp.pop %v3990
    %v3993 = vmul.f32 %v3990, %v3992
    %v3994 = vsub.f32 1.0, %v3993
    %v3995 = vmul.f32 %v3992, %v3994
    %v3996 = vadd.f32 %v3992, %v3995
    %vm3997 = vweird.f32 %v3990
    %vm3998 = vweird.f32 %v3992
    %vm3999 = vmor %vm3997, %vm3998
    %v4000 = vsel %vm3999, %v3992, %v3996
    %v4001 = vand.u32 2147483647, %v3990
    %vm4002 = vcmp.eq.f32.partialorder %v4001, 8.507059e+37
    %v4003 = vand.u32 %v3990, 2147483648
    %v4004 = vor.u32 1.1754944e-38, %v4003
    %v4005 = vsel %vm4002, %v4004, %v4000
    %v4006 = vmul.f32 1.0, %v4005
    %v4007 = vrcp.pop %v3991
    %v4008 = vmul.f32 %v3991, %v4007
    %v4009 = vsub.f32 1.0, %v4008
    %v4010 = vmul.f32 %v4007, %v4009
    %v4011 = vadd.f32 %v4007, %v4010
    %vm4012 = vweird.f32 %v3991
    %vm4013 = vweird.f32 %v4007
    %vm4014 = vmor %vm4012, %vm4013
    %v4015 = vsel %vm4014, %v4007, %v4011
    %v4016 = vand.u32 2147483647, %v3991
    %vm4017 = vcmp.eq.f32.partialorder %v4016, 8.507059e+37
    %v4018 = vand.u32 %v3991, 2147483648
    %v4019 = vor.u32 1.1754944e-38, %v4018
    %v4020 = vsel %vm4017, %v4019, %v4015
    %v4021 = vmul.f32 1.0, %v4020
    %v4023 = vrot.slane %v3954, 1
    %v4025 = vadd.f32 %v3768, %v3954
    %v4026 = vadd.f32 %v3794, %v4023
    %v4027 = vxor.u32 %v4025, 2147483648
    %v4028 = vxor.u32 %v4026, 2147483648
    %v4029 = vmul.f32 %v4027, 1.442695
    %v4030 = vpow.pop %v4029
    %v4031 = vmul.f32 %v4028, 1.442695
    %v4032 = vpow.pop %v4031
    %v4033 = vadd.f32 %v4030, 1.0
    %v4034 = vadd.f32 %v4032, 1.0
    %v4035 = vrcp.pop %v4033
    %v4036 = vmul.f32 %v4033, %v4035
    %v4037 = vsub.f32 1.0, %v4036
    %v4038 = vmul.f32 %v4035, %v4037
    %v4039 = vadd.f32 %v4035, %v4038
    %vm4040 = vweird.f32 %v4033
    %vm4041 = vweird.f32 %v4035
    %vm4042 = vmor %vm4040, %vm4041
    %v4043 = vsel %vm4042, %v4035, %v4039
    %v4044 = vand.u32 2147483647, %v4033
    %vm4045 = vcmp.eq.f32.partialorder %v4044, 8.507059e+37
    %v4046 = vand.u32 %v4033, 2147483648
    %v4047 = vor.u32 1.1754944e-38, %v4046
    %v4048 = vsel %vm4045, %v4047, %v4043
    %v4049 = vmul.f32 1.0, %v4048
    %v4050 = vrcp.pop %v4034
    %v4051 = vmul.f32 %v4034, %v4050
    %v4052 = vsub.f32 1.0, %v4051
    %v4053 = vmul.f32 %v4050, %v4052
    %v4054 = vadd.f32 %v4050, %v4053
    %vm4055 = vweird.f32 %v4034
    %vm4056 = vweird.f32 %v4050
    %vm4057 = vmor %vm4055, %vm4056
    %v4058 = vsel %vm4057, %v4050, %v4054
    %v4059 = vand.u32 2147483647, %v4034
    %vm4060 = vcmp.eq.f32.partialorder %v4059, 8.507059e+37
    %v4061 = vand.u32 %v4034, 2147483648
    %v4062 = vor.u32 1.1754944e-38, %v4061
    %v4063 = vsel %vm4060, %v4062, %v4058
    %v4064 = vmul.f32 1.0, %v4063
    %v4066 = vrot.slane %v3977, 1
    %v4068 = vmul.f32 %v4006, %v3977
    %v4069 = vmul.f32 %v4021, %v4066
    %v4070 = vadd.f32 %v3848, %v4068
    %v4071 = vadd.f32 %v3874, %v4069
    %v4072 = vtanh.pop %v4070
    %v4073 = vtanh.pop %v4071
    %v4074 = vsub.f32 1.0, %v4049
    %v4075 = vsub.f32 1.0, %v4064
    %v4076 = vmul.f32 %v4074, %v4072
    %v4077 = vmul.f32 %v4075, %v4073
    %v4078 = vmul.f32 %v4049, 0.0
    %v4079 = vmul.f32 %v4064, 0.0
    %v4080 = vadd.f32 %v4076, %v4078
    %v4081 = vadd.f32 %v4077, %v4079
    %4084 = vst [vmem:[#allocation1] ss:$9 sm:$0xff] %v4080
    %s4085 = scalar_lea.vmem [#allocation1], 1
    %4086 = vst [vmem:[%s4085] ss:$9 sm:$0xff] %v4081
    %v4087 = vld [vmem:[#allocation1] sm:$0xff]
    %v4088 = vsel %vm3589, %v4087, 0
    %4090 = vmatpush.msra.mxu0 0.0
    %4091 = vmatpush.msra.mxu0 0.0
    %4092 = vmatpush.msra.mxu0 0.0
    %4093 = vmatpush.msra.mxu0 0.0
    %4094 = vmatpush.msra.mxu0 0.0
    %4095 = vmatpush.msra.mxu0 0.0
    %4096 = vmatpush.msra.mxu0 0.0
    %4097 = vmatpush.msra.mxu0 0.0
    %4098 = vmatpush.msra.mxu0 0.0
    %4099 = vmatpush.msra.mxu0 0.0
    %4100 = vmatpush.msra.mxu0 0.0
    %4101 = vmatpush.msra.mxu0 0.0
    %4102 = vmatpush.msra.mxu0 %v3643
    %4103 = vmatpush.msra.mxu0 %v3642
    %4104 = vmatpush.msra.mxu0 %v3641
    %4105 = vmatpush.msra.mxu0 %v3640
    %4106 = vmatmul.f32.gmra.mxu0 %v4088
    %v4107 = vpop.f32.mrf.mxu0
    %v4108 = vadd.f32 %v3908, %v4107
    %4109 = vdwg.mxu0
    %4110 = vst [vmem:[#allocation1] ss:$9 sm:$0xff] %v4080
    %s4111 = scalar_lea.vmem [#allocation1], 1
    %4112 = vst [vmem:[%s4111] ss:$9 sm:$0xff] %v4081
    %v4113 = vld [vmem:[#allocation1] sm:$0xff]
    %v4114 = vsel %vm3589, %v4113, 0
    %4116 = vmatpush.msra.mxu0 0.0
    %4117 = vmatpush.msra.mxu0 0.0
    %4118 = vmatpush.msra.mxu0 0.0
    %4119 = vmatpush.msra.mxu0 0.0
    %4120 = vmatpush.msra.mxu0 0.0
    %4121 = vmatpush.msra.mxu0 0.0
    %4122 = vmatpush.msra.mxu0 0.0
    %4123 = vmatpush.msra.mxu0 0.0
    %4124 = vmatpush.msra.mxu0 0.0
    %4125 = vmatpush.msra.mxu0 0.0
    %4126 = vmatpush.msra.mxu0 0.0
    %4127 = vmatpush.msra.mxu0 0.0
    %4128 = vmatpush.msra.mxu0 %v3647
    %4129 = vmatpush.msra.mxu0 %v3646
    %4130 = vmatpush.msra.mxu0 %v3645
    %4131 = vmatpush.msra.mxu0 %v3644
    %4132 = vmatmul.f32.gmra.mxu0 %v4114
    %v4133 = vpop.f32.mrf.mxu0
    %v4134 = vadd.f32 %v3934, %v4133
    %4135 = vdwg.mxu0
    %4136 = vst [vmem:[#allocation1] ss:$9 sm:$0xff] %v4080
    %s4137 = scalar_lea.vmem [#allocation1], 1
    %4138 = vst [vmem:[%s4137] ss:$9 sm:$0xff] %v4081
    %v4139 = vld [vmem:[#allocation1] sm:$0xff]
    %v4140 = vsel %vm3589, %v4139, 0
    %4142 = vmatpush.msra.mxu0 0.0
    %4143 = vmatpush.msra.mxu0 0.0
    %4144 = vmatpush.msra.mxu0 0.0
    %4145 = vmatpush.msra.mxu0 0.0
    %4146 = vmatpush.msra.mxu0 0.0
    %4147 = vmatpush.msra.mxu0 0.0
    %4148 = vmatpush.msra.mxu0 0.0
    %4149 = vmatpush.msra.mxu0 0.0
    %4150 = vmatpush.msra.mxu0 0.0
    %4151 = vmatpush.msra.mxu0 0.0
    %4152 = vmatpush.msra.mxu0 0.0
    %4153 = vmatpush.msra.mxu0 0.0
    %4154 = vmatpush.msra.mxu0 %v3651
    %4155 = vmatpush.msra.mxu0 %v3650
    %4156 = vmatpush.msra.mxu0 %v3649
    %4157 = vmatpush.msra.mxu0 %v3648
    %4158 = vmatmul.f32.gmra.mxu0 %v4140
    %v4159 = vpop.f32.mrf.mxu0
    %v4160 = vadd.f32 %v3957, %v4159
    %4161 = vdwg.mxu0
    %v4163 = vrot.slane %v4108, 1
    %v4165 = vadd.f32 %v3703, %v4108
    %v4166 = vadd.f32 %v3715, %v4163
    %v4167 = vxor.u32 %v4165, 2147483648
    %v4168 = vxor.u32 %v4166, 2147483648
    %v4169 = vmul.f32 %v4167, 1.442695
    %v4170 = vpow.pop %v4169
    %v4171 = vmul.f32 %v4168, 1.442695
    %v4172 = vpow.pop %v4171
    %v4173 = vadd.f32 %v4170, 1.0
    %v4174 = vadd.f32 %v4172, 1.0
    %v4175 = vrcp.pop %v4173
    %v4176 = vmul.f32 %v4173, %v4175
    %v4177 = vsub.f32 1.0, %v4176
    %v4178 = vmul.f32 %v4175, %v4177
    %v4179 = vadd.f32 %v4175, %v4178
    %vm4180 = vweird.f32 %v4173
    %vm4181 = vweird.f32 %v4175
    %vm4182 = vmor %vm4180, %vm4181
    %v4183 = vsel %vm4182, %v4175, %v4179
    %v4184 = vand.u32 2147483647, %v4173
    %vm4185 = vcmp.eq.f32.partialorder %v4184, 8.507059e+37
    %v4186 = vand.u32 %v4173, 2147483648
    %v4187 = vor.u32 1.1754944e-38, %v4186
    %v4188 = vsel %vm4185, %v4187, %v4183
    %v4189 = vmul.f32 1.0, %v4188
    %v4190 = vrcp.pop %v4174
    %v4191 = vmul.f32 %v4174, %v4190
    %v4192 = vsub.f32 1.0, %v4191
    %v4193 = vmul.f32 %v4190, %v4192
    %v4194 = vadd.f32 %v4190, %v4193
    %vm4195 = vweird.f32 %v4174
    %vm4196 = vweird.f32 %v4190
    %vm4197 = vmor %vm4195, %vm4196
    %v4198 = vsel %vm4197, %v4190, %v4194
    %v4199 = vand.u32 2147483647, %v4174
    %vm4200 = vcmp.eq.f32.partialorder %v4199, 8.507059e+37
    %v4201 = vand.u32 %v4174, 2147483648
    %v4202 = vor.u32 1.1754944e-38, %v4201
    %v4203 = vsel %vm4200, %v4202, %v4198
    %v4204 = vmul.f32 1.0, %v4203
    %v4206 = vrot.slane %v4134, 1
    %v4208 = vadd.f32 %v3783, %v4134
    %v4209 = vadd.f32 %v3795, %v4206
    %v4210 = vxor.u32 %v4208, 2147483648
    %v4211 = vxor.u32 %v4209, 2147483648
    %v4212 = vmul.f32 %v4210, 1.442695
    %v4213 = vpow.pop %v4212
    %v4214 = vmul.f32 %v4211, 1.442695
    %v4215 = vpow.pop %v4214
    %v4216 = vadd.f32 %v4213, 1.0
    %v4217 = vadd.f32 %v4215, 1.0
    %v4218 = vrcp.pop %v4216
    %v4219 = vmul.f32 %v4216, %v4218
    %v4220 = vsub.f32 1.0, %v4219
    %v4221 = vmul.f32 %v4218, %v4220
    %v4222 = vadd.f32 %v4218, %v4221
    %vm4223 = vweird.f32 %v4216
    %vm4224 = vweird.f32 %v4218
    %vm4225 = vmor %vm4223, %vm4224
    %v4226 = vsel %vm4225, %v4218, %v4222
    %v4227 = vand.u32 2147483647, %v4216
    %vm4228 = vcmp.eq.f32.partialorder %v4227, 8.507059e+37
    %v4229 = vand.u32 %v4216, 2147483648
    %v4230 = vor.u32 1.1754944e-38, %v4229
    %v4231 = vsel %vm4228, %v4230, %v4226
    %v4232 = vmul.f32 1.0, %v4231
    %v4233 = vrcp.pop %v4217
    %v4234 = vmul.f32 %v4217, %v4233
    %v4235 = vsub.f32 1.0, %v4234
    %v4236 = vmul.f32 %v4233, %v4235
    %v4237 = vadd.f32 %v4233, %v4236
    %vm4238 = vweird.f32 %v4217
    %vm4239 = vweird.f32 %v4233
    %vm4240 = vmor %vm4238, %vm4239
    %v4241 = vsel %vm4240, %v4233, %v4237
    %v4242 = vand.u32 2147483647, %v4217
    %vm4243 = vcmp.eq.f32.partialorder %v4242, 8.507059e+37
    %v4244 = vand.u32 %v4217, 2147483648
    %v4245 = vor.u32 1.1754944e-38, %v4244
    %v4246 = vsel %vm4243, %v4245, %v4241
    %v4247 = vmul.f32 1.0, %v4246
    %v4249 = vrot.slane %v4160, 1
    %v4251 = vmul.f32 %v4189, %v4160
    %v4252 = vmul.f32 %v4204, %v4249
    %v4253 = vadd.f32 %v3863, %v4251
    %v4254 = vadd.f32 %v3875, %v4252
    %v4255 = vtanh.pop %v4253
    %v4256 = vtanh.pop %v4254
    %v4257 = vsub.f32 1.0, %v4232
    %v4258 = vsub.f32 1.0, %v4247
    %v4259 = vmul.f32 %v4257, %v4255
    %v4260 = vmul.f32 %v4258, %v4256
    %v4261 = vmul.f32 %v4232, %v4080
    %v4262 = vmul.f32 %v4247, %v4081
    %v4263 = vadd.f32 %v4259, %v4261
    %v4264 = vadd.f32 %v4260, %v4262
    %4267 = vst [vmem:[#allocation1] ss:$9 sm:$0xff] %v4263
    %s4268 = scalar_lea.vmem [#allocation1], 1
    %4269 = vst [vmem:[%s4268] ss:$9 sm:$0xff] %v4264
    %v4270 = vld [vmem:[#allocation1] sm:$0xff]
    %v4271 = vsel %vm3589, %v4270, 0
    %4273 = vmatpush.msra.mxu0 0.0
    %4274 = vmatpush.msra.mxu0 0.0
    %4275 = vmatpush.msra.mxu0 0.0
    %4276 = vmatpush.msra.mxu0 0.0
    %4277 = vmatpush.msra.mxu0 0.0
    %4278 = vmatpush.msra.mxu0 0.0
    %4279 = vmatpush.msra.mxu0 0.0
    %4280 = vmatpush.msra.mxu0 0.0
    %4281 = vmatpush.msra.mxu0 0.0
    %4282 = vmatpush.msra.mxu0 0.0
    %4283 = vmatpush.msra.mxu0 0.0
    %4284 = vmatpush.msra.mxu0 0.0
    %4285 = vmatpush.msra.mxu0 %v3643
    %4286 = vmatpush.msra.mxu0 %v3642
    %4287 = vmatpush.msra.mxu0 %v3641
    %4288 = vmatpush.msra.mxu0 %v3640
    %4289 = vmatmul.f32.gmra.mxu0 %v4271
    %v4290 = vpop.f32.mrf.mxu0
    %v4291 = vadd.f32 %v3908, %v4290
    %4292 = vdwg.mxu0
    %4293 = vst [vmem:[#allocation1] ss:$9 sm:$0xff] %v4263
    %s4294 = scalar_lea.vmem [#allocation1], 1
    %4295 = vst [vmem:[%s4294] ss:$9 sm:$0xff] %v4264
    %v4296 = vld [vmem:[#allocation1] sm:$0xff]
    %v4297 = vsel %vm3589, %v4296, 0
    %4299 = vmatpush.msra.mxu0 0.0
    %4300 = vmatpush.msra.mxu0 0.0
    %4301 = vmatpush.msra.mxu0 0.0
    %4302 = vmatpush.msra.mxu0 0.0
    %4303 = vmatpush.msra.mxu0 0.0
    %4304 = vmatpush.msra.mxu0 0.0
    %4305 = vmatpush.msra.mxu0 0.0
    %4306 = vmatpush.msra.mxu0 0.0
    %4307 = vmatpush.msra.mxu0 0.0
    %4308 = vmatpush.msra.mxu0 0.0
    %4309 = vmatpush.msra.mxu0 0.0
    %4310 = vmatpush.msra.mxu0 0.0
    %4311 = vmatpush.msra.mxu0 %v3647
    %4312 = vmatpush.msra.mxu0 %v3646
    %4313 = vmatpush.msra.mxu0 %v3645
    %4314 = vmatpush.msra.mxu0 %v3644
    %4315 = vmatmul.f32.gmra.mxu0 %v4297
    %v4316 = vpop.f32.mrf.mxu0
    %v4317 = vadd.f32 %v3934, %v4316
    %4318 = vdwg.mxu0
    %4319 = vst [vmem:[#allocation1] ss:$9 sm:$0xff] %v4263
    %s4320 = scalar_lea.vmem [#allocation1], 1
    %4321 = vst [vmem:[%s4320] ss:$9 sm:$0xff] %v4264
    %v4322 = vld [vmem:[#allocation1] sm:$0xff]
    %v4323 = vsel %vm3589, %v4322, 0
    %4325 = vmatpush.msra.mxu0 0.0
    %4326 = vmatpush.msra.mxu0 0.0
    %4327 = vmatpush.msra.mxu0 0.0
    %4328 = vmatpush.msra.mxu0 0.0
    %4329 = vmatpush.msra.mxu0 0.0
    %4330 = vmatpush.msra.mxu0 0.0
    %4331 = vmatpush.msra.mxu0 0.0
    %4332 = vmatpush.msra.mxu0 0.0
    %4333 = vmatpush.msra.mxu0 0.0
    %4334 = vmatpush.msra.mxu0 0.0
    %4335 = vmatpush.msra.mxu0 0.0
    %4336 = vmatpush.msra.mxu0 0.0
    %4337 = vmatpush.msra.mxu0 %v3651
    %4338 = vmatpush.msra.mxu0 %v3650
    %4339 = vmatpush.msra.mxu0 %v3649
    %4340 = vmatpush.msra.mxu0 %v3648
    %4341 = vmatmul.f32.gmra.mxu0 %v4323
    %v4342 = vpop.f32.mrf.mxu0
    %v4343 = vadd.f32 %v3957, %v4342
    %4344 = vdwg.mxu0
    %v4346 = vrot.slane %v4291, 1
    %v4348 = vadd.f32 %v3704, %v4291
    %v4349 = vadd.f32 %v3716, %v4346
    %v4350 = vxor.u32 %v4348, 2147483648
    %v4351 = vxor.u32 %v4349, 2147483648
    %v4352 = vmul.f32 %v4350, 1.442695
    %v4353 = vpow.pop %v4352
    %v4354 = vmul.f32 %v4351, 1.442695
    %v4355 = vpow.pop %v4354
    %v4356 = vadd.f32 %v4353, 1.0
    %v4357 = vadd.f32 %v4355, 1.0
    %v4358 = vrcp.pop %v4356
    %v4359 = vmul.f32 %v4356, %v4358
    %v4360 = vsub.f32 1.0, %v4359
    %v4361 = vmul.f32 %v4358, %v4360
    %v4362 = vadd.f32 %v4358, %v4361
    %vm4363 = vweird.f32 %v4356
    %vm4364 = vweird.f32 %v4358
    %vm4365 = vmor %vm4363, %vm4364
    %v4366 = vsel %vm4365, %v4358, %v4362
    %v4367 = vand.u32 2147483647, %v4356
    %vm4368 = vcmp.eq.f32.partialorder %v4367, 8.507059e+37
    %v4369 = vand.u32 %v4356, 2147483648
    %v4370 = vor.u32 1.1754944e-38, %v4369
    %v4371 = vsel %vm4368, %v4370, %v4366
    %v4372 = vmul.f32 1.0, %v4371
    %v4373 = vrcp.pop %v4357
    %v4374 = vmul.f32 %v4357, %v4373
    %v4375 = vsub.f32 1.0, %v4374
    %v4376 = vmul.f32 %v4373, %v4375
    %v4377 = vadd.f32 %v4373, %v4376
    %vm4378 = vweird.f32 %v4357
    %vm4379 = vweird.f32 %v4373
    %vm4380 = vmor %vm4378, %vm4379
    %v4381 = vsel %vm4380, %v4373, %v4377
    %v4382 = vand.u32 2147483647, %v4357
    %vm4383 = vcmp.eq.f32.partialorder %v4382, 8.507059e+37
    %v4384 = vand.u32 %v4357, 2147483648
    %v4385 = vor.u32 1.1754944e-38, %v4384
    %v4386 = vsel %vm4383, %v4385, %v4381
    %v4387 = vmul.f32 1.0, %v4386
    %v4389 = vrot.slane %v4317, 1
    %v4391 = vadd.f32 %v3784, %v4317
    %v4392 = vadd.f32 %v3796, %v4389
    %v4393 = vxor.u32 %v4391, 2147483648
    %v4394 = vxor.u32 %v4392, 2147483648
    %v4395 = vmul.f32 %v4393, 1.442695
    %v4396 = vpow.pop %v4395
    %v4397 = vmul.f32 %v4394, 1.442695
    %v4398 = vpow.pop %v4397
    %v4399 = vadd.f32 %v4396, 1.0
    %v4400 = vadd.f32 %v4398, 1.0
    %v4401 = vrcp.pop %v4399
    %v4402 = vmul.f32 %v4399, %v4401
    %v4403 = vsub.f32 1.0, %v4402
    %v4404 = vmul.f32 %v4401, %v4403
    %v4405 = vadd.f32 %v4401, %v4404
    %vm4406 = vweird.f32 %v4399
    %vm4407 = vweird.f32 %v4401
    %vm4408 = vmor %vm4406, %vm4407
    %v4409 = vsel %vm4408, %v4401, %v4405
    %v4410 = vand.u32 2147483647, %v4399
    %vm4411 = vcmp.eq.f32.partialorder %v4410, 8.507059e+37
    %v4412 = vand.u32 %v4399, 2147483648
    %v4413 = vor.u32 1.1754944e-38, %v4412
    %v4414 = vsel %vm4411, %v4413, %v4409
    %v4415 = vmul.f32 1.0, %v4414
    %v4416 = vrcp.pop %v4400
    %v4417 = vmul.f32 %v4400, %v4416
    %v4418 = vsub.f32 1.0, %v4417
    %v4419 = vmul.f32 %v4416, %v4418
    %v4420 = vadd.f32 %v4416, %v4419
    %vm4421 = vweird.f32 %v4400
    %vm4422 = vweird.f32 %v4416
    %vm4423 = vmor %vm4421, %vm4422
    %v4424 = vsel %vm4423, %v4416, %v4420
    %v4425 = vand.u32 2147483647, %v4400
    %vm4426 = vcmp.eq.f32.partialorder %v4425, 8.507059e+37
    %v4427 = vand.u32 %v4400, 2147483648
    %v4428 = vor.u32 1.1754944e-38, %v4427
    %v4429 = vsel %vm4426, %v4428, %v4424
    %v4430 = vmul.f32 1.0, %v4429
    %v4432 = vrot.slane %v4343, 1
    %v4434 = vmul.f32 %v4372, %v4343
    %v4435 = vmul.f32 %v4387, %v4432
    %v4436 = vadd.f32 %v3864, %v4434
    %v4437 = vadd.f32 %v3876, %v4435
    %v4438 = vtanh.pop %v4436
    %v4439 = vtanh.pop %v4437
    %v4440 = vsub.f32 1.0, %v4415
    %v4441 = vsub.f32 1.0, %v4430
    %v4442 = vmul.f32 %v4440, %v4438
    %v4443 = vmul.f32 %v4441, %v4439
    %v4444 = vmul.f32 %v4415, %v4263
    %v4445 = vmul.f32 %v4430, %v4264
    %v4446 = vadd.f32 %v4442, %v4444
    %v4447 = vadd.f32 %v4443, %v4445
    %4450 = vst [vmem:[#allocation1] ss:$9 sm:$0xff] %v4446
    %s4451 = scalar_lea.vmem [#allocation1], 1
    %4452 = vst [vmem:[%s4451] ss:$9 sm:$0xff] %v4447
    %v4453 = vld [vmem:[#allocation1] sm:$0xff]
    %v4454 = vsel %vm3589, %v4453, 0
    %4456 = vmatpush.msra.mxu0 0.0
    %4457 = vmatpush.msra.mxu0 0.0
    %4458 = vmatpush.msra.mxu0 0.0
    %4459 = vmatpush.msra.mxu0 0.0
    %4460 = vmatpush.msra.mxu0 0.0
    %4461 = vmatpush.msra.mxu0 0.0
    %4462 = vmatpush.msra.mxu0 0.0
    %4463 = vmatpush.msra.mxu0 0.0
    %4464 = vmatpush.msra.mxu0 0.0
    %4465 = vmatpush.msra.mxu0 0.0
    %4466 = vmatpush.msra.mxu0 0.0
    %4467 = vmatpush.msra.mxu0 0.0
    %4468 = vmatpush.msra.mxu0 %v3643
    %4469 = vmatpush.msra.mxu0 %v3642
    %4470 = vmatpush.msra.mxu0 %v3641
    %4471 = vmatpush.msra.mxu0 %v3640
    %4472 = vmatmul.f32.gmra.mxu0 %v4454
    %v4473 = vpop.f32.mrf.mxu0
    %v4474 = vadd.f32 %v3908, %v4473
    %4475 = vdwg.mxu0
    %4476 = vst [vmem:[#allocation1] ss:$9 sm:$0xff] %v4446
    %s4477 = scalar_lea.vmem [#allocation1], 1
    %4478 = vst [vmem:[%s4477] ss:$9 sm:$0xff] %v4447
    %v4479 = vld [vmem:[#allocation1] sm:$0xff]
    %v4480 = vsel %vm3589, %v4479, 0
    %4482 = vmatpush.msra.mxu0 0.0
    %4483 = vmatpush.msra.mxu0 0.0
    %4484 = vmatpush.msra.mxu0 0.0
    %4485 = vmatpush.msra.mxu0 0.0
    %4486 = vmatpush.msra.mxu0 0.0
    %4487 = vmatpush.msra.mxu0 0.0
    %4488 = vmatpush.msra.mxu0 0.0
    %4489 = vmatpush.msra.mxu0 0.0
    %4490 = vmatpush.msra.mxu0 0.0
    %4491 = vmatpush.msra.mxu0 0.0
    %4492 = vmatpush.msra.mxu0 0.0
    %4493 = vmatpush.msra.mxu0 0.0
    %4494 = vmatpush.msra.mxu0 %v3647
    %4495 = vmatpush.msra.mxu0 %v3646
    %4496 = vmatpush.msra.mxu0 %v3645
    %4497 = vmatpush.msra.mxu0 %v3644
    %4498 = vmatmul.f32.gmra.mxu0 %v4480
    %v4499 = vpop.f32.mrf.mxu0
    %v4500 = vadd.f32 %v3934, %v4499
    %4501 = vdwg.mxu0
    %4502 = vst [vmem:[#allocation1] ss:$9 sm:$0xff] %v4446
    %s4503 = scalar_lea.vmem [#allocation1], 1
    %4504 = vst [vmem:[%s4503] ss:$9 sm:$0xff] %v4447
    %v4505 = vld [vmem:[#allocation1] sm:$0xff]
    %v4506 = vsel %vm3589, %v4505, 0
    %4508 = vmatpush.msra.mxu0 0.0
    %4509 = vmatpush.msra.mxu0 0.0
    %4510 = vmatpush.msra.mxu0 0.0
    %4511 = vmatpush.msra.mxu0 0.0
    %4512 = vmatpush.msra.mxu0 0.0
    %4513 = vmatpush.msra.mxu0 0.0
    %4514 = vmatpush.msra.mxu0 0.0
    %4515 = vmatpush.msra.mxu0 0.0
    %4516 = vmatpush.msra.mxu0 0.0
    %4517 = vmatpush.msra.mxu0 0.0
    %4518 = vmatpush.msra.mxu0 0.0
    %4519 = vmatpush.msra.mxu0 0.0
    %4520 = vmatpush.msra.mxu0 %v3651
    %4521 = vmatpush.msra.mxu0 %v3650
    %4522 = vmatpush.msra.mxu0 %v3649
    %4523 = vmatpush.msra.mxu0 %v3648
    %4524 = vmatmul.f32.gmra.mxu0 %v4506
    %v4525 = vpop.f32.mrf.mxu0
    %v4526 = vadd.f32 %v3957, %v4525
    %4527 = vdwg.mxu0
    %v4529 = vrot.slane %v4474, 1
    %v4531 = vadd.f32 %v3705, %v4474
    %v4532 = vadd.f32 %v3694, %v4529
    %v4533 = vxor.u32 %v4531, 2147483648
    %v4534 = vxor.u32 %v4532, 2147483648
    %v4535 = vmul.f32 %v4533, 1.442695
    %v4536 = vpow.pop %v4535
    %v4537 = vmul.f32 %v4534, 1.442695
    %v4538 = vpow.pop %v4537
    %v4539 = vadd.f32 %v4536, 1.0
    %v4540 = vadd.f32 %v4538, 1.0
    %v4541 = vrcp.pop %v4539
    %v4542 = vmul.f32 %v4539, %v4541
    %v4543 = vsub.f32 1.0, %v4542
    %v4544 = vmul.f32 %v4541, %v4543
    %v4545 = vadd.f32 %v4541, %v4544
    %vm4546 = vweird.f32 %v4539
    %vm4547 = vweird.f32 %v4541
    %vm4548 = vmor %vm4546, %vm4547
    %v4549 = vsel %vm4548, %v4541, %v4545
    %v4550 = vand.u32 2147483647, %v4539
    %vm4551 = vcmp.eq.f32.partialorder %v4550, 8.507059e+37
    %v4552 = vand.u32 %v4539, 2147483648
    %v4553 = vor.u32 1.1754944e-38, %v4552
    %v4554 = vsel %vm4551, %v4553, %v4549
    %v4555 = vmul.f32 1.0, %v4554
    %v4556 = vrcp.pop %v4540
    %v4557 = vmul.f32 %v4540, %v4556
    %v4558 = vsub.f32 1.0, %v4557
    %v4559 = vmul.f32 %v4556, %v4558
    %v4560 = vadd.f32 %v4556, %v4559
    %vm4561 = vweird.f32 %v4540
    %vm4562 = vweird.f32 %v4556
    %vm4563 = vmor %vm4561, %vm4562
    %v4564 = vsel %vm4563, %v4556, %v4560
    %v4565 = vand.u32 2147483647, %v4540
    %vm4566 = vcmp.eq.f32.partialorder %v4565, 8.507059e+37
    %v4567 = vand.u32 %v4540, 2147483648
    %v4568 = vor.u32 1.1754944e-38, %v4567
    %v4569 = vsel %vm4566, %v4568, %v4564
    %v4570 = vmul.f32 1.0, %v4569
    %v4572 = vrot.slane %v4500, 1
    %v4574 = vadd.f32 %v3785, %v4500
    %v4575 = vadd.f32 %v3774, %v4572
    %v4576 = vxor.u32 %v4574, 2147483648
    %v4577 = vxor.u32 %v4575, 2147483648
    %v4578 = vmul.f32 %v4576, 1.442695
    %v4579 = vpow.pop %v4578
    %v4580 = vmul.f32 %v4577, 1.442695
    %v4581 = vpow.pop %v4580
    %v4582 = vadd.f32 %v4579, 1.0
    %v4583 = vadd.f32 %v4581, 1.0
    %v4584 = vrcp.pop %v4582
    %v4585 = vmul.f32 %v4582, %v4584
    %v4586 = vsub.f32 1.0, %v4585
    %v4587 = vmul.f32 %v4584, %v4586
    %v4588 = vadd.f32 %v4584, %v4587
    %vm4589 = vweird.f32 %v4582
    %vm4590 = vweird.f32 %v4584
    %vm4591 = vmor %vm4589, %vm4590
    %v4592 = vsel %vm4591, %v4584, %v4588
    %v4593 = vand.u32 2147483647, %v4582
    %vm4594 = vcmp.eq.f32.partialorder %v4593, 8.507059e+37
    %v4595 = vand.u32 %v4582, 2147483648
    %v4596 = vor.u32 1.1754944e-38, %v4595
    %v4597 = vsel %vm4594, %v4596, %v4592
    %v4598 = vmul.f32 1.0, %v4597
    %v4599 = vrcp.pop %v4583
    %v4600 = vmul.f32 %v4583, %v4599
    %v4601 = vsub.f32 1.0, %v4600
    %v4602 = vmul.f32 %v4599, %v4601
    %v4603 = vadd.f32 %v4599, %v4602
    %vm4604 = vweird.f32 %v4583
    %vm4605 = vweird.f32 %v4599
    %vm4606 = vmor %vm4604, %vm4605
    %v4607 = vsel %vm4606, %v4599, %v4603
    %v4608 = vand.u32 2147483647, %v4583
    %vm4609 = vcmp.eq.f32.partialorder %v4608, 8.507059e+37
    %v4610 = vand.u32 %v4583, 2147483648
    %v4611 = vor.u32 1.1754944e-38, %v4610
    %v4612 = vsel %vm4609, %v4611, %v4607
    %v4613 = vmul.f32 1.0, %v4612
    %v4615 = vrot.slane %v4526, 1
    %v4617 = vmul.f32 %v4555, %v4526
    %v4618 = vmul.f32 %v4570, %v4615
    %v4619 = vadd.f32 %v3865, %v4617
    %v4620 = vadd.f32 %v3854, %v4618
    %v4621 = vtanh.pop %v4619
    %v4622 = vtanh.pop %v4620
    %v4623 = vsub.f32 1.0, %v4598
    %v4624 = vsub.f32 1.0, %v4613
    %v4625 = vmul.f32 %v4623, %v4621
    %v4626 = vmul.f32 %v4624, %v4622
    %v4627 = vmul.f32 %v4598, %v4446
    %v4628 = vmul.f32 %v4613, %v4447
    %v4629 = vadd.f32 %v4625, %v4627
    %v4630 = vadd.f32 %v4626, %v4628
    %4633 = vst [vmem:[#allocation1] ss:$9 sm:$0xff] %v4629
    %s4634 = scalar_lea.vmem [#allocation1], 1
    %4635 = vst [vmem:[%s4634] ss:$9 sm:$0xff] %v4630
    %v4636 = vld [vmem:[#allocation1] sm:$0xff]
    %v4637 = vsel %vm3589, %v4636, 0
    %4639 = vmatpush.msra.mxu0 0.0
    %4640 = vmatpush.msra.mxu0 0.0
    %4641 = vmatpush.msra.mxu0 0.0
    %4642 = vmatpush.msra.mxu0 0.0
    %4643 = vmatpush.msra.mxu0 0.0
    %4644 = vmatpush.msra.mxu0 0.0
    %4645 = vmatpush.msra.mxu0 0.0
    %4646 = vmatpush.msra.mxu0 0.0
    %4647 = vmatpush.msra.mxu0 0.0
    %4648 = vmatpush.msra.mxu0 0.0
    %4649 = vmatpush.msra.mxu0 0.0
    %4650 = vmatpush.msra.mxu0 0.0
    %4651 = vmatpush.msra.mxu0 %v3643
    %4652 = vmatpush.msra.mxu0 %v3642
    %4653 = vmatpush.msra.mxu0 %v3641
    %4654 = vmatpush.msra.mxu0 %v3640
    %4655 = vmatmul.f32.gmra.mxu0 %v4637
    %v4656 = vpop.f32.mrf.mxu0
    %v4657 = vadd.f32 %v3908, %v4656
    %4658 = vdwg.mxu0
    %4659 = vst [vmem:[#allocation1] ss:$9 sm:$0xff] %v4629
    %s4660 = scalar_lea.vmem [#allocation1], 1
    %4661 = vst [vmem:[%s4660] ss:$9 sm:$0xff] %v4630
    %v4662 = vld [vmem:[#allocation1] sm:$0xff]
    %v4663 = vsel %vm3589, %v4662, 0
    %4665 = vmatpush.msra.mxu0 0.0
    %4666 = vmatpush.msra.mxu0 0.0
    %4667 = vmatpush.msra.mxu0 0.0
    %4668 = vmatpush.msra.mxu0 0.0
    %4669 = vmatpush.msra.mxu0 0.0
    %4670 = vmatpush.msra.mxu0 0.0
    %4671 = vmatpush.msra.mxu0 0.0
    %4672 = vmatpush.msra.mxu0 0.0
    %4673 = vmatpush.msra.mxu0 0.0
    %4674 = vmatpush.msra.mxu0 0.0
    %4675 = vmatpush.msra.mxu0 0.0
    %4676 = vmatpush.msra.mxu0 0.0
    %4677 = vmatpush.msra.mxu0 %v3647
    %4678 = vmatpush.msra.mxu0 %v3646
    %4679 = vmatpush.msra.mxu0 %v3645
    %4680 = vmatpush.msra.mxu0 %v3644
    %4681 = vmatmul.f32.gmra.mxu0 %v4663
    %v4682 = vpop.f32.mrf.mxu0
    %v4683 = vadd.f32 %v3934, %v4682
    %4684 = vdwg.mxu0
    %4685 = vst [vmem:[#allocation1] ss:$9 sm:$0xff] %v4629
    %s4686 = scalar_lea.vmem [#allocation1], 1
    %4687 = vst [vmem:[%s4686] ss:$9 sm:$0xff] %v4630
    %v4688 = vld [vmem:[#allocation1] sm:$0xff]
    %v4689 = vsel %vm3589, %v4688, 0
    %4691 = vmatpush.msra.mxu0 0.0
    %4692 = vmatpush.msra.mxu0 0.0
    %4693 = vmatpush.msra.mxu0 0.0
    %4694 = vmatpush.msra.mxu0 0.0
    %4695 = vmatpush.msra.mxu0 0.0
    %4696 = vmatpush.msra.mxu0 0.0
    %4697 = vmatpush.msra.mxu0 0.0
    %4698 = vmatpush.msra.mxu0 0.0
    %4699 = vmatpush.msra.mxu0 0.0
    %4700 = vmatpush.msra.mxu0 0.0
    %4701 = vmatpush.msra.mxu0 0.0
    %4702 = vmatpush.msra.mxu0 0.0
    %4703 = vmatpush.msra.mxu0 %v3651
    %4704 = vmatpush.msra.mxu0 %v3650
    %4705 = vmatpush.msra.mxu0 %v3649
    %4706 = vmatpush.msra.mxu0 %v3648
    %4707 = vmatmul.f32.gmra.mxu0 %v4689
    %v4708 = vpop.f32.mrf.mxu0
    %v4709 = vadd.f32 %v3957, %v4708
    %4710 = vdwg.mxu0
    %v4712 = vrot.slane %v4657, 1
    %v4714 = vadd.f32 %v3706, %v4657
    %v4715 = vadd.f32 %v3717, %v4712
    %v4716 = vxor.u32 %v4714, 2147483648
    %v4717 = vxor.u32 %v4715, 2147483648
    %v4718 = vmul.f32 %v4716, 1.442695
    %v4719 = vpow.pop %v4718
    %v4720 = vmul.f32 %v4717, 1.442695
    %v4721 = vpow.pop %v4720
    %v4722 = vadd.f32 %v4719, 1.0
    %v4723 = vadd.f32 %v4721, 1.0
    %v4724 = vrcp.pop %v4722
    %v4725 = vmul.f32 %v4722, %v4724
    %v4726 = vsub.f32 1.0, %v4725
    %v4727 = vmul.f32 %v4724, %v4726
    %v4728 = vadd.f32 %v4724, %v4727
    %vm4729 = vweird.f32 %v4722
    %vm4730 = vweird.f32 %v4724
    %vm4731 = vmor %vm4729, %vm4730
    %v4732 = vsel %vm4731, %v4724, %v4728
    %v4733 = vand.u32 2147483647, %v4722
    %vm4734 = vcmp.eq.f32.partialorder %v4733, 8.507059e+37
    %v4735 = vand.u32 %v4722, 2147483648
    %v4736 = vor.u32 1.1754944e-38, %v4735
    %v4737 = vsel %vm4734, %v4736, %v4732
    %v4738 = vmul.f32 1.0, %v4737
    %v4739 = vrcp.pop %v4723
    %v4740 = vmul.f32 %v4723, %v4739
    %v4741 = vsub.f32 1.0, %v4740
    %v4742 = vmul.f32 %v4739, %v4741
    %v4743 = vadd.f32 %v4739, %v4742
    %vm4744 = vweird.f32 %v4723
    %vm4745 = vweird.f32 %v4739
    %vm4746 = vmor %vm4744, %vm4745
    %v4747 = vsel %vm4746, %v4739, %v4743
    %v4748 = vand.u32 2147483647, %v4723
    %vm4749 = vcmp.eq.f32.partialorder %v4748, 8.507059e+37
    %v4750 = vand.u32 %v4723, 2147483648
    %v4751 = vor.u32 1.1754944e-38, %v4750
    %v4752 = vsel %vm4749, %v4751, %v4747
    %v4753 = vmul.f32 1.0, %v4752
    %v4755 = vrot.slane %v4683, 1
    %v4757 = vadd.f32 %v3786, %v4683
    %v4758 = vadd.f32 %v3797, %v4755
    %v4759 = vxor.u32 %v4757, 2147483648
    %v4760 = vxor.u32 %v4758, 2147483648
    %v4761 = vmul.f32 %v4759, 1.442695
    %v4762 = vpow.pop %v4761
    %v4763 = vmul.f32 %v4760, 1.442695
    %v4764 = vpow.pop %v4763
    %v4765 = vadd.f32 %v4762, 1.0
    %v4766 = vadd.f32 %v4764, 1.0
    %v4767 = vrcp.pop %v4765
    %v4768 = vmul.f32 %v4765, %v4767
    %v4769 = vsub.f32 1.0, %v4768
    %v4770 = vmul.f32 %v4767, %v4769
    %v4771 = vadd.f32 %v4767, %v4770
    %vm4772 = vweird.f32 %v4765
    %vm4773 = vweird.f32 %v4767
    %vm4774 = vmor %vm4772, %vm4773
    %v4775 = vsel %vm4774, %v4767, %v4771
    %v4776 = vand.u32 2147483647, %v4765
    %vm4777 = vcmp.eq.f32.partialorder %v4776, 8.507059e+37
    %v4778 = vand.u32 %v4765, 2147483648
    %v4779 = vor.u32 1.1754944e-38, %v4778
    %v4780 = vsel %vm4777, %v4779, %v4775
    %v4781 = vmul.f32 1.0, %v4780
    %v4782 = vrcp.pop %v4766
    %v4783 = vmul.f32 %v4766, %v4782
    %v4784 = vsub.f32 1.0, %v4783
    %v4785 = vmul.f32 %v4782, %v4784
    %v4786 = vadd.f32 %v4782, %v4785
    %vm4787 = vweird.f32 %v4766
    %vm4788 = vweird.f32 %v4782
    %vm4789 = vmor %vm4787, %vm4788
    %v4790 = vsel %vm4789, %v4782, %v4786
    %v4791 = vand.u32 2147483647, %v4766
    %vm4792 = vcmp.eq.f32.partialorder %v4791, 8.507059e+37
    %v4793 = vand.u32 %v4766, 2147483648
    %v4794 = vor.u32 1.1754944e-38, %v4793
    %v4795 = vsel %vm4792, %v4794, %v4790
    %v4796 = vmul.f32 1.0, %v4795
    %v4798 = vrot.slane %v4709, 1
    %v4800 = vmul.f32 %v4738, %v4709
    %v4801 = vmul.f32 %v4753, %v4798
    %v4802 = vadd.f32 %v3866, %v4800
    %v4803 = vadd.f32 %v3877, %v4801
    %v4804 = vtanh.pop %v4802
    %v4805 = vtanh.pop %v4803
    %v4806 = vsub.f32 1.0, %v4781
    %v4807 = vsub.f32 1.0, %v4796
    %v4808 = vmul.f32 %v4806, %v4804
    %v4809 = vmul.f32 %v4807, %v4805
    %v4810 = vmul.f32 %v4781, %v4629
    %v4811 = vmul.f32 %v4796, %v4630
    %v4812 = vadd.f32 %v4808, %v4810
    %v4813 = vadd.f32 %v4809, %v4811
    %4816 = vst [vmem:[#allocation1] ss:$9 sm:$0xff] %v4812
    %s4817 = scalar_lea.vmem [#allocation1], 1
    %4818 = vst [vmem:[%s4817] ss:$9 sm:$0xff] %v4813
    %v4819 = vld [vmem:[#allocation1] sm:$0xff]
    %v4820 = vsel %vm3589, %v4819, 0
    %4822 = vmatpush.msra.mxu0 0.0
    %4823 = vmatpush.msra.mxu0 0.0
    %4824 = vmatpush.msra.mxu0 0.0
    %4825 = vmatpush.msra.mxu0 0.0
    %4826 = vmatpush.msra.mxu0 0.0
    %4827 = vmatpush.msra.mxu0 0.0
    %4828 = vmatpush.msra.mxu0 0.0
    %4829 = vmatpush.msra.mxu0 0.0
    %4830 = vmatpush.msra.mxu0 0.0
    %4831 = vmatpush.msra.mxu0 0.0
    %4832 = vmatpush.msra.mxu0 0.0
    %4833 = vmatpush.msra.mxu0 0.0
    %4834 = vmatpush.msra.mxu0 %v3643
    %4835 = vmatpush.msra.mxu0 %v3642
    %4836 = vmatpush.msra.mxu0 %v3641
    %4837 = vmatpush.msra.mxu0 %v3640
    %4838 = vmatmul.f32.gmra.mxu0 %v4820
    %v4839 = vpop.f32.mrf.mxu0
    %v4840 = vadd.f32 %v3908, %v4839
    %4841 = vdwg.mxu0
    %4842 = vst [vmem:[#allocation1] ss:$9 sm:$0xff] %v4812
    %s4843 = scalar_lea.vmem [#allocation1], 1
    %4844 = vst [vmem:[%s4843] ss:$9 sm:$0xff] %v4813
    %v4845 = vld [vmem:[#allocation1] sm:$0xff]
    %v4846 = vsel %vm3589, %v4845, 0
    %4848 = vmatpush.msra.mxu0 0.0
    %4849 = vmatpush.msra.mxu0 0.0
    %4850 = vmatpush.msra.mxu0 0.0
    %4851 = vmatpush.msra.mxu0 0.0
    %4852 = vmatpush.msra.mxu0 0.0
    %4853 = vmatpush.msra.mxu0 0.0
    %4854 = vmatpush.msra.mxu0 0.0
    %4855 = vmatpush.msra.mxu0 0.0
    %4856 = vmatpush.msra.mxu0 0.0
    %4857 = vmatpush.msra.mxu0 0.0
    %4858 = vmatpush.msra.mxu0 0.0
    %4859 = vmatpush.msra.mxu0 0.0
    %4860 = vmatpush.msra.mxu0 %v3647
    %4861 = vmatpush.msra.mxu0 %v3646
    %4862 = vmatpush.msra.mxu0 %v3645
    %4863 = vmatpush.msra.mxu0 %v3644
    %4864 = vmatmul.f32.gmra.mxu0 %v4846
    %v4865 = vpop.f32.mrf.mxu0
    %v4866 = vadd.f32 %v3934, %v4865
    %4867 = vdwg.mxu0
    %4868 = vst [vmem:[#allocation1] ss:$9 sm:$0xff] %v4812
    %s4869 = scalar_lea.vmem [#allocation1], 1
    %4870 = vst [vmem:[%s4869] ss:$9 sm:$0xff] %v4813
    %v4871 = vld [vmem:[#allocation1] sm:$0xff]
    %v4872 = vsel %vm3589, %v4871, 0
    %4874 = vmatpush.msra.mxu0 0.0
    %4875 = vmatpush.msra.mxu0 0.0
    %4876 = vmatpush.msra.mxu0 0.0
    %4877 = vmatpush.msra.mxu0 0.0
    %4878 = vmatpush.msra.mxu0 0.0
    %4879 = vmatpush.msra.mxu0 0.0
    %4880 = vmatpush.msra.mxu0 0.0
    %4881 = vmatpush.msra.mxu0 0.0
    %4882 = vmatpush.msra.mxu0 0.0
    %4883 = vmatpush.msra.mxu0 0.0
    %4884 = vmatpush.msra.mxu0 0.0
    %4885 = vmatpush.msra.mxu0 0.0
    %4886 = vmatpush.msra.mxu0 %v3651
    %4887 = vmatpush.msra.mxu0 %v3650
    %4888 = vmatpush.msra.mxu0 %v3649
    %4889 = vmatpush.msra.mxu0 %v3648
    %4890 = vmatmul.f32.gmra.mxu0 %v4872
    %v4891 = vpop.f32.mrf.mxu0
    %v4892 = vadd.f32 %v3957, %v4891
    %4893 = vdwg.mxu0
    %v4895 = vrot.slane %v4840, 1
    %v4897 = vadd.f32 %v3707, %v4840
    %v4898 = vadd.f32 %v3718, %v4895
    %v4899 = vxor.u32 %v4897, 2147483648
    %v4900 = vxor.u32 %v4898, 2147483648
    %v4901 = vmul.f32 %v4899, 1.442695
    %v4902 = vpow.pop %v4901
    %v4903 = vmul.f32 %v4900, 1.442695
    %v4904 = vpow.pop %v4903
    %v4905 = vadd.f32 %v4902, 1.0
    %v4906 = vadd.f32 %v4904, 1.0
    %v4907 = vrcp.pop %v4905
    %v4908 = vmul.f32 %v4905, %v4907
    %v4909 = vsub.f32 1.0, %v4908
    %v4910 = vmul.f32 %v4907, %v4909
    %v4911 = vadd.f32 %v4907, %v4910
    %vm4912 = vweird.f32 %v4905
    %vm4913 = vweird.f32 %v4907
    %vm4914 = vmor %vm4912, %vm4913
    %v4915 = vsel %vm4914, %v4907, %v4911
    %v4916 = vand.u32 2147483647, %v4905
    %vm4917 = vcmp.eq.f32.partialorder %v4916, 8.507059e+37
    %v4918 = vand.u32 %v4905, 2147483648
    %v4919 = vor.u32 1.1754944e-38, %v4918
    %v4920 = vsel %vm4917, %v4919, %v4915
    %v4921 = vmul.f32 1.0, %v4920
    %v4922 = vrcp.pop %v4906
    %v4923 = vmul.f32 %v4906, %v4922
    %v4924 = vsub.f32 1.0, %v4923
    %v4925 = vmul.f32 %v4922, %v4924
    %v4926 = vadd.f32 %v4922, %v4925
    %vm4927 = vweird.f32 %v4906
    %vm4928 = vweird.f32 %v4922
    %vm4929 = vmor %vm4927, %vm4928
    %v4930 = vsel %vm4929, %v4922, %v4926
    %v4931 = vand.u32 2147483647, %v4906
    %vm4932 = vcmp.eq.f32.partialorder %v4931, 8.507059e+37
    %v4933 = vand.u32 %v4906, 2147483648
    %v4934 = vor.u32 1.1754944e-38, %v4933
    %v4935 = vsel %vm4932, %v4934, %v4930
    %v4936 = vmul.f32 1.0, %v4935
    %v4938 = vrot.slane %v4866, 1
    %v4940 = vadd.f32 %v3787, %v4866
    %v4941 = vadd.f32 %v3798, %v4938
    %v4942 = vxor.u32 %v4940, 2147483648
    %v4943 = vxor.u32 %v4941, 2147483648
    %v4944 = vmul.f32 %v4942, 1.442695
    %v4945 = vpow.pop %v4944
    %v4946 = vmul.f32 %v4943, 1.442695
    %v4947 = vpow.pop %v4946
    %v4948 = vadd.f32 %v4945, 1.0
    %v4949 = vadd.f32 %v4947, 1.0
    %v4950 = vrcp.pop %v4948
    %v4951 = vmul.f32 %v4948, %v4950
    %v4952 = vsub.f32 1.0, %v4951
    %v4953 = vmul.f32 %v4950, %v4952
    %v4954 = vadd.f32 %v4950, %v4953
    %vm4955 = vweird.f32 %v4948
    %vm4956 = vweird.f32 %v4950
    %vm4957 = vmor %vm4955, %vm4956
    %v4958 = vsel %vm4957, %v4950, %v4954
    %v4959 = vand.u32 2147483647, %v4948
    %vm4960 = vcmp.eq.f32.partialorder %v4959, 8.507059e+37
    %v4961 = vand.u32 %v4948, 2147483648
    %v4962 = vor.u32 1.1754944e-38, %v4961
    %v4963 = vsel %vm4960, %v4962, %v4958
    %v4964 = vmul.f32 1.0, %v4963
    %v4965 = vrcp.pop %v4949
    %v4966 = vmul.f32 %v4949, %v4965
    %v4967 = vsub.f32 1.0, %v4966
    %v4968 = vmul.f32 %v4965, %v4967
    %v4969 = vadd.f32 %v4965, %v4968
    %vm4970 = vweird.f32 %v4949
    %vm4971 = vweird.f32 %v4965
    %vm4972 = vmor %vm4970, %vm4971
    %v4973 = vsel %vm4972, %v4965, %v4969
    %v4974 = vand.u32 2147483647, %v4949
    %vm4975 = vcmp.eq.f32.partialorder %v4974, 8.507059e+37
    %v4976 = vand.u32 %v4949, 2147483648
    %v4977 = vor.u32 1.1754944e-38, %v4976
    %v4978 = vsel %vm4975, %v4977, %v4973
    %v4979 = vmul.f32 1.0, %v4978
    %v4981 = vrot.slane %v4892, 1
    %v4983 = vmul.f32 %v4921, %v4892
    %v4984 = vmul.f32 %v4936, %v4981
    %v4985 = vadd.f32 %v3867, %v4983
    %v4986 = vadd.f32 %v3878, %v4984
    %v4987 = vtanh.pop %v4985
    %v4988 = vtanh.pop %v4986
    %v4989 = vsub.f32 1.0, %v4964
    %v4990 = vsub.f32 1.0, %v4979
    %v4991 = vmul.f32 %v4989, %v4987
    %v4992 = vmul.f32 %v4990, %v4988
    %v4993 = vmul.f32 %v4964, %v4812
    %v4994 = vmul.f32 %v4979, %v4813
    %v4995 = vadd.f32 %v4991, %v4993
    %v4996 = vadd.f32 %v4992, %v4994
    %4999 = vst [vmem:[#allocation1] ss:$9 sm:$0xff] %v4995
    %s5000 = scalar_lea.vmem [#allocation1], 1
    %5001 = vst [vmem:[%s5000] ss:$9 sm:$0xff] %v4996
    %v5002 = vld [vmem:[#allocation1] sm:$0xff]
    %v5003 = vsel %vm3589, %v5002, 0
    %5005 = vmatpush.msra.mxu0 0.0
    %5006 = vmatpush.msra.mxu0 0.0
    %5007 = vmatpush.msra.mxu0 0.0
    %5008 = vmatpush.msra.mxu0 0.0
    %5009 = vmatpush.msra.mxu0 0.0
    %5010 = vmatpush.msra.mxu0 0.0
    %5011 = vmatpush.msra.mxu0 0.0
    %5012 = vmatpush.msra.mxu0 0.0
    %5013 = vmatpush.msra.mxu0 0.0
    %5014 = vmatpush.msra.mxu0 0.0
    %5015 = vmatpush.msra.mxu0 0.0
    %5016 = vmatpush.msra.mxu0 0.0
    %5017 = vmatpush.msra.mxu0 %v3643
    %5018 = vmatpush.msra.mxu0 %v3642
    %5019 = vmatpush.msra.mxu0 %v3641
    %5020 = vmatpush.msra.mxu0 %v3640
    %5021 = vmatmul.f32.gmra.mxu0 %v5003
    %v5022 = vpop.f32.mrf.mxu0
    %v5023 = vadd.f32 %v3908, %v5022
    %5024 = vdwg.mxu0
    %5025 = vst [vmem:[#allocation1] ss:$9 sm:$0xff] %v4995
    %s5026 = scalar_lea.vmem [#allocation1], 1
    %5027 = vst [vmem:[%s5026] ss:$9 sm:$0xff] %v4996
    %v5028 = vld [vmem:[#allocation1] sm:$0xff]
    %v5029 = vsel %vm3589, %v5028, 0
    %5031 = vmatpush.msra.mxu0 0.0
    %5032 = vmatpush.msra.mxu0 0.0
    %5033 = vmatpush.msra.mxu0 0.0
    %5034 = vmatpush.msra.mxu0 0.0
    %5035 = vmatpush.msra.mxu0 0.0
    %5036 = vmatpush.msra.mxu0 0.0
    %5037 = vmatpush.msra.mxu0 0.0
    %5038 = vmatpush.msra.mxu0 0.0
    %5039 = vmatpush.msra.mxu0 0.0
    %5040 = vmatpush.msra.mxu0 0.0
    %5041 = vmatpush.msra.mxu0 0.0
    %5042 = vmatpush.msra.mxu0 0.0
    %5043 = vmatpush.msra.mxu0 %v3647
    %5044 = vmatpush.msra.mxu0 %v3646
    %5045 = vmatpush.msra.mxu0 %v3645
    %5046 = vmatpush.msra.mxu0 %v3644
    %5047 = vmatmul.f32.gmra.mxu0 %v5029
    %v5048 = vpop.f32.mrf.mxu0
    %v5049 = vadd.f32 %v3934, %v5048
    %5050 = vdwg.mxu0
    %5051 = vst [vmem:[#allocation1] ss:$9 sm:$0xff] %v4995
    %s5052 = scalar_lea.vmem [#allocation1], 1
    %5053 = vst [vmem:[%s5052] ss:$9 sm:$0xff] %v4996
    %v5054 = vld [vmem:[#allocation1] sm:$0xff]
    %v5055 = vsel %vm3589, %v5054, 0
    %5057 = vmatpush.msra.mxu0 0.0
    %5058 = vmatpush.msra.mxu0 0.0
    %5059 = vmatpush.msra.mxu0 0.0
    %5060 = vmatpush.msra.mxu0 0.0
    %5061 = vmatpush.msra.mxu0 0.0
    %5062 = vmatpush.msra.mxu0 0.0
    %5063 = vmatpush.msra.mxu0 0.0
    %5064 = vmatpush.msra.mxu0 0.0
    %5065 = vmatpush.msra.mxu0 0.0
    %5066 = vmatpush.msra.mxu0 0.0
    %5067 = vmatpush.msra.mxu0 0.0
    %5068 = vmatpush.msra.mxu0 0.0
    %5069 = vmatpush.msra.mxu0 %v3651
    %5070 = vmatpush.msra.mxu0 %v3650
    %5071 = vmatpush.msra.mxu0 %v3649
    %5072 = vmatpush.msra.mxu0 %v3648
    %5073 = vmatmul.f32.gmra.mxu0 %v5055
    %v5074 = vpop.f32.mrf.mxu0
    %v5075 = vadd.f32 %v3957, %v5074
    %5076 = vdwg.mxu0
    %v5078 = vrot.slane %v5023, 1
    %v5080 = vadd.f32 %v3708, %v5023
    %v5081 = vadd.f32 %v3719, %v5078
    %v5082 = vxor.u32 %v5080, 2147483648
    %v5083 = vxor.u32 %v5081, 2147483648
    %v5084 = vmul.f32 %v5082, 1.442695
    %v5085 = vpow.pop %v5084
    %v5086 = vmul.f32 %v5083, 1.442695
    %v5087 = vpow.pop %v5086
    %v5088 = vadd.f32 %v5085, 1.0
    %v5089 = vadd.f32 %v5087, 1.0
    %v5090 = vrcp.pop %v5088
    %v5091 = vmul.f32 %v5088, %v5090
    %v5092 = vsub.f32 1.0, %v5091
    %v5093 = vmul.f32 %v5090, %v5092
    %v5094 = vadd.f32 %v5090, %v5093
    %vm5095 = vweird.f32 %v5088
    %vm5096 = vweird.f32 %v5090
    %vm5097 = vmor %vm5095, %vm5096
    %v5098 = vsel %vm5097, %v5090, %v5094
    %v5099 = vand.u32 2147483647, %v5088
    %vm5100 = vcmp.eq.f32.partialorder %v5099, 8.507059e+37
    %v5101 = vand.u32 %v5088, 2147483648
    %v5102 = vor.u32 1.1754944e-38, %v5101
    %v5103 = vsel %vm5100, %v5102, %v5098
    %v5104 = vmul.f32 1.0, %v5103
    %v5105 = vrcp.pop %v5089
    %v5106 = vmul.f32 %v5089, %v5105
    %v5107 = vsub.f32 1.0, %v5106
    %v5108 = vmul.f32 %v5105, %v5107
    %v5109 = vadd.f32 %v5105, %v5108
    %vm5110 = vweird.f32 %v5089
    %vm5111 = vweird.f32 %v5105
    %vm5112 = vmor %vm5110, %vm5111
    %v5113 = vsel %vm5112, %v5105, %v5109
    %v5114 = vand.u32 2147483647, %v5089
    %vm5115 = vcmp.eq.f32.partialorder %v5114, 8.507059e+37
    %v5116 = vand.u32 %v5089, 2147483648
    %v5117 = vor.u32 1.1754944e-38, %v5116
    %v5118 = vsel %vm5115, %v5117, %v5113
    %v5119 = vmul.f32 1.0, %v5118
    %v5121 = vrot.slane %v5049, 1
    %v5123 = vadd.f32 %v3788, %v5049
    %v5124 = vadd.f32 %v3799, %v5121
    %v5125 = vxor.u32 %v5123, 2147483648
    %v5126 = vxor.u32 %v5124, 2147483648
    %v5127 = vmul.f32 %v5125, 1.442695
    %v5128 = vpow.pop %v5127
    %v5129 = vmul.f32 %v5126, 1.442695
    %v5130 = vpow.pop %v5129
    %v5131 = vadd.f32 %v5128, 1.0
    %v5132 = vadd.f32 %v5130, 1.0
    %v5133 = vrcp.pop %v5131
    %v5134 = vmul.f32 %v5131, %v5133
    %v5135 = vsub.f32 1.0, %v5134
    %v5136 = vmul.f32 %v5133, %v5135
    %v5137 = vadd.f32 %v5133, %v5136
    %vm5138 = vweird.f32 %v5131
    %vm5139 = vweird.f32 %v5133
    %vm5140 = vmor %vm5138, %vm5139
    %v5141 = vsel %vm5140, %v5133, %v5137
    %v5142 = vand.u32 2147483647, %v5131
    %vm5143 = vcmp.eq.f32.partialorder %v5142, 8.507059e+37
    %v5144 = vand.u32 %v5131, 2147483648
    %v5145 = vor.u32 1.1754944e-38, %v5144
    %v5146 = vsel %vm5143, %v5145, %v5141
    %v5147 = vmul.f32 1.0, %v5146
    %v5148 = vrcp.pop %v5132
    %v5149 = vmul.f32 %v5132, %v5148
    %v5150 = vsub.f32 1.0, %v5149
    %v5151 = vmul.f32 %v5148, %v5150
    %v5152 = vadd.f32 %v5148, %v5151
    %vm5153 = vweird.f32 %v5132
    %vm5154 = vweird.f32 %v5148
    %vm5155 = vmor %vm5153, %vm5154
    %v5156 = vsel %vm5155, %v5148, %v5152
    %v5157 = vand.u32 2147483647, %v5132
    %vm5158 = vcmp.eq.f32.partialorder %v5157, 8.507059e+37
    %v5159 = vand.u32 %v5132, 2147483648
    %v5160 = vor.u32 1.1754944e-38, %v5159
    %v5161 = vsel %vm5158, %v5160, %v5156
    %v5162 = vmul.f32 1.0, %v5161
    %v5164 = vrot.slane %v5075, 1
    %v5166 = vmul.f32 %v5104, %v5075
    %v5167 = vmul.f32 %v5119, %v5164
    %v5168 = vadd.f32 %v3868, %v5166
    %v5169 = vadd.f32 %v3879, %v5167
    %v5170 = vtanh.pop %v5168
    %v5171 = vtanh.pop %v5169
    %v5172 = vsub.f32 1.0, %v5147
    %v5173 = vsub.f32 1.0, %v5162
    %v5174 = vmul.f32 %v5172, %v5170
    %v5175 = vmul.f32 %v5173, %v5171
    %v5176 = vmul.f32 %v5147, %v4995
    %v5177 = vmul.f32 %v5162, %v4996
    %v5178 = vadd.f32 %v5174, %v5176
    %v5179 = vadd.f32 %v5175, %v5177
    %5182 = vst [vmem:[#allocation1] ss:$9 sm:$0xff] %v5178
    %s5183 = scalar_lea.vmem [#allocation1], 1
    %5184 = vst [vmem:[%s5183] ss:$9 sm:$0xff] %v5179
    %v5185 = vld [vmem:[#allocation1] sm:$0xff]
    %v5186 = vsel %vm3589, %v5185, 0
    %5188 = vmatpush.msra.mxu0 0.0
    %5189 = vmatpush.msra.mxu0 0.0
    %5190 = vmatpush.msra.mxu0 0.0
    %5191 = vmatpush.msra.mxu0 0.0
    %5192 = vmatpush.msra.mxu0 0.0
    %5193 = vmatpush.msra.mxu0 0.0
    %5194 = vmatpush.msra.mxu0 0.0
    %5195 = vmatpush.msra.mxu0 0.0
    %5196 = vmatpush.msra.mxu0 0.0
    %5197 = vmatpush.msra.mxu0 0.0
    %5198 = vmatpush.msra.mxu0 0.0
    %5199 = vmatpush.msra.mxu0 0.0
    %5200 = vmatpush.msra.mxu0 %v3643
    %5201 = vmatpush.msra.mxu0 %v3642
    %5202 = vmatpush.msra.mxu0 %v3641
    %5203 = vmatpush.msra.mxu0 %v3640
    %5204 = vmatmul.f32.gmra.mxu0 %v5186
    %v5205 = vpop.f32.mrf.mxu0
    %v5206 = vadd.f32 %v3908, %v5205
    %5207 = vdwg.mxu0
    %5208 = vst [vmem:[#allocation1] ss:$9 sm:$0xff] %v5178
    %s5209 = scalar_lea.vmem [#allocation1], 1
    %5210 = vst [vmem:[%s5209] ss:$9 sm:$0xff] %v5179
    %v5211 = vld [vmem:[#allocation1] sm:$0xff]
    %v5212 = vsel %vm3589, %v5211, 0
    %5214 = vmatpush.msra.mxu0 0.0
    %5215 = vmatpush.msra.mxu0 0.0
    %5216 = vmatpush.msra.mxu0 0.0
    %5217 = vmatpush.msra.mxu0 0.0
    %5218 = vmatpush.msra.mxu0 0.0
    %5219 = vmatpush.msra.mxu0 0.0
    %5220 = vmatpush.msra.mxu0 0.0
    %5221 = vmatpush.msra.mxu0 0.0
    %5222 = vmatpush.msra.mxu0 0.0
    %5223 = vmatpush.msra.mxu0 0.0
    %5224 = vmatpush.msra.mxu0 0.0
    %5225 = vmatpush.msra.mxu0 0.0
    %5226 = vmatpush.msra.mxu0 %v3647
    %5227 = vmatpush.msra.mxu0 %v3646
    %5228 = vmatpush.msra.mxu0 %v3645
    %5229 = vmatpush.msra.mxu0 %v3644
    %5230 = vmatmul.f32.gmra.mxu0 %v5212
    %v5231 = vpop.f32.mrf.mxu0
    %v5232 = vadd.f32 %v3934, %v5231
    %5233 = vdwg.mxu0
    %5234 = vst [vmem:[#allocation1] ss:$9 sm:$0xff] %v5178
    %s5235 = scalar_lea.vmem [#allocation1], 1
    %5236 = vst [vmem:[%s5235] ss:$9 sm:$0xff] %v5179
    %v5237 = vld [vmem:[#allocation1] sm:$0xff]
    %v5238 = vsel %vm3589, %v5237, 0
    %5240 = vmatpush.msra.mxu0 0.0
    %5241 = vmatpush.msra.mxu0 0.0
    %5242 = vmatpush.msra.mxu0 0.0
    %5243 = vmatpush.msra.mxu0 0.0
    %5244 = vmatpush.msra.mxu0 0.0
    %5245 = vmatpush.msra.mxu0 0.0
    %5246 = vmatpush.msra.mxu0 0.0
    %5247 = vmatpush.msra.mxu0 0.0
    %5248 = vmatpush.msra.mxu0 0.0
    %5249 = vmatpush.msra.mxu0 0.0
    %5250 = vmatpush.msra.mxu0 0.0
    %5251 = vmatpush.msra.mxu0 0.0
    %5252 = vmatpush.msra.mxu0 %v3651
    %5253 = vmatpush.msra.mxu0 %v3650
    %5254 = vmatpush.msra.mxu0 %v3649
    %5255 = vmatpush.msra.mxu0 %v3648
    %5256 = vmatmul.f32.gmra.mxu0 %v5238
    %v5257 = vpop.f32.mrf.mxu0
    %v5258 = vadd.f32 %v3957, %v5257
    %5259 = vdwg.mxu0
    %v5261 = vrot.slane %v5206, 1
    %v5263 = vadd.f32 %v3709, %v5206
    %v5264 = vadd.f32 %v3720, %v5261
    %v5265 = vxor.u32 %v5263, 2147483648
    %v5266 = vxor.u32 %v5264, 2147483648
    %v5267 = vmul.f32 %v5265, 1.442695
    %v5268 = vpow.pop %v5267
    %v5269 = vmul.f32 %v5266, 1.442695
    %v5270 = vpow.pop %v5269
    %v5271 = vadd.f32 %v5268, 1.0
    %v5272 = vadd.f32 %v5270, 1.0
    %v5273 = vrcp.pop %v5271
    %v5274 = vmul.f32 %v5271, %v5273
    %v5275 = vsub.f32 1.0, %v5274
    %v5276 = vmul.f32 %v5273, %v5275
    %v5277 = vadd.f32 %v5273, %v5276
    %vm5278 = vweird.f32 %v5271
    %vm5279 = vweird.f32 %v5273
    %vm5280 = vmor %vm5278, %vm5279
    %v5281 = vsel %vm5280, %v5273, %v5277
    %v5282 = vand.u32 2147483647, %v5271
    %vm5283 = vcmp.eq.f32.partialorder %v5282, 8.507059e+37
    %v5284 = vand.u32 %v5271, 2147483648
    %v5285 = vor.u32 1.1754944e-38, %v5284
    %v5286 = vsel %vm5283, %v5285, %v5281
    %v5287 = vmul.f32 1.0, %v5286
    %v5288 = vrcp.pop %v5272
    %v5289 = vmul.f32 %v5272, %v5288
    %v5290 = vsub.f32 1.0, %v5289
    %v5291 = vmul.f32 %v5288, %v5290
    %v5292 = vadd.f32 %v5288, %v5291
    %vm5293 = vweird.f32 %v5272
    %vm5294 = vweird.f32 %v5288
    %vm5295 = vmor %vm5293, %vm5294
    %v5296 = vsel %vm5295, %v5288, %v5292
    %v5297 = vand.u32 2147483647, %v5272
    %vm5298 = vcmp.eq.f32.partialorder %v5297, 8.507059e+37
    %v5299 = vand.u32 %v5272, 2147483648
    %v5300 = vor.u32 1.1754944e-38, %v5299
    %v5301 = vsel %vm5298, %v5300, %v5296
    %v5302 = vmul.f32 1.0, %v5301
    %v5304 = vrot.slane %v5232, 1
    %v5306 = vadd.f32 %v3789, %v5232
    %v5307 = vadd.f32 %v3800, %v5304
    %v5308 = vxor.u32 %v5306, 2147483648
    %v5309 = vxor.u32 %v5307, 2147483648
    %v5310 = vmul.f32 %v5308, 1.442695
    %v5311 = vpow.pop %v5310
    %v5312 = vmul.f32 %v5309, 1.442695
    %v5313 = vpow.pop %v5312
    %v5314 = vadd.f32 %v5311, 1.0
    %v5315 = vadd.f32 %v5313, 1.0
    %v5316 = vrcp.pop %v5314
    %v5317 = vmul.f32 %v5314, %v5316
    %v5318 = vsub.f32 1.0, %v5317
    %v5319 = vmul.f32 %v5316, %v5318
    %v5320 = vadd.f32 %v5316, %v5319
    %vm5321 = vweird.f32 %v5314
    %vm5322 = vweird.f32 %v5316
    %vm5323 = vmor %vm5321, %vm5322
    %v5324 = vsel %vm5323, %v5316, %v5320
    %v5325 = vand.u32 2147483647, %v5314
    %vm5326 = vcmp.eq.f32.partialorder %v5325, 8.507059e+37
    %v5327 = vand.u32 %v5314, 2147483648
    %v5328 = vor.u32 1.1754944e-38, %v5327
    %v5329 = vsel %vm5326, %v5328, %v5324
    %v5330 = vmul.f32 1.0, %v5329
    %v5331 = vrcp.pop %v5315
    %v5332 = vmul.f32 %v5315, %v5331
    %v5333 = vsub.f32 1.0, %v5332
    %v5334 = vmul.f32 %v5331, %v5333
    %v5335 = vadd.f32 %v5331, %v5334
    %vm5336 = vweird.f32 %v5315
    %vm5337 = vweird.f32 %v5331
    %vm5338 = vmor %vm5336, %vm5337
    %v5339 = vsel %vm5338, %v5331, %v5335
    %v5340 = vand.u32 2147483647, %v5315
    %vm5341 = vcmp.eq.f32.partialorder %v5340, 8.507059e+37
    %v5342 = vand.u32 %v5315, 2147483648
    %v5343 = vor.u32 1.1754944e-38, %v5342
    %v5344 = vsel %vm5341, %v5343, %v5339
    %v5345 = vmul.f32 1.0, %v5344
    %v5347 = vrot.slane %v5258, 1
    %v5349 = vmul.f32 %v5287, %v5258
    %v5350 = vmul.f32 %v5302, %v5347
    %v5351 = vadd.f32 %v3869, %v5349
    %v5352 = vadd.f32 %v3880, %v5350
    %v5353 = vtanh.pop %v5351
    %v5354 = vtanh.pop %v5352
    %v5355 = vsub.f32 1.0, %v5330
    %v5356 = vsub.f32 1.0, %v5345
    %v5357 = vmul.f32 %v5355, %v5353
    %v5358 = vmul.f32 %v5356, %v5354
    %v5359 = vmul.f32 %v5330, %v5178
    %v5360 = vmul.f32 %v5345, %v5179
    %v5361 = vadd.f32 %v5357, %v5359
    %v5362 = vadd.f32 %v5358, %v5360
    %5365 = vst [vmem:[#allocation1] ss:$9 sm:$0xff] %v5361
    %s5366 = scalar_lea.vmem [#allocation1], 1
    %5367 = vst [vmem:[%s5366] ss:$9 sm:$0xff] %v5362
    %v5368 = vld [vmem:[#allocation1] sm:$0xff]
    %v5369 = vsel %vm3589, %v5368, 0
    %5371 = vmatpush.msra.mxu0 0.0
    %5372 = vmatpush.msra.mxu0 0.0
    %5373 = vmatpush.msra.mxu0 0.0
    %5374 = vmatpush.msra.mxu0 0.0
    %5375 = vmatpush.msra.mxu0 0.0
    %5376 = vmatpush.msra.mxu0 0.0
    %5377 = vmatpush.msra.mxu0 0.0
    %5378 = vmatpush.msra.mxu0 0.0
    %5379 = vmatpush.msra.mxu0 0.0
    %5380 = vmatpush.msra.mxu0 0.0
    %5381 = vmatpush.msra.mxu0 0.0
    %5382 = vmatpush.msra.mxu0 0.0
    %5383 = vmatpush.msra.mxu0 %v3643
    %5384 = vmatpush.msra.mxu0 %v3642
    %5385 = vmatpush.msra.mxu0 %v3641
    %5386 = vmatpush.msra.mxu0 %v3640
    %5387 = vmatmul.f32.gmra.mxu0 %v5369
    %v5388 = vpop.f32.mrf.mxu0
    %v5389 = vadd.f32 %v3908, %v5388
    %5390 = vdwg.mxu0
    %5391 = vst [vmem:[#allocation1] ss:$9 sm:$0xff] %v5361
    %s5392 = scalar_lea.vmem [#allocation1], 1
    %5393 = vst [vmem:[%s5392] ss:$9 sm:$0xff] %v5362
    %v5394 = vld [vmem:[#allocation1] sm:$0xff]
    %v5395 = vsel %vm3589, %v5394, 0
    %5397 = vmatpush.msra.mxu0 0.0
    %5398 = vmatpush.msra.mxu0 0.0
    %5399 = vmatpush.msra.mxu0 0.0
    %5400 = vmatpush.msra.mxu0 0.0
    %5401 = vmatpush.msra.mxu0 0.0
    %5402 = vmatpush.msra.mxu0 0.0
    %5403 = vmatpush.msra.mxu0 0.0
    %5404 = vmatpush.msra.mxu0 0.0
    %5405 = vmatpush.msra.mxu0 0.0
    %5406 = vmatpush.msra.mxu0 0.0
    %5407 = vmatpush.msra.mxu0 0.0
    %5408 = vmatpush.msra.mxu0 0.0
    %5409 = vmatpush.msra.mxu0 %v3647
    %5410 = vmatpush.msra.mxu0 %v3646
    %5411 = vmatpush.msra.mxu0 %v3645
    %5412 = vmatpush.msra.mxu0 %v3644
    %5413 = vmatmul.f32.gmra.mxu0 %v5395
    %v5414 = vpop.f32.mrf.mxu0
    %v5415 = vadd.f32 %v3934, %v5414
    %5416 = vdwg.mxu0
    %5417 = vst [vmem:[#allocation1] ss:$9 sm:$0xff] %v5361
    %s5418 = scalar_lea.vmem [#allocation1], 1
    %5419 = vst [vmem:[%s5418] ss:$9 sm:$0xff] %v5362
    %v5420 = vld [vmem:[#allocation1] sm:$0xff]
    %v5421 = vsel %vm3589, %v5420, 0
    %5423 = vmatpush.msra.mxu0 0.0
    %5424 = vmatpush.msra.mxu0 0.0
    %5425 = vmatpush.msra.mxu0 0.0
    %5426 = vmatpush.msra.mxu0 0.0
    %5427 = vmatpush.msra.mxu0 0.0
    %5428 = vmatpush.msra.mxu0 0.0
    %5429 = vmatpush.msra.mxu0 0.0
    %5430 = vmatpush.msra.mxu0 0.0
    %5431 = vmatpush.msra.mxu0 0.0
    %5432 = vmatpush.msra.mxu0 0.0
    %5433 = vmatpush.msra.mxu0 0.0
    %5434 = vmatpush.msra.mxu0 0.0
    %5435 = vmatpush.msra.mxu0 %v3651
    %5436 = vmatpush.msra.mxu0 %v3650
    %5437 = vmatpush.msra.mxu0 %v3649
    %5438 = vmatpush.msra.mxu0 %v3648
    %5439 = vmatmul.f32.gmra.mxu0 %v5421
    %v5440 = vpop.f32.mrf.mxu0
    %v5441 = vadd.f32 %v3957, %v5440
    %5442 = vdwg.mxu0
    %v5444 = vrot.slane %v5389, 1
    %v5446 = vadd.f32 %v3691, %v5389
    %v5447 = vadd.f32 %v3721, %v5444
    %v5448 = vxor.u32 %v5446, 2147483648
    %v5449 = vxor.u32 %v5447, 2147483648
    %v5450 = vmul.f32 %v5448, 1.442695
    %v5451 = vpow.pop %v5450
    %v5452 = vmul.f32 %v5449, 1.442695
    %v5453 = vpow.pop %v5452
    %v5454 = vadd.f32 %v5451, 1.0
    %v5455 = vadd.f32 %v5453, 1.0
    %v5456 = vrcp.pop %v5454
    %v5457 = vmul.f32 %v5454, %v5456
    %v5458 = vsub.f32 1.0, %v5457
    %v5459 = vmul.f32 %v5456, %v5458
    %v5460 = vadd.f32 %v5456, %v5459
    %vm5461 = vweird.f32 %v5454
    %vm5462 = vweird.f32 %v5456
    %vm5463 = vmor %vm5461, %vm5462
    %v5464 = vsel %vm5463, %v5456, %v5460
    %v5465 = vand.u32 2147483647, %v5454
    %vm5466 = vcmp.eq.f32.partialorder %v5465, 8.507059e+37
    %v5467 = vand.u32 %v5454, 2147483648
    %v5468 = vor.u32 1.1754944e-38, %v5467
    %v5469 = vsel %vm5466, %v5468, %v5464
    %v5470 = vmul.f32 1.0, %v5469
    %v5471 = vrcp.pop %v5455
    %v5472 = vmul.f32 %v5455, %v5471
    %v5473 = vsub.f32 1.0, %v5472
    %v5474 = vmul.f32 %v5471, %v5473
    %v5475 = vadd.f32 %v5471, %v5474
    %vm5476 = vweird.f32 %v5455
    %vm5477 = vweird.f32 %v5471
    %vm5478 = vmor %vm5476, %vm5477
    %v5479 = vsel %vm5478, %v5471, %v5475
    %v5480 = vand.u32 2147483647, %v5455
    %vm5481 = vcmp.eq.f32.partialorder %v5480, 8.507059e+37
    %v5482 = vand.u32 %v5455, 2147483648
    %v5483 = vor.u32 1.1754944e-38, %v5482
    %v5484 = vsel %vm5481, %v5483, %v5479
    %v5485 = vmul.f32 1.0, %v5484
    %v5487 = vrot.slane %v5415, 1
    %v5489 = vadd.f32 %v3771, %v5415
    %v5490 = vadd.f32 %v3801, %v5487
    %v5491 = vxor.u32 %v5489, 2147483648
    %v5492 = vxor.u32 %v5490, 2147483648
    %v5493 = vmul.f32 %v5491, 1.442695
    %v5494 = vpow.pop %v5493
    %v5495 = vmul.f32 %v5492, 1.442695
    %v5496 = vpow.pop %v5495
    %v5497 = vadd.f32 %v5494, 1.0
    %v5498 = vadd.f32 %v5496, 1.0
    %v5499 = vrcp.pop %v5497
    %v5500 = vmul.f32 %v5497, %v5499
    %v5501 = vsub.f32 1.0, %v5500
    %v5502 = vmul.f32 %v5499, %v5501
    %v5503 = vadd.f32 %v5499, %v5502
    %vm5504 = vweird.f32 %v5497
    %vm5505 = vweird.f32 %v5499
    %vm5506 = vmor %vm5504, %vm5505
    %v5507 = vsel %vm5506, %v5499, %v5503
    %v5508 = vand.u32 2147483647, %v5497
    %vm5509 = vcmp.eq.f32.partialorder %v5508, 8.507059e+37
    %v5510 = vand.u32 %v5497, 2147483648
    %v5511 = vor.u32 1.1754944e-38, %v5510
    %v5512 = vsel %vm5509, %v5511, %v5507
    %v5513 = vmul.f32 1.0, %v5512
    %v5514 = vrcp.pop %v5498
    %v5515 = vmul.f32 %v5498, %v5514
    %v5516 = vsub.f32 1.0, %v5515
    %v5517 = vmul.f32 %v5514, %v5516
    %v5518 = vadd.f32 %v5514, %v5517
    %vm5519 = vweird.f32 %v5498
    %vm5520 = vweird.f32 %v5514
    %vm5521 = vmor %vm5519, %vm5520
    %v5522 = vsel %vm5521, %v5514, %v5518
    %v5523 = vand.u32 2147483647, %v5498
    %vm5524 = vcmp.eq.f32.partialorder %v5523, 8.507059e+37
    %v5525 = vand.u32 %v5498, 2147483648
    %v5526 = vor.u32 1.1754944e-38, %v5525
    %v5527 = vsel %vm5524, %v5526, %v5522
    %v5528 = vmul.f32 1.0, %v5527
    %v5530 = vrot.slane %v5441, 1
    %v5532 = vmul.f32 %v5470, %v5441
    %v5533 = vmul.f32 %v5485, %v5530
    %v5534 = vadd.f32 %v3851, %v5532
    %v5535 = vadd.f32 %v3881, %v5533
    %v5536 = vtanh.pop %v5534
    %v5537 = vtanh.pop %v5535
    %v5538 = vsub.f32 1.0, %v5513
    %v5539 = vsub.f32 1.0, %v5528
    %v5540 = vmul.f32 %v5538, %v5536
    %v5541 = vmul.f32 %v5539, %v5537
    %v5542 = vmul.f32 %v5513, %v5361
    %v5543 = vmul.f32 %v5528, %v5362
    %v5544 = vadd.f32 %v5540, %v5542
    %v5545 = vadd.f32 %v5541, %v5543
    %5548 = vst [vmem:[#allocation1] ss:$9 sm:$0xff] %v5544
    %s5549 = scalar_lea.vmem [#allocation1], 1
    %5550 = vst [vmem:[%s5549] ss:$9 sm:$0xff] %v5545
    %v5551 = vld [vmem:[#allocation1] sm:$0xff]
    %v5552 = vsel %vm3589, %v5551, 0
    %5554 = vmatpush.msra.mxu0 0.0
    %5555 = vmatpush.msra.mxu0 0.0
    %5556 = vmatpush.msra.mxu0 0.0
    %5557 = vmatpush.msra.mxu0 0.0
    %5558 = vmatpush.msra.mxu0 0.0
    %5559 = vmatpush.msra.mxu0 0.0
    %5560 = vmatpush.msra.mxu0 0.0
    %5561 = vmatpush.msra.mxu0 0.0
    %5562 = vmatpush.msra.mxu0 0.0
    %5563 = vmatpush.msra.mxu0 0.0
    %5564 = vmatpush.msra.mxu0 0.0
    %5565 = vmatpush.msra.mxu0 0.0
    %5566 = vmatpush.msra.mxu0 %v3643
    %5567 = vmatpush.msra.mxu0 %v3642
    %5568 = vmatpush.msra.mxu0 %v3641
    %5569 = vmatpush.msra.mxu0 %v3640
    %5570 = vmatmul.f32.gmra.mxu0 %v5552
    %v5571 = vpop.f32.mrf.mxu0
    %v5572 = vadd.f32 %v3908, %v5571
    %5573 = vdwg.mxu0
    %5574 = vst [vmem:[#allocation1] ss:$9 sm:$0xff] %v5544
    %s5575 = scalar_lea.vmem [#allocation1], 1
    %5576 = vst [vmem:[%s5575] ss:$9 sm:$0xff] %v5545
    %v5577 = vld [vmem:[#allocation1] sm:$0xff]
    %v5578 = vsel %vm3589, %v5577, 0
    %5580 = vmatpush.msra.mxu0 0.0
    %5581 = vmatpush.msra.mxu0 0.0
    %5582 = vmatpush.msra.mxu0 0.0
    %5583 = vmatpush.msra.mxu0 0.0
    %5584 = vmatpush.msra.mxu0 0.0
    %5585 = vmatpush.msra.mxu0 0.0
    %5586 = vmatpush.msra.mxu0 0.0
    %5587 = vmatpush.msra.mxu0 0.0
    %5588 = vmatpush.msra.mxu0 0.0
    %5589 = vmatpush.msra.mxu0 0.0
    %5590 = vmatpush.msra.mxu0 0.0
    %5591 = vmatpush.msra.mxu0 0.0
    %5592 = vmatpush.msra.mxu0 %v3647
    %5593 = vmatpush.msra.mxu0 %v3646
    %5594 = vmatpush.msra.mxu0 %v3645
    %5595 = vmatpush.msra.mxu0 %v3644
    %5596 = vmatmul.f32.gmra.mxu0 %v5578
    %v5597 = vpop.f32.mrf.mxu0
    %v5598 = vadd.f32 %v3934, %v5597
    %5599 = vdwg.mxu0
    %5600 = vst [vmem:[#allocation1] ss:$9 sm:$0xff] %v5544
    %s5601 = scalar_lea.vmem [#allocation1], 1
    %5602 = vst [vmem:[%s5601] ss:$9 sm:$0xff] %v5545
    %v5603 = vld [vmem:[#allocation1] sm:$0xff]
    %v5604 = vsel %vm3589, %v5603, 0
    %5606 = vmatpush.msra.mxu0 0.0
    %5607 = vmatpush.msra.mxu0 0.0
    %5608 = vmatpush.msra.mxu0 0.0
    %5609 = vmatpush.msra.mxu0 0.0
    %5610 = vmatpush.msra.mxu0 0.0
    %5611 = vmatpush.msra.mxu0 0.0
    %5612 = vmatpush.msra.mxu0 0.0
    %5613 = vmatpush.msra.mxu0 0.0
    %5614 = vmatpush.msra.mxu0 0.0
    %5615 = vmatpush.msra.mxu0 0.0
    %5616 = vmatpush.msra.mxu0 0.0
    %5617 = vmatpush.msra.mxu0 0.0
    %5618 = vmatpush.msra.mxu0 %v3651
    %5619 = vmatpush.msra.mxu0 %v3650
    %5620 = vmatpush.msra.mxu0 %v3649
    %5621 = vmatpush.msra.mxu0 %v3648
    %5622 = vmatmul.f32.gmra.mxu0 %v5604
    %v5623 = vpop.f32.mrf.mxu0
    %v5624 = vadd.f32 %v3957, %v5623
    %5625 = vdwg.mxu0
    %v5627 = vrot.slane %v5572, 1
    %v5629 = vadd.f32 %v3710, %v5572
    %v5630 = vadd.f32 %v3722, %v5627
    %v5631 = vxor.u32 %v5629, 2147483648
    %v5632 = vxor.u32 %v5630, 2147483648
    %v5633 = vmul.f32 %v5631, 1.442695
    %v5634 = vpow.pop %v5633
    %v5635 = vmul.f32 %v5632, 1.442695
    %v5636 = vpow.pop %v5635
    %v5637 = vadd.f32 %v5634, 1.0
    %v5638 = vadd.f32 %v5636, 1.0
    %v5639 = vrcp.pop %v5637
    %v5640 = vmul.f32 %v5637, %v5639
    %v5641 = vsub.f32 1.0, %v5640
    %v5642 = vmul.f32 %v5639, %v5641
    %v5643 = vadd.f32 %v5639, %v5642
    %vm5644 = vweird.f32 %v5637
    %vm5645 = vweird.f32 %v5639
    %vm5646 = vmor %vm5644, %vm5645
    %v5647 = vsel %vm5646, %v5639, %v5643
    %v5648 = vand.u32 2147483647, %v5637
    %vm5649 = vcmp.eq.f32.partialorder %v5648, 8.507059e+37
    %v5650 = vand.u32 %v5637, 2147483648
    %v5651 = vor.u32 1.1754944e-38, %v5650
    %v5652 = vsel %vm5649, %v5651, %v5647
    %v5653 = vmul.f32 1.0, %v5652
    %v5654 = vrcp.pop %v5638
    %v5655 = vmul.f32 %v5638, %v5654
    %v5656 = vsub.f32 1.0, %v5655
    %v5657 = vmul.f32 %v5654, %v5656
    %v5658 = vadd.f32 %v5654, %v5657
    %vm5659 = vweird.f32 %v5638
    %vm5660 = vweird.f32 %v5654
    %vm5661 = vmor %vm5659, %vm5660
    %v5662 = vsel %vm5661, %v5654, %v5658
    %v5663 = vand.u32 2147483647, %v5638
    %vm5664 = vcmp.eq.f32.partialorder %v5663, 8.507059e+37
    %v5665 = vand.u32 %v5638, 2147483648
    %v5666 = vor.u32 1.1754944e-38, %v5665
    %v5667 = vsel %vm5664, %v5666, %v5662
    %v5668 = vmul.f32 1.0, %v5667
    %v5670 = vrot.slane %v5598, 1
    %v5672 = vadd.f32 %v3790, %v5598
    %v5673 = vadd.f32 %v3802, %v5670
    %v5674 = vxor.u32 %v5672, 2147483648
    %v5675 = vxor.u32 %v5673, 2147483648
    %v5676 = vmul.f32 %v5674, 1.442695
    %v5677 = vpow.pop %v5676
    %v5678 = vmul.f32 %v5675, 1.442695
    %v5679 = vpow.pop %v5678
    %v5680 = vadd.f32 %v5677, 1.0
    %v5681 = vadd.f32 %v5679, 1.0
    %v5682 = vrcp.pop %v5680
    %v5683 = vmul.f32 %v5680, %v5682
    %v5684 = vsub.f32 1.0, %v5683
    %v5685 = vmul.f32 %v5682, %v5684
    %v5686 = vadd.f32 %v5682, %v5685
    %vm5687 = vweird.f32 %v5680
    %vm5688 = vweird.f32 %v5682
    %vm5689 = vmor %vm5687, %vm5688
    %v5690 = vsel %vm5689, %v5682, %v5686
    %v5691 = vand.u32 2147483647, %v5680
    %vm5692 = vcmp.eq.f32.partialorder %v5691, 8.507059e+37
    %v5693 = vand.u32 %v5680, 2147483648
    %v5694 = vor.u32 1.1754944e-38, %v5693
    %v5695 = vsel %vm5692, %v5694, %v5690
    %v5696 = vmul.f32 1.0, %v5695
    %v5697 = vrcp.pop %v5681
    %v5698 = vmul.f32 %v5681, %v5697
    %v5699 = vsub.f32 1.0, %v5698
    %v5700 = vmul.f32 %v5697, %v5699
    %v5701 = vadd.f32 %v5697, %v5700
    %vm5702 = vweird.f32 %v5681
    %vm5703 = vweird.f32 %v5697
    %vm5704 = vmor %vm5702, %vm5703
    %v5705 = vsel %vm5704, %v5697, %v5701
    %v5706 = vand.u32 2147483647, %v5681
    %vm5707 = vcmp.eq.f32.partialorder %v5706, 8.507059e+37
    %v5708 = vand.u32 %v5681, 2147483648
    %v5709 = vor.u32 1.1754944e-38, %v5708
    %v5710 = vsel %vm5707, %v5709, %v5705
    %v5711 = vmul.f32 1.0, %v5710
    %v5713 = vrot.slane %v5624, 1
    %v5715 = vmul.f32 %v5653, %v5624
    %v5716 = vmul.f32 %v5668, %v5713
    %v5717 = vadd.f32 %v3870, %v5715
    %v5718 = vadd.f32 %v3882, %v5716
    %v5719 = vtanh.pop %v5717
    %v5720 = vtanh.pop %v5718
    %v5721 = vsub.f32 1.0, %v5696
    %v5722 = vsub.f32 1.0, %v5711
    %v5723 = vmul.f32 %v5721, %v5719
    %v5724 = vmul.f32 %v5722, %v5720
    %v5725 = vmul.f32 %v5696, %v5544
    %v5726 = vmul.f32 %v5711, %v5545
    %v5727 = vadd.f32 %v5723, %v5725
    %v5728 = vadd.f32 %v5724, %v5726
    %5731 = vst [vmem:[#allocation1] ss:$9 sm:$0xff] %v5727
    %s5732 = scalar_lea.vmem [#allocation1], 1
    %5733 = vst [vmem:[%s5732] ss:$9 sm:$0xff] %v5728
    %v5734 = vld [vmem:[#allocation1] sm:$0xff]
    %v5735 = vsel %vm3589, %v5734, 0
    %5737 = vmatpush.msra.mxu0 0.0
    %5738 = vmatpush.msra.mxu0 0.0
    %5739 = vmatpush.msra.mxu0 0.0
    %5740 = vmatpush.msra.mxu0 0.0
    %5741 = vmatpush.msra.mxu0 0.0
    %5742 = vmatpush.msra.mxu0 0.0
    %5743 = vmatpush.msra.mxu0 0.0
    %5744 = vmatpush.msra.mxu0 0.0
    %5745 = vmatpush.msra.mxu0 0.0
    %5746 = vmatpush.msra.mxu0 0.0
    %5747 = vmatpush.msra.mxu0 0.0
    %5748 = vmatpush.msra.mxu0 0.0
    %5749 = vmatpush.msra.mxu0 %v3643
    %5750 = vmatpush.msra.mxu0 %v3642
    %5751 = vmatpush.msra.mxu0 %v3641
    %5752 = vmatpush.msra.mxu0 %v3640
    %5753 = vmatmul.f32.gmra.mxu0 %v5735
    %v5754 = vpop.f32.mrf.mxu0
    %v5755 = vadd.f32 %v3908, %v5754
    %5756 = vdwg.mxu0
    %5757 = vst [vmem:[#allocation1] ss:$9 sm:$0xff] %v5727
    %s5758 = scalar_lea.vmem [#allocation1], 1
    %5759 = vst [vmem:[%s5758] ss:$9 sm:$0xff] %v5728
    %v5760 = vld [vmem:[#allocation1] sm:$0xff]
    %v5761 = vsel %vm3589, %v5760, 0
    %5763 = vmatpush.msra.mxu0 0.0
    %5764 = vmatpush.msra.mxu0 0.0
    %5765 = vmatpush.msra.mxu0 0.0
    %5766 = vmatpush.msra.mxu0 0.0
    %5767 = vmatpush.msra.mxu0 0.0
    %5768 = vmatpush.msra.mxu0 0.0
    %5769 = vmatpush.msra.mxu0 0.0
    %5770 = vmatpush.msra.mxu0 0.0
    %5771 = vmatpush.msra.mxu0 0.0
    %5772 = vmatpush.msra.mxu0 0.0
    %5773 = vmatpush.msra.mxu0 0.0
    %5774 = vmatpush.msra.mxu0 0.0
    %5775 = vmatpush.msra.mxu0 %v3647
    %5776 = vmatpush.msra.mxu0 %v3646
    %5777 = vmatpush.msra.mxu0 %v3645
    %5778 = vmatpush.msra.mxu0 %v3644
    %5779 = vmatmul.f32.gmra.mxu0 %v5761
    %v5780 = vpop.f32.mrf.mxu0
    %v5781 = vadd.f32 %v3934, %v5780
    %5782 = vdwg.mxu0
    %5783 = vst [vmem:[#allocation1] ss:$9 sm:$0xff] %v5727
    %s5784 = scalar_lea.vmem [#allocation1], 1
    %5785 = vst [vmem:[%s5784] ss:$9 sm:$0xff] %v5728
    %v5786 = vld [vmem:[#allocation1] sm:$0xff]
    %v5787 = vsel %vm3589, %v5786, 0
    %5789 = vmatpush.msra.mxu0 0.0
    %5790 = vmatpush.msra.mxu0 0.0
    %5791 = vmatpush.msra.mxu0 0.0
    %5792 = vmatpush.msra.mxu0 0.0
    %5793 = vmatpush.msra.mxu0 0.0
    %5794 = vmatpush.msra.mxu0 0.0
    %5795 = vmatpush.msra.mxu0 0.0
    %5796 = vmatpush.msra.mxu0 0.0
    %5797 = vmatpush.msra.mxu0 0.0
    %5798 = vmatpush.msra.mxu0 0.0
    %5799 = vmatpush.msra.mxu0 0.0
    %5800 = vmatpush.msra.mxu0 0.0
    %5801 = vmatpush.msra.mxu0 %v3651
    %5802 = vmatpush.msra.mxu0 %v3650
    %5803 = vmatpush.msra.mxu0 %v3649
    %5804 = vmatpush.msra.mxu0 %v3648
    %5805 = vmatmul.f32.gmra.mxu0 %v5787
    %v5806 = vpop.f32.mrf.mxu0
    %v5807 = vadd.f32 %v3957, %v5806
    %5808 = vdwg.mxu0
    %v5810 = vrot.slane %v5755, 1
    %v5812 = vadd.f32 %v3711, %v5755
    %v5813 = vadd.f32 %v3723, %v5810
    %v5814 = vxor.u32 %v5812, 2147483648
    %v5815 = vxor.u32 %v5813, 2147483648
    %v5816 = vmul.f32 %v5814, 1.442695
    %v5817 = vpow.pop %v5816
    %v5818 = vmul.f32 %v5815, 1.442695
    %v5819 = vpow.pop %v5818
    %v5820 = vadd.f32 %v5817, 1.0
    %v5821 = vadd.f32 %v5819, 1.0
    %v5822 = vrcp.pop %v5820
    %v5823 = vmul.f32 %v5820, %v5822
    %v5824 = vsub.f32 1.0, %v5823
    %v5825 = vmul.f32 %v5822, %v5824
    %v5826 = vadd.f32 %v5822, %v5825
    %vm5827 = vweird.f32 %v5820
    %vm5828 = vweird.f32 %v5822
    %vm5829 = vmor %vm5827, %vm5828
    %v5830 = vsel %vm5829, %v5822, %v5826
    %v5831 = vand.u32 2147483647, %v5820
    %vm5832 = vcmp.eq.f32.partialorder %v5831, 8.507059e+37
    %v5833 = vand.u32 %v5820, 2147483648
    %v5834 = vor.u32 1.1754944e-38, %v5833
    %v5835 = vsel %vm5832, %v5834, %v5830
    %v5836 = vmul.f32 1.0, %v5835
    %v5837 = vrcp.pop %v5821
    %v5838 = vmul.f32 %v5821, %v5837
    %v5839 = vsub.f32 1.0, %v5838
    %v5840 = vmul.f32 %v5837, %v5839
    %v5841 = vadd.f32 %v5837, %v5840
    %vm5842 = vweird.f32 %v5821
    %vm5843 = vweird.f32 %v5837
    %vm5844 = vmor %vm5842, %vm5843
    %v5845 = vsel %vm5844, %v5837, %v5841
    %v5846 = vand.u32 2147483647, %v5821
    %vm5847 = vcmp.eq.f32.partialorder %v5846, 8.507059e+37
    %v5848 = vand.u32 %v5821, 2147483648
    %v5849 = vor.u32 1.1754944e-38, %v5848
    %v5850 = vsel %vm5847, %v5849, %v5845
    %v5851 = vmul.f32 1.0, %v5850
    %v5853 = vrot.slane %v5781, 1
    %v5855 = vadd.f32 %v3791, %v5781
    %v5856 = vadd.f32 %v3803, %v5853
    %v5857 = vxor.u32 %v5855, 2147483648
    %v5858 = vxor.u32 %v5856, 2147483648
    %v5859 = vmul.f32 %v5857, 1.442695
    %v5860 = vpow.pop %v5859
    %v5861 = vmul.f32 %v5858, 1.442695
    %v5862 = vpow.pop %v5861
    %v5863 = vadd.f32 %v5860, 1.0
    %v5864 = vadd.f32 %v5862, 1.0
    %v5865 = vrcp.pop %v5863
    %v5866 = vmul.f32 %v5863, %v5865
    %v5867 = vsub.f32 1.0, %v5866
    %v5868 = vmul.f32 %v5865, %v5867
    %v5869 = vadd.f32 %v5865, %v5868
    %vm5870 = vweird.f32 %v5863
    %vm5871 = vweird.f32 %v5865
    %vm5872 = vmor %vm5870, %vm5871
    %v5873 = vsel %vm5872, %v5865, %v5869
    %v5874 = vand.u32 2147483647, %v5863
    %vm5875 = vcmp.eq.f32.partialorder %v5874, 8.507059e+37
    %v5876 = vand.u32 %v5863, 2147483648
    %v5877 = vor.u32 1.1754944e-38, %v5876
    %v5878 = vsel %vm5875, %v5877, %v5873
    %v5879 = vmul.f32 1.0, %v5878
    %v5880 = vrcp.pop %v5864
    %v5881 = vmul.f32 %v5864, %v5880
    %v5882 = vsub.f32 1.0, %v5881
    %v5883 = vmul.f32 %v5880, %v5882
    %v5884 = vadd.f32 %v5880, %v5883
    %vm5885 = vweird.f32 %v5864
    %vm5886 = vweird.f32 %v5880
    %vm5887 = vmor %vm5885, %vm5886
    %v5888 = vsel %vm5887, %v5880, %v5884
    %v5889 = vand.u32 2147483647, %v5864
    %vm5890 = vcmp.eq.f32.partialorder %v5889, 8.507059e+37
    %v5891 = vand.u32 %v5864, 2147483648
    %v5892 = vor.u32 1.1754944e-38, %v5891
    %v5893 = vsel %vm5890, %v5892, %v5888
    %v5894 = vmul.f32 1.0, %v5893
    %v5896 = vrot.slane %v5807, 1
    %v5898 = vmul.f32 %v5836, %v5807
    %v5899 = vmul.f32 %v5851, %v5896
    %v5900 = vadd.f32 %v3871, %v5898
    %v5901 = vadd.f32 %v3883, %v5899
    %v5902 = vtanh.pop %v5900
    %v5903 = vtanh.pop %v5901
    %v5904 = vsub.f32 1.0, %v5879
    %v5905 = vsub.f32 1.0, %v5894
    %v5906 = vmul.f32 %v5904, %v5902
    %v5907 = vmul.f32 %v5905, %v5903
    %v5908 = vmul.f32 %v5879, %v5727
    %v5909 = vmul.f32 %v5894, %v5728
    %v5910 = vadd.f32 %v5906, %v5908
    %v5911 = vadd.f32 %v5907, %v5909
    %5914 = vst [vmem:[#allocation1] ss:$9 sm:$0xff] %v5910
    %s5915 = scalar_lea.vmem [#allocation1], 1
    %5916 = vst [vmem:[%s5915] ss:$9 sm:$0xff] %v5911
    %v5917 = vld [vmem:[#allocation1] sm:$0xff]
    %v5918 = vsel %vm3589, %v5917, 0
    %5920 = vmatpush.msra.mxu0 0.0
    %5921 = vmatpush.msra.mxu0 0.0
    %5922 = vmatpush.msra.mxu0 0.0
    %5923 = vmatpush.msra.mxu0 0.0
    %5924 = vmatpush.msra.mxu0 0.0
    %5925 = vmatpush.msra.mxu0 0.0
    %5926 = vmatpush.msra.mxu0 0.0
    %5927 = vmatpush.msra.mxu0 0.0
    %5928 = vmatpush.msra.mxu0 0.0
    %5929 = vmatpush.msra.mxu0 0.0
    %5930 = vmatpush.msra.mxu0 0.0
    %5931 = vmatpush.msra.mxu0 0.0
    %5932 = vmatpush.msra.mxu0 %v3643
    %5933 = vmatpush.msra.mxu0 %v3642
    %5934 = vmatpush.msra.mxu0 %v3641
    %5935 = vmatpush.msra.mxu0 %v3640
    %5936 = vmatmul.f32.gmra.mxu0 %v5918
    %v5937 = vpop.f32.mrf.mxu0
    %v5938 = vadd.f32 %v3908, %v5937
    %5939 = vdwg.mxu0
    %5940 = vst [vmem:[#allocation1] ss:$9 sm:$0xff] %v5910
    %s5941 = scalar_lea.vmem [#allocation1], 1
    %5942 = vst [vmem:[%s5941] ss:$9 sm:$0xff] %v5911
    %v5943 = vld [vmem:[#allocation1] sm:$0xff]
    %v5944 = vsel %vm3589, %v5943, 0
    %5946 = vmatpush.msra.mxu0 0.0
    %5947 = vmatpush.msra.mxu0 0.0
    %5948 = vmatpush.msra.mxu0 0.0
    %5949 = vmatpush.msra.mxu0 0.0
    %5950 = vmatpush.msra.mxu0 0.0
    %5951 = vmatpush.msra.mxu0 0.0
    %5952 = vmatpush.msra.mxu0 0.0
    %5953 = vmatpush.msra.mxu0 0.0
    %5954 = vmatpush.msra.mxu0 0.0
    %5955 = vmatpush.msra.mxu0 0.0
    %5956 = vmatpush.msra.mxu0 0.0
    %5957 = vmatpush.msra.mxu0 0.0
    %5958 = vmatpush.msra.mxu0 %v3647
    %5959 = vmatpush.msra.mxu0 %v3646
    %5960 = vmatpush.msra.mxu0 %v3645
    %5961 = vmatpush.msra.mxu0 %v3644
    %5962 = vmatmul.f32.gmra.mxu0 %v5944
    %v5963 = vpop.f32.mrf.mxu0
    %v5964 = vadd.f32 %v3934, %v5963
    %5965 = vdwg.mxu0
    %5966 = vst [vmem:[#allocation1] ss:$9 sm:$0xff] %v5910
    %s5967 = scalar_lea.vmem [#allocation1], 1
    %5968 = vst [vmem:[%s5967] ss:$9 sm:$0xff] %v5911
    %v5969 = vld [vmem:[#allocation1] sm:$0xff]
    %v5970 = vsel %vm3589, %v5969, 0
    %5972 = vmatpush.msra.mxu0 0.0
    %5973 = vmatpush.msra.mxu0 0.0
    %5974 = vmatpush.msra.mxu0 0.0
    %5975 = vmatpush.msra.mxu0 0.0
    %5976 = vmatpush.msra.mxu0 0.0
    %5977 = vmatpush.msra.mxu0 0.0
    %5978 = vmatpush.msra.mxu0 0.0
    %5979 = vmatpush.msra.mxu0 0.0
    %5980 = vmatpush.msra.mxu0 0.0
    %5981 = vmatpush.msra.mxu0 0.0
    %5982 = vmatpush.msra.mxu0 0.0
    %5983 = vmatpush.msra.mxu0 0.0
    %5984 = vmatpush.msra.mxu0 %v3651
    %5985 = vmatpush.msra.mxu0 %v3650
    %5986 = vmatpush.msra.mxu0 %v3649
    %5987 = vmatpush.msra.mxu0 %v3648
    %5988 = vmatmul.f32.gmra.mxu0 %v5970
    %v5989 = vpop.f32.mrf.mxu0
    %v5990 = vadd.f32 %v3957, %v5989
    %5991 = vdwg.mxu0
    %v5993 = vrot.slane %v5938, 1
    %v5995 = vadd.f32 %v3712, %v5938
    %v5996 = vadd.f32 %v3697, %v5993
    %v5997 = vxor.u32 %v5995, 2147483648
    %v5998 = vxor.u32 %v5996, 2147483648
    %v5999 = vmul.f32 %v5997, 1.442695
    %v6000 = vpow.pop %v5999
    %v6001 = vmul.f32 %v5998, 1.442695
    %v6002 = vpow.pop %v6001
    %v6003 = vadd.f32 %v6000, 1.0
    %v6004 = vadd.f32 %v6002, 1.0
    %v6005 = vrcp.pop %v6003
    %v6006 = vmul.f32 %v6003, %v6005
    %v6007 = vsub.f32 1.0, %v6006
    %v6008 = vmul.f32 %v6005, %v6007
    %v6009 = vadd.f32 %v6005, %v6008
    %vm6010 = vweird.f32 %v6003
    %vm6011 = vweird.f32 %v6005
    %vm6012 = vmor %vm6010, %vm6011
    %v6013 = vsel %vm6012, %v6005, %v6009
    %v6014 = vand.u32 2147483647, %v6003
    %vm6015 = vcmp.eq.f32.partialorder %v6014, 8.507059e+37
    %v6016 = vand.u32 %v6003, 2147483648
    %v6017 = vor.u32 1.1754944e-38, %v6016
    %v6018 = vsel %vm6015, %v6017, %v6013
    %v6019 = vmul.f32 1.0, %v6018
    %v6020 = vrcp.pop %v6004
    %v6021 = vmul.f32 %v6004, %v6020
    %v6022 = vsub.f32 1.0, %v6021
    %v6023 = vmul.f32 %v6020, %v6022
    %v6024 = vadd.f32 %v6020, %v6023
    %vm6025 = vweird.f32 %v6004
    %vm6026 = vweird.f32 %v6020
    %vm6027 = vmor %vm6025, %vm6026
    %v6028 = vsel %vm6027, %v6020, %v6024
    %v6029 = vand.u32 2147483647, %v6004
    %vm6030 = vcmp.eq.f32.partialorder %v6029, 8.507059e+37
    %v6031 = vand.u32 %v6004, 2147483648
    %v6032 = vor.u32 1.1754944e-38, %v6031
    %v6033 = vsel %vm6030, %v6032, %v6028
    %v6034 = vmul.f32 1.0, %v6033
    %v6036 = vrot.slane %v5964, 1
    %v6038 = vadd.f32 %v3792, %v5964
    %v6039 = vadd.f32 %v3777, %v6036
    %v6040 = vxor.u32 %v6038, 2147483648
    %v6041 = vxor.u32 %v6039, 2147483648
    %v6042 = vmul.f32 %v6040, 1.442695
    %v6043 = vpow.pop %v6042
    %v6044 = vmul.f32 %v6041, 1.442695
    %v6045 = vpow.pop %v6044
    %v6046 = vadd.f32 %v6043, 1.0
    %v6047 = vadd.f32 %v6045, 1.0
    %v6048 = vrcp.pop %v6046
    %v6049 = vmul.f32 %v6046, %v6048
    %v6050 = vsub.f32 1.0, %v6049
    %v6051 = vmul.f32 %v6048, %v6050
    %v6052 = vadd.f32 %v6048, %v6051
    %vm6053 = vweird.f32 %v6046
    %vm6054 = vweird.f32 %v6048
    %vm6055 = vmor %vm6053, %vm6054
    %v6056 = vsel %vm6055, %v6048, %v6052
    %v6057 = vand.u32 2147483647, %v6046
    %vm6058 = vcmp.eq.f32.partialorder %v6057, 8.507059e+37
    %v6059 = vand.u32 %v6046, 2147483648
    %v6060 = vor.u32 1.1754944e-38, %v6059
    %v6061 = vsel %vm6058, %v6060, %v6056
    %v6062 = vmul.f32 1.0, %v6061
    %v6063 = vrcp.pop %v6047
    %v6064 = vmul.f32 %v6047, %v6063
    %v6065 = vsub.f32 1.0, %v6064
    %v6066 = vmul.f32 %v6063, %v6065
    %v6067 = vadd.f32 %v6063, %v6066
    %vm6068 = vweird.f32 %v6047
    %vm6069 = vweird.f32 %v6063
    %vm6070 = vmor %vm6068, %vm6069
    %v6071 = vsel %vm6070, %v6063, %v6067
    %v6072 = vand.u32 2147483647, %v6047
    %vm6073 = vcmp.eq.f32.partialorder %v6072, 8.507059e+37
    %v6074 = vand.u32 %v6047, 2147483648
    %v6075 = vor.u32 1.1754944e-38, %v6074
    %v6076 = vsel %vm6073, %v6075, %v6071
    %v6077 = vmul.f32 1.0, %v6076
    %v6079 = vrot.slane %v5990, 1
    %v6081 = vmul.f32 %v6019, %v5990
    %v6082 = vmul.f32 %v6034, %v6079
    %v6083 = vadd.f32 %v3872, %v6081
    %v6084 = vadd.f32 %v3857, %v6082
    %v6085 = vtanh.pop %v6083
    %v6086 = vtanh.pop %v6084
    %v6087 = vsub.f32 1.0, %v6062
    %v6088 = vsub.f32 1.0, %v6077
    %v6089 = vmul.f32 %v6087, %v6085
    %v6090 = vmul.f32 %v6088, %v6086
    %v6091 = vmul.f32 %v6062, %v5910
    %v6092 = vmul.f32 %v6077, %v5911
    %v6093 = vadd.f32 %v6089, %v6091
    %v6094 = vadd.f32 %v6090, %v6092
    %6097 = vst [vmem:[#allocation1] ss:$9 sm:$0xff] %v6093
    %s6098 = scalar_lea.vmem [#allocation1], 1
    %6099 = vst [vmem:[%s6098] ss:$9 sm:$0xff] %v6094
    %v6100 = vld [vmem:[#allocation1] sm:$0xff]
    %v6101 = vsel %vm3589, %v6100, 0
    %6103 = vmatpush.msra.mxu0 0.0
    %6104 = vmatpush.msra.mxu0 0.0
    %6105 = vmatpush.msra.mxu0 0.0
    %6106 = vmatpush.msra.mxu0 0.0
    %6107 = vmatpush.msra.mxu0 0.0
    %6108 = vmatpush.msra.mxu0 0.0
    %6109 = vmatpush.msra.mxu0 0.0
    %6110 = vmatpush.msra.mxu0 0.0
    %6111 = vmatpush.msra.mxu0 0.0
    %6112 = vmatpush.msra.mxu0 0.0
    %6113 = vmatpush.msra.mxu0 0.0
    %6114 = vmatpush.msra.mxu0 0.0
    %6115 = vmatpush.msra.mxu0 %v3643
    %6116 = vmatpush.msra.mxu0 %v3642
    %6117 = vmatpush.msra.mxu0 %v3641
    %6118 = vmatpush.msra.mxu0 %v3640
    %6119 = vmatmul.f32.gmra.mxu0 %v6101
    %v6120 = vpop.f32.mrf.mxu0
    %v6121 = vadd.f32 %v3908, %v6120
    %6122 = vdwg.mxu0
    %6123 = vst [vmem:[#allocation1] ss:$9 sm:$0xff] %v6093
    %s6124 = scalar_lea.vmem [#allocation1], 1
    %6125 = vst [vmem:[%s6124] ss:$9 sm:$0xff] %v6094
    %v6126 = vld [vmem:[#allocation1] sm:$0xff]
    %v6127 = vsel %vm3589, %v6126, 0
    %6129 = vmatpush.msra.mxu0 0.0
    %6130 = vmatpush.msra.mxu0 0.0
    %6131 = vmatpush.msra.mxu0 0.0
    %6132 = vmatpush.msra.mxu0 0.0
    %6133 = vmatpush.msra.mxu0 0.0
    %6134 = vmatpush.msra.mxu0 0.0
    %6135 = vmatpush.msra.mxu0 0.0
    %6136 = vmatpush.msra.mxu0 0.0
    %6137 = vmatpush.msra.mxu0 0.0
    %6138 = vmatpush.msra.mxu0 0.0
    %6139 = vmatpush.msra.mxu0 0.0
    %6140 = vmatpush.msra.mxu0 0.0
    %6141 = vmatpush.msra.mxu0 %v3647
    %6142 = vmatpush.msra.mxu0 %v3646
    %6143 = vmatpush.msra.mxu0 %v3645
    %6144 = vmatpush.msra.mxu0 %v3644
    %6145 = vmatmul.f32.gmra.mxu0 %v6127
    %v6146 = vpop.f32.mrf.mxu0
    %v6147 = vadd.f32 %v3934, %v6146
    %6148 = vdwg.mxu0
    %6149 = vst [vmem:[#allocation1] ss:$9 sm:$0xff] %v6093
    %s6150 = scalar_lea.vmem [#allocation1], 1
    %6151 = vst [vmem:[%s6150] ss:$9 sm:$0xff] %v6094
    %v6152 = vld [vmem:[#allocation1] sm:$0xff]
    %v6153 = vsel %vm3589, %v6152, 0
    %6155 = vmatpush.msra.mxu0 0.0
    %6156 = vmatpush.msra.mxu0 0.0
    %6157 = vmatpush.msra.mxu0 0.0
    %6158 = vmatpush.msra.mxu0 0.0
    %6159 = vmatpush.msra.mxu0 0.0
    %6160 = vmatpush.msra.mxu0 0.0
    %6161 = vmatpush.msra.mxu0 0.0
    %6162 = vmatpush.msra.mxu0 0.0
    %6163 = vmatpush.msra.mxu0 0.0
    %6164 = vmatpush.msra.mxu0 0.0
    %6165 = vmatpush.msra.mxu0 0.0
    %6166 = vmatpush.msra.mxu0 0.0
    %6167 = vmatpush.msra.mxu0 %v3651
    %6168 = vmatpush.msra.mxu0 %v3650
    %6169 = vmatpush.msra.mxu0 %v3649
    %6170 = vmatpush.msra.mxu0 %v3648
    %6171 = vmatmul.f32.gmra.mxu0 %v6153
    %v6172 = vpop.f32.mrf.mxu0
    %v6173 = vadd.f32 %v3957, %v6172
    %6174 = vdwg.mxu0
    %v6176 = vrot.slane %v6121, 1
    %v6178 = vadd.f32 %v3713, %v6121
    %v6179 = vadd.f32 %v3724, %v6176
    %v6180 = vxor.u32 %v6178, 2147483648
    %v6181 = vxor.u32 %v6179, 2147483648
    %v6182 = vmul.f32 %v6180, 1.442695
    %v6183 = vpow.pop %v6182
    %v6184 = vmul.f32 %v6181, 1.442695
    %v6185 = vpow.pop %v6184
    %v6186 = vadd.f32 %v6183, 1.0
    %v6187 = vadd.f32 %v6185, 1.0
    %v6188 = vrcp.pop %v6186
    %v6189 = vmul.f32 %v6186, %v6188
    %v6190 = vsub.f32 1.0, %v6189
    %v6191 = vmul.f32 %v6188, %v6190
    %v6192 = vadd.f32 %v6188, %v6191
    %vm6193 = vweird.f32 %v6186
    %vm6194 = vweird.f32 %v6188
    %vm6195 = vmor %vm6193, %vm6194
    %v6196 = vsel %vm6195, %v6188, %v6192
    %v6197 = vand.u32 2147483647, %v6186
    %vm6198 = vcmp.eq.f32.partialorder %v6197, 8.507059e+37
    %v6199 = vand.u32 %v6186, 2147483648
    %v6200 = vor.u32 1.1754944e-38, %v6199
    %v6201 = vsel %vm6198, %v6200, %v6196
    %v6202 = vmul.f32 1.0, %v6201
    %v6203 = vrcp.pop %v6187
    %v6204 = vmul.f32 %v6187, %v6203
    %v6205 = vsub.f32 1.0, %v6204
    %v6206 = vmul.f32 %v6203, %v6205
    %v6207 = vadd.f32 %v6203, %v6206
    %vm6208 = vweird.f32 %v6187
    %vm6209 = vweird.f32 %v6203
    %vm6210 = vmor %vm6208, %vm6209
    %v6211 = vsel %vm6210, %v6203, %v6207
    %v6212 = vand.u32 2147483647, %v6187
    %vm6213 = vcmp.eq.f32.partialorder %v6212, 8.507059e+37
    %v6214 = vand.u32 %v6187, 2147483648
    %v6215 = vor.u32 1.1754944e-38, %v6214
    %v6216 = vsel %vm6213, %v6215, %v6211
    %v6217 = vmul.f32 1.0, %v6216
    %v6219 = vrot.slane %v6147, 1
    %v6221 = vadd.f32 %v3793, %v6147
    %v6222 = vadd.f32 %v3804, %v6219
    %v6223 = vxor.u32 %v6221, 2147483648
    %v6224 = vxor.u32 %v6222, 2147483648
    %v6225 = vmul.f32 %v6223, 1.442695
    %v6226 = vpow.pop %v6225
    %v6227 = vmul.f32 %v6224, 1.442695
    %v6228 = vpow.pop %v6227
    %v6229 = vadd.f32 %v6226, 1.0
    %v6230 = vadd.f32 %v6228, 1.0
    %v6231 = vrcp.pop %v6229
    %v6232 = vmul.f32 %v6229, %v6231
    %v6233 = vsub.f32 1.0, %v6232
    %v6234 = vmul.f32 %v6231, %v6233
    %v6235 = vadd.f32 %v6231, %v6234
    %vm6236 = vweird.f32 %v6229
    %vm6237 = vweird.f32 %v6231
    %vm6238 = vmor %vm6236, %vm6237
    %v6239 = vsel %vm6238, %v6231, %v6235
    %v6240 = vand.u32 2147483647, %v6229
    %vm6241 = vcmp.eq.f32.partialorder %v6240, 8.507059e+37
    %v6242 = vand.u32 %v6229, 2147483648
    %v6243 = vor.u32 1.1754944e-38, %v6242
    %v6244 = vsel %vm6241, %v6243, %v6239
    %v6245 = vmul.f32 1.0, %v6244
    %v6246 = vrcp.pop %v6230
    %v6247 = vmul.f32 %v6230, %v6246
    %v6248 = vsub.f32 1.0, %v6247
    %v6249 = vmul.f32 %v6246, %v6248
    %v6250 = vadd.f32 %v6246, %v6249
    %vm6251 = vweird.f32 %v6230
    %vm6252 = vweird.f32 %v6246
    %vm6253 = vmor %vm6251, %vm6252
    %v6254 = vsel %vm6253, %v6246, %v6250
    %v6255 = vand.u32 2147483647, %v6230
    %vm6256 = vcmp.eq.f32.partialorder %v6255, 8.507059e+37
    %v6257 = vand.u32 %v6230, 2147483648
    %v6258 = vor.u32 1.1754944e-38, %v6257
    %v6259 = vsel %vm6256, %v6258, %v6254
    %v6260 = vmul.f32 1.0, %v6259
    %v6262 = vrot.slane %v6173, 1
    %v6264 = vmul.f32 %v6202, %v6173
    %v6265 = vmul.f32 %v6217, %v6262
    %v6266 = vadd.f32 %v3873, %v6264
    %v6267 = vadd.f32 %v3884, %v6265
    %v6268 = vtanh.pop %v6266
    %v6269 = vtanh.pop %v6267
    %v6270 = vsub.f32 1.0, %v6245
    %v6271 = vsub.f32 1.0, %v6260
    %v6272 = vmul.f32 %v6270, %v6268
    %v6273 = vmul.f32 %v6271, %v6269
    %v6274 = vmul.f32 %v6245, %v6093
    %v6275 = vmul.f32 %v6260, %v6094
    %v6276 = vadd.f32 %v6272, %v6274
    %v6277 = vadd.f32 %v6273, %v6275
    %v6278 = vld [vmem:[%s15] sm:$0xff]
    %v6279 = vld [vmem:[%s15 + $0x8] sm:$0xff]
    %v6280 = vld [vmem:[%s15 + $0x10] sm:$0xff]
    %v6281 = vld [vmem:[%s15 + $0x18] sm:$0xff]
    %v6282 = vld [vmem:[%s15 + $0x20] sm:$0xff]
    %v6283 = vld [vmem:[%s15 + $0x28] sm:$0xff]
    %v6284 = vld [vmem:[%s17] sm:$0x1]
    %v6285 = vld [vmem:[%s17 + $0x1] sm:$0x1]
    %v6286 = vld [vmem:[%s17 + $0x2] sm:$0x1]
    %v6287 = vld [vmem:[#allocation18] sm:$0xff]
    %v6288 = vld [vmem:[#allocation18 + $0x8] sm:$0xff]
    %v6289 = vld [vmem:[#allocation18 + $0x10] sm:$0xff]
    %v6290 = vld [vmem:[%s18] sm:$0x1]
    %v6291 = vld [vmem:[%s18 + $0x1] sm:$0x1]
    %v6292 = vld [vmem:[%s18 + $0x2] sm:$0x1]
    %v6294 = vperm.slane %v6284, 0
    %6296 = vmatpush.msra.mxu0 0.0
    %6297 = vmatpush.msra.mxu0 0.0
    %6298 = vmatpush.msra.mxu0 0.0
    %6299 = vmatpush.msra.mxu0 0.0
    %6300 = vmatpush.msra.mxu0 0.0
    %6301 = vmatpush.msra.mxu0 0.0
    %6302 = vmatpush.msra.mxu0 0.0
    %6303 = vmatpush.msra.mxu0 0.0
    %6304 = vmatpush.msra.mxu0 0.0
    %6305 = vmatpush.msra.mxu0 0.0
    %6306 = vmatpush.msra.mxu0 0.0
    %6307 = vmatpush.msra.mxu0 0.0
    %6308 = vmatpush.msra.mxu0 0.0
    %6309 = vmatpush.msra.mxu0 0.0
    %6310 = vmatpush.msra.mxu0 %v6279
    %6311 = vmatpush.msra.mxu0 %v6278
    %6312 = vmatmul.f32.gmra.mxu0 %v3659
    %v6313 = vpop.f32.mrf.mxu0
    %v6314 = vadd.f32 %v6294, %v6313
    %6315 = vmatmul.f32.gmra.mxu0 %v3662
    %v6316 = vpop.f32.mrf.mxu0
    %v6317 = vadd.f32 %v6294, %v6316
    %6318 = vmatmul.f32.gmra.mxu0 %v3665
    %v6319 = vpop.f32.mrf.mxu0
    %v6320 = vadd.f32 %v6294, %v6319
    %6321 = vmatmul.f32.gmra.mxu0 %v3668
    %v6322 = vpop.f32.mrf.mxu0
    %v6323 = vadd.f32 %v6294, %v6322
    %6324 = vdwg.mxu0
    %v6329 = vrot.slane %v6314, 1
    %v6330 = vrot.slane %v6314, 2
    %v6331 = vrot.slane %v6314, 3
    %v6332 = vrot.slane %v6314, 4
    %v6333 = vrot.slane %v6314, 5
    %v6334 = vrot.slane %v6314, 6
    %v6335 = vrot.slane %v6314, 7
    %v6336 = vrot.slane %v6317, 1
    %v6337 = vrot.slane %v6317, 2
    %v6338 = vrot.slane %v6317, 3
    %v6339 = vrot.slane %v6317, 4
    %v6340 = vrot.slane %v6317, 6
    %v6341 = vrot.slane %v6317, 7
    %v6342 = vrot.slane %v6320, 1
    %v6343 = vrot.slane %v6320, 2
    %v6344 = vrot.slane %v6320, 3
    %v6345 = vrot.slane %v6320, 4
    %v6346 = vrot.slane %v6320, 5
    %v6347 = vrot.slane %v6320, 6
    %v6348 = vrot.slane %v6320, 7
    %v6349 = vrot.slane %v6323, 1
    %v6372 = vperm.slane %v6285, 0
    %6374 = vmatpush.msra.mxu0 0.0
    %6375 = vmatpush.msra.mxu0 0.0
    %6376 = vmatpush.msra.mxu0 0.0
    %6377 = vmatpush.msra.mxu0 0.0
    %6378 = vmatpush.msra.mxu0 0.0
    %6379 = vmatpush.msra.mxu0 0.0
    %6380 = vmatpush.msra.mxu0 0.0
    %6381 = vmatpush.msra.mxu0 0.0
    %6382 = vmatpush.msra.mxu0 0.0
    %6383 = vmatpush.msra.mxu0 0.0
    %6384 = vmatpush.msra.mxu0 0.0
    %6385 = vmatpush.msra.mxu0 0.0
    %6386 = vmatpush.msra.mxu0 0.0
    %6387 = vmatpush.msra.mxu0 0.0
    %6388 = vmatpush.msra.mxu0 %v6281
    %6389 = vmatpush.msra.mxu0 %v6280
    %6390 = vmatmul.f32.gmra.mxu0 %v3659
    %v6391 = vpop.f32.mrf.mxu0
    %v6392 = vadd.f32 %v6372, %v6391
    %6393 = vmatmul.f32.gmra.mxu0 %v3662
    %v6394 = vpop.f32.mrf.mxu0
    %v6395 = vadd.f32 %v6372, %v6394
    %6396 = vmatmul.f32.gmra.mxu0 %v3665
    %v6397 = vpop.f32.mrf.mxu0
    %v6398 = vadd.f32 %v6372, %v6397
    %6399 = vmatmul.f32.gmra.mxu0 %v3668
    %v6400 = vpop.f32.mrf.mxu0
    %v6401 = vadd.f32 %v6372, %v6400
    %6402 = vdwg.mxu0
    %v6407 = vrot.slane %v6392, 1
    %v6408 = vrot.slane %v6392, 2
    %v6409 = vrot.slane %v6392, 3
    %v6410 = vrot.slane %v6392, 4
    %v6411 = vrot.slane %v6392, 5
    %v6412 = vrot.slane %v6392, 6
    %v6413 = vrot.slane %v6392, 7
    %v6414 = vrot.slane %v6395, 1
    %v6415 = vrot.slane %v6395, 2
    %v6416 = vrot.slane %v6395, 3
    %v6417 = vrot.slane %v6395, 4
    %v6418 = vrot.slane %v6395, 6
    %v6419 = vrot.slane %v6395, 7
    %v6420 = vrot.slane %v6398, 1
    %v6421 = vrot.slane %v6398, 2
    %v6422 = vrot.slane %v6398, 3
    %v6423 = vrot.slane %v6398, 4
    %v6424 = vrot.slane %v6398, 5
    %v6425 = vrot.slane %v6398, 6
    %v6426 = vrot.slane %v6398, 7
    %v6427 = vrot.slane %v6401, 1
    %v6450 = vperm.slane %v6286, 0
    %6452 = vmatpush.msra.mxu0 0.0
    %6453 = vmatpush.msra.mxu0 0.0
    %6454 = vmatpush.msra.mxu0 0.0
    %6455 = vmatpush.msra.mxu0 0.0
    %6456 = vmatpush.msra.mxu0 0.0
    %6457 = vmatpush.msra.mxu0 0.0
    %6458 = vmatpush.msra.mxu0 0.0
    %6459 = vmatpush.msra.mxu0 0.0
    %6460 = vmatpush.msra.mxu0 0.0
    %6461 = vmatpush.msra.mxu0 0.0
    %6462 = vmatpush.msra.mxu0 0.0
    %6463 = vmatpush.msra.mxu0 0.0
    %6464 = vmatpush.msra.mxu0 0.0
    %6465 = vmatpush.msra.mxu0 0.0
    %6466 = vmatpush.msra.mxu0 %v6283
    %6467 = vmatpush.msra.mxu0 %v6282
    %6468 = vmatmul.f32.gmra.mxu0 %v3659
    %v6469 = vpop.f32.mrf.mxu0
    %v6470 = vadd.f32 %v6450, %v6469
    %6471 = vmatmul.f32.gmra.mxu0 %v3662
    %v6472 = vpop.f32.mrf.mxu0
    %v6473 = vadd.f32 %v6450, %v6472
    %6474 = vmatmul.f32.gmra.mxu0 %v3665
    %v6475 = vpop.f32.mrf.mxu0
    %v6476 = vadd.f32 %v6450, %v6475
    %6477 = vmatmul.f32.gmra.mxu0 %v3668
    %v6478 = vpop.f32.mrf.mxu0
    %v6479 = vadd.f32 %v6450, %v6478
    %6480 = vdwg.mxu0
    %v6485 = vrot.slane %v6470, 1
    %v6486 = vrot.slane %v6470, 2
    %v6487 = vrot.slane %v6470, 3
    %v6488 = vrot.slane %v6470, 4
    %v6489 = vrot.slane %v6470, 5
    %v6490 = vrot.slane %v6470, 6
    %v6491 = vrot.slane %v6470, 7
    %v6492 = vrot.slane %v6473, 1
    %v6493 = vrot.slane %v6473, 2
    %v6494 = vrot.slane %v6473, 3
    %v6495 = vrot.slane %v6473, 4
    %v6496 = vrot.slane %v6473, 6
    %v6497 = vrot.slane %v6473, 7
    %v6498 = vrot.slane %v6476, 1
    %v6499 = vrot.slane %v6476, 2
    %v6500 = vrot.slane %v6476, 3
    %v6501 = vrot.slane %v6476, 4
    %v6502 = vrot.slane %v6476, 5
    %v6503 = vrot.slane %v6476, 6
    %v6504 = vrot.slane %v6476, 7
    %v6505 = vrot.slane %v6479, 1
    %v6527 = vld [vmem:[#allocation20] sm:$0xff]
    %v6528 = vld [vmem:[#allocation20 + $0x8] sm:$0xff]
    %v6529 = vld [vmem:[#allocation20 + $0x10] sm:$0xff]
    %v6531 = vperm.slane %v6290, 0
    %v6533 = vsel %vm3121, 0.0, 0
    %6535 = vmatpush.msra.mxu0 0.0
    %6536 = vmatpush.msra.mxu0 0.0
    %6537 = vmatpush.msra.mxu0 0.0
    %6538 = vmatpush.msra.mxu0 0.0
    %6539 = vmatpush.msra.mxu0 0.0
    %6540 = vmatpush.msra.mxu0 0.0
    %6541 = vmatpush.msra.mxu0 0.0
    %6542 = vmatpush.msra.mxu0 0.0
    %6543 = vmatpush.msra.mxu0 0.0
    %6544 = vmatpush.msra.mxu0 0.0
    %6545 = vmatpush.msra.mxu0 0.0
    %6546 = vmatpush.msra.mxu0 0.0
    %6547 = vmatpush.msra.mxu0 0.0
    %6548 = vmatpush.msra.mxu0 0.0
    %6549 = vmatpush.msra.mxu0 0.0
    %6550 = vmatpush.msra.mxu0 %v6287
    %6551 = vmatmul.f32.gmra.mxu0 %v6533
    %v6552 = vpop.f32.mrf.mxu0
    %v6553 = vadd.f32 %v6531, %v6552
    %6554 = vdwg.mxu0
    %v6556 = vperm.slane %v6291, 0
    %6558 = vmatpush.msra.mxu0 0.0
    %6559 = vmatpush.msra.mxu0 0.0
    %6560 = vmatpush.msra.mxu0 0.0
    %6561 = vmatpush.msra.mxu0 0.0
    %6562 = vmatpush.msra.mxu0 0.0
    %6563 = vmatpush.msra.mxu0 0.0
    %6564 = vmatpush.msra.mxu0 0.0
    %6565 = vmatpush.msra.mxu0 0.0
    %6566 = vmatpush.msra.mxu0 0.0
    %6567 = vmatpush.msra.mxu0 0.0
    %6568 = vmatpush.msra.mxu0 0.0
    %6569 = vmatpush.msra.mxu0 0.0
    %6570 = vmatpush.msra.mxu0 0.0
    %6571 = vmatpush.msra.mxu0 0.0
    %6572 = vmatpush.msra.mxu0 0.0
    %6573 = vmatpush.msra.mxu0 %v6288
    %6574 = vmatmul.f32.gmra.mxu0 %v6533
    %v6575 = vpop.f32.mrf.mxu0
    %v6576 = vadd.f32 %v6556, %v6575
    %6577 = vdwg.mxu0
    %v6579 = vperm.slane %v6292, 0
    %6581 = vmatpush.msra.mxu0 0.0
    %6582 = vmatpush.msra.mxu0 0.0
    %6583 = vmatpush.msra.mxu0 0.0
    %6584 = vmatpush.msra.mxu0 0.0
    %6585 = vmatpush.msra.mxu0 0.0
    %6586 = vmatpush.msra.mxu0 0.0
    %6587 = vmatpush.msra.mxu0 0.0
    %6588 = vmatpush.msra.mxu0 0.0
    %6589 = vmatpush.msra.mxu0 0.0
    %6590 = vmatpush.msra.mxu0 0.0
    %6591 = vmatpush.msra.mxu0 0.0
    %6592 = vmatpush.msra.mxu0 0.0
    %6593 = vmatpush.msra.mxu0 0.0
    %6594 = vmatpush.msra.mxu0 0.0
    %6595 = vmatpush.msra.mxu0 0.0
    %6596 = vmatpush.msra.mxu0 %v6289
    %6597 = vmatmul.f32.gmra.mxu0 %v6533
    %v6598 = vpop.f32.mrf.mxu0
    %v6599 = vadd.f32 %v6579, %v6598
    %6600 = vdwg.mxu0
    %v6602 = vrot.slane %v6553, 1
    %v6604 = vadd.f32 %v6329, %v6553
    %v6605 = vadd.f32 %v6340, %v6602
    %v6606 = vxor.u32 %v6604, 2147483648
    %v6607 = vxor.u32 %v6605, 2147483648
    %v6608 = vmul.f32 %v6606, 1.442695
    %v6609 = vpow.pop %v6608
    %v6610 = vmul.f32 %v6607, 1.442695
    %v6611 = vpow.pop %v6610
    %v6612 = vadd.f32 %v6609, 1.0
    %v6613 = vadd.f32 %v6611, 1.0
    %v6614 = vrcp.pop %v6612
    %v6615 = vmul.f32 %v6612, %v6614
    %v6616 = vsub.f32 1.0, %v6615
    %v6617 = vmul.f32 %v6614, %v6616
    %v6618 = vadd.f32 %v6614, %v6617
    %vm6619 = vweird.f32 %v6612
    %vm6620 = vweird.f32 %v6614
    %vm6621 = vmor %vm6619, %vm6620
    %v6622 = vsel %vm6621, %v6614, %v6618
    %v6623 = vand.u32 2147483647, %v6612
    %vm6624 = vcmp.eq.f32.partialorder %v6623, 8.507059e+37
    %v6625 = vand.u32 %v6612, 2147483648
    %v6626 = vor.u32 1.1754944e-38, %v6625
    %v6627 = vsel %vm6624, %v6626, %v6622
    %v6628 = vmul.f32 1.0, %v6627
    %v6629 = vrcp.pop %v6613
    %v6630 = vmul.f32 %v6613, %v6629
    %v6631 = vsub.f32 1.0, %v6630
    %v6632 = vmul.f32 %v6629, %v6631
    %v6633 = vadd.f32 %v6629, %v6632
    %vm6634 = vweird.f32 %v6613
    %vm6635 = vweird.f32 %v6629
    %vm6636 = vmor %vm6634, %vm6635
    %v6637 = vsel %vm6636, %v6629, %v6633
    %v6638 = vand.u32 2147483647, %v6613
    %vm6639 = vcmp.eq.f32.partialorder %v6638, 8.507059e+37
    %v6640 = vand.u32 %v6613, 2147483648
    %v6641 = vor.u32 1.1754944e-38, %v6640
    %v6642 = vsel %vm6639, %v6641, %v6637
    %v6643 = vmul.f32 1.0, %v6642
    %v6645 = vrot.slane %v6576, 1
    %v6647 = vadd.f32 %v6407, %v6576
    %v6648 = vadd.f32 %v6418, %v6645
    %v6649 = vxor.u32 %v6647, 2147483648
    %v6650 = vxor.u32 %v6648, 2147483648
    %v6651 = vmul.f32 %v6649, 1.442695
    %v6652 = vpow.pop %v6651
    %v6653 = vmul.f32 %v6650, 1.442695
    %v6654 = vpow.pop %v6653
    %v6655 = vadd.f32 %v6652, 1.0
    %v6656 = vadd.f32 %v6654, 1.0
    %v6657 = vrcp.pop %v6655
    %v6658 = vmul.f32 %v6655, %v6657
    %v6659 = vsub.f32 1.0, %v6658
    %v6660 = vmul.f32 %v6657, %v6659
    %v6661 = vadd.f32 %v6657, %v6660
    %vm6662 = vweird.f32 %v6655
    %vm6663 = vweird.f32 %v6657
    %vm6664 = vmor %vm6662, %vm6663
    %v6665 = vsel %vm6664, %v6657, %v6661
    %v6666 = vand.u32 2147483647, %v6655
    %vm6667 = vcmp.eq.f32.partialorder %v6666, 8.507059e+37
    %v6668 = vand.u32 %v6655, 2147483648
    %v6669 = vor.u32 1.1754944e-38, %v6668
    %v6670 = vsel %vm6667, %v6669, %v6665
    %v6671 = vmul.f32 1.0, %v6670
    %v6672 = vrcp.pop %v6656
    %v6673 = vmul.f32 %v6656, %v6672
    %v6674 = vsub.f32 1.0, %v6673
    %v6675 = vmul.f32 %v6672, %v6674
    %v6676 = vadd.f32 %v6672, %v6675
    %vm6677 = vweird.f32 %v6656
    %vm6678 = vweird.f32 %v6672
    %vm6679 = vmor %vm6677, %vm6678
    %v6680 = vsel %vm6679, %v6672, %v6676
    %v6681 = vand.u32 2147483647, %v6656
    %vm6682 = vcmp.eq.f32.partialorder %v6681, 8.507059e+37
    %v6683 = vand.u32 %v6656, 2147483648
    %v6684 = vor.u32 1.1754944e-38, %v6683
    %v6685 = vsel %vm6682, %v6684, %v6680
    %v6686 = vmul.f32 1.0, %v6685
    %v6688 = vrot.slane %v6599, 1
    %v6690 = vmul.f32 %v6628, %v6599
    %v6691 = vmul.f32 %v6643, %v6688
    %v6692 = vadd.f32 %v6485, %v6690
    %v6693 = vadd.f32 %v6496, %v6691
    %v6694 = vtanh.pop %v6692
    %v6695 = vtanh.pop %v6693
    %v6696 = vsub.f32 1.0, %v6671
    %v6697 = vsub.f32 1.0, %v6686
    %v6698 = vmul.f32 %v6696, %v6694
    %v6699 = vmul.f32 %v6697, %v6695
    %v6700 = vmul.f32 %v6671, 0.0
    %v6701 = vmul.f32 %v6686, 0.0
    %v6702 = vadd.f32 %v6698, %v6700
    %v6703 = vadd.f32 %v6699, %v6701
    %6706 = vst [vmem:[#allocation1] ss:$9 sm:$0xff] %v6702
    %s6707 = scalar_lea.vmem [#allocation1], 1
    %6708 = vst [vmem:[%s6707] ss:$9 sm:$0xff] %v6703
    %v6709 = vld [vmem:[#allocation1] sm:$0xff]
    %v6710 = vsel %vm3121, %v6709, 0
    %6712 = vmatpush.msra.mxu0 0.0
    %6713 = vmatpush.msra.mxu0 0.0
    %6714 = vmatpush.msra.mxu0 0.0
    %6715 = vmatpush.msra.mxu0 0.0
    %6716 = vmatpush.msra.mxu0 0.0
    %6717 = vmatpush.msra.mxu0 0.0
    %6718 = vmatpush.msra.mxu0 0.0
    %6719 = vmatpush.msra.mxu0 0.0
    %6720 = vmatpush.msra.mxu0 0.0
    %6721 = vmatpush.msra.mxu0 0.0
    %6722 = vmatpush.msra.mxu0 0.0
    %6723 = vmatpush.msra.mxu0 0.0
    %6724 = vmatpush.msra.mxu0 0.0
    %6725 = vmatpush.msra.mxu0 0.0
    %6726 = vmatpush.msra.mxu0 0.0
    %6727 = vmatpush.msra.mxu0 %v6287
    %6728 = vmatmul.f32.gmra.mxu0 %v6710
    %v6729 = vpop.f32.mrf.mxu0
    %v6730 = vadd.f32 %v6531, %v6729
    %6731 = vdwg.mxu0
    %6732 = vst [vmem:[#allocation1] ss:$9 sm:$0xff] %v6702
    %s6733 = scalar_lea.vmem [#allocation1], 1
    %6734 = vst [vmem:[%s6733] ss:$9 sm:$0xff] %v6703
    %v6735 = vld [vmem:[#allocation1] sm:$0xff]
    %v6736 = vsel %vm3121, %v6735, 0
    %6738 = vmatpush.msra.mxu0 0.0
    %6739 = vmatpush.msra.mxu0 0.0
    %6740 = vmatpush.msra.mxu0 0.0
    %6741 = vmatpush.msra.mxu0 0.0
    %6742 = vmatpush.msra.mxu0 0.0
    %6743 = vmatpush.msra.mxu0 0.0
    %6744 = vmatpush.msra.mxu0 0.0
    %6745 = vmatpush.msra.mxu0 0.0
    %6746 = vmatpush.msra.mxu0 0.0
    %6747 = vmatpush.msra.mxu0 0.0
    %6748 = vmatpush.msra.mxu0 0.0
    %6749 = vmatpush.msra.mxu0 0.0
    %6750 = vmatpush.msra.mxu0 0.0
    %6751 = vmatpush.msra.mxu0 0.0
    %6752 = vmatpush.msra.mxu0 0.0
    %6753 = vmatpush.msra.mxu0 %v6288
    %6754 = vmatmul.f32.gmra.mxu0 %v6736
    %v6755 = vpop.f32.mrf.mxu0
    %v6756 = vadd.f32 %v6556, %v6755
    %6757 = vdwg.mxu0
    %6758 = vst [vmem:[#allocation1] ss:$9 sm:$0xff] %v6702
    %s6759 = scalar_lea.vmem [#allocation1], 1
    %6760 = vst [vmem:[%s6759] ss:$9 sm:$0xff] %v6703
    %v6761 = vld [vmem:[#allocation1] sm:$0xff]
    %v6762 = vsel %vm3121, %v6761, 0
    %6764 = vmatpush.msra.mxu0 0.0
    %6765 = vmatpush.msra.mxu0 0.0
    %6766 = vmatpush.msra.mxu0 0.0
    %6767 = vmatpush.msra.mxu0 0.0
    %6768 = vmatpush.msra.mxu0 0.0
    %6769 = vmatpush.msra.mxu0 0.0
    %6770 = vmatpush.msra.mxu0 0.0
    %6771 = vmatpush.msra.mxu0 0.0
    %6772 = vmatpush.msra.mxu0 0.0
    %6773 = vmatpush.msra.mxu0 0.0
    %6774 = vmatpush.msra.mxu0 0.0
    %6775 = vmatpush.msra.mxu0 0.0
    %6776 = vmatpush.msra.mxu0 0.0
    %6777 = vmatpush.msra.mxu0 0.0
    %6778 = vmatpush.msra.mxu0 0.0
    %6779 = vmatpush.msra.mxu0 %v6289
    %6780 = vmatmul.f32.gmra.mxu0 %v6762
    %v6781 = vpop.f32.mrf.mxu0
    %v6782 = vadd.f32 %v6579, %v6781
    %6783 = vdwg.mxu0
    %v6785 = vrot.slane %v6730, 1
    %v6787 = vadd.f32 %v6332, %v6730
    %v6788 = vadd.f32 %v6342, %v6785
    %v6789 = vxor.u32 %v6787, 2147483648
    %v6790 = vxor.u32 %v6788, 2147483648
    %v6791 = vmul.f32 %v6789, 1.442695
    %v6792 = vpow.pop %v6791
    %v6793 = vmul.f32 %v6790, 1.442695
    %v6794 = vpow.pop %v6793
    %v6795 = vadd.f32 %v6792, 1.0
    %v6796 = vadd.f32 %v6794, 1.0
    %v6797 = vrcp.pop %v6795
    %v6798 = vmul.f32 %v6795, %v6797
    %v6799 = vsub.f32 1.0, %v6798
    %v6800 = vmul.f32 %v6797, %v6799
    %v6801 = vadd.f32 %v6797, %v6800
    %vm6802 = vweird.f32 %v6795
    %vm6803 = vweird.f32 %v6797
    %vm6804 = vmor %vm6802, %vm6803
    %v6805 = vsel %vm6804, %v6797, %v6801
    %v6806 = vand.u32 2147483647, %v6795
    %vm6807 = vcmp.eq.f32.partialorder %v6806, 8.507059e+37
    %v6808 = vand.u32 %v6795, 2147483648
    %v6809 = vor.u32 1.1754944e-38, %v6808
    %v6810 = vsel %vm6807, %v6809, %v6805
    %v6811 = vmul.f32 1.0, %v6810
    %v6812 = vrcp.pop %v6796
    %v6813 = vmul.f32 %v6796, %v6812
    %v6814 = vsub.f32 1.0, %v6813
    %v6815 = vmul.f32 %v6812, %v6814
    %v6816 = vadd.f32 %v6812, %v6815
    %vm6817 = vweird.f32 %v6796
    %vm6818 = vweird.f32 %v6812
    %vm6819 = vmor %vm6817, %vm6818
    %v6820 = vsel %vm6819, %v6812, %v6816
    %v6821 = vand.u32 2147483647, %v6796
    %vm6822 = vcmp.eq.f32.partialorder %v6821, 8.507059e+37
    %v6823 = vand.u32 %v6796, 2147483648
    %v6824 = vor.u32 1.1754944e-38, %v6823
    %v6825 = vsel %vm6822, %v6824, %v6820
    %v6826 = vmul.f32 1.0, %v6825
    %v6828 = vrot.slane %v6756, 1
    %v6830 = vadd.f32 %v6410, %v6756
    %v6831 = vadd.f32 %v6420, %v6828
    %v6832 = vxor.u32 %v6830, 2147483648
    %v6833 = vxor.u32 %v6831, 2147483648
    %v6834 = vmul.f32 %v6832, 1.442695
    %v6835 = vpow.pop %v6834
    %v6836 = vmul.f32 %v6833, 1.442695
    %v6837 = vpow.pop %v6836
    %v6838 = vadd.f32 %v6835, 1.0
    %v6839 = vadd.f32 %v6837, 1.0
    %v6840 = vrcp.pop %v6838
    %v6841 = vmul.f32 %v6838, %v6840
    %v6842 = vsub.f32 1.0, %v6841
    %v6843 = vmul.f32 %v6840, %v6842
    %v6844 = vadd.f32 %v6840, %v6843
    %vm6845 = vweird.f32 %v6838
    %vm6846 = vweird.f32 %v6840
    %vm6847 = vmor %vm6845, %vm6846
    %v6848 = vsel %vm6847, %v6840, %v6844
    %v6849 = vand.u32 2147483647, %v6838
    %vm6850 = vcmp.eq.f32.partialorder %v6849, 8.507059e+37
    %v6851 = vand.u32 %v6838, 2147483648
    %v6852 = vor.u32 1.1754944e-38, %v6851
    %v6853 = vsel %vm6850, %v6852, %v6848
    %v6854 = vmul.f32 1.0, %v6853
    %v6855 = vrcp.pop %v6839
    %v6856 = vmul.f32 %v6839, %v6855
    %v6857 = vsub.f32 1.0, %v6856
    %v6858 = vmul.f32 %v6855, %v6857
    %v6859 = vadd.f32 %v6855, %v6858
    %vm6860 = vweird.f32 %v6839
    %vm6861 = vweird.f32 %v6855
    %vm6862 = vmor %vm6860, %vm6861
    %v6863 = vsel %vm6862, %v6855, %v6859
    %v6864 = vand.u32 2147483647, %v6839
    %vm6865 = vcmp.eq.f32.partialorder %v6864, 8.507059e+37
    %v6866 = vand.u32 %v6839, 2147483648
    %v6867 = vor.u32 1.1754944e-38, %v6866
    %v6868 = vsel %vm6865, %v6867, %v6863
    %v6869 = vmul.f32 1.0, %v6868
    %v6871 = vrot.slane %v6782, 1
    %v6873 = vmul.f32 %v6811, %v6782
    %v6874 = vmul.f32 %v6826, %v6871
    %v6875 = vadd.f32 %v6488, %v6873
    %v6876 = vadd.f32 %v6498, %v6874
    %v6877 = vtanh.pop %v6875
    %v6878 = vtanh.pop %v6876
    %v6879 = vsub.f32 1.0, %v6854
    %v6880 = vsub.f32 1.0, %v6869
    %v6881 = vmul.f32 %v6879, %v6877
    %v6882 = vmul.f32 %v6880, %v6878
    %v6883 = vmul.f32 %v6854, %v6702
    %v6884 = vmul.f32 %v6869, %v6703
    %v6885 = vadd.f32 %v6881, %v6883
    %v6886 = vadd.f32 %v6882, %v6884
    %6889 = vst [vmem:[#allocation1] ss:$9 sm:$0xff] %v6885
    %s6890 = scalar_lea.vmem [#allocation1], 1
    %6891 = vst [vmem:[%s6890] ss:$9 sm:$0xff] %v6886
    %v6892 = vld [vmem:[#allocation1] sm:$0xff]
    %v6893 = vsel %vm3121, %v6892, 0
    %6895 = vmatpush.msra.mxu0 0.0
    %6896 = vmatpush.msra.mxu0 0.0
    %6897 = vmatpush.msra.mxu0 0.0
    %6898 = vmatpush.msra.mxu0 0.0
    %6899 = vmatpush.msra.mxu0 0.0
    %6900 = vmatpush.msra.mxu0 0.0
    %6901 = vmatpush.msra.mxu0 0.0
    %6902 = vmatpush.msra.mxu0 0.0
    %6903 = vmatpush.msra.mxu0 0.0
    %6904 = vmatpush.msra.mxu0 0.0
    %6905 = vmatpush.msra.mxu0 0.0
    %6906 = vmatpush.msra.mxu0 0.0
    %6907 = vmatpush.msra.mxu0 0.0
    %6908 = vmatpush.msra.mxu0 0.0
    %6909 = vmatpush.msra.mxu0 0.0
    %6910 = vmatpush.msra.mxu0 %v6287
    %6911 = vmatmul.f32.gmra.mxu0 %v6893
    %v6912 = vpop.f32.mrf.mxu0
    %v6913 = vadd.f32 %v6531, %v6912
    %6914 = vdwg.mxu0
    %6915 = vst [vmem:[#allocation1] ss:$9 sm:$0xff] %v6885
    %s6916 = scalar_lea.vmem [#allocation1], 1
    %6917 = vst [vmem:[%s6916] ss:$9 sm:$0xff] %v6886
    %v6918 = vld [vmem:[#allocation1] sm:$0xff]
    %v6919 = vsel %vm3121, %v6918, 0
    %6921 = vmatpush.msra.mxu0 0.0
    %6922 = vmatpush.msra.mxu0 0.0
    %6923 = vmatpush.msra.mxu0 0.0
    %6924 = vmatpush.msra.mxu0 0.0
    %6925 = vmatpush.msra.mxu0 0.0
    %6926 = vmatpush.msra.mxu0 0.0
    %6927 = vmatpush.msra.mxu0 0.0
    %6928 = vmatpush.msra.mxu0 0.0
    %6929 = vmatpush.msra.mxu0 0.0
    %6930 = vmatpush.msra.mxu0 0.0
    %6931 = vmatpush.msra.mxu0 0.0
    %6932 = vmatpush.msra.mxu0 0.0
    %6933 = vmatpush.msra.mxu0 0.0
    %6934 = vmatpush.msra.mxu0 0.0
    %6935 = vmatpush.msra.mxu0 0.0
    %6936 = vmatpush.msra.mxu0 %v6288
    %6937 = vmatmul.f32.gmra.mxu0 %v6919
    %v6938 = vpop.f32.mrf.mxu0
    %v6939 = vadd.f32 %v6556, %v6938
    %6940 = vdwg.mxu0
    %6941 = vst [vmem:[#allocation1] ss:$9 sm:$0xff] %v6885
    %s6942 = scalar_lea.vmem [#allocation1], 1
    %6943 = vst [vmem:[%s6942] ss:$9 sm:$0xff] %v6886
    %v6944 = vld [vmem:[#allocation1] sm:$0xff]
    %v6945 = vsel %vm3121, %v6944, 0
    %6947 = vmatpush.msra.mxu0 0.0
    %6948 = vmatpush.msra.mxu0 0.0
    %6949 = vmatpush.msra.mxu0 0.0
    %6950 = vmatpush.msra.mxu0 0.0
    %6951 = vmatpush.msra.mxu0 0.0
    %6952 = vmatpush.msra.mxu0 0.0
    %6953 = vmatpush.msra.mxu0 0.0
    %6954 = vmatpush.msra.mxu0 0.0
    %6955 = vmatpush.msra.mxu0 0.0
    %6956 = vmatpush.msra.mxu0 0.0
    %6957 = vmatpush.msra.mxu0 0.0
    %6958 = vmatpush.msra.mxu0 0.0
    %6959 = vmatpush.msra.mxu0 0.0
    %6960 = vmatpush.msra.mxu0 0.0
    %6961 = vmatpush.msra.mxu0 0.0
    %6962 = vmatpush.msra.mxu0 %v6289
    %6963 = vmatmul.f32.gmra.mxu0 %v6945
    %v6964 = vpop.f32.mrf.mxu0
    %v6965 = vadd.f32 %v6579, %v6964
    %6966 = vdwg.mxu0
    %v6968 = vrot.slane %v6913, 1
    %v6970 = vadd.f32 %v6335, %v6913
    %v6971 = vadd.f32 %v6345, %v6968
    %v6972 = vxor.u32 %v6970, 2147483648
    %v6973 = vxor.u32 %v6971, 2147483648
    %v6974 = vmul.f32 %v6972, 1.442695
    %v6975 = vpow.pop %v6974
    %v6976 = vmul.f32 %v6973, 1.442695
    %v6977 = vpow.pop %v6976
    %v6978 = vadd.f32 %v6975, 1.0
    %v6979 = vadd.f32 %v6977, 1.0
    %v6980 = vrcp.pop %v6978
    %v6981 = vmul.f32 %v6978, %v6980
    %v6982 = vsub.f32 1.0, %v6981
    %v6983 = vmul.f32 %v6980, %v6982
    %v6984 = vadd.f32 %v6980, %v6983
    %vm6985 = vweird.f32 %v6978
    %vm6986 = vweird.f32 %v6980
    %vm6987 = vmor %vm6985, %vm6986
    %v6988 = vsel %vm6987, %v6980, %v6984
    %v6989 = vand.u32 2147483647, %v6978
    %vm6990 = vcmp.eq.f32.partialorder %v6989, 8.507059e+37
    %v6991 = vand.u32 %v6978, 2147483648
    %v6992 = vor.u32 1.1754944e-38, %v6991
    %v6993 = vsel %vm6990, %v6992, %v6988
    %v6994 = vmul.f32 1.0, %v6993
    %v6995 = vrcp.pop %v6979
    %v6996 = vmul.f32 %v6979, %v6995
    %v6997 = vsub.f32 1.0, %v6996
    %v6998 = vmul.f32 %v6995, %v6997
    %v6999 = vadd.f32 %v6995, %v6998
    %vm7000 = vweird.f32 %v6979
    %vm7001 = vweird.f32 %v6995
    %vm7002 = vmor %vm7000, %vm7001
    %v7003 = vsel %vm7002, %v6995, %v6999
    %v7004 = vand.u32 2147483647, %v6979
    %vm7005 = vcmp.eq.f32.partialorder %v7004, 8.507059e+37
    %v7006 = vand.u32 %v6979, 2147483648
    %v7007 = vor.u32 1.1754944e-38, %v7006
    %v7008 = vsel %vm7005, %v7007, %v7003
    %v7009 = vmul.f32 1.0, %v7008
    %v7011 = vrot.slane %v6939, 1
    %v7013 = vadd.f32 %v6413, %v6939
    %v7014 = vadd.f32 %v6423, %v7011
    %v7015 = vxor.u32 %v7013, 2147483648
    %v7016 = vxor.u32 %v7014, 2147483648
    %v7017 = vmul.f32 %v7015, 1.442695
    %v7018 = vpow.pop %v7017
    %v7019 = vmul.f32 %v7016, 1.442695
    %v7020 = vpow.pop %v7019
    %v7021 = vadd.f32 %v7018, 1.0
    %v7022 = vadd.f32 %v7020, 1.0
    %v7023 = vrcp.pop %v7021
    %v7024 = vmul.f32 %v7021, %v7023
    %v7025 = vsub.f32 1.0, %v7024
    %v7026 = vmul.f32 %v7023, %v7025
    %v7027 = vadd.f32 %v7023, %v7026
    %vm7028 = vweird.f32 %v7021
    %vm7029 = vweird.f32 %v7023
    %vm7030 = vmor %vm7028, %vm7029
    %v7031 = vsel %vm7030, %v7023, %v7027
    %v7032 = vand.u32 2147483647, %v7021
    %vm7033 = vcmp.eq.f32.partialorder %v7032, 8.507059e+37
    %v7034 = vand.u32 %v7021, 2147483648
    %v7035 = vor.u32 1.1754944e-38, %v7034
    %v7036 = vsel %vm7033, %v7035, %v7031
    %v7037 = vmul.f32 1.0, %v7036
    %v7038 = vrcp.pop %v7022
    %v7039 = vmul.f32 %v7022, %v7038
    %v7040 = vsub.f32 1.0, %v7039
    %v7041 = vmul.f32 %v7038, %v7040
    %v7042 = vadd.f32 %v7038, %v7041
    %vm7043 = vweird.f32 %v7022
    %vm7044 = vweird.f32 %v7038
    %vm7045 = vmor %vm7043, %vm7044
    %v7046 = vsel %vm7045, %v7038, %v7042
    %v7047 = vand.u32 2147483647, %v7022
    %vm7048 = vcmp.eq.f32.partialorder %v7047, 8.507059e+37
    %v7049 = vand.u32 %v7022, 2147483648
    %v7050 = vor.u32 1.1754944e-38, %v7049
    %v7051 = vsel %vm7048, %v7050, %v7046
    %v7052 = vmul.f32 1.0, %v7051
    %v7054 = vrot.slane %v6965, 1
    %v7056 = vmul.f32 %v6994, %v6965
    %v7057 = vmul.f32 %v7009, %v7054
    %v7058 = vadd.f32 %v6491, %v7056
    %v7059 = vadd.f32 %v6501, %v7057
    %v7060 = vtanh.pop %v7058
    %v7061 = vtanh.pop %v7059
    %v7062 = vsub.f32 1.0, %v7037
    %v7063 = vsub.f32 1.0, %v7052
    %v7064 = vmul.f32 %v7062, %v7060
    %v7065 = vmul.f32 %v7063, %v7061
    %v7066 = vmul.f32 %v7037, %v6885
    %v7067 = vmul.f32 %v7052, %v6886
    %v7068 = vadd.f32 %v7064, %v7066
    %v7069 = vadd.f32 %v7065, %v7067
    %7072 = vst [vmem:[#allocation1] ss:$9 sm:$0xff] %v7068
    %s7073 = scalar_lea.vmem [#allocation1], 1
    %7074 = vst [vmem:[%s7073] ss:$9 sm:$0xff] %v7069
    %v7075 = vld [vmem:[#allocation1] sm:$0xff]
    %v7076 = vsel %vm3121, %v7075, 0
    %7078 = vmatpush.msra.mxu0 0.0
    %7079 = vmatpush.msra.mxu0 0.0
    %7080 = vmatpush.msra.mxu0 0.0
    %7081 = vmatpush.msra.mxu0 0.0
    %7082 = vmatpush.msra.mxu0 0.0
    %7083 = vmatpush.msra.mxu0 0.0
    %7084 = vmatpush.msra.mxu0 0.0
    %7085 = vmatpush.msra.mxu0 0.0
    %7086 = vmatpush.msra.mxu0 0.0
    %7087 = vmatpush.msra.mxu0 0.0
    %7088 = vmatpush.msra.mxu0 0.0
    %7089 = vmatpush.msra.mxu0 0.0
    %7090 = vmatpush.msra.mxu0 0.0
    %7091 = vmatpush.msra.mxu0 0.0
    %7092 = vmatpush.msra.mxu0 0.0
    %7093 = vmatpush.msra.mxu0 %v6287
    %7094 = vmatmul.f32.gmra.mxu0 %v7076
    %v7095 = vpop.f32.mrf.mxu0
    %v7096 = vadd.f32 %v6531, %v7095
    %7097 = vdwg.mxu0
    %7098 = vst [vmem:[#allocation1] ss:$9 sm:$0xff] %v7068
    %s7099 = scalar_lea.vmem [#allocation1], 1
    %7100 = vst [vmem:[%s7099] ss:$9 sm:$0xff] %v7069
    %v7101 = vld [vmem:[#allocation1] sm:$0xff]
    %v7102 = vsel %vm3121, %v7101, 0
    %7104 = vmatpush.msra.mxu0 0.0
    %7105 = vmatpush.msra.mxu0 0.0
    %7106 = vmatpush.msra.mxu0 0.0
    %7107 = vmatpush.msra.mxu0 0.0
    %7108 = vmatpush.msra.mxu0 0.0
    %7109 = vmatpush.msra.mxu0 0.0
    %7110 = vmatpush.msra.mxu0 0.0
    %7111 = vmatpush.msra.mxu0 0.0
    %7112 = vmatpush.msra.mxu0 0.0
    %7113 = vmatpush.msra.mxu0 0.0
    %7114 = vmatpush.msra.mxu0 0.0
    %7115 = vmatpush.msra.mxu0 0.0
    %7116 = vmatpush.msra.mxu0 0.0
    %7117 = vmatpush.msra.mxu0 0.0
    %7118 = vmatpush.msra.mxu0 0.0
    %7119 = vmatpush.msra.mxu0 %v6288
    %7120 = vmatmul.f32.gmra.mxu0 %v7102
    %v7121 = vpop.f32.mrf.mxu0
    %v7122 = vadd.f32 %v6556, %v7121
    %7123 = vdwg.mxu0
    %7124 = vst [vmem:[#allocation1] ss:$9 sm:$0xff] %v7068
    %s7125 = scalar_lea.vmem [#allocation1], 1
    %7126 = vst [vmem:[%s7125] ss:$9 sm:$0xff] %v7069
    %v7127 = vld [vmem:[#allocation1] sm:$0xff]
    %v7128 = vsel %vm3121, %v7127, 0
    %7130 = vmatpush.msra.mxu0 0.0
    %7131 = vmatpush.msra.mxu0 0.0
    %7132 = vmatpush.msra.mxu0 0.0
    %7133 = vmatpush.msra.mxu0 0.0
    %7134 = vmatpush.msra.mxu0 0.0
    %7135 = vmatpush.msra.mxu0 0.0
    %7136 = vmatpush.msra.mxu0 0.0
    %7137 = vmatpush.msra.mxu0 0.0
    %7138 = vmatpush.msra.mxu0 0.0
    %7139 = vmatpush.msra.mxu0 0.0
    %7140 = vmatpush.msra.mxu0 0.0
    %7141 = vmatpush.msra.mxu0 0.0
    %7142 = vmatpush.msra.mxu0 0.0
    %7143 = vmatpush.msra.mxu0 0.0
    %7144 = vmatpush.msra.mxu0 0.0
    %7145 = vmatpush.msra.mxu0 %v6289
    %7146 = vmatmul.f32.gmra.mxu0 %v7128
    %v7147 = vpop.f32.mrf.mxu0
    %v7148 = vadd.f32 %v6579, %v7147
    %7149 = vdwg.mxu0
    %v7151 = vrot.slane %v7096, 1
    %v7153 = vadd.f32 %v6337, %v7096
    %v7154 = vadd.f32 %v6348, %v7151
    %v7155 = vxor.u32 %v7153, 2147483648
    %v7156 = vxor.u32 %v7154, 2147483648
    %v7157 = vmul.f32 %v7155, 1.442695
    %v7158 = vpow.pop %v7157
    %v7159 = vmul.f32 %v7156, 1.442695
    %v7160 = vpow.pop %v7159
    %v7161 = vadd.f32 %v7158, 1.0
    %v7162 = vadd.f32 %v7160, 1.0
    %v7163 = vrcp.pop %v7161
    %v7164 = vmul.f32 %v7161, %v7163
    %v7165 = vsub.f32 1.0, %v7164
    %v7166 = vmul.f32 %v7163, %v7165
    %v7167 = vadd.f32 %v7163, %v7166
    %vm7168 = vweird.f32 %v7161
    %vm7169 = vweird.f32 %v7163
    %vm7170 = vmor %vm7168, %vm7169
    %v7171 = vsel %vm7170, %v7163, %v7167
    %v7172 = vand.u32 2147483647, %v7161
    %vm7173 = vcmp.eq.f32.partialorder %v7172, 8.507059e+37
    %v7174 = vand.u32 %v7161, 2147483648
    %v7175 = vor.u32 1.1754944e-38, %v7174
    %v7176 = vsel %vm7173, %v7175, %v7171
    %v7177 = vmul.f32 1.0, %v7176
    %v7178 = vrcp.pop %v7162
    %v7179 = vmul.f32 %v7162, %v7178
    %v7180 = vsub.f32 1.0, %v7179
    %v7181 = vmul.f32 %v7178, %v7180
    %v7182 = vadd.f32 %v7178, %v7181
    %vm7183 = vweird.f32 %v7162
    %vm7184 = vweird.f32 %v7178
    %vm7185 = vmor %vm7183, %vm7184
    %v7186 = vsel %vm7185, %v7178, %v7182
    %v7187 = vand.u32 2147483647, %v7162
    %vm7188 = vcmp.eq.f32.partialorder %v7187, 8.507059e+37
    %v7189 = vand.u32 %v7162, 2147483648
    %v7190 = vor.u32 1.1754944e-38, %v7189
    %v7191 = vsel %vm7188, %v7190, %v7186
    %v7192 = vmul.f32 1.0, %v7191
    %v7194 = vrot.slane %v7122, 1
    %v7196 = vadd.f32 %v6415, %v7122
    %v7197 = vadd.f32 %v6426, %v7194
    %v7198 = vxor.u32 %v7196, 2147483648
    %v7199 = vxor.u32 %v7197, 2147483648
    %v7200 = vmul.f32 %v7198, 1.442695
    %v7201 = vpow.pop %v7200
    %v7202 = vmul.f32 %v7199, 1.442695
    %v7203 = vpow.pop %v7202
    %v7204 = vadd.f32 %v7201, 1.0
    %v7205 = vadd.f32 %v7203, 1.0
    %v7206 = vrcp.pop %v7204
    %v7207 = vmul.f32 %v7204, %v7206
    %v7208 = vsub.f32 1.0, %v7207
    %v7209 = vmul.f32 %v7206, %v7208
    %v7210 = vadd.f32 %v7206, %v7209
    %vm7211 = vweird.f32 %v7204
    %vm7212 = vweird.f32 %v7206
    %vm7213 = vmor %vm7211, %vm7212
    %v7214 = vsel %vm7213, %v7206, %v7210
    %v7215 = vand.u32 2147483647, %v7204
    %vm7216 = vcmp.eq.f32.partialorder %v7215, 8.507059e+37
    %v7217 = vand.u32 %v7204, 2147483648
    %v7218 = vor.u32 1.1754944e-38, %v7217
    %v7219 = vsel %vm7216, %v7218, %v7214
    %v7220 = vmul.f32 1.0, %v7219
    %v7221 = vrcp.pop %v7205
    %v7222 = vmul.f32 %v7205, %v7221
    %v7223 = vsub.f32 1.0, %v7222
    %v7224 = vmul.f32 %v7221, %v7223
    %v7225 = vadd.f32 %v7221, %v7224
    %vm7226 = vweird.f32 %v7205
    %vm7227 = vweird.f32 %v7221
    %vm7228 = vmor %vm7226, %vm7227
    %v7229 = vsel %vm7228, %v7221, %v7225
    %v7230 = vand.u32 2147483647, %v7205
    %vm7231 = vcmp.eq.f32.partialorder %v7230, 8.507059e+37
    %v7232 = vand.u32 %v7205, 2147483648
    %v7233 = vor.u32 1.1754944e-38, %v7232
    %v7234 = vsel %vm7231, %v7233, %v7229
    %v7235 = vmul.f32 1.0, %v7234
    %v7237 = vrot.slane %v7148, 1
    %v7239 = vmul.f32 %v7177, %v7148
    %v7240 = vmul.f32 %v7192, %v7237
    %v7241 = vadd.f32 %v6493, %v7239
    %v7242 = vadd.f32 %v6504, %v7240
    %v7243 = vtanh.pop %v7241
    %v7244 = vtanh.pop %v7242
    %v7245 = vsub.f32 1.0, %v7220
    %v7246 = vsub.f32 1.0, %v7235
    %v7247 = vmul.f32 %v7245, %v7243
    %v7248 = vmul.f32 %v7246, %v7244
    %v7249 = vmul.f32 %v7220, %v7068
    %v7250 = vmul.f32 %v7235, %v7069
    %v7251 = vadd.f32 %v7247, %v7249
    %v7252 = vadd.f32 %v7248, %v7250
    %v7253 = vadd.f32 %v6330, %v6553
    %v7254 = vadd.f32 %v6341, %v6602
    %v7255 = vxor.u32 %v7253, 2147483648
    %v7256 = vxor.u32 %v7254, 2147483648
    %v7257 = vmul.f32 %v7255, 1.442695
    %v7258 = vpow.pop %v7257
    %v7259 = vmul.f32 %v7256, 1.442695
    %v7260 = vpow.pop %v7259
    %v7261 = vadd.f32 %v7258, 1.0
    %v7262 = vadd.f32 %v7260, 1.0
    %v7263 = vrcp.pop %v7261
    %v7264 = vmul.f32 %v7261, %v7263
    %v7265 = vsub.f32 1.0, %v7264
    %v7266 = vmul.f32 %v7263, %v7265
    %v7267 = vadd.f32 %v7263, %v7266
    %vm7268 = vweird.f32 %v7261
    %vm7269 = vweird.f32 %v7263
    %vm7270 = vmor %vm7268, %vm7269
    %v7271 = vsel %vm7270, %v7263, %v7267
    %v7272 = vand.u32 2147483647, %v7261
    %vm7273 = vcmp.eq.f32.partialorder %v7272, 8.507059e+37
    %v7274 = vand.u32 %v7261, 2147483648
    %v7275 = vor.u32 1.1754944e-38, %v7274
    %v7276 = vsel %vm7273, %v7275, %v7271
    %v7277 = vmul.f32 1.0, %v7276
    %v7278 = vrcp.pop %v7262
    %v7279 = vmul.f32 %v7262, %v7278
    %v7280 = vsub.f32 1.0, %v7279
    %v7281 = vmul.f32 %v7278, %v7280
    %v7282 = vadd.f32 %v7278, %v7281
    %vm7283 = vweird.f32 %v7262
    %vm7284 = vweird.f32 %v7278
    %vm7285 = vmor %vm7283, %vm7284
    %v7286 = vsel %vm7285, %v7278, %v7282
    %v7287 = vand.u32 2147483647, %v7262
    %vm7288 = vcmp.eq.f32.partialorder %v7287, 8.507059e+37
    %v7289 = vand.u32 %v7262, 2147483648
    %v7290 = vor.u32 1.1754944e-38, %v7289
    %v7291 = vsel %vm7288, %v7290, %v7286
    %v7292 = vmul.f32 1.0, %v7291
    %v7293 = vadd.f32 %v6408, %v6576
    %v7294 = vadd.f32 %v6419, %v6645
    %v7295 = vxor.u32 %v7293, 2147483648
    %v7296 = vxor.u32 %v7294, 2147483648
    %v7297 = vmul.f32 %v7295, 1.442695
    %v7298 = vpow.pop %v7297
    %v7299 = vmul.f32 %v7296, 1.442695
    %v7300 = vpow.pop %v7299
    %v7301 = vadd.f32 %v7298, 1.0
    %v7302 = vadd.f32 %v7300, 1.0
    %v7303 = vrcp.pop %v7301
    %v7304 = vmul.f32 %v7301, %v7303
    %v7305 = vsub.f32 1.0, %v7304
    %v7306 = vmul.f32 %v7303, %v7305
    %v7307 = vadd.f32 %v7303, %v7306
    %vm7308 = vweird.f32 %v7301
    %vm7309 = vweird.f32 %v7303
    %vm7310 = vmor %vm7308, %vm7309
    %v7311 = vsel %vm7310, %v7303, %v7307
    %v7312 = vand.u32 2147483647, %v7301
    %vm7313 = vcmp.eq.f32.partialorder %v7312, 8.507059e+37
    %v7314 = vand.u32 %v7301, 2147483648
    %v7315 = vor.u32 1.1754944e-38, %v7314
    %v7316 = vsel %vm7313, %v7315, %v7311
    %v7317 = vmul.f32 1.0, %v7316
    %v7318 = vrcp.pop %v7302
    %v7319 = vmul.f32 %v7302, %v7318
    %v7320 = vsub.f32 1.0, %v7319
    %v7321 = vmul.f32 %v7318, %v7320
    %v7322 = vadd.f32 %v7318, %v7321
    %vm7323 = vweird.f32 %v7302
    %vm7324 = vweird.f32 %v7318
    %vm7325 = vmor %vm7323, %vm7324
    %v7326 = vsel %vm7325, %v7318, %v7322
    %v7327 = vand.u32 2147483647, %v7302
    %vm7328 = vcmp.eq.f32.partialorder %v7327, 8.507059e+37
    %v7329 = vand.u32 %v7302, 2147483648
    %v7330 = vor.u32 1.1754944e-38, %v7329
    %v7331 = vsel %vm7328, %v7330, %v7326
    %v7332 = vmul.f32 1.0, %v7331
    %v7333 = vmul.f32 %v7277, %v6599
    %v7334 = vmul.f32 %v7292, %v6688
    %v7335 = vadd.f32 %v6486, %v7333
    %v7336 = vadd.f32 %v6497, %v7334
    %v7337 = vtanh.pop %v7335
    %v7338 = vtanh.pop %v7336
    %v7339 = vsub.f32 1.0, %v7317
    %v7340 = vsub.f32 1.0, %v7332
    %v7341 = vmul.f32 %v7339, %v7337
    %v7342 = vmul.f32 %v7340, %v7338
    %v7343 = vmul.f32 %v7317, 0.0
    %v7344 = vmul.f32 %v7332, 0.0
    %v7345 = vadd.f32 %v7341, %v7343
    %v7346 = vadd.f32 %v7342, %v7344
    %7349 = vst [vmem:[#allocation1] ss:$9 sm:$0xff] %v7345
    %s7350 = scalar_lea.vmem [#allocation1], 1
    %7351 = vst [vmem:[%s7350] ss:$9 sm:$0xff] %v7346
    %v7352 = vld [vmem:[#allocation1] sm:$0xff]
    %v7353 = vsel %vm3121, %v7352, 0
    %7355 = vmatpush.msra.mxu0 0.0
    %7356 = vmatpush.msra.mxu0 0.0
    %7357 = vmatpush.msra.mxu0 0.0
    %7358 = vmatpush.msra.mxu0 0.0
    %7359 = vmatpush.msra.mxu0 0.0
    %7360 = vmatpush.msra.mxu0 0.0
    %7361 = vmatpush.msra.mxu0 0.0
    %7362 = vmatpush.msra.mxu0 0.0
    %7363 = vmatpush.msra.mxu0 0.0
    %7364 = vmatpush.msra.mxu0 0.0
    %7365 = vmatpush.msra.mxu0 0.0
    %7366 = vmatpush.msra.mxu0 0.0
    %7367 = vmatpush.msra.mxu0 0.0
    %7368 = vmatpush.msra.mxu0 0.0
    %7369 = vmatpush.msra.mxu0 0.0
    %7370 = vmatpush.msra.mxu0 %v6287
    %7371 = vmatmul.f32.gmra.mxu0 %v7353
    %v7372 = vpop.f32.mrf.mxu0
    %v7373 = vadd.f32 %v6531, %v7372
    %7374 = vdwg.mxu0
    %7375 = vst [vmem:[#allocation1] ss:$9 sm:$0xff] %v7345
    %s7376 = scalar_lea.vmem [#allocation1], 1
    %7377 = vst [vmem:[%s7376] ss:$9 sm:$0xff] %v7346
    %v7378 = vld [vmem:[#allocation1] sm:$0xff]
    %v7379 = vsel %vm3121, %v7378, 0
    %7381 = vmatpush.msra.mxu0 0.0
    %7382 = vmatpush.msra.mxu0 0.0
    %7383 = vmatpush.msra.mxu0 0.0
    %7384 = vmatpush.msra.mxu0 0.0
    %7385 = vmatpush.msra.mxu0 0.0
    %7386 = vmatpush.msra.mxu0 0.0
    %7387 = vmatpush.msra.mxu0 0.0
    %7388 = vmatpush.msra.mxu0 0.0
    %7389 = vmatpush.msra.mxu0 0.0
    %7390 = vmatpush.msra.mxu0 0.0
    %7391 = vmatpush.msra.mxu0 0.0
    %7392 = vmatpush.msra.mxu0 0.0
    %7393 = vmatpush.msra.mxu0 0.0
    %7394 = vmatpush.msra.mxu0 0.0
    %7395 = vmatpush.msra.mxu0 0.0
    %7396 = vmatpush.msra.mxu0 %v6288
    %7397 = vmatmul.f32.gmra.mxu0 %v7379
    %v7398 = vpop.f32.mrf.mxu0
    %v7399 = vadd.f32 %v6556, %v7398
    %7400 = vdwg.mxu0
    %7401 = vst [vmem:[#allocation1] ss:$9 sm:$0xff] %v7345
    %s7402 = scalar_lea.vmem [#allocation1], 1
    %7403 = vst [vmem:[%s7402] ss:$9 sm:$0xff] %v7346
    %v7404 = vld [vmem:[#allocation1] sm:$0xff]
    %v7405 = vsel %vm3121, %v7404, 0
    %7407 = vmatpush.msra.mxu0 0.0
    %7408 = vmatpush.msra.mxu0 0.0
    %7409 = vmatpush.msra.mxu0 0.0
    %7410 = vmatpush.msra.mxu0 0.0
    %7411 = vmatpush.msra.mxu0 0.0
    %7412 = vmatpush.msra.mxu0 0.0
    %7413 = vmatpush.msra.mxu0 0.0
    %7414 = vmatpush.msra.mxu0 0.0
    %7415 = vmatpush.msra.mxu0 0.0
    %7416 = vmatpush.msra.mxu0 0.0
    %7417 = vmatpush.msra.mxu0 0.0
    %7418 = vmatpush.msra.mxu0 0.0
    %7419 = vmatpush.msra.mxu0 0.0
    %7420 = vmatpush.msra.mxu0 0.0
    %7421 = vmatpush.msra.mxu0 0.0
    %7422 = vmatpush.msra.mxu0 %v6289
    %7423 = vmatmul.f32.gmra.mxu0 %v7405
    %v7424 = vpop.f32.mrf.mxu0
    %v7425 = vadd.f32 %v6579, %v7424
    %7426 = vdwg.mxu0
    %v7428 = vrot.slane %v7373, 1
    %v7430 = vadd.f32 %v6333, %v7373
    %v7431 = vadd.f32 %v6343, %v7428
    %v7432 = vxor.u32 %v7430, 2147483648
    %v7433 = vxor.u32 %v7431, 2147483648
    %v7434 = vmul.f32 %v7432, 1.442695
    %v7435 = vpow.pop %v7434
    %v7436 = vmul.f32 %v7433, 1.442695
    %v7437 = vpow.pop %v7436
    %v7438 = vadd.f32 %v7435, 1.0
    %v7439 = vadd.f32 %v7437, 1.0
    %v7440 = vrcp.pop %v7438
    %v7441 = vmul.f32 %v7438, %v7440
    %v7442 = vsub.f32 1.0, %v7441
    %v7443 = vmul.f32 %v7440, %v7442
    %v7444 = vadd.f32 %v7440, %v7443
    %vm7445 = vweird.f32 %v7438
    %vm7446 = vweird.f32 %v7440
    %vm7447 = vmor %vm7445, %vm7446
    %v7448 = vsel %vm7447, %v7440, %v7444
    %v7449 = vand.u32 2147483647, %v7438
    %vm7450 = vcmp.eq.f32.partialorder %v7449, 8.507059e+37
    %v7451 = vand.u32 %v7438, 2147483648
    %v7452 = vor.u32 1.1754944e-38, %v7451
    %v7453 = vsel %vm7450, %v7452, %v7448
    %v7454 = vmul.f32 1.0, %v7453
    %v7455 = vrcp.pop %v7439
    %v7456 = vmul.f32 %v7439, %v7455
    %v7457 = vsub.f32 1.0, %v7456
    %v7458 = vmul.f32 %v7455, %v7457
    %v7459 = vadd.f32 %v7455, %v7458
    %vm7460 = vweird.f32 %v7439
    %vm7461 = vweird.f32 %v7455
    %vm7462 = vmor %vm7460, %vm7461
    %v7463 = vsel %vm7462, %v7455, %v7459
    %v7464 = vand.u32 2147483647, %v7439
    %vm7465 = vcmp.eq.f32.partialorder %v7464, 8.507059e+37
    %v7466 = vand.u32 %v7439, 2147483648
    %v7467 = vor.u32 1.1754944e-38, %v7466
    %v7468 = vsel %vm7465, %v7467, %v7463
    %v7469 = vmul.f32 1.0, %v7468
    %v7471 = vrot.slane %v7399, 1
    %v7473 = vadd.f32 %v6411, %v7399
    %v7474 = vadd.f32 %v6421, %v7471
    %v7475 = vxor.u32 %v7473, 2147483648
    %v7476 = vxor.u32 %v7474, 2147483648
    %v7477 = vmul.f32 %v7475, 1.442695
    %v7478 = vpow.pop %v7477
    %v7479 = vmul.f32 %v7476, 1.442695
    %v7480 = vpow.pop %v7479
    %v7481 = vadd.f32 %v7478, 1.0
    %v7482 = vadd.f32 %v7480, 1.0
    %v7483 = vrcp.pop %v7481
    %v7484 = vmul.f32 %v7481, %v7483
    %v7485 = vsub.f32 1.0, %v7484
    %v7486 = vmul.f32 %v7483, %v7485
    %v7487 = vadd.f32 %v7483, %v7486
    %vm7488 = vweird.f32 %v7481
    %vm7489 = vweird.f32 %v7483
    %vm7490 = vmor %vm7488, %vm7489
    %v7491 = vsel %vm7490, %v7483, %v7487
    %v7492 = vand.u32 2147483647, %v7481
    %vm7493 = vcmp.eq.f32.partialorder %v7492, 8.507059e+37
    %v7494 = vand.u32 %v7481, 2147483648
    %v7495 = vor.u32 1.1754944e-38, %v7494
    %v7496 = vsel %vm7493, %v7495, %v7491
    %v7497 = vmul.f32 1.0, %v7496
    %v7498 = vrcp.pop %v7482
    %v7499 = vmul.f32 %v7482, %v7498
    %v7500 = vsub.f32 1.0, %v7499
    %v7501 = vmul.f32 %v7498, %v7500
    %v7502 = vadd.f32 %v7498, %v7501
    %vm7503 = vweird.f32 %v7482
    %vm7504 = vweird.f32 %v7498
    %vm7505 = vmor %vm7503, %vm7504
    %v7506 = vsel %vm7505, %v7498, %v7502
    %v7507 = vand.u32 2147483647, %v7482
    %vm7508 = vcmp.eq.f32.partialorder %v7507, 8.507059e+37
    %v7509 = vand.u32 %v7482, 2147483648
    %v7510 = vor.u32 1.1754944e-38, %v7509
    %v7511 = vsel %vm7508, %v7510, %v7506
    %v7512 = vmul.f32 1.0, %v7511
    %v7514 = vrot.slane %v7425, 1
    %v7516 = vmul.f32 %v7454, %v7425
    %v7517 = vmul.f32 %v7469, %v7514
    %v7518 = vadd.f32 %v6489, %v7516
    %v7519 = vadd.f32 %v6499, %v7517
    %v7520 = vtanh.pop %v7518
    %v7521 = vtanh.pop %v7519
    %v7522 = vsub.f32 1.0, %v7497
    %v7523 = vsub.f32 1.0, %v7512
    %v7524 = vmul.f32 %v7522, %v7520
    %v7525 = vmul.f32 %v7523, %v7521
    %v7526 = vmul.f32 %v7497, %v7345
    %v7527 = vmul.f32 %v7512, %v7346
    %v7528 = vadd.f32 %v7524, %v7526
    %v7529 = vadd.f32 %v7525, %v7527
    %7532 = vst [vmem:[#allocation1] ss:$9 sm:$0xff] %v7528
    %s7533 = scalar_lea.vmem [#allocation1], 1
    %7534 = vst [vmem:[%s7533] ss:$9 sm:$0xff] %v7529
    %v7535 = vld [vmem:[#allocation1] sm:$0xff]
    %v7536 = vsel %vm3121, %v7535, 0
    %7538 = vmatpush.msra.mxu0 0.0
    %7539 = vmatpush.msra.mxu0 0.0
    %7540 = vmatpush.msra.mxu0 0.0
    %7541 = vmatpush.msra.mxu0 0.0
    %7542 = vmatpush.msra.mxu0 0.0
    %7543 = vmatpush.msra.mxu0 0.0
    %7544 = vmatpush.msra.mxu0 0.0
    %7545 = vmatpush.msra.mxu0 0.0
    %7546 = vmatpush.msra.mxu0 0.0
    %7547 = vmatpush.msra.mxu0 0.0
    %7548 = vmatpush.msra.mxu0 0.0
    %7549 = vmatpush.msra.mxu0 0.0
    %7550 = vmatpush.msra.mxu0 0.0
    %7551 = vmatpush.msra.mxu0 0.0
    %7552 = vmatpush.msra.mxu0 0.0
    %7553 = vmatpush.msra.mxu0 %v6287
    %7554 = vmatmul.f32.gmra.mxu0 %v7536
    %v7555 = vpop.f32.mrf.mxu0
    %v7556 = vadd.f32 %v6531, %v7555
    %7557 = vdwg.mxu0
    %7558 = vst [vmem:[#allocation1] ss:$9 sm:$0xff] %v7528
    %s7559 = scalar_lea.vmem [#allocation1], 1
    %7560 = vst [vmem:[%s7559] ss:$9 sm:$0xff] %v7529
    %v7561 = vld [vmem:[#allocation1] sm:$0xff]
    %v7562 = vsel %vm3121, %v7561, 0
    %7564 = vmatpush.msra.mxu0 0.0
    %7565 = vmatpush.msra.mxu0 0.0
    %7566 = vmatpush.msra.mxu0 0.0
    %7567 = vmatpush.msra.mxu0 0.0
    %7568 = vmatpush.msra.mxu0 0.0
    %7569 = vmatpush.msra.mxu0 0.0
    %7570 = vmatpush.msra.mxu0 0.0
    %7571 = vmatpush.msra.mxu0 0.0
    %7572 = vmatpush.msra.mxu0 0.0
    %7573 = vmatpush.msra.mxu0 0.0
    %7574 = vmatpush.msra.mxu0 0.0
    %7575 = vmatpush.msra.mxu0 0.0
    %7576 = vmatpush.msra.mxu0 0.0
    %7577 = vmatpush.msra.mxu0 0.0
    %7578 = vmatpush.msra.mxu0 0.0
    %7579 = vmatpush.msra.mxu0 %v6288
    %7580 = vmatmul.f32.gmra.mxu0 %v7562
    %v7581 = vpop.f32.mrf.mxu0
    %v7582 = vadd.f32 %v6556, %v7581
    %7583 = vdwg.mxu0
    %7584 = vst [vmem:[#allocation1] ss:$9 sm:$0xff] %v7528
    %s7585 = scalar_lea.vmem [#allocation1], 1
    %7586 = vst [vmem:[%s7585] ss:$9 sm:$0xff] %v7529
    %v7587 = vld [vmem:[#allocation1] sm:$0xff]
    %v7588 = vsel %vm3121, %v7587, 0
    %7590 = vmatpush.msra.mxu0 0.0
    %7591 = vmatpush.msra.mxu0 0.0
    %7592 = vmatpush.msra.mxu0 0.0
    %7593 = vmatpush.msra.mxu0 0.0
    %7594 = vmatpush.msra.mxu0 0.0
    %7595 = vmatpush.msra.mxu0 0.0
    %7596 = vmatpush.msra.mxu0 0.0
    %7597 = vmatpush.msra.mxu0 0.0
    %7598 = vmatpush.msra.mxu0 0.0
    %7599 = vmatpush.msra.mxu0 0.0
    %7600 = vmatpush.msra.mxu0 0.0
    %7601 = vmatpush.msra.mxu0 0.0
    %7602 = vmatpush.msra.mxu0 0.0
    %7603 = vmatpush.msra.mxu0 0.0
    %7604 = vmatpush.msra.mxu0 0.0
    %7605 = vmatpush.msra.mxu0 %v6289
    %7606 = vmatmul.f32.gmra.mxu0 %v7588
    %v7607 = vpop.f32.mrf.mxu0
    %v7608 = vadd.f32 %v6579, %v7607
    %7609 = vdwg.mxu0
    %v7611 = vrot.slane %v7556, 1
    %v7613 = vadd.f32 %v6317, %v7556
    %v7614 = vadd.f32 %v6346, %v7611
    %v7615 = vxor.u32 %v7613, 2147483648
    %v7616 = vxor.u32 %v7614, 2147483648
    %v7617 = vmul.f32 %v7615, 1.442695
    %v7618 = vpow.pop %v7617
    %v7619 = vmul.f32 %v7616, 1.442695
    %v7620 = vpow.pop %v7619
    %v7621 = vadd.f32 %v7618, 1.0
    %v7622 = vadd.f32 %v7620, 1.0
    %v7623 = vrcp.pop %v7621
    %v7624 = vmul.f32 %v7621, %v7623
    %v7625 = vsub.f32 1.0, %v7624
    %v7626 = vmul.f32 %v7623, %v7625
    %v7627 = vadd.f32 %v7623, %v7626
    %vm7628 = vweird.f32 %v7621
    %vm7629 = vweird.f32 %v7623
    %vm7630 = vmor %vm7628, %vm7629
    %v7631 = vsel %vm7630, %v7623, %v7627
    %v7632 = vand.u32 2147483647, %v7621
    %vm7633 = vcmp.eq.f32.partialorder %v7632, 8.507059e+37
    %v7634 = vand.u32 %v7621, 2147483648
    %v7635 = vor.u32 1.1754944e-38, %v7634
    %v7636 = vsel %vm7633, %v7635, %v7631
    %v7637 = vmul.f32 1.0, %v7636
    %v7638 = vrcp.pop %v7622
    %v7639 = vmul.f32 %v7622, %v7638
    %v7640 = vsub.f32 1.0, %v7639
    %v7641 = vmul.f32 %v7638, %v7640
    %v7642 = vadd.f32 %v7638, %v7641
    %vm7643 = vweird.f32 %v7622
    %vm7644 = vweird.f32 %v7638
    %vm7645 = vmor %vm7643, %vm7644
    %v7646 = vsel %vm7645, %v7638, %v7642
    %v7647 = vand.u32 2147483647, %v7622
    %vm7648 = vcmp.eq.f32.partialorder %v7647, 8.507059e+37
    %v7649 = vand.u32 %v7622, 2147483648
    %v7650 = vor.u32 1.1754944e-38, %v7649
    %v7651 = vsel %vm7648, %v7650, %v7646
    %v7652 = vmul.f32 1.0, %v7651
    %v7654 = vrot.slane %v7582, 1
    %v7656 = vadd.f32 %v6395, %v7582
    %v7657 = vadd.f32 %v6424, %v7654
    %v7658 = vxor.u32 %v7656, 2147483648
    %v7659 = vxor.u32 %v7657, 2147483648
    %v7660 = vmul.f32 %v7658, 1.442695
    %v7661 = vpow.pop %v7660
    %v7662 = vmul.f32 %v7659, 1.442695
    %v7663 = vpow.pop %v7662
    %v7664 = vadd.f32 %v7661, 1.0
    %v7665 = vadd.f32 %v7663, 1.0
    %v7666 = vrcp.pop %v7664
    %v7667 = vmul.f32 %v7664, %v7666
    %v7668 = vsub.f32 1.0, %v7667
    %v7669 = vmul.f32 %v7666, %v7668
    %v7670 = vadd.f32 %v7666, %v7669
    %vm7671 = vweird.f32 %v7664
    %vm7672 = vweird.f32 %v7666
    %vm7673 = vmor %vm7671, %vm7672
    %v7674 = vsel %vm7673, %v7666, %v7670
    %v7675 = vand.u32 2147483647, %v7664
    %vm7676 = vcmp.eq.f32.partialorder %v7675, 8.507059e+37
    %v7677 = vand.u32 %v7664, 2147483648
    %v7678 = vor.u32 1.1754944e-38, %v7677
    %v7679 = vsel %vm7676, %v7678, %v7674
    %v7680 = vmul.f32 1.0, %v7679
    %v7681 = vrcp.pop %v7665
    %v7682 = vmul.f32 %v7665, %v7681
    %v7683 = vsub.f32 1.0, %v7682
    %v7684 = vmul.f32 %v7681, %v7683
    %v7685 = vadd.f32 %v7681, %v7684
    %vm7686 = vweird.f32 %v7665
    %vm7687 = vweird.f32 %v7681
    %vm7688 = vmor %vm7686, %vm7687
    %v7689 = vsel %vm7688, %v7681, %v7685
    %v7690 = vand.u32 2147483647, %v7665
    %vm7691 = vcmp.eq.f32.partialorder %v7690, 8.507059e+37
    %v7692 = vand.u32 %v7665, 2147483648
    %v7693 = vor.u32 1.1754944e-38, %v7692
    %v7694 = vsel %vm7691, %v7693, %v7689
    %v7695 = vmul.f32 1.0, %v7694
    %v7697 = vrot.slane %v7608, 1
    %v7699 = vmul.f32 %v7637, %v7608
    %v7700 = vmul.f32 %v7652, %v7697
    %v7701 = vadd.f32 %v6473, %v7699
    %v7702 = vadd.f32 %v6502, %v7700
    %v7703 = vtanh.pop %v7701
    %v7704 = vtanh.pop %v7702
    %v7705 = vsub.f32 1.0, %v7680
    %v7706 = vsub.f32 1.0, %v7695
    %v7707 = vmul.f32 %v7705, %v7703
    %v7708 = vmul.f32 %v7706, %v7704
    %v7709 = vmul.f32 %v7680, %v7528
    %v7710 = vmul.f32 %v7695, %v7529
    %v7711 = vadd.f32 %v7707, %v7709
    %v7712 = vadd.f32 %v7708, %v7710
    %7715 = vst [vmem:[#allocation1] ss:$9 sm:$0xff] %v7711
    %s7716 = scalar_lea.vmem [#allocation1], 1
    %7717 = vst [vmem:[%s7716] ss:$9 sm:$0xff] %v7712
    %v7718 = vld [vmem:[#allocation1] sm:$0xff]
    %v7719 = vsel %vm3121, %v7718, 0
    %7721 = vmatpush.msra.mxu0 0.0
    %7722 = vmatpush.msra.mxu0 0.0
    %7723 = vmatpush.msra.mxu0 0.0
    %7724 = vmatpush.msra.mxu0 0.0
    %7725 = vmatpush.msra.mxu0 0.0
    %7726 = vmatpush.msra.mxu0 0.0
    %7727 = vmatpush.msra.mxu0 0.0
    %7728 = vmatpush.msra.mxu0 0.0
    %7729 = vmatpush.msra.mxu0 0.0
    %7730 = vmatpush.msra.mxu0 0.0
    %7731 = vmatpush.msra.mxu0 0.0
    %7732 = vmatpush.msra.mxu0 0.0
    %7733 = vmatpush.msra.mxu0 0.0
    %7734 = vmatpush.msra.mxu0 0.0
    %7735 = vmatpush.msra.mxu0 0.0
    %7736 = vmatpush.msra.mxu0 %v6287
    %7737 = vmatmul.f32.gmra.mxu0 %v7719
    %v7738 = vpop.f32.mrf.mxu0
    %v7739 = vadd.f32 %v6531, %v7738
    %7740 = vdwg.mxu0
    %7741 = vst [vmem:[#allocation1] ss:$9 sm:$0xff] %v7711
    %s7742 = scalar_lea.vmem [#allocation1], 1
    %7743 = vst [vmem:[%s7742] ss:$9 sm:$0xff] %v7712
    %v7744 = vld [vmem:[#allocation1] sm:$0xff]
    %v7745 = vsel %vm3121, %v7744, 0
    %7747 = vmatpush.msra.mxu0 0.0
    %7748 = vmatpush.msra.mxu0 0.0
    %7749 = vmatpush.msra.mxu0 0.0
    %7750 = vmatpush.msra.mxu0 0.0
    %7751 = vmatpush.msra.mxu0 0.0
    %7752 = vmatpush.msra.mxu0 0.0
    %7753 = vmatpush.msra.mxu0 0.0
    %7754 = vmatpush.msra.mxu0 0.0
    %7755 = vmatpush.msra.mxu0 0.0
    %7756 = vmatpush.msra.mxu0 0.0
    %7757 = vmatpush.msra.mxu0 0.0
    %7758 = vmatpush.msra.mxu0 0.0
    %7759 = vmatpush.msra.mxu0 0.0
    %7760 = vmatpush.msra.mxu0 0.0
    %7761 = vmatpush.msra.mxu0 0.0
    %7762 = vmatpush.msra.mxu0 %v6288
    %7763 = vmatmul.f32.gmra.mxu0 %v7745
    %v7764 = vpop.f32.mrf.mxu0
    %v7765 = vadd.f32 %v6556, %v7764
    %7766 = vdwg.mxu0
    %7767 = vst [vmem:[#allocation1] ss:$9 sm:$0xff] %v7711
    %s7768 = scalar_lea.vmem [#allocation1], 1
    %7769 = vst [vmem:[%s7768] ss:$9 sm:$0xff] %v7712
    %v7770 = vld [vmem:[#allocation1] sm:$0xff]
    %v7771 = vsel %vm3121, %v7770, 0
    %7773 = vmatpush.msra.mxu0 0.0
    %7774 = vmatpush.msra.mxu0 0.0
    %7775 = vmatpush.msra.mxu0 0.0
    %7776 = vmatpush.msra.mxu0 0.0
    %7777 = vmatpush.msra.mxu0 0.0
    %7778 = vmatpush.msra.mxu0 0.0
    %7779 = vmatpush.msra.mxu0 0.0
    %7780 = vmatpush.msra.mxu0 0.0
    %7781 = vmatpush.msra.mxu0 0.0
    %7782 = vmatpush.msra.mxu0 0.0
    %7783 = vmatpush.msra.mxu0 0.0
    %7784 = vmatpush.msra.mxu0 0.0
    %7785 = vmatpush.msra.mxu0 0.0
    %7786 = vmatpush.msra.mxu0 0.0
    %7787 = vmatpush.msra.mxu0 0.0
    %7788 = vmatpush.msra.mxu0 %v6289
    %7789 = vmatmul.f32.gmra.mxu0 %v7771
    %v7790 = vpop.f32.mrf.mxu0
    %v7791 = vadd.f32 %v6579, %v7790
    %7792 = vdwg.mxu0
    %v7794 = vrot.slane %v7739, 1
    %v7796 = vadd.f32 %v6338, %v7739
    %v7797 = vadd.f32 %v6323, %v7794
    %v7798 = vxor.u32 %v7796, 2147483648
    %v7799 = vxor.u32 %v7797, 2147483648
    %v7800 = vmul.f32 %v7798, 1.442695
    %v7801 = vpow.pop %v7800
    %v7802 = vmul.f32 %v7799, 1.442695
    %v7803 = vpow.pop %v7802
    %v7804 = vadd.f32 %v7801, 1.0
    %v7805 = vadd.f32 %v7803, 1.0
    %v7806 = vrcp.pop %v7804
    %v7807 = vmul.f32 %v7804, %v7806
    %v7808 = vsub.f32 1.0, %v7807
    %v7809 = vmul.f32 %v7806, %v7808
    %v7810 = vadd.f32 %v7806, %v7809
    %vm7811 = vweird.f32 %v7804
    %vm7812 = vweird.f32 %v7806
    %vm7813 = vmor %vm7811, %vm7812
    %v7814 = vsel %vm7813, %v7806, %v7810
    %v7815 = vand.u32 2147483647, %v7804
    %vm7816 = vcmp.eq.f32.partialorder %v7815, 8.507059e+37
    %v7817 = vand.u32 %v7804, 2147483648
    %v7818 = vor.u32 1.1754944e-38, %v7817
    %v7819 = vsel %vm7816, %v7818, %v7814
    %v7820 = vmul.f32 1.0, %v7819
    %v7821 = vrcp.pop %v7805
    %v7822 = vmul.f32 %v7805, %v7821
    %v7823 = vsub.f32 1.0, %v7822
    %v7824 = vmul.f32 %v7821, %v7823
    %v7825 = vadd.f32 %v7821, %v7824
    %vm7826 = vweird.f32 %v7805
    %vm7827 = vweird.f32 %v7821
    %vm7828 = vmor %vm7826, %vm7827
    %v7829 = vsel %vm7828, %v7821, %v7825
    %v7830 = vand.u32 2147483647, %v7805
    %vm7831 = vcmp.eq.f32.partialorder %v7830, 8.507059e+37
    %v7832 = vand.u32 %v7805, 2147483648
    %v7833 = vor.u32 1.1754944e-38, %v7832
    %v7834 = vsel %vm7831, %v7833, %v7829
    %v7835 = vmul.f32 1.0, %v7834
    %v7837 = vrot.slane %v7765, 1
    %v7839 = vadd.f32 %v6416, %v7765
    %v7840 = vadd.f32 %v6401, %v7837
    %v7841 = vxor.u32 %v7839, 2147483648
    %v7842 = vxor.u32 %v7840, 2147483648
    %v7843 = vmul.f32 %v7841, 1.442695
    %v7844 = vpow.pop %v7843
    %v7845 = vmul.f32 %v7842, 1.442695
    %v7846 = vpow.pop %v7845
    %v7847 = vadd.f32 %v7844, 1.0
    %v7848 = vadd.f32 %v7846, 1.0
    %v7849 = vrcp.pop %v7847
    %v7850 = vmul.f32 %v7847, %v7849
    %v7851 = vsub.f32 1.0, %v7850
    %v7852 = vmul.f32 %v7849, %v7851
    %v7853 = vadd.f32 %v7849, %v7852
    %vm7854 = vweird.f32 %v7847
    %vm7855 = vweird.f32 %v7849
    %vm7856 = vmor %vm7854, %vm7855
    %v7857 = vsel %vm7856, %v7849, %v7853
    %v7858 = vand.u32 2147483647, %v7847
    %vm7859 = vcmp.eq.f32.partialorder %v7858, 8.507059e+37
    %v7860 = vand.u32 %v7847, 2147483648
    %v7861 = vor.u32 1.1754944e-38, %v7860
    %v7862 = vsel %vm7859, %v7861, %v7857
    %v7863 = vmul.f32 1.0, %v7862
    %v7864 = vrcp.pop %v7848
    %v7865 = vmul.f32 %v7848, %v7864
    %v7866 = vsub.f32 1.0, %v7865
    %v7867 = vmul.f32 %v7864, %v7866
    %v7868 = vadd.f32 %v7864, %v7867
    %vm7869 = vweird.f32 %v7848
    %vm7870 = vweird.f32 %v7864
    %vm7871 = vmor %vm7869, %vm7870
    %v7872 = vsel %vm7871, %v7864, %v7868
    %v7873 = vand.u32 2147483647, %v7848
    %vm7874 = vcmp.eq.f32.partialorder %v7873, 8.507059e+37
    %v7875 = vand.u32 %v7848, 2147483648
    %v7876 = vor.u32 1.1754944e-38, %v7875
    %v7877 = vsel %vm7874, %v7876, %v7872
    %v7878 = vmul.f32 1.0, %v7877
    %v7880 = vrot.slane %v7791, 1
    %v7882 = vmul.f32 %v7820, %v7791
    %v7883 = vmul.f32 %v7835, %v7880
    %v7884 = vadd.f32 %v6494, %v7882
    %v7885 = vadd.f32 %v6479, %v7883
    %v7886 = vtanh.pop %v7884
    %v7887 = vtanh.pop %v7885
    %v7888 = vsub.f32 1.0, %v7863
    %v7889 = vsub.f32 1.0, %v7878
    %v7890 = vmul.f32 %v7888, %v7886
    %v7891 = vmul.f32 %v7889, %v7887
    %v7892 = vmul.f32 %v7863, %v7711
    %v7893 = vmul.f32 %v7878, %v7712
    %v7894 = vadd.f32 %v7890, %v7892
    %v7895 = vadd.f32 %v7891, %v7893
    %7898 = vst [vmem:[#allocation1] ss:$9 sm:$0xff] %v7894
    %s7899 = scalar_lea.vmem [#allocation1], 1
    %7900 = vst [vmem:[%s7899] ss:$9 sm:$0xff] %v7895
    %v7901 = vld [vmem:[#allocation1] sm:$0xff]
    %v7902 = vsel %vm3121, %v7901, 0
    %7904 = vmatpush.msra.mxu0 0.0
    %7905 = vmatpush.msra.mxu0 0.0
    %7906 = vmatpush.msra.mxu0 0.0
    %7907 = vmatpush.msra.mxu0 0.0
    %7908 = vmatpush.msra.mxu0 0.0
    %7909 = vmatpush.msra.mxu0 0.0
    %7910 = vmatpush.msra.mxu0 0.0
    %7911 = vmatpush.msra.mxu0 0.0
    %7912 = vmatpush.msra.mxu0 0.0
    %7913 = vmatpush.msra.mxu0 0.0
    %7914 = vmatpush.msra.mxu0 0.0
    %7915 = vmatpush.msra.mxu0 0.0
    %7916 = vmatpush.msra.mxu0 0.0
    %7917 = vmatpush.msra.mxu0 0.0
    %7918 = vmatpush.msra.mxu0 0.0
    %7919 = vmatpush.msra.mxu0 %v6528
    %7920 = vmatmul.f32.gmra.mxu0 %v7902
    %v7921 = vpop.f32.mrf.mxu0
    %v7922 = vadd.f32 0.0, %v7921
    %7923 = vdwg.mxu0
    %7926 = vst [vmem:[#allocation1] ss:$9 sm:$0xff] %v7251
    %s7927 = scalar_lea.vmem [#allocation1], 1
    %7928 = vst [vmem:[%s7927] ss:$9 sm:$0xff] %v7252
    %v7929 = vld [vmem:[#allocation1] sm:$0xff]
    %v7930 = vsel %vm3121, %v7929, 0
    %7932 = vmatpush.msra.mxu0 0.0
    %7933 = vmatpush.msra.mxu0 0.0
    %7934 = vmatpush.msra.mxu0 0.0
    %7935 = vmatpush.msra.mxu0 0.0
    %7936 = vmatpush.msra.mxu0 0.0
    %7937 = vmatpush.msra.mxu0 0.0
    %7938 = vmatpush.msra.mxu0 0.0
    %7939 = vmatpush.msra.mxu0 0.0
    %7940 = vmatpush.msra.mxu0 0.0
    %7941 = vmatpush.msra.mxu0 0.0
    %7942 = vmatpush.msra.mxu0 0.0
    %7943 = vmatpush.msra.mxu0 0.0
    %7944 = vmatpush.msra.mxu0 0.0
    %7945 = vmatpush.msra.mxu0 0.0
    %7946 = vmatpush.msra.mxu0 0.0
    %7947 = vmatpush.msra.mxu0 %v6527
    %7948 = vmatmul.f32.gmra.mxu0 %v7930
    %v7949 = vpop.f32.mrf.mxu0
    %v7950 = vadd.f32 %v7922, %v7949
    %7951 = vdwg.mxu0
    %v7952 = vadd.f32 %v6331, %v6553
    %v7953 = vadd.f32 %v6320, %v6602
    %v7954 = vxor.u32 %v7952, 2147483648
    %v7955 = vxor.u32 %v7953, 2147483648
    %v7956 = vmul.f32 %v7954, 1.442695
    %v7957 = vpow.pop %v7956
    %v7958 = vmul.f32 %v7955, 1.442695
    %v7959 = vpow.pop %v7958
    %v7960 = vadd.f32 %v7957, 1.0
    %v7961 = vadd.f32 %v7959, 1.0
    %v7962 = vrcp.pop %v7960
    %v7963 = vmul.f32 %v7960, %v7962
    %v7964 = vsub.f32 1.0, %v7963
    %v7965 = vmul.f32 %v7962, %v7964
    %v7966 = vadd.f32 %v7962, %v7965
    %vm7967 = vweird.f32 %v7960
    %vm7968 = vweird.f32 %v7962
    %vm7969 = vmor %vm7967, %vm7968
    %v7970 = vsel %vm7969, %v7962, %v7966
    %v7971 = vand.u32 2147483647, %v7960
    %vm7972 = vcmp.eq.f32.partialorder %v7971, 8.507059e+37
    %v7973 = vand.u32 %v7960, 2147483648
    %v7974 = vor.u32 1.1754944e-38, %v7973
    %v7975 = vsel %vm7972, %v7974, %v7970
    %v7976 = vmul.f32 1.0, %v7975
    %v7977 = vrcp.pop %v7961
    %v7978 = vmul.f32 %v7961, %v7977
    %v7979 = vsub.f32 1.0, %v7978
    %v7980 = vmul.f32 %v7977, %v7979
    %v7981 = vadd.f32 %v7977, %v7980
    %vm7982 = vweird.f32 %v7961
    %vm7983 = vweird.f32 %v7977
    %vm7984 = vmor %vm7982, %vm7983
    %v7985 = vsel %vm7984, %v7977, %v7981
    %v7986 = vand.u32 2147483647, %v7961
    %vm7987 = vcmp.eq.f32.partialorder %v7986, 8.507059e+37
    %v7988 = vand.u32 %v7961, 2147483648
    %v7989 = vor.u32 1.1754944e-38, %v7988
    %v7990 = vsel %vm7987, %v7989, %v7985
    %v7991 = vmul.f32 1.0, %v7990
    %v7992 = vadd.f32 %v6409, %v6576
    %v7993 = vadd.f32 %v6398, %v6645
    %v7994 = vxor.u32 %v7992, 2147483648
    %v7995 = vxor.u32 %v7993, 2147483648
    %v7996 = vmul.f32 %v7994, 1.442695
    %v7997 = vpow.pop %v7996
    %v7998 = vmul.f32 %v7995, 1.442695
    %v7999 = vpow.pop %v7998
    %v8000 = vadd.f32 %v7997, 1.0
    %v8001 = vadd.f32 %v7999, 1.0
    %v8002 = vrcp.pop %v8000
    %v8003 = vmul.f32 %v8000, %v8002
    %v8004 = vsub.f32 1.0, %v8003
    %v8005 = vmul.f32 %v8002, %v8004
    %v8006 = vadd.f32 %v8002, %v8005
    %vm8007 = vweird.f32 %v8000
    %vm8008 = vweird.f32 %v8002
    %vm8009 = vmor %vm8007, %vm8008
    %v8010 = vsel %vm8009, %v8002, %v8006
    %v8011 = vand.u32 2147483647, %v8000
    %vm8012 = vcmp.eq.f32.partialorder %v8011, 8.507059e+37
    %v8013 = vand.u32 %v8000, 2147483648
    %v8014 = vor.u32 1.1754944e-38, %v8013
    %v8015 = vsel %vm8012, %v8014, %v8010
    %v8016 = vmul.f32 1.0, %v8015
    %v8017 = vrcp.pop %v8001
    %v8018 = vmul.f32 %v8001, %v8017
    %v8019 = vsub.f32 1.0, %v8018
    %v8020 = vmul.f32 %v8017, %v8019
    %v8021 = vadd.f32 %v8017, %v8020
    %vm8022 = vweird.f32 %v8001
    %vm8023 = vweird.f32 %v8017
    %vm8024 = vmor %vm8022, %vm8023
    %v8025 = vsel %vm8024, %v8017, %v8021
    %v8026 = vand.u32 2147483647, %v8001
    %vm8027 = vcmp.eq.f32.partialorder %v8026, 8.507059e+37
    %v8028 = vand.u32 %v8001, 2147483648
    %v8029 = vor.u32 1.1754944e-38, %v8028
    %v8030 = vsel %vm8027, %v8029, %v8025
    %v8031 = vmul.f32 1.0, %v8030
    %v8032 = vmul.f32 %v7976, %v6599
    %v8033 = vmul.f32 %v7991, %v6688
    %v8034 = vadd.f32 %v6487, %v8032
    %v8035 = vadd.f32 %v6476, %v8033
    %v8036 = vtanh.pop %v8034
    %v8037 = vtanh.pop %v8035
    %v8038 = vsub.f32 1.0, %v8016
    %v8039 = vsub.f32 1.0, %v8031
    %v8040 = vmul.f32 %v8038, %v8036
    %v8041 = vmul.f32 %v8039, %v8037
    %v8042 = vmul.f32 %v8016, 0.0
    %v8043 = vmul.f32 %v8031, 0.0
    %v8044 = vadd.f32 %v8040, %v8042
    %v8045 = vadd.f32 %v8041, %v8043
    %8048 = vst [vmem:[#allocation1] ss:$9 sm:$0xff] %v8044
    %s8049 = scalar_lea.vmem [#allocation1], 1
    %8050 = vst [vmem:[%s8049] ss:$9 sm:$0xff] %v8045
    %v8051 = vld [vmem:[#allocation1] sm:$0xff]
    %v8052 = vsel %vm3121, %v8051, 0
    %8054 = vmatpush.msra.mxu0 0.0
    %8055 = vmatpush.msra.mxu0 0.0
    %8056 = vmatpush.msra.mxu0 0.0
    %8057 = vmatpush.msra.mxu0 0.0
    %8058 = vmatpush.msra.mxu0 0.0
    %8059 = vmatpush.msra.mxu0 0.0
    %8060 = vmatpush.msra.mxu0 0.0
    %8061 = vmatpush.msra.mxu0 0.0
    %8062 = vmatpush.msra.mxu0 0.0
    %8063 = vmatpush.msra.mxu0 0.0
    %8064 = vmatpush.msra.mxu0 0.0
    %8065 = vmatpush.msra.mxu0 0.0
    %8066 = vmatpush.msra.mxu0 0.0
    %8067 = vmatpush.msra.mxu0 0.0
    %8068 = vmatpush.msra.mxu0 0.0
    %8069 = vmatpush.msra.mxu0 %v6287
    %8070 = vmatmul.f32.gmra.mxu0 %v8052
    %v8071 = vpop.f32.mrf.mxu0
    %v8072 = vadd.f32 %v6531, %v8071
    %8073 = vdwg.mxu0
    %8074 = vst [vmem:[#allocation1] ss:$9 sm:$0xff] %v8044
    %s8075 = scalar_lea.vmem [#allocation1], 1
    %8076 = vst [vmem:[%s8075] ss:$9 sm:$0xff] %v8045
    %v8077 = vld [vmem:[#allocation1] sm:$0xff]
    %v8078 = vsel %vm3121, %v8077, 0
    %8080 = vmatpush.msra.mxu0 0.0
    %8081 = vmatpush.msra.mxu0 0.0
    %8082 = vmatpush.msra.mxu0 0.0
    %8083 = vmatpush.msra.mxu0 0.0
    %8084 = vmatpush.msra.mxu0 0.0
    %8085 = vmatpush.msra.mxu0 0.0
    %8086 = vmatpush.msra.mxu0 0.0
    %8087 = vmatpush.msra.mxu0 0.0
    %8088 = vmatpush.msra.mxu0 0.0
    %8089 = vmatpush.msra.mxu0 0.0
    %8090 = vmatpush.msra.mxu0 0.0
    %8091 = vmatpush.msra.mxu0 0.0
    %8092 = vmatpush.msra.mxu0 0.0
    %8093 = vmatpush.msra.mxu0 0.0
    %8094 = vmatpush.msra.mxu0 0.0
    %8095 = vmatpush.msra.mxu0 %v6288
    %8096 = vmatmul.f32.gmra.mxu0 %v8078
    %v8097 = vpop.f32.mrf.mxu0
    %v8098 = vadd.f32 %v6556, %v8097
    %8099 = vdwg.mxu0
    %8100 = vst [vmem:[#allocation1] ss:$9 sm:$0xff] %v8044
    %s8101 = scalar_lea.vmem [#allocation1], 1
    %8102 = vst [vmem:[%s8101] ss:$9 sm:$0xff] %v8045
    %v8103 = vld [vmem:[#allocation1] sm:$0xff]
    %v8104 = vsel %vm3121, %v8103, 0
    %8106 = vmatpush.msra.mxu0 0.0
    %8107 = vmatpush.msra.mxu0 0.0
    %8108 = vmatpush.msra.mxu0 0.0
    %8109 = vmatpush.msra.mxu0 0.0
    %8110 = vmatpush.msra.mxu0 0.0
    %8111 = vmatpush.msra.mxu0 0.0
    %8112 = vmatpush.msra.mxu0 0.0
    %8113 = vmatpush.msra.mxu0 0.0
    %8114 = vmatpush.msra.mxu0 0.0
    %8115 = vmatpush.msra.mxu0 0.0
    %8116 = vmatpush.msra.mxu0 0.0
    %8117 = vmatpush.msra.mxu0 0.0
    %8118 = vmatpush.msra.mxu0 0.0
    %8119 = vmatpush.msra.mxu0 0.0
    %8120 = vmatpush.msra.mxu0 0.0
    %8121 = vmatpush.msra.mxu0 %v6289
    %8122 = vmatmul.f32.gmra.mxu0 %v8104
    %v8123 = vpop.f32.mrf.mxu0
    %v8124 = vadd.f32 %v6579, %v8123
    %8125 = vdwg.mxu0
    %v8127 = vrot.slane %v8072, 1
    %v8129 = vadd.f32 %v6334, %v8072
    %v8130 = vadd.f32 %v6344, %v8127
    %v8131 = vxor.u32 %v8129, 2147483648
    %v8132 = vxor.u32 %v8130, 2147483648
    %v8133 = vmul.f32 %v8131, 1.442695
    %v8134 = vpow.pop %v8133
    %v8135 = vmul.f32 %v8132, 1.442695
    %v8136 = vpow.pop %v8135
    %v8137 = vadd.f32 %v8134, 1.0
    %v8138 = vadd.f32 %v8136, 1.0
    %v8139 = vrcp.pop %v8137
    %v8140 = vmul.f32 %v8137, %v8139
    %v8141 = vsub.f32 1.0, %v8140
    %v8142 = vmul.f32 %v8139, %v8141
    %v8143 = vadd.f32 %v8139, %v8142
    %vm8144 = vweird.f32 %v8137
    %vm8145 = vweird.f32 %v8139
    %vm8146 = vmor %vm8144, %vm8145
    %v8147 = vsel %vm8146, %v8139, %v8143
    %v8148 = vand.u32 2147483647, %v8137
    %vm8149 = vcmp.eq.f32.partialorder %v8148, 8.507059e+37
    %v8150 = vand.u32 %v8137, 2147483648
    %v8151 = vor.u32 1.1754944e-38, %v8150
    %v8152 = vsel %vm8149, %v8151, %v8147
    %v8153 = vmul.f32 1.0, %v8152
    %v8154 = vrcp.pop %v8138
    %v8155 = vmul.f32 %v8138, %v8154
    %v8156 = vsub.f32 1.0, %v8155
    %v8157 = vmul.f32 %v8154, %v8156
    %v8158 = vadd.f32 %v8154, %v8157
    %vm8159 = vweird.f32 %v8138
    %vm8160 = vweird.f32 %v8154
    %vm8161 = vmor %vm8159, %vm8160
    %v8162 = vsel %vm8161, %v8154, %v8158
    %v8163 = vand.u32 2147483647, %v8138
    %vm8164 = vcmp.eq.f32.partialorder %v8163, 8.507059e+37
    %v8165 = vand.u32 %v8138, 2147483648
    %v8166 = vor.u32 1.1754944e-38, %v8165
    %v8167 = vsel %vm8164, %v8166, %v8162
    %v8168 = vmul.f32 1.0, %v8167
    %v8170 = vrot.slane %v8098, 1
    %v8172 = vadd.f32 %v6412, %v8098
    %v8173 = vadd.f32 %v6422, %v8170
    %v8174 = vxor.u32 %v8172, 2147483648
    %v8175 = vxor.u32 %v8173, 2147483648
    %v8176 = vmul.f32 %v8174, 1.442695
    %v8177 = vpow.pop %v8176
    %v8178 = vmul.f32 %v8175, 1.442695
    %v8179 = vpow.pop %v8178
    %v8180 = vadd.f32 %v8177, 1.0
    %v8181 = vadd.f32 %v8179, 1.0
    %v8182 = vrcp.pop %v8180
    %v8183 = vmul.f32 %v8180, %v8182
    %v8184 = vsub.f32 1.0, %v8183
    %v8185 = vmul.f32 %v8182, %v8184
    %v8186 = vadd.f32 %v8182, %v8185
    %vm8187 = vweird.f32 %v8180
    %vm8188 = vweird.f32 %v8182
    %vm8189 = vmor %vm8187, %vm8188
    %v8190 = vsel %vm8189, %v8182, %v8186
    %v8191 = vand.u32 2147483647, %v8180
    %vm8192 = vcmp.eq.f32.partialorder %v8191, 8.507059e+37
    %v8193 = vand.u32 %v8180, 2147483648
    %v8194 = vor.u32 1.1754944e-38, %v8193
    %v8195 = vsel %vm8192, %v8194, %v8190
    %v8196 = vmul.f32 1.0, %v8195
    %v8197 = vrcp.pop %v8181
    %v8198 = vmul.f32 %v8181, %v8197
    %v8199 = vsub.f32 1.0, %v8198
    %v8200 = vmul.f32 %v8197, %v8199
    %v8201 = vadd.f32 %v8197, %v8200
    %vm8202 = vweird.f32 %v8181
    %vm8203 = vweird.f32 %v8197
    %vm8204 = vmor %vm8202, %vm8203
    %v8205 = vsel %vm8204, %v8197, %v8201
    %v8206 = vand.u32 2147483647, %v8181
    %vm8207 = vcmp.eq.f32.partialorder %v8206, 8.507059e+37
    %v8208 = vand.u32 %v8181, 2147483648
    %v8209 = vor.u32 1.1754944e-38, %v8208
    %v8210 = vsel %vm8207, %v8209, %v8205
    %v8211 = vmul.f32 1.0, %v8210
    %v8213 = vrot.slane %v8124, 1
    %v8215 = vmul.f32 %v8153, %v8124
    %v8216 = vmul.f32 %v8168, %v8213
    %v8217 = vadd.f32 %v6490, %v8215
    %v8218 = vadd.f32 %v6500, %v8216
    %v8219 = vtanh.pop %v8217
    %v8220 = vtanh.pop %v8218
    %v8221 = vsub.f32 1.0, %v8196
    %v8222 = vsub.f32 1.0, %v8211
    %v8223 = vmul.f32 %v8221, %v8219
    %v8224 = vmul.f32 %v8222, %v8220
    %v8225 = vmul.f32 %v8196, %v8044
    %v8226 = vmul.f32 %v8211, %v8045
    %v8227 = vadd.f32 %v8223, %v8225
    %v8228 = vadd.f32 %v8224, %v8226
    %8231 = vst [vmem:[#allocation1] ss:$9 sm:$0xff] %v8227
    %s8232 = scalar_lea.vmem [#allocation1], 1
    %8233 = vst [vmem:[%s8232] ss:$9 sm:$0xff] %v8228
    %v8234 = vld [vmem:[#allocation1] sm:$0xff]
    %v8235 = vsel %vm3121, %v8234, 0
    %8237 = vmatpush.msra.mxu0 0.0
    %8238 = vmatpush.msra.mxu0 0.0
    %8239 = vmatpush.msra.mxu0 0.0
    %8240 = vmatpush.msra.mxu0 0.0
    %8241 = vmatpush.msra.mxu0 0.0
    %8242 = vmatpush.msra.mxu0 0.0
    %8243 = vmatpush.msra.mxu0 0.0
    %8244 = vmatpush.msra.mxu0 0.0
    %8245 = vmatpush.msra.mxu0 0.0
    %8246 = vmatpush.msra.mxu0 0.0
    %8247 = vmatpush.msra.mxu0 0.0
    %8248 = vmatpush.msra.mxu0 0.0
    %8249 = vmatpush.msra.mxu0 0.0
    %8250 = vmatpush.msra.mxu0 0.0
    %8251 = vmatpush.msra.mxu0 0.0
    %8252 = vmatpush.msra.mxu0 %v6287
    %8253 = vmatmul.f32.gmra.mxu0 %v8235
    %v8254 = vpop.f32.mrf.mxu0
    %v8255 = vadd.f32 %v6531, %v8254
    %8256 = vdwg.mxu0
    %8257 = vst [vmem:[#allocation1] ss:$9 sm:$0xff] %v8227
    %s8258 = scalar_lea.vmem [#allocation1], 1
    %8259 = vst [vmem:[%s8258] ss:$9 sm:$0xff] %v8228
    %v8260 = vld [vmem:[#allocation1] sm:$0xff]
    %v8261 = vsel %vm3121, %v8260, 0
    %8263 = vmatpush.msra.mxu0 0.0
    %8264 = vmatpush.msra.mxu0 0.0
    %8265 = vmatpush.msra.mxu0 0.0
    %8266 = vmatpush.msra.mxu0 0.0
    %8267 = vmatpush.msra.mxu0 0.0
    %8268 = vmatpush.msra.mxu0 0.0
    %8269 = vmatpush.msra.mxu0 0.0
    %8270 = vmatpush.msra.mxu0 0.0
    %8271 = vmatpush.msra.mxu0 0.0
    %8272 = vmatpush.msra.mxu0 0.0
    %8273 = vmatpush.msra.mxu0 0.0
    %8274 = vmatpush.msra.mxu0 0.0
    %8275 = vmatpush.msra.mxu0 0.0
    %8276 = vmatpush.msra.mxu0 0.0
    %8277 = vmatpush.msra.mxu0 0.0
    %8278 = vmatpush.msra.mxu0 %v6288
    %8279 = vmatmul.f32.gmra.mxu0 %v8261
    %v8280 = vpop.f32.mrf.mxu0
    %v8281 = vadd.f32 %v6556, %v8280
    %8282 = vdwg.mxu0
    %8283 = vst [vmem:[#allocation1] ss:$9 sm:$0xff] %v8227
    %s8284 = scalar_lea.vmem [#allocation1], 1
    %8285 = vst [vmem:[%s8284] ss:$9 sm:$0xff] %v8228
    %v8286 = vld [vmem:[#allocation1] sm:$0xff]
    %v8287 = vsel %vm3121, %v8286, 0
    %8289 = vmatpush.msra.mxu0 0.0
    %8290 = vmatpush.msra.mxu0 0.0
    %8291 = vmatpush.msra.mxu0 0.0
    %8292 = vmatpush.msra.mxu0 0.0
    %8293 = vmatpush.msra.mxu0 0.0
    %8294 = vmatpush.msra.mxu0 0.0
    %8295 = vmatpush.msra.mxu0 0.0
    %8296 = vmatpush.msra.mxu0 0.0
    %8297 = vmatpush.msra.mxu0 0.0
    %8298 = vmatpush.msra.mxu0 0.0
    %8299 = vmatpush.msra.mxu0 0.0
    %8300 = vmatpush.msra.mxu0 0.0
    %8301 = vmatpush.msra.mxu0 0.0
    %8302 = vmatpush.msra.mxu0 0.0
    %8303 = vmatpush.msra.mxu0 0.0
    %8304 = vmatpush.msra.mxu0 %v6289
    %8305 = vmatmul.f32.gmra.mxu0 %v8287
    %v8306 = vpop.f32.mrf.mxu0
    %v8307 = vadd.f32 %v6579, %v8306
    %8308 = vdwg.mxu0
    %v8310 = vrot.slane %v8255, 1
    %v8312 = vadd.f32 %v6336, %v8255
    %v8313 = vadd.f32 %v6347, %v8310
    %v8314 = vxor.u32 %v8312, 2147483648
    %v8315 = vxor.u32 %v8313, 2147483648
    %v8316 = vmul.f32 %v8314, 1.442695
    %v8317 = vpow.pop %v8316
    %v8318 = vmul.f32 %v8315, 1.442695
    %v8319 = vpow.pop %v8318
    %v8320 = vadd.f32 %v8317, 1.0
    %v8321 = vadd.f32 %v8319, 1.0
    %v8322 = vrcp.pop %v8320
    %v8323 = vmul.f32 %v8320, %v8322
    %v8324 = vsub.f32 1.0, %v8323
    %v8325 = vmul.f32 %v8322, %v8324
    %v8326 = vadd.f32 %v8322, %v8325
    %vm8327 = vweird.f32 %v8320
    %vm8328 = vweird.f32 %v8322
    %vm8329 = vmor %vm8327, %vm8328
    %v8330 = vsel %vm8329, %v8322, %v8326
    %v8331 = vand.u32 2147483647, %v8320
    %vm8332 = vcmp.eq.f32.partialorder %v8331, 8.507059e+37
    %v8333 = vand.u32 %v8320, 2147483648
    %v8334 = vor.u32 1.1754944e-38, %v8333
    %v8335 = vsel %vm8332, %v8334, %v8330
    %v8336 = vmul.f32 1.0, %v8335
    %v8337 = vrcp.pop %v8321
    %v8338 = vmul.f32 %v8321, %v8337
    %v8339 = vsub.f32 1.0, %v8338
    %v8340 = vmul.f32 %v8337, %v8339
    %v8341 = vadd.f32 %v8337, %v8340
    %vm8342 = vweird.f32 %v8321
    %vm8343 = vweird.f32 %v8337
    %vm8344 = vmor %vm8342, %vm8343
    %v8345 = vsel %vm8344, %v8337, %v8341
    %v8346 = vand.u32 2147483647, %v8321
    %vm8347 = vcmp.eq.f32.partialorder %v8346, 8.507059e+37
    %v8348 = vand.u32 %v8321, 2147483648
    %v8349 = vor.u32 1.1754944e-38, %v8348
    %v8350 = vsel %vm8347, %v8349, %v8345
    %v8351 = vmul.f32 1.0, %v8350
    %v8353 = vrot.slane %v8281, 1
    %v8355 = vadd.f32 %v6414, %v8281
    %v8356 = vadd.f32 %v6425, %v8353
    %v8357 = vxor.u32 %v8355, 2147483648
    %v8358 = vxor.u32 %v8356, 2147483648
    %v8359 = vmul.f32 %v8357, 1.442695
    %v8360 = vpow.pop %v8359
    %v8361 = vmul.f32 %v8358, 1.442695
    %v8362 = vpow.pop %v8361
    %v8363 = vadd.f32 %v8360, 1.0
    %v8364 = vadd.f32 %v8362, 1.0
    %v8365 = vrcp.pop %v8363
    %v8366 = vmul.f32 %v8363, %v8365
    %v8367 = vsub.f32 1.0, %v8366
    %v8368 = vmul.f32 %v8365, %v8367
    %v8369 = vadd.f32 %v8365, %v8368
    %vm8370 = vweird.f32 %v8363
    %vm8371 = vweird.f32 %v8365
    %vm8372 = vmor %vm8370, %vm8371
    %v8373 = vsel %vm8372, %v8365, %v8369
    %v8374 = vand.u32 2147483647, %v8363
    %vm8375 = vcmp.eq.f32.partialorder %v8374, 8.507059e+37
    %v8376 = vand.u32 %v8363, 2147483648
    %v8377 = vor.u32 1.1754944e-38, %v8376
    %v8378 = vsel %vm8375, %v8377, %v8373
    %v8379 = vmul.f32 1.0, %v8378
    %v8380 = vrcp.pop %v8364
    %v8381 = vmul.f32 %v8364, %v8380
    %v8382 = vsub.f32 1.0, %v8381
    %v8383 = vmul.f32 %v8380, %v8382
    %v8384 = vadd.f32 %v8380, %v8383
    %vm8385 = vweird.f32 %v8364
    %vm8386 = vweird.f32 %v8380
    %vm8387 = vmor %vm8385, %vm8386
    %v8388 = vsel %vm8387, %v8380, %v8384
    %v8389 = vand.u32 2147483647, %v8364
    %vm8390 = vcmp.eq.f32.partialorder %v8389, 8.507059e+37
    %v8391 = vand.u32 %v8364, 2147483648
    %v8392 = vor.u32 1.1754944e-38, %v8391
    %v8393 = vsel %vm8390, %v8392, %v8388
    %v8394 = vmul.f32 1.0, %v8393
    %v8396 = vrot.slane %v8307, 1
    %v8398 = vmul.f32 %v8336, %v8307
    %v8399 = vmul.f32 %v8351, %v8396
    %v8400 = vadd.f32 %v6492, %v8398
    %v8401 = vadd.f32 %v6503, %v8399
    %v8402 = vtanh.pop %v8400
    %v8403 = vtanh.pop %v8401
    %v8404 = vsub.f32 1.0, %v8379
    %v8405 = vsub.f32 1.0, %v8394
    %v8406 = vmul.f32 %v8404, %v8402
    %v8407 = vmul.f32 %v8405, %v8403
    %v8408 = vmul.f32 %v8379, %v8227
    %v8409 = vmul.f32 %v8394, %v8228
    %v8410 = vadd.f32 %v8406, %v8408
    %v8411 = vadd.f32 %v8407, %v8409
    %8414 = vst [vmem:[#allocation1] ss:$9 sm:$0xff] %v8410
    %s8415 = scalar_lea.vmem [#allocation1], 1
    %8416 = vst [vmem:[%s8415] ss:$9 sm:$0xff] %v8411
    %v8417 = vld [vmem:[#allocation1] sm:$0xff]
    %v8418 = vsel %vm3121, %v8417, 0
    %8420 = vmatpush.msra.mxu0 0.0
    %8421 = vmatpush.msra.mxu0 0.0
    %8422 = vmatpush.msra.mxu0 0.0
    %8423 = vmatpush.msra.mxu0 0.0
    %8424 = vmatpush.msra.mxu0 0.0
    %8425 = vmatpush.msra.mxu0 0.0
    %8426 = vmatpush.msra.mxu0 0.0
    %8427 = vmatpush.msra.mxu0 0.0
    %8428 = vmatpush.msra.mxu0 0.0
    %8429 = vmatpush.msra.mxu0 0.0
    %8430 = vmatpush.msra.mxu0 0.0
    %8431 = vmatpush.msra.mxu0 0.0
    %8432 = vmatpush.msra.mxu0 0.0
    %8433 = vmatpush.msra.mxu0 0.0
    %8434 = vmatpush.msra.mxu0 0.0
    %8435 = vmatpush.msra.mxu0 %v6287
    %8436 = vmatmul.f32.gmra.mxu0 %v8418
    %v8437 = vpop.f32.mrf.mxu0
    %v8438 = vadd.f32 %v6531, %v8437
    %8439 = vdwg.mxu0
    %8440 = vst [vmem:[#allocation1] ss:$9 sm:$0xff] %v8410
    %s8441 = scalar_lea.vmem [#allocation1], 1
    %8442 = vst [vmem:[%s8441] ss:$9 sm:$0xff] %v8411
    %v8443 = vld [vmem:[#allocation1] sm:$0xff]
    %v8444 = vsel %vm3121, %v8443, 0
    %8446 = vmatpush.msra.mxu0 0.0
    %8447 = vmatpush.msra.mxu0 0.0
    %8448 = vmatpush.msra.mxu0 0.0
    %8449 = vmatpush.msra.mxu0 0.0
    %8450 = vmatpush.msra.mxu0 0.0
    %8451 = vmatpush.msra.mxu0 0.0
    %8452 = vmatpush.msra.mxu0 0.0
    %8453 = vmatpush.msra.mxu0 0.0
    %8454 = vmatpush.msra.mxu0 0.0
    %8455 = vmatpush.msra.mxu0 0.0
    %8456 = vmatpush.msra.mxu0 0.0
    %8457 = vmatpush.msra.mxu0 0.0
    %8458 = vmatpush.msra.mxu0 0.0
    %8459 = vmatpush.msra.mxu0 0.0
    %8460 = vmatpush.msra.mxu0 0.0
    %8461 = vmatpush.msra.mxu0 %v6288
    %8462 = vmatmul.f32.gmra.mxu0 %v8444
    %v8463 = vpop.f32.mrf.mxu0
    %v8464 = vadd.f32 %v6556, %v8463
    %8465 = vdwg.mxu0
    %8466 = vst [vmem:[#allocation1] ss:$9 sm:$0xff] %v8410
    %s8467 = scalar_lea.vmem [#allocation1], 1
    %8468 = vst [vmem:[%s8467] ss:$9 sm:$0xff] %v8411
    %v8469 = vld [vmem:[#allocation1] sm:$0xff]
    %v8470 = vsel %vm3121, %v8469, 0
    %8472 = vmatpush.msra.mxu0 0.0
    %8473 = vmatpush.msra.mxu0 0.0
    %8474 = vmatpush.msra.mxu0 0.0
    %8475 = vmatpush.msra.mxu0 0.0
    %8476 = vmatpush.msra.mxu0 0.0
    %8477 = vmatpush.msra.mxu0 0.0
    %8478 = vmatpush.msra.mxu0 0.0
    %8479 = vmatpush.msra.mxu0 0.0
    %8480 = vmatpush.msra.mxu0 0.0
    %8481 = vmatpush.msra.mxu0 0.0
    %8482 = vmatpush.msra.mxu0 0.0
    %8483 = vmatpush.msra.mxu0 0.0
    %8484 = vmatpush.msra.mxu0 0.0
    %8485 = vmatpush.msra.mxu0 0.0
    %8486 = vmatpush.msra.mxu0 0.0
    %8487 = vmatpush.msra.mxu0 %v6289
    %8488 = vmatmul.f32.gmra.mxu0 %v8470
    %v8489 = vpop.f32.mrf.mxu0
    %v8490 = vadd.f32 %v6579, %v8489
    %8491 = vdwg.mxu0
    %v8493 = vrot.slane %v8438, 1
    %v8495 = vadd.f32 %v6339, %v8438
    %v8496 = vadd.f32 %v6349, %v8493
    %v8497 = vxor.u32 %v8495, 2147483648
    %v8498 = vxor.u32 %v8496, 2147483648
    %v8499 = vmul.f32 %v8497, 1.442695
    %v8500 = vpow.pop %v8499
    %v8501 = vmul.f32 %v8498, 1.442695
    %v8502 = vpow.pop %v8501
    %v8503 = vadd.f32 %v8500, 1.0
    %v8504 = vadd.f32 %v8502, 1.0
    %v8505 = vrcp.pop %v8503
    %v8506 = vmul.f32 %v8503, %v8505
    %v8507 = vsub.f32 1.0, %v8506
    %v8508 = vmul.f32 %v8505, %v8507
    %v8509 = vadd.f32 %v8505, %v8508
    %vm8510 = vweird.f32 %v8503
    %vm8511 = vweird.f32 %v8505
    %vm8512 = vmor %vm8510, %vm8511
    %v8513 = vsel %vm8512, %v8505, %v8509
    %v8514 = vand.u32 2147483647, %v8503
    %vm8515 = vcmp.eq.f32.partialorder %v8514, 8.507059e+37
    %v8516 = vand.u32 %v8503, 2147483648
    %v8517 = vor.u32 1.1754944e-38, %v8516
    %v8518 = vsel %vm8515, %v8517, %v8513
    %v8519 = vmul.f32 1.0, %v8518
    %v8520 = vrcp.pop %v8504
    %v8521 = vmul.f32 %v8504, %v8520
    %v8522 = vsub.f32 1.0, %v8521
    %v8523 = vmul.f32 %v8520, %v8522
    %v8524 = vadd.f32 %v8520, %v8523
    %vm8525 = vweird.f32 %v8504
    %vm8526 = vweird.f32 %v8520
    %vm8527 = vmor %vm8525, %vm8526
    %v8528 = vsel %vm8527, %v8520, %v8524
    %v8529 = vand.u32 2147483647, %v8504
    %vm8530 = vcmp.eq.f32.partialorder %v8529, 8.507059e+37
    %v8531 = vand.u32 %v8504, 2147483648
    %v8532 = vor.u32 1.1754944e-38, %v8531
    %v8533 = vsel %vm8530, %v8532, %v8528
    %v8534 = vmul.f32 1.0, %v8533
    %v8536 = vrot.slane %v8464, 1
    %v8538 = vadd.f32 %v6417, %v8464
    %v8539 = vadd.f32 %v6427, %v8536
    %v8540 = vxor.u32 %v8538, 2147483648
    %v8541 = vxor.u32 %v8539, 2147483648
    %v8542 = vmul.f32 %v8540, 1.442695
    %v8543 = vpow.pop %v8542
    %v8544 = vmul.f32 %v8541, 1.442695
    %v8545 = vpow.pop %v8544
    %v8546 = vadd.f32 %v8543, 1.0
    %v8547 = vadd.f32 %v8545, 1.0
    %v8548 = vrcp.pop %v8546
    %v8549 = vmul.f32 %v8546, %v8548
    %v8550 = vsub.f32 1.0, %v8549
    %v8551 = vmul.f32 %v8548, %v8550
    %v8552 = vadd.f32 %v8548, %v8551
    %vm8553 = vweird.f32 %v8546
    %vm8554 = vweird.f32 %v8548
    %vm8555 = vmor %vm8553, %vm8554
    %v8556 = vsel %vm8555, %v8548, %v8552
    %v8557 = vand.u32 2147483647, %v8546
    %vm8558 = vcmp.eq.f32.partialorder %v8557, 8.507059e+37
    %v8559 = vand.u32 %v8546, 2147483648
    %v8560 = vor.u32 1.1754944e-38, %v8559
    %v8561 = vsel %vm8558, %v8560, %v8556
    %v8562 = vmul.f32 1.0, %v8561
    %v8563 = vrcp.pop %v8547
    %v8564 = vmul.f32 %v8547, %v8563
    %v8565 = vsub.f32 1.0, %v8564
    %v8566 = vmul.f32 %v8563, %v8565
    %v8567 = vadd.f32 %v8563, %v8566
    %vm8568 = vweird.f32 %v8547
    %vm8569 = vweird.f32 %v8563
    %vm8570 = vmor %vm8568, %vm8569
    %v8571 = vsel %vm8570, %v8563, %v8567
    %v8572 = vand.u32 2147483647, %v8547
    %vm8573 = vcmp.eq.f32.partialorder %v8572, 8.507059e+37
    %v8574 = vand.u32 %v8547, 2147483648
    %v8575 = vor.u32 1.1754944e-38, %v8574
    %v8576 = vsel %vm8573, %v8575, %v8571
    %v8577 = vmul.f32 1.0, %v8576
    %v8579 = vrot.slane %v8490, 1
    %v8581 = vmul.f32 %v8519, %v8490
    %v8582 = vmul.f32 %v8534, %v8579
    %v8583 = vadd.f32 %v6495, %v8581
    %v8584 = vadd.f32 %v6505, %v8582
    %v8585 = vtanh.pop %v8583
    %v8586 = vtanh.pop %v8584
    %v8587 = vsub.f32 1.0, %v8562
    %v8588 = vsub.f32 1.0, %v8577
    %v8589 = vmul.f32 %v8587, %v8585
    %v8590 = vmul.f32 %v8588, %v8586
    %v8591 = vmul.f32 %v8562, %v8410
    %v8592 = vmul.f32 %v8577, %v8411
    %v8593 = vadd.f32 %v8589, %v8591
    %v8594 = vadd.f32 %v8590, %v8592
    %8597 = vst [vmem:[#allocation1] ss:$9 sm:$0xff] %v8593
    %s8598 = scalar_lea.vmem [#allocation1], 1
    %8599 = vst [vmem:[%s8598] ss:$9 sm:$0xff] %v8594
    %v8600 = vld [vmem:[#allocation1] sm:$0xff]
    %v8601 = vsel %vm3121, %v8600, 0
    %8603 = vmatpush.msra.mxu0 0.0
    %8604 = vmatpush.msra.mxu0 0.0
    %8605 = vmatpush.msra.mxu0 0.0
    %8606 = vmatpush.msra.mxu0 0.0
    %8607 = vmatpush.msra.mxu0 0.0
    %8608 = vmatpush.msra.mxu0 0.0
    %8609 = vmatpush.msra.mxu0 0.0
    %8610 = vmatpush.msra.mxu0 0.0
    %8611 = vmatpush.msra.mxu0 0.0
    %8612 = vmatpush.msra.mxu0 0.0
    %8613 = vmatpush.msra.mxu0 0.0
    %8614 = vmatpush.msra.mxu0 0.0
    %8615 = vmatpush.msra.mxu0 0.0
    %8616 = vmatpush.msra.mxu0 0.0
    %8617 = vmatpush.msra.mxu0 0.0
    %8618 = vmatpush.msra.mxu0 %v6529
    %8619 = vmatmul.f32.gmra.mxu0 %v8601
    %v8620 = vpop.f32.mrf.mxu0
    %v8621 = vadd.f32 0.0, %v8620
    %8622 = vdwg.mxu0
    %v8623 = vadd.f32 %v7950, %v8621
    %v8624 = vld [vmem:[%s19] sm:$0xff]
    %v8625 = vld [vmem:[%s19 + $0x8] sm:$0xff]
    %v8626 = vld [vmem:[%s19 + $0x10] sm:$0xff]
    %v8627 = vld [vmem:[%s19 + $0x18] sm:$0xff]
    %8630 = vst [vmem:[#allocation1] ss:$9 sm:$0xff] %v6276
    %s8631 = scalar_lea.vmem [#allocation1], 1
    %8632 = vst [vmem:[%s8631] ss:$9 sm:$0xff] %v6277
    %v8633 = vld [vmem:[#allocation1] sm:$0xff]
    %v8634 = vsel %vm3589, %v8633, 0
    %8636 = vmatpush.msra.mxu0 0.0
    %8637 = vmatpush.msra.mxu0 0.0
    %8638 = vmatpush.msra.mxu0 0.0
    %8639 = vmatpush.msra.mxu0 0.0
    %8640 = vmatpush.msra.mxu0 0.0
    %8641 = vmatpush.msra.mxu0 0.0
    %8642 = vmatpush.msra.mxu0 0.0
    %8643 = vmatpush.msra.mxu0 0.0
    %8644 = vmatpush.msra.mxu0 0.0
    %8645 = vmatpush.msra.mxu0 0.0
    %8646 = vmatpush.msra.mxu0 0.0
    %8647 = vmatpush.msra.mxu0 0.0
    %8648 = vmatpush.msra.mxu0 %v8627
    %8649 = vmatpush.msra.mxu0 %v8626
    %8650 = vmatpush.msra.mxu0 %v8625
    %8651 = vmatpush.msra.mxu0 %v8624
    %8652 = vmatmul.f32.gmra.mxu0 %v8634
    %v8653 = vpop.f32.mrf.mxu0
    %v8654 = vadd.f32 %v8623, %v8653
    %8655 = vdwg.mxu0
    %v8656 = vld [vmem:[%s21] sm:$0x1]
    %v8658 = vperm.slane %v8656, 0
    %v8660 = vadd.f32 %v8654, %v8658
    %v8661 = vld [vmem:[%s22] sm:$0x1]
    %v8663 = vperm.slane %v8661, 0
    %v8665 = vmul.f32 %v3438, %v8663
    %v8666 = vmul.f32 %v3439, %v8663
    %8667 = vadd.xlane.f32.xlu0 %v8665
    %v8668 = vpop.xlane.xlu0 %8667
    %8669 = vadd.xlane.f32.xlu0 %v8666
    %v8670 = vpop.xlane.xlu0 %8669
    %s8671 = sld [smem:[#allocation21]]
    %v8672 = vstv %s8671
    %v8673 = vmul.f32 %v8672, %v3441
    %v8674 = vmul.f32 %v8672, %v3443
    %v8675 = vadd.f32 %v8673, 0.0
    %v8676 = vadd.f32 %v8674, 0.0
    %s8677 = sld [smem:[#allocation21 + $0x1]]
    %v8678 = vstv %s8677
    %v8679 = vmul.f32 %v8678, %v3441
    %v8680 = vmul.f32 %v8678, %v3443
    %v8683 = vrot.slane %v8679, 1
    %v8684 = vrot.slane %v8680, 1
    %v8687 = vadd.f32 %v8675, %v8683
    %v8688 = vadd.f32 %v8676, %v8684
    %s8689 = sld [smem:[#allocation21 + $0x2]]
    %v8690 = vstv %s8689
    %v8691 = vmul.f32 %v8690, %v3441
    %v8692 = vmul.f32 %v8690, %v3443
    %v8695 = vrot.slane %v8691, 2
    %v8696 = vrot.slane %v8692, 2
    %v8699 = vadd.f32 %v8687, %v8695
    %v8700 = vadd.f32 %v8688, %v8696
    %s8701 = sld [smem:[#allocation21 + $0x3]]
    %v8702 = vstv %s8701
    %v8703 = vmul.f32 %v8702, %v3441
    %v8704 = vmul.f32 %v8702, %v3443
    %v8707 = vrot.slane %v8703, 3
    %v8708 = vrot.slane %v8704, 3
    %v8711 = vadd.f32 %v8699, %v8707
    %v8712 = vadd.f32 %v8700, %v8708
    %v8715 = vperm.slane %v8711, 4
    %v8716 = vlaneseq
    %v8717 = vshrl.u32 %v8716, 7
    %8719 = vset.pattern.permute.xlu0 %v8717
    %8720 = vperm.xlu0 %8719, %v8715
    %v8721 = vpop.permute.xlu0 %8720
    %v8722 = vperm.slane %v8712, 4
    %v8723 = vlaneseq
    %v8724 = vshrl.u32 %v8723, 7
    %8726 = vset.pattern.permute.xlu0 %v8724
    %8727 = vperm.xlu0 %8726, %v8722
    %v8728 = vpop.permute.xlu0 %8727
    %v8731 = vadd.f32 %v8668, %v8721
    %v8732 = vadd.f32 %v8670, %v8728
    %s8733 = sld [smem:[#allocation4]]
    %v8734 = vstv %s8733
    %v8735 = vadd.f32 %v8731, %v8734
    %v8736 = vadd.f32 %v8732, %v8734
    %8739 = vset.pattern.permute.xlu0 0
    %8740 = vperm.xlu0 %8739, %v8735
    %v8741 = vpop.permute.xlu0 %8740
    %8742 = vset.pattern.permute.xlu0 0
    %8743 = vperm.xlu0 %8742, %v8736
    %v8744 = vpop.permute.xlu0 %8743
    %v8745 = vlaneseq
    %v8746 = vand.u32 %v8745, 127
    %v8747 = vperm.slane %v8741, %v8746
    %v8748 = vperm.slane %v8744, %v8746
    %v8749 = vsel %vm717, %v8748, %v8747
    %v8751 = vadd.f32 %v8660, %v8749
    %v8752 = vxor.u32 %v8751, 2147483648
    %v8753 = vmul.f32 %v8752, 1.442695
    %v8754 = vpow.pop %v8753
    %v8755 = vadd.f32 %v8754, 1.0
    %v8756 = vrcp.pop %v8755
    %v8757 = vmul.f32 %v8755, %v8756
    %v8758 = vsub.f32 1.0, %v8757
    %v8759 = vmul.f32 %v8756, %v8758
    %v8760 = vadd.f32 %v8756, %v8759
    %vm8761 = vweird.f32 %v8755
    %vm8762 = vweird.f32 %v8756
    %vm8763 = vmor %vm8761, %vm8762
    %v8764 = vsel %vm8763, %v8756, %v8760
    %v8765 = vand.u32 2147483647, %v8755
    %vm8766 = vcmp.eq.f32.partialorder %v8765, 8.507059e+37
    %v8767 = vand.u32 %v8755, 2147483648
    %v8768 = vor.u32 1.1754944e-38, %v8767
    %v8769 = vsel %vm8766, %v8768, %v8764
    %v8770 = vmul.f32 1.0, %v8769
    %vm8771 = vcmask 58368
    %8772 = vst.msk [vmem:[#allocation22] sm:$0x3] %vm8771, %v8770
    // Predicated region
    $region146: #{lstnet_forward.1} parent=1 // pred_check
      _
    $region147: #{lstnet_forward.1} parent=1 // pred_check_branch
      %8774 = sbr.rel (0) target = $region149
    $region148: #{lstnet_forward.1} parent=1 // pred_region
      %8776 = vsyncadd [#allocation7], 0
      %s8778 = sshll.u32 [#allocation22], 4
      %s8779 = int_to_ptr.vmem [resolvable:$true] %s8778
      %s8780 = sshll.u32 %s26, 4
      %s8781 = int_to_ptr.hbm [resolvable:$true] %s8780
      %8783 = dma.vmem_to_hbm [thread:$0]  %s8779, 32, %s8781, [#allocation7]
    $region149: #{lstnet_forward.1} parent=1 // pred_fallthru
      _
    // Predicated region
    $region150: #{lstnet_forward.1} parent=1 // pred_check
      _
    $region151: #{lstnet_forward.1} parent=1 // pred_check_branch
      %8785 = sbr.rel (0) target = $region153
    $region152: #{lstnet_forward.1} parent=1 // pred_region
      %8787 = dma.done [#allocation7], 32
    $region153: #{lstnet_forward.1} parent=1 // pred_fallthru
      _
    %8788 = vsyncpa [#allocation6], 1
    %8789 = vsyncpa [#allocation10], 1
    %8790 = vsyncpa [#allocation13], 1
    %8791 = vsyncpa [#allocation16], 1
    %8792 = vsyncpa [#allocation19], 1
    %8793 = vsyncpa [#allocation7], 1
    %8794 = vsyncpa [#allocation8], 1

</llo_original>
